<compile_context>
chip_gen: v7x
topology: tpu7x:2x2x1
jax: 0.10.0
libtpu: 0.0.40
codegen_flags: <defaults>
</compile_context>

<pallas_src>
import functools

import jax
import jax.numpy as jnp
from jax import lax
from jax.experimental import pallas as pl
from jax.experimental.pallas import tpu as pltpu

# VGG19 cfg 'E'. The trailing 'M' (and the last conv's BN+ReLU) are dropped by [:-3].
_CFG = [64, 64, "M", 128, 128, "M", 256, 256, 256, 256, "M",
        512, 512, 512, 512, "M", 512, 512, 512, 512]


# ------------------------------------------------------------------ VMEM / tile sizing
def _vmem_config():
    cap = 64 * 1024 * 1024
    try:
        cap = int(getattr(pltpu.get_tpu_info(), "vmem_capacity_bytes", cap))
    except Exception:
        pass
    vmem_limit = max(min(int(cap * 0.8), 100 * 1024 * 1024), 32 * 1024 * 1024)
    vmem_budget = int(vmem_limit * 0.5)          # headroom for double-buffered pipelines
    return vmem_limit, vmem_budget


def _estimate_vmem_bytes(th, w, cin, cout, pool, use_im2col):
    bf, f32 = 2, 4
    tho = th // 2 if pool else th
    wo = w // 2 if pool else w
    tiles_in = 2 * (th * w * cin * bf) + 4 * (w * cin * bf)   # main + 2 halo rows, 2x buffered
    tiles_out = 2 * (tho * wo * cout * bf)
    weights = 2 * (9 * cin * cout * bf) + 4 * (cout * f32)
    xbuf = (th + 2) * (w + 2) * cin * bf
    if use_im2col:
        work = th * w * 9 * cin * bf + 2 * th * w * cout * f32
    else:
        work = 3 * th * w * cout * f32
    return tiles_in + tiles_out + weights + xbuf + work


def _pick_th(h, w, cin, cout, pool, use_im2col, budget):
    cands = [th for th in range(h, 0, -1)
             if h % th == 0 and (not pool or th % 2 == 0)]
    if not cands:
        return h
    for th in cands:                              # biggest tile that fits the budget
        if _estimate_vmem_bytes(th, w, cin, cout, pool, use_im2col) <= budget:
            return th
    return cands[-1]


# --------------------------------------------------------------------------- kernel
def _conv_kernel(xm_ref, xt_ref, xb_ref, w_ref, s_ref, b_ref, o_ref, xbuf, *acc_scratch,
                 TH, W, Cin, Cout, use_im2col, relu, pool):
    # xm_ref: (1, TH, W, Cin)  main rows of this tile
    # xt_ref: (1, 1, W, Cin)   row above the tile (clamped; zeroed when t == 0)
    # xb_ref: (1, 1, W, Cin)   row below the tile (clamped; zeroed when t == last)
    # w_ref:  (9*Cin, Cout) bf16 (im2col) or (9, Cin, Cout) bf16 (per-tap)
    # s_ref/b_ref: (1, Cout) f32 folded BN scale / bias
    # o_ref:  (1, TH, W, Cout) or (1, TH//2, W//2, Cout) when the 2x2 maxpool is fused
    # xbuf:   VMEM scratch (TH+2, W+2, Cin) bf16 -- zero-padded window (in-kernel halo)
    t = pl.program_id(1)
    nt = pl.num_programs(1)

    zero_col = jnp.zeros((TH + 2, 1, Cin), xbuf.dtype)
    xbuf[:, 0:1, :] = zero_col                       # left / right zero padding (W halo)
    xbuf[:, W + 1:W + 2, :] = zero_col
    xbuf[1:TH + 1, 1:W + 1, :] = xm_ref[0]           # main rows

    @pl.when(t == 0)                                 # top halo row
    def _():
        xbuf[0:1, 1:W + 1, :] = jnp.zeros((1, W, Cin), xbuf.dtype)

    @pl.when(t > 0)
    def _():
        xbuf[0:1, 1:W + 1, :] = xt_ref[0]

    @pl.when(t == nt - 1)                            # bottom halo row
    def _():
        xbuf[TH + 1:TH + 2, 1:W + 1, :] = jnp.zeros((1, W, Cin), xbuf.dtype)

    @pl.when(t < nt - 1)
    def _():
        xbuf[TH + 1:TH + 2, 1:W + 1, :] = xb_ref[0]

    if use_im2col:
        # One big matmul: (TH*W, 9*Cin) x (9*Cin, Cout) -> better MXU K-utilization
        taps = [xbuf[dy:dy + TH, dx:dx + W, :].reshape(TH * W, Cin)
                for dy in range(3) for dx in range(3)]
        slab = jnp.concatenate(taps, axis=1)
        y = jnp.dot(slab, w_ref[...], preferred_element_type=jnp.float32)
    else:
        # Deep layers: 9 taps accumulated into an f32 VMEM scratch accumulator
        acc = acc_scratch[0]
        for k in range(9):
            dy, dx = divmod(k, 3)
            xs = xbuf[dy:dy + TH, dx:dx + W, :].reshape(TH * W, Cin)
            p = jnp.dot(xs, w_ref[k], preferred_element_type=jnp.float32)
            if k == 0:
                acc[...] = p
            else:
                acc[...] += p
        y = acc[...]

    y = y * s_ref[...] + b_ref[...]                  # folded BN (f32 epilogue)
    if relu:
        y = jnp.maximum(y, 0.0)
    y = y.reshape(TH, W, Cout)
    if pool:                                         # fused 2x2 maxpool while in VMEM
        y = y.reshape(TH // 2, 2, W, Cout)
        y = jnp.maximum(y[:, 0, :, :], y[:, 1, :, :])
        y = y.reshape(TH // 2, W // 2, 2, Cout)
        y = jnp.maximum(y[:, :, 0, :], y[:, :, 1, :])
    o_ref[0] = y.astype(o_ref.dtype)


def conv3x3_bn_relu_pool(x, w9, scale, bias, *, relu, pool, vmem_limit, vmem_budget):
    # x: (N, H, W, Cin) bf16 NHWC -> (N, H[/2], W[/2], Cout) bf16
    N, H, W, Cin = x.shape
    Cout = w9.shape[-1]
    if pool:
        assert H % 2 == 0 and W % 2 == 0
    use_im2col = 8 <= Cin <= 128                    # Cin=3 and Cin>=256 keep per-tap matmuls
    TH = _pick_th(H, W, Cin, Cout, pool, use_im2col, vmem_budget)
    THo, Ho, Wo = (TH // 2, H // 2, W // 2) if pool else (TH, H, W)

    w_arg = w9.reshape(9 * Cin, Cout) if use_im2col else w9
    w_map = (lambda n, t: (0, 0)) if use_im2col else (lambda n, t: (0, 0, 0))

    in_specs = [
        pl.BlockSpec((1, TH, W, Cin), lambda n, t: (n, t, 0, 0)),
        pl.BlockSpec((1, 1, W, Cin),
                     lambda n, t: (n, jnp.maximum(t * TH - 1, 0), 0, 0)),
        pl.BlockSpec((1, 1, W, Cin),
                     lambda n, t: (n, jnp.minimum(t * TH + TH, H - 1), 0, 0)),
        pl.BlockSpec(w_arg.shape, w_map),
        pl.BlockSpec((1, Cout), lambda n, t: (0, 0)),
        pl.BlockSpec((1, Cout), lambda n, t: (0, 0)),
    ]
    scratch = [pltpu.VMEM((TH + 2, W + 2, Cin), jnp.bfloat16)]
    if not use_im2col:
        scratch.append(pltpu.VMEM((TH * W, Cout), jnp.float32))

    kernel = functools.partial(_conv_kernel, TH=TH, W=W, Cin=Cin, Cout=Cout,
                               use_im2col=use_im2col, relu=relu, pool=pool)
    return pl.pallas_call(
        kernel,
        out_shape=jax.ShapeDtypeStruct((N, Ho, Wo, Cout), jnp.bfloat16),
        grid=(N, H // TH),
        in_specs=in_specs,
        out_specs=pl.BlockSpec((1, THo, Wo, Cout), lambda n, t: (n, t, 0, 0)),
        scratch_shapes=scratch,
        compiler_params=pltpu.CompilerParams(
            dimension_semantics=("parallel", "parallel"),
            vmem_limit_bytes=vmem_limit,
        ),
    )(x, x, x, w_arg, scale, bias)


# --------------------------------------------------------------------- params / glue
def init_vgg_params(key):
    """Deterministic synthetic VGG19-BN params (conv bias + eval-mode BN folded)."""
    # Attach each MaxPool to the preceding conv (it is fused into that conv's epilogue).
    specs = []
    for v in _CFG:
        if v == "M":
            specs[-1] = (specs[-1][0], True)
        else:
            specs.append((v, False))
    layers = []
    cin = 3
    for k, (cout, pool_after) in enumerate(specs):
        is_last = k == len(specs) - 1            # features[:-3] drops the last conv's BN+ReLU
        key, kw, kb, kg, kbe, km, kv = jax.random.split(key, 7)
        gain = (2.0 / (9.0 * cin)) ** 0.5
        w = gain * jax.random.normal(kw, (9, cin, cout), jnp.float32)
        b = 0.05 * jax.random.normal(kb, (cout,), jnp.float32)
        if not is_last:
            gamma = 1.0 + 0.1 * jax.random.normal(kg, (cout,), jnp.float32)
            beta = 0.1 * jax.random.normal(kbe, (cout,), jnp.float32)
            mean = 0.1 * jax.random.normal(km, (cout,), jnp.float32)
            var = 1.0 + 0.5 * jax.random.uniform(kv, (cout,), jnp.float32)
            scale = gamma / jnp.sqrt(var + 1e-5)
            bias = (b - mean) * scale + beta
            relu = True
        else:
            scale = jnp.ones((cout,), jnp.float32)
            bias = b
            relu = False
        layers.append(dict(w=w.astype(jnp.bfloat16),
                           scale=scale.reshape(1, cout),
                           bias=bias.reshape(1, cout),
                           relu=relu, pool=pool_after))
        cin = cout
    return layers


def vgg_loss_forward(x_nchw, layers):
    """Pallas implementation of VGGLoss.forward (NCHW in, NCHW out, like PyTorch)."""
    vmem_limit, vmem_budget = _vmem_config()
    x = jnp.transpose(x_nchw, (0, 2, 3, 1)).astype(jnp.bfloat16)   # NHWC bf16
    for lyr in layers:
        x = conv3x3_bn_relu_pool(x, lyr["w"], lyr["scale"], lyr["bias"],
                                 relu=lyr["relu"], pool=lyr["pool"],
                                 vmem_limit=vmem_limit, vmem_budget=vmem_budget)
    return jnp.transpose(x, (0, 3, 1, 2)).astype(jnp.float32)      # back to NCHW


def vgg_loss_reference(x_nchw, layers):
    """Pure-JAX/XLA reference (same bf16 storage, f32 accumulation) for correctness."""
    x = jnp.transpose(x_nchw, (0, 2, 3, 1)).astype(jnp.bfloat16)
    for lyr in layers:
        w = lyr["w"]
        cin, cout = w.shape[1], w.shape[2]
        w_hwio = w.reshape(3, 3, cin, cout)
        y = lax.conv_general_dilated(
            x, w_hwio, window_strides=(1, 1), padding="SAME",
            dimension_numbers=("NHWC", "HWIO", "NHWC"),
            preferred_element_type=jnp.float32)
        y = y * lyr["scale"][0] + lyr["bias"][0]
        if lyr["relu"]:
            y = jnp.maximum(y, 0.0)
        y = y.astype(jnp.bfloat16)
        if lyr["pool"]:
            n_, h_, w_, c_ = y.shape
            y = y.reshape(n_, h_ // 2, 2, w_ // 2, 2, c_).max(axis=(2, 4))
        x = y
    return jnp.transpose(x, (0, 3, 1, 2)).astype(jnp.float32)


if __name__ == "__main__":
    key = jax.random.PRNGKey(0)
    key, kx = jax.random.split(key)
    x = jax.random.normal(kx, (2, 3, 16, 16), jnp.float32)         # NCHW like PyTorch

    layers = init_vgg_params(key)

    out = vgg_loss_forward(x, layers)
    out = jax.block_until_ready(out)

    ref = vgg_loss_reference(x, layers)
    ref = jax.block_until_ready(ref)

    assert out.shape == ref.shape == (2, 512, 1, 1), out.shape
    err = float(jnp.max(jnp.abs(out - ref)) / (jnp.max(jnp.abs(ref)) + 1e-8))
    assert err < 2e-2, f"mismatch vs reference: {err}"
    print("KERNEL_OK")
</pallas_src>

<mosaic_0001>
module attributes {stable_mosaic.version = 11 : i64} {
  func.func @_conv_kernel(%arg0: i32, %arg1: i32, %arg2: memref<1x16x16x3xbf16, #tpu.memory_space<vmem>>, %arg3: memref<1x1x16x3xbf16, #tpu.memory_space<vmem>>, %arg4: memref<1x1x16x3xbf16, #tpu.memory_space<vmem>>, %arg5: memref<9x3x64xbf16, #tpu.memory_space<vmem>>, %arg6: memref<1x64xf32, #tpu.memory_space<vmem>>, %arg7: memref<1x64xf32, #tpu.memory_space<vmem>>, %arg8: memref<1x16x16x64xbf16, #tpu.memory_space<vmem>>, %arg9: memref<18x18x3xbf16, #tpu.memory_space<vmem>>, %arg10: memref<256x64xf32, #tpu.memory_space<vmem>>) attributes {dimension_semantics = [#tpu.dimension_semantics<parallel>, #tpu.dimension_semantics<parallel>], iteration_bounds = array<i64: 2, 1>, scalar_prefetch = 0 : i64, scratch_operands = 2 : i64, tpu.core_type = #tpu.core_type<tc>, window_params = [{transform_indices = @transform_0, window_bounds = array<i64: 1, 16, 16, 3>}, {transform_indices = @transform_1, window_bounds = array<i64: 1, 1, 16, 3>}, {transform_indices = @transform_2, window_bounds = array<i64: 1, 1, 16, 3>}, {pipeline_mode = #tpu.pipeline_mode<synchronous>, transform_indices = @transform_3, window_bounds = array<i64: 9, 3, 64>}, {pipeline_mode = #tpu.pipeline_mode<synchronous>, transform_indices = @transform_4, window_bounds = array<i64: 1, 64>}, {pipeline_mode = #tpu.pipeline_mode<synchronous>, transform_indices = @transform_5, window_bounds = array<i64: 1, 64>}, {transform_indices = @transform_6, window_bounds = array<i64: 1, 16, 16, 64>}]} {
    %cst = arith.constant 0.000000e+00 : bf16
    %0 = vector.broadcast %cst : bf16 to vector<18x1x3xbf16>
    %c0 = arith.constant 0 : index
    %c0_0 = arith.constant 0 : index
    %c0_1 = arith.constant 0 : index
    %1 = vector.load %arg9[%c0, %c0_0, %c0_1] : memref<18x18x3xbf16, #tpu.memory_space<vmem>>, vector<18x1x3xbf16>
    tpu.vector_store %arg9[%c0, %c0_0, %c0_1], %0 {strides = array<i32>} : memref<18x18x3xbf16, #tpu.memory_space<vmem>>, vector<18x1x3xbf16>,
    %c0_2 = arith.constant 0 : index
    %c17 = arith.constant 17 : index
    %c0_3 = arith.constant 0 : index
    %2 = vector.load %arg9[%c0_2, %c17, %c0_3] : memref<18x18x3xbf16, #tpu.memory_space<vmem>>, vector<18x1x3xbf16>
    tpu.vector_store %arg9[%c0_2, %c17, %c0_3], %0 {strides = array<i32>} : memref<18x18x3xbf16, #tpu.memory_space<vmem>>, vector<18x1x3xbf16>,
    %c0_4 = arith.constant 0 : index
    %c0_5 = arith.constant 0 : index
    %c0_6 = arith.constant 0 : index
    %c0_7 = arith.constant 0 : index
    %3 = vector.load %arg2[%c0_4, %c0_5, %c0_6, %c0_7] : memref<1x16x16x3xbf16, #tpu.memory_space<vmem>>, vector<1x16x16x3xbf16>
    %4 = vector.shape_cast %3 : vector<1x16x16x3xbf16> to vector<16x16x3xbf16>
    %c1 = arith.constant 1 : index
    %c1_8 = arith.constant 1 : index
    %c0_9 = arith.constant 0 : index
    %5 = vector.load %arg9[%c1, %c1_8, %c0_9] : memref<18x18x3xbf16, #tpu.memory_space<vmem>>, vector<16x16x3xbf16>
    tpu.vector_store %arg9[%c1, %c1_8, %c0_9], %4 {strides = array<i32>} : memref<18x18x3xbf16, #tpu.memory_space<vmem>>, vector<16x16x3xbf16>,
    %c0_i32 = arith.constant 0 : i32
    %6 = arith.cmpi eq, %arg1, %c0_i32 : i32
    %7 = arith.extui %6 : i1 to i32
    %c0_i32_10 = arith.constant 0 : i32
    %8 = arith.cmpi ne, %7, %c0_i32_10 : i32
    scf.if %8 {
      %cst_118 = arith.constant 0.000000e+00 : bf16
      %102 = vector.broadcast %cst_118 : bf16 to vector<1x16x3xbf16>
      %c0_119 = arith.constant 0 : index
      %c1_120 = arith.constant 1 : index
      %c0_121 = arith.constant 0 : index
      %103 = vector.load %arg9[%c0_119, %c1_120, %c0_121] : memref<18x18x3xbf16, #tpu.memory_space<vmem>>, vector<1x16x3xbf16>
      tpu.vector_store %arg9[%c0_119, %c1_120, %c0_121], %102 {strides = array<i32>} : memref<18x18x3xbf16, #tpu.memory_space<vmem>>, vector<1x16x3xbf16>,
    } else {
    }
    %c0_i32_11 = arith.constant 0 : i32
    %9 = arith.cmpi sgt, %arg1, %c0_i32_11 : i32
    %10 = arith.extui %9 : i1 to i32
    %c0_i32_12 = arith.constant 0 : i32
    %11 = arith.cmpi ne, %10, %c0_i32_12 : i32
    scf.if %11 {
      %c0_118 = arith.constant 0 : index
      %c0_119 = arith.constant 0 : index
      %c0_120 = arith.constant 0 : index
      %c0_121 = arith.constant 0 : index
      %102 = vector.load %arg3[%c0_118, %c0_119, %c0_120, %c0_121] : memref<1x1x16x3xbf16, #tpu.memory_space<vmem>>, vector<1x1x16x3xbf16>
      %103 = vector.shape_cast %102 : vector<1x1x16x3xbf16> to vector<1x16x3xbf16>
      %c0_122 = arith.constant 0 : index
      %c1_123 = arith.constant 1 : index
      %c0_124 = arith.constant 0 : index
      %104 = vector.load %arg9[%c0_122, %c1_123, %c0_124] : memref<18x18x3xbf16, #tpu.memory_space<vmem>>, vector<1x16x3xbf16>
      tpu.vector_store %arg9[%c0_122, %c1_123, %c0_124], %103 {strides = array<i32>} : memref<18x18x3xbf16, #tpu.memory_space<vmem>>, vector<1x16x3xbf16>,
    } else {
    }
    %c0_i32_13 = arith.constant 0 : i32
    %12 = arith.cmpi eq, %arg1, %c0_i32_13 : i32
    %13 = arith.extui %12 : i1 to i32
    %c0_i32_14 = arith.constant 0 : i32
    %14 = arith.cmpi ne, %13, %c0_i32_14 : i32
    scf.if %14 {
      %cst_118 = arith.constant 0.000000e+00 : bf16
      %102 = vector.broadcast %cst_118 : bf16 to vector<1x16x3xbf16>
      %c17_119 = arith.constant 17 : index
      %c1_120 = arith.constant 1 : index
      %c0_121 = arith.constant 0 : index
      %103 = vector.load %arg9[%c17_119, %c1_120, %c0_121] : memref<18x18x3xbf16, #tpu.memory_space<vmem>>, vector<1x16x3xbf16>
      tpu.vector_store %arg9[%c17_119, %c1_120, %c0_121], %102 {strides = array<i32>} : memref<18x18x3xbf16, #tpu.memory_space<vmem>>, vector<1x16x3xbf16>,
    } else {
    }
    %c0_i32_15 = arith.constant 0 : i32
    %15 = arith.cmpi slt, %arg1, %c0_i32_15 : i32
    %16 = arith.extui %15 : i1 to i32
    %c0_i32_16 = arith.constant 0 : i32
    %17 = arith.cmpi ne, %16, %c0_i32_16 : i32
    scf.if %17 {
      %c0_118 = arith.constant 0 : index
      %c0_119 = arith.constant 0 : index
      %c0_120 = arith.constant 0 : index
      %c0_121 = arith.constant 0 : index
      %102 = vector.load %arg4[%c0_118, %c0_119, %c0_120, %c0_121] : memref<1x1x16x3xbf16, #tpu.memory_space<vmem>>, vector<1x1x16x3xbf16>
      %103 = vector.shape_cast %102 : vector<1x1x16x3xbf16> to vector<1x16x3xbf16>
      %c17_122 = arith.constant 17 : index
      %c1_123 = arith.constant 1 : index
      %c0_124 = arith.constant 0 : index
      %104 = vector.load %arg9[%c17_122, %c1_123, %c0_124] : memref<18x18x3xbf16, #tpu.memory_space<vmem>>, vector<1x16x3xbf16>
      tpu.vector_store %arg9[%c17_122, %c1_123, %c0_124], %103 {strides = array<i32>} : memref<18x18x3xbf16, #tpu.memory_space<vmem>>, vector<1x16x3xbf16>,
    } else {
    }
    %c0_17 = arith.constant 0 : index
    %c0_18 = arith.constant 0 : index
    %c0_19 = arith.constant 0 : index
    %18 = vector.load %arg9[%c0_17, %c0_18, %c0_19] : memref<18x18x3xbf16, #tpu.memory_space<vmem>>, vector<16x16x3xbf16>
    %19 = vector.shape_cast %18 : vector<16x16x3xbf16> to vector<256x3xbf16>
    %c0_20 = arith.constant 0 : index
    %c0_21 = arith.constant 0 : index
    %c0_22 = arith.constant 0 : index
    %20 = vector.load %arg5[%c0_20, %c0_21, %c0_22] : memref<9x3x64xbf16, #tpu.memory_space<vmem>>, vector<1x3x64xbf16>
    %21 = vector.shape_cast %20 : vector<1x3x64xbf16> to vector<3x64xbf16>
    %cst_23 = arith.constant dense<0.000000e+00> : vector<256x64xf32>
    %22 = tpu.matmul %19, %21, %cst_23 {dimension_numbers = #tpu.dot_dimension_numbers<[1], [0], [0], [1], [0, 0, 1, 1], [], []>} : vector<256x3xbf16>, vector<3x64xbf16>, vector<256x64xf32> -> vector<256x64xf32>
    %c0_24 = arith.constant 0 : index
    %c0_25 = arith.constant 0 : index
    %23 = vector.load %arg10[%c0_24, %c0_25] : memref<256x64xf32, #tpu.memory_space<vmem>>, vector<256x64xf32>
    tpu.vector_store %arg10[%c0_24, %c0_25], %22 {strides = array<i32>} : memref<256x64xf32, #tpu.memory_space<vmem>>, vector<256x64xf32>,
    %c0_26 = arith.constant 0 : index
    %c1_27 = arith.constant 1 : index
    %c0_28 = arith.constant 0 : index
    %24 = vector.load %arg9[%c0_26, %c1_27, %c0_28] : memref<18x18x3xbf16, #tpu.memory_space<vmem>>, vector<16x16x3xbf16>
    %25 = vector.shape_cast %24 : vector<16x16x3xbf16> to vector<256x3xbf16>
    %c1_29 = arith.constant 1 : index
    %c0_30 = arith.constant 0 : index
    %c0_31 = arith.constant 0 : index
    %26 = vector.load %arg5[%c1_29, %c0_30, %c0_31] : memref<9x3x64xbf16, #tpu.memory_space<vmem>>, vector<1x3x64xbf16>
    %27 = vector.shape_cast %26 : vector<1x3x64xbf16> to vector<3x64xbf16>
    %cst_32 = arith.constant dense<0.000000e+00> : vector<256x64xf32>
    %28 = tpu.matmul %25, %27, %cst_32 {dimension_numbers = #tpu.dot_dimension_numbers<[1], [0], [0], [1], [0, 0, 1, 1], [], []>} : vector<256x3xbf16>, vector<3x64xbf16>, vector<256x64xf32> -> vector<256x64xf32>
    %c0_33 = arith.constant 0 : index
    %c0_34 = arith.constant 0 : index
    %29 = vector.load %arg10[%c0_33, %c0_34] : memref<256x64xf32, #tpu.memory_space<vmem>>, vector<256x64xf32>
    %30 = arith.addf %29, %28 : vector<256x64xf32>
    %c0_35 = arith.constant 0 : index
    %c0_36 = arith.constant 0 : index
    %31 = vector.load %arg10[%c0_35, %c0_36] : memref<256x64xf32, #tpu.memory_space<vmem>>, vector<256x64xf32>
    tpu.vector_store %arg10[%c0_35, %c0_36], %30 {strides = array<i32>} : memref<256x64xf32, #tpu.memory_space<vmem>>, vector<256x64xf32>,
    %c0_37 = arith.constant 0 : index
    %c2 = arith.constant 2 : index
    %c0_38 = arith.constant 0 : index
    %32 = vector.load %arg9[%c0_37, %c2, %c0_38] : memref<18x18x3xbf16, #tpu.memory_space<vmem>>, vector<16x16x3xbf16>
    %33 = vector.shape_cast %32 : vector<16x16x3xbf16> to vector<256x3xbf16>
    %c2_39 = arith.constant 2 : index
    %c0_40 = arith.constant 0 : index
    %c0_41 = arith.constant 0 : index
    %34 = vector.load %arg5[%c2_39, %c0_40, %c0_41] : memref<9x3x64xbf16, #tpu.memory_space<vmem>>, vector<1x3x64xbf16>
    %35 = vector.shape_cast %34 : vector<1x3x64xbf16> to vector<3x64xbf16>
    %cst_42 = arith.constant dense<0.000000e+00> : vector<256x64xf32>
    %36 = tpu.matmul %33, %35, %cst_42 {dimension_numbers = #tpu.dot_dimension_numbers<[1], [0], [0], [1], [0, 0, 1, 1], [], []>} : vector<256x3xbf16>, vector<3x64xbf16>, vector<256x64xf32> -> vector<256x64xf32>
    %c0_43 = arith.constant 0 : index
    %c0_44 = arith.constant 0 : index
    %37 = vector.load %arg10[%c0_43, %c0_44] : memref<256x64xf32, #tpu.memory_space<vmem>>, vector<256x64xf32>
    %38 = arith.addf %37, %36 : vector<256x64xf32>
    %c0_45 = arith.constant 0 : index
    %c0_46 = arith.constant 0 : index
    %39 = vector.load %arg10[%c0_45, %c0_46] : memref<256x64xf32, #tpu.memory_space<vmem>>, vector<256x64xf32>
    tpu.vector_store %arg10[%c0_45, %c0_46], %38 {strides = array<i32>} : memref<256x64xf32, #tpu.memory_space<vmem>>, vector<256x64xf32>,
    %c1_47 = arith.constant 1 : index
    %c0_48 = arith.constant 0 : index
    %c0_49 = arith.constant 0 : index
    %40 = vector.load %arg9[%c1_47, %c0_48, %c0_49] : memref<18x18x3xbf16, #tpu.memory_space<vmem>>, vector<16x16x3xbf16>
    %41 = vector.shape_cast %40 : vector<16x16x3xbf16> to vector<256x3xbf16>
    %c3 = arith.constant 3 : index
    %c0_50 = arith.constant 0 : index
    %c0_51 = arith.constant 0 : index
    %42 = vector.load %arg5[%c3, %c0_50, %c0_51] : memref<9x3x64xbf16, #tpu.memory_space<vmem>>, vector<1x3x64xbf16>
    %43 = vector.shape_cast %42 : vector<1x3x64xbf16> to vector<3x64xbf16>
    %cst_52 = arith.constant dense<0.000000e+00> : vector<256x64xf32>
    %44 = tpu.matmul %41, %43, %cst_52 {dimension_numbers = #tpu.dot_dimension_numbers<[1], [0], [0], [1], [0, 0, 1, 1], [], []>} : vector<256x3xbf16>, vector<3x64xbf16>, vector<256x64xf32> -> vector<256x64xf32>
    %c0_53 = arith.constant 0 : index
    %c0_54 = arith.constant 0 : index
    %45 = vector.load %arg10[%c0_53, %c0_54] : memref<256x64xf32, #tpu.memory_space<vmem>>, vector<256x64xf32>
    %46 = arith.addf %45, %44 : vector<256x64xf32>
    %c0_55 = arith.constant 0 : index
    %c0_56 = arith.constant 0 : index
    %47 = vector.load %arg10[%c0_55, %c0_56] : memref<256x64xf32, #tpu.memory_space<vmem>>, vector<256x64xf32>
    tpu.vector_store %arg10[%c0_55, %c0_56], %46 {strides = array<i32>} : memref<256x64xf32, #tpu.memory_space<vmem>>, vector<256x64xf32>,
    %c1_57 = arith.constant 1 : index
    %c1_58 = arith.constant 1 : index
    %c0_59 = arith.constant 0 : index
    %48 = vector.load %arg9[%c1_57, %c1_58, %c0_59] : memref<18x18x3xbf16, #tpu.memory_space<vmem>>, vector<16x16x3xbf16>
    %49 = vector.shape_cast %48 : vector<16x16x3xbf16> to vector<256x3xbf16>
    %c4 = arith.constant 4 : index
    %c0_60 = arith.constant 0 : index
    %c0_61 = arith.constant 0 : index
    %50 = vector.load %arg5[%c4, %c0_60, %c0_61] : memref<9x3x64xbf16, #tpu.memory_space<vmem>>, vector<1x3x64xbf16>
    %51 = vector.shape_cast %50 : vector<1x3x64xbf16> to vector<3x64xbf16>
    %cst_62 = arith.constant dense<0.000000e+00> : vector<256x64xf32>
    %52 = tpu.matmul %49, %51, %cst_62 {dimension_numbers = #tpu.dot_dimension_numbers<[1], [0], [0], [1], [0, 0, 1, 1], [], []>} : vector<256x3xbf16>, vector<3x64xbf16>, vector<256x64xf32> -> vector<256x64xf32>
    %c0_63 = arith.constant 0 : index
    %c0_64 = arith.constant 0 : index
    %53 = vector.load %arg10[%c0_63, %c0_64] : memref<256x64xf32, #tpu.memory_space<vmem>>, vector<256x64xf32>
    %54 = arith.addf %53, %52 : vector<256x64xf32>
    %c0_65 = arith.constant 0 : index
    %c0_66 = arith.constant 0 : index
    %55 = vector.load %arg10[%c0_65, %c0_66] : memref<256x64xf32, #tpu.memory_space<vmem>>, vector<256x64xf32>
    tpu.vector_store %arg10[%c0_65, %c0_66], %54 {strides = array<i32>} : memref<256x64xf32, #tpu.memory_space<vmem>>, vector<256x64xf32>,
    %c1_67 = arith.constant 1 : index
    %c2_68 = arith.constant 2 : index
    %c0_69 = arith.constant 0 : index
    %56 = vector.load %arg9[%c1_67, %c2_68, %c0_69] : memref<18x18x3xbf16, #tpu.memory_space<vmem>>, vector<16x16x3xbf16>
    %57 = vector.shape_cast %56 : vector<16x16x3xbf16> to vector<256x3xbf16>
    %c5 = arith.constant 5 : index
    %c0_70 = arith.constant 0 : index
    %c0_71 = arith.constant 0 : index
    %58 = vector.load %arg5[%c5, %c0_70, %c0_71] : memref<9x3x64xbf16, #tpu.memory_space<vmem>>, vector<1x3x64xbf16>
    %59 = vector.shape_cast %58 : vector<1x3x64xbf16> to vector<3x64xbf16>
    %cst_72 = arith.constant dense<0.000000e+00> : vector<256x64xf32>
    %60 = tpu.matmul %57, %59, %cst_72 {dimension_numbers = #tpu.dot_dimension_numbers<[1], [0], [0], [1], [0, 0, 1, 1], [], []>} : vector<256x3xbf16>, vector<3x64xbf16>, vector<256x64xf32> -> vector<256x64xf32>
    %c0_73 = arith.constant 0 : index
    %c0_74 = arith.constant 0 : index
    %61 = vector.load %arg10[%c0_73, %c0_74] : memref<256x64xf32, #tpu.memory_space<vmem>>, vector<256x64xf32>
    %62 = arith.addf %61, %60 : vector<256x64xf32>
    %c0_75 = arith.constant 0 : index
    %c0_76 = arith.constant 0 : index
    %63 = vector.load %arg10[%c0_75, %c0_76] : memref<256x64xf32, #tpu.memory_space<vmem>>, vector<256x64xf32>
    tpu.vector_store %arg10[%c0_75, %c0_76], %62 {strides = array<i32>} : memref<256x64xf32, #tpu.memory_space<vmem>>, vector<256x64xf32>,
    %c2_77 = arith.constant 2 : index
    %c0_78 = arith.constant 0 : index
    %c0_79 = arith.constant 0 : index
    %64 = vector.load %arg9[%c2_77, %c0_78, %c0_79] : memref<18x18x3xbf16, #tpu.memory_space<vmem>>, vector<16x16x3xbf16>
    %65 = vector.shape_cast %64 : vector<16x16x3xbf16> to vector<256x3xbf16>
    %c6 = arith.constant 6 : index
    %c0_80 = arith.constant 0 : index
    %c0_81 = arith.constant 0 : index
    %66 = vector.load %arg5[%c6, %c0_80, %c0_81] : memref<9x3x64xbf16, #tpu.memory_space<vmem>>, vector<1x3x64xbf16>
    %67 = vector.shape_cast %66 : vector<1x3x64xbf16> to vector<3x64xbf16>
    %cst_82 = arith.constant dense<0.000000e+00> : vector<256x64xf32>
    %68 = tpu.matmul %65, %67, %cst_82 {dimension_numbers = #tpu.dot_dimension_numbers<[1], [0], [0], [1], [0, 0, 1, 1], [], []>} : vector<256x3xbf16>, vector<3x64xbf16>, vector<256x64xf32> -> vector<256x64xf32>
    %c0_83 = arith.constant 0 : index
    %c0_84 = arith.constant 0 : index
    %69 = vector.load %arg10[%c0_83, %c0_84] : memref<256x64xf32, #tpu.memory_space<vmem>>, vector<256x64xf32>
    %70 = arith.addf %69, %68 : vector<256x64xf32>
    %c0_85 = arith.constant 0 : index
    %c0_86 = arith.constant 0 : index
    %71 = vector.load %arg10[%c0_85, %c0_86] : memref<256x64xf32, #tpu.memory_space<vmem>>, vector<256x64xf32>
    tpu.vector_store %arg10[%c0_85, %c0_86], %70 {strides = array<i32>} : memref<256x64xf32, #tpu.memory_space<vmem>>, vector<256x64xf32>,
    %c2_87 = arith.constant 2 : index
    %c1_88 = arith.constant 1 : index
    %c0_89 = arith.constant 0 : index
    %72 = vector.load %arg9[%c2_87, %c1_88, %c0_89] : memref<18x18x3xbf16, #tpu.memory_space<vmem>>, vector<16x16x3xbf16>
    %73 = vector.shape_cast %72 : vector<16x16x3xbf16> to vector<256x3xbf16>
    %c7 = arith.constant 7 : index
    %c0_90 = arith.constant 0 : index
    %c0_91 = arith.constant 0 : index
    %74 = vector.load %arg5[%c7, %c0_90, %c0_91] : memref<9x3x64xbf16, #tpu.memory_space<vmem>>, vector<1x3x64xbf16>
    %75 = vector.shape_cast %74 : vector<1x3x64xbf16> to vector<3x64xbf16>
    %cst_92 = arith.constant dense<0.000000e+00> : vector<256x64xf32>
    %76 = tpu.matmul %73, %75, %cst_92 {dimension_numbers = #tpu.dot_dimension_numbers<[1], [0], [0], [1], [0, 0, 1, 1], [], []>} : vector<256x3xbf16>, vector<3x64xbf16>, vector<256x64xf32> -> vector<256x64xf32>
    %c0_93 = arith.constant 0 : index
    %c0_94 = arith.constant 0 : index
    %77 = vector.load %arg10[%c0_93, %c0_94] : memref<256x64xf32, #tpu.memory_space<vmem>>, vector<256x64xf32>
    %78 = arith.addf %77, %76 : vector<256x64xf32>
    %c0_95 = arith.constant 0 : index
    %c0_96 = arith.constant 0 : index
    %79 = vector.load %arg10[%c0_95, %c0_96] : memref<256x64xf32, #tpu.memory_space<vmem>>, vector<256x64xf32>
    tpu.vector_store %arg10[%c0_95, %c0_96], %78 {strides = array<i32>} : memref<256x64xf32, #tpu.memory_space<vmem>>, vector<256x64xf32>,
    %c2_97 = arith.constant 2 : index
    %c2_98 = arith.constant 2 : index
    %c0_99 = arith.constant 0 : index
    %80 = vector.load %arg9[%c2_97, %c2_98, %c0_99] : memref<18x18x3xbf16, #tpu.memory_space<vmem>>, vector<16x16x3xbf16>
    %81 = vector.shape_cast %80 : vector<16x16x3xbf16> to vector<256x3xbf16>
    %c8 = arith.constant 8 : index
    %c0_100 = arith.constant 0 : index
    %c0_101 = arith.constant 0 : index
    %82 = vector.load %arg5[%c8, %c0_100, %c0_101] : memref<9x3x64xbf16, #tpu.memory_space<vmem>>, vector<1x3x64xbf16>
    %83 = vector.shape_cast %82 : vector<1x3x64xbf16> to vector<3x64xbf16>
    %cst_102 = arith.constant dense<0.000000e+00> : vector<256x64xf32>
    %84 = tpu.matmul %81, %83, %cst_102 {dimension_numbers = #tpu.dot_dimension_numbers<[1], [0], [0], [1], [0, 0, 1, 1], [], []>} : vector<256x3xbf16>, vector<3x64xbf16>, vector<256x64xf32> -> vector<256x64xf32>
    %c0_103 = arith.constant 0 : index
    %c0_104 = arith.constant 0 : index
    %85 = vector.load %arg10[%c0_103, %c0_104] : memref<256x64xf32, #tpu.memory_space<vmem>>, vector<256x64xf32>
    %86 = arith.addf %85, %84 : vector<256x64xf32>
    %c0_105 = arith.constant 0 : index
    %c0_106 = arith.constant 0 : index
    %87 = vector.load %arg10[%c0_105, %c0_106] : memref<256x64xf32, #tpu.memory_space<vmem>>, vector<256x64xf32>
    tpu.vector_store %arg10[%c0_105, %c0_106], %86 {strides = array<i32>} : memref<256x64xf32, #tpu.memory_space<vmem>>, vector<256x64xf32>,
    %c0_107 = arith.constant 0 : index
    %c0_108 = arith.constant 0 : index
    %88 = vector.load %arg10[%c0_107, %c0_108] : memref<256x64xf32, #tpu.memory_space<vmem>>, vector<256x64xf32>
    %c0_109 = arith.constant 0 : index
    %c0_110 = arith.constant 0 : index
    %89 = vector.load %arg6[%c0_109, %c0_110] : memref<1x64xf32, #tpu.memory_space<vmem>>, vector<1x64xf32>
    %90 = vector.broadcast %89 : vector<1x64xf32> to vector<256x64xf32>
    %91 = arith.mulf %88, %90 : vector<256x64xf32>
    %c0_111 = arith.constant 0 : index
    %c0_112 = arith.constant 0 : index
    %92 = vector.load %arg7[%c0_111, %c0_112] : memref<1x64xf32, #tpu.memory_space<vmem>>, vector<1x64xf32>
    %93 = vector.broadcast %92 : vector<1x64xf32> to vector<256x64xf32>
    %94 = arith.addf %91, %93 : vector<256x64xf32>
    %cst_113 = arith.constant 0.000000e+00 : f32
    %95 = vector.broadcast %cst_113 : f32 to vector<256x64xf32>
    %96 = arith.maximumf %94, %95 : vector<256x64xf32>
    %97 = vector.shape_cast %96 : vector<256x64xf32> to vector<16x16x64xf32>
    %98 = arith.truncf %97 : vector<16x16x64xf32> to vector<16x16x64xbf16>
    %c0_114 = arith.constant 0 : index
    %c0_115 = arith.constant 0 : index
    %c0_116 = arith.constant 0 : index
    %c0_117 = arith.constant 0 : index
    %99 = vector.load %arg8[%c0_114, %c0_115, %c0_116, %c0_117] : memref<1x16x16x64xbf16, #tpu.memory_space<vmem>>, vector<1x16x16x64xbf16>
    %100 = vector.shape_cast %99 : vector<1x16x16x64xbf16> to vector<16x16x64xbf16>
    %101 = vector.shape_cast %98 : vector<16x16x64xbf16> to vector<1x16x16x64xbf16>
    tpu.vector_store %arg8[%c0_114, %c0_115, %c0_116, %c0_117], %101 {strides = array<i32>} : memref<1x16x16x64xbf16, #tpu.memory_space<vmem>>, vector<1x16x16x64xbf16>,
    return
  }
  func.func @transform_0(%arg0: i32, %arg1: i32) -> (i32, i32, i32, i32) {
    %c0_i32 = arith.constant 0 : i32
    %c0_i32_0 = arith.constant 0 : i32
    %c0_i32_1 = arith.constant 0 : i32
    return %arg0, %arg1, %c0_i32, %c0_i32_0 : i32, i32, i32, i32
  }
  func.func @transform_1(%arg0: i32, %arg1: i32) -> (i32, i32, i32, i32) {
    %c16_i32 = arith.constant 16 : i32
    %0 = arith.muli %arg1, %c16_i32 : i32
    %c1_i32 = arith.constant 1 : i32
    %1 = arith.subi %0, %c1_i32 : i32
    %c0_i32 = arith.constant 0 : i32
    %2 = arith.maxsi %1, %c0_i32 : i32
    %c0_i32_0 = arith.constant 0 : i32
    %c0_i32_1 = arith.constant 0 : i32
    %c0_i32_2 = arith.constant 0 : i32
    return %arg0, %2, %c0_i32_0, %c0_i32_1 : i32, i32, i32, i32
  }
  func.func @transform_2(%arg0: i32, %arg1: i32) -> (i32, i32, i32, i32) {
    %c16_i32 = arith.constant 16 : i32
    %0 = arith.muli %arg1, %c16_i32 : i32
    %c16_i32_0 = arith.constant 16 : i32
    %1 = arith.addi %0, %c16_i32_0 : i32
    %c15_i32 = arith.constant 15 : i32
    %2 = arith.minsi %1, %c15_i32 : i32
    %c0_i32 = arith.constant 0 : i32
    %c0_i32_1 = arith.constant 0 : i32
    %c0_i32_2 = arith.constant 0 : i32
    return %arg0, %2, %c0_i32, %c0_i32_1 : i32, i32, i32, i32
  }
  func.func @transform_3(%arg0: i32, %arg1: i32) -> (i32, i32, i32) {
    %c0_i32 = arith.constant 0 : i32
    %c0_i32_0 = arith.constant 0 : i32
    %c0_i32_1 = arith.constant 0 : i32
    %c0_i32_2 = arith.constant 0 : i32
    return %c0_i32, %c0_i32_0, %c0_i32_1 : i32, i32, i32
  }
  func.func @transform_4(%arg0: i32, %arg1: i32) -> (i32, i32) {
    %c0_i32 = arith.constant 0 : i32
    %c0_i32_0 = arith.constant 0 : i32
    %c0_i32_1 = arith.constant 0 : i32
    return %c0_i32, %c0_i32_0 : i32, i32
  }
  func.func @transform_5(%arg0: i32, %arg1: i32) -> (i32, i32) {
    %c0_i32 = arith.constant 0 : i32
    %c0_i32_0 = arith.constant 0 : i32
    %c0_i32_1 = arith.constant 0 : i32
    return %c0_i32, %c0_i32_0 : i32, i32
  }
  func.func @transform_6(%arg0: i32, %arg1: i32) -> (i32, i32, i32, i32) {
    %c0_i32 = arith.constant 0 : i32
    %c0_i32_0 = arith.constant 0 : i32
    %c0_i32_1 = arith.constant 0 : i32
    return %arg0, %arg1, %c0_i32, %c0_i32_0 : i32, i32, i32, i32
  }
}

</mosaic_0001>

<llo_original>
// kernel: tpu_custom_call.1
$region0: #{tpu_custom_call.1}
  #allocation0 [shape = 'u32[]', space=smem, size = 0x4, offset = 0x4, fixed_abs, tag = 'smem constant byte address 0x4 - core index']
  #allocation1 [shape = 'u32[144,128]{1,0:T(1,128)}', space=vmem, size = 0x12000, scoped, tag = 'internal scratch']
  #allocation2 [shape = 'bf16[18,18,3]{2,1,0:T(8,128)(2,1)}', space=vmem, size = 0x1b000, scoped, tag = 'scratch operand']
  #allocation3 [shape = 'f32[256,64]{1,0:T(8,128)}', space=vmem, size = 0x20000, scoped, tag = 'scratch operand']
  %s0 = inlined_call_operand.vmem [shape: bf16[2,16,16,3], index: 0, kind: input, shape index: {}]
  %s1 = inlined_call_operand.vmem [shape: bf16[2,16,16,3], index: 1, kind: input, shape index: {}]
  %s2 = inlined_call_operand.vmem [shape: bf16[2,16,16,3], index: 2, kind: input, shape index: {}]
  %s3 = inlined_call_operand.vmem [shape: bf16[9,3,64], index: 3, kind: input, shape index: {}]
  %s4 = inlined_call_operand.vmem [shape: f32[1,64], index: 4, kind: input, shape index: {}]
  %s5 = inlined_call_operand.vmem [shape: f32[1,64], index: 5, kind: input, shape index: {}]
  %s6 = inlined_call_operand.hbm [shape: bf16[2,16,16,64], index: 6, kind: output, shape index: {}]
  %s7 = sld [smem:[#allocation0]]
  $region73: #{tpu_custom_call.1} parent=0
    _
  %s9 = ssub.s32 1, %s7
  %s10 = scalar_select 0, %s9, %s7
  $region1: #{tpu_custom_call.1} parent=0
    #allocation4 [shape = 'u8[131072]{0}', space=vmem, size = 0x20000, scoped, tag = 'output window, operand 0']
    #allocation5 [shape = 's32[2]{0}', space=sflag, size = 0x8, scoped, tag = 'scoped memory for tpu_custom_call.1']
    %11 = vsyncpa [#allocation5], 0
    %s12 = scalar_lea.sflag [#allocation5], 1
    %13 = vsyncpa %s12, 0
    loop: start=0, step=1, limit=4
    $region2: #{tpu_custom_call.1} parent=1 // loop_pre_header
      _
    $region3: #{tpu_custom_call.1} parent=1 // loop_header
      %s15 = sphi 0, %s19
      %p16 = scmp.ge.s32.totalorder %s15, 4
      %s22 = sphi 0, %s34
      %s23 = sphi 0, %s30
      %s24 = sphi 0, %s22
      %s25 = sphi 0, %s23
      %s26 = sphi 0, %s24
      %s27 = sphi 0, %s25
      %s39 = sphi 0, %s41
      %s42 = sphi 0, %s39
      %s43 = sphi 0, %s42
      %s59 = sphi 0, %s43
      %s75 = sphi 0, %s77
      %s78 = sphi 0, %s75
      %s79 = sphi 0, %s78
      %s95 = sphi 0, %s79
      %s111 = sphi 0, %s113
      %s114 = sphi 0, %s111
      %s115 = sphi 0, %s114
      %s131 = sphi 0, %s115
      %s135 = sphi 0, %s135
      %s137 = sphi 0, %s135
      %s138 = sphi 0, %s137
      %s152 = sphi 0, %s138
      %s156 = sphi 0, %s156
      %s158 = sphi 0, %s156
      %s159 = sphi 0, %s158
      %s173 = sphi 0, %s159
      %s177 = sphi 0, %s177
      %s179 = sphi 0, %s177
      %s180 = sphi 0, %s179
      %s194 = sphi 0, %s180
      %s202 = sphi 0, %s204
      %s205 = sphi 0, %s202
      %s206 = sphi 0, %s205
      %s222 = sphi 0, %s206
    $region4: #{tpu_custom_call.1} parent=1 // loop_header_branch
      %18 = sbr.rel (%p16) target = $region8
    $region5: #{tpu_custom_call.1} parent=1 // loop_body
      %s20 = ssub.s32 %s15, 1
      %s21 = ssub.s32 %s15, 2
      %s28 = sadd.s32 1, %s23
      %p29 = scmp.ge.s32.totalorder %s28, 1
      %s30 = scalar_select %p29, 0, %s28
      %s31 = sadd.s32 1, %s22
      %s32 = scalar_select %p29, %s31, %s22
      %p33 = scmp.ge.s32.totalorder %s32, 2
      %s34 = scalar_select %p33, 0, %s32
      %s35 = ssub.s32 %s22, %s34
      %s36 = ssub.s32 %s23, %s30
      %s37 = sor.u32 %s35, %s36
      %p38 = scmp.eq.s32.totalorder %s37, 0
      %s40 = sadd.s32 %s39, 1
      %s41 = scalar_select %p38, %s39, %s40
      %p44 = pneg %p38
      %p45 = scmp.eq.s32.totalorder %s15, 1
      %p46 = por %p44, %p45
      %p47 = scmp.ne.s32.totalorder %s39, %s42
      %p48 = scmp.eq.s32.totalorder %s15, 0
      %p49 = por %p47, %p48
      %p50 = scmp.ne.s32.totalorder %s39, %s42
      %p51 = scmp.eq.s32.totalorder %s20, 1
      %p52 = por %p50, %p51
      %p53 = scmp.ne.s32.totalorder %s42, %s43
      %p54 = scmp.eq.s32.totalorder %s20, 0
      %p55 = por %p53, %p54
      %p56 = scmp.ne.s32.totalorder %s42, %s43
      %p57 = scmp.eq.s32.totalorder %s21, 1
      %p58 = por %p56, %p57
      %p60 = scmp.ne.s32.totalorder %s43, %s59
      %p61 = scmp.eq.s32.totalorder %s21, 0
      %p62 = por %p60, %p61
      %s63 = smul.u32 %s23, 16
      %s64 = ssub.s32 %s63, 1
      %p65 = scmp.gt.s32.totalorder %s64, 0
      %s66 = scalar_select %p65, %s64, 0
      %s67 = smul.u32 %s30, 16
      %s68 = ssub.s32 %s67, 1
      %p69 = scmp.gt.s32.totalorder %s68, 0
      %s70 = scalar_select %p69, %s68, 0
      %s71 = ssub.s32 %s22, %s34
      %s72 = ssub.s32 %s66, %s70
      %s73 = sor.u32 %s71, %s72
      %p74 = scmp.eq.s32.totalorder %s73, 0
      %s76 = sadd.s32 %s75, 1
      %s77 = scalar_select %p74, %s75, %s76
      %p80 = pneg %p74
      %p81 = scmp.eq.s32.totalorder %s15, 1
      %p82 = por %p80, %p81
      %p83 = scmp.ne.s32.totalorder %s75, %s78
      %p84 = scmp.eq.s32.totalorder %s15, 0
      %p85 = por %p83, %p84
      %p86 = scmp.ne.s32.totalorder %s75, %s78
      %p87 = scmp.eq.s32.totalorder %s20, 1
      %p88 = por %p86, %p87
      %p89 = scmp.ne.s32.totalorder %s78, %s79
      %p90 = scmp.eq.s32.totalorder %s20, 0
      %p91 = por %p89, %p90
      %p92 = scmp.ne.s32.totalorder %s78, %s79
      %p93 = scmp.eq.s32.totalorder %s21, 1
      %p94 = por %p92, %p93
      %p96 = scmp.ne.s32.totalorder %s79, %s95
      %p97 = scmp.eq.s32.totalorder %s21, 0
      %p98 = por %p96, %p97
      %s99 = smul.u32 %s23, 16
      %s100 = sadd.s32 %s99, 16
      %p101 = scmp.lt.s32.totalorder %s100, 15
      %s102 = scalar_select %p101, %s100, 15
      %s103 = smul.u32 %s30, 16
      %s104 = sadd.s32 %s103, 16
      %p105 = scmp.lt.s32.totalorder %s104, 15
      %s106 = scalar_select %p105, %s104, 15
      %s107 = ssub.s32 %s22, %s34
      %s108 = ssub.s32 %s102, %s106
      %s109 = sor.u32 %s107, %s108
      %p110 = scmp.eq.s32.totalorder %s109, 0
      %s112 = sadd.s32 %s111, 1
      %s113 = scalar_select %p110, %s111, %s112
      %p116 = pneg %p110
      %p117 = scmp.eq.s32.totalorder %s15, 1
      %p118 = por %p116, %p117
      %p119 = scmp.ne.s32.totalorder %s111, %s114
      %p120 = scmp.eq.s32.totalorder %s15, 0
      %p121 = por %p119, %p120
      %p122 = scmp.ne.s32.totalorder %s111, %s114
      %p123 = scmp.eq.s32.totalorder %s20, 1
      %p124 = por %p122, %p123
      %p125 = scmp.ne.s32.totalorder %s114, %s115
      %p126 = scmp.eq.s32.totalorder %s20, 0
      %p127 = por %p125, %p126
      %p128 = scmp.ne.s32.totalorder %s114, %s115
      %p129 = scmp.eq.s32.totalorder %s21, 1
      %p130 = por %p128, %p129
      %p132 = scmp.ne.s32.totalorder %s115, %s131
      %p133 = scmp.eq.s32.totalorder %s21, 0
      %p134 = por %p132, %p133
      %s136 = sadd.s32 %s135, 1
      %p139 = scmp.eq.s32.totalorder %s15, 1
      %p140 = scmp.ne.s32.totalorder %s135, %s137
      %p141 = scmp.eq.s32.totalorder %s15, 0
      %p142 = por %p140, %p141
      %p143 = scmp.ne.s32.totalorder %s135, %s137
      %p144 = scmp.eq.s32.totalorder %s20, 1
      %p145 = por %p143, %p144
      %p146 = scmp.ne.s32.totalorder %s137, %s138
      %p147 = scmp.eq.s32.totalorder %s20, 0
      %p148 = por %p146, %p147
      %p149 = scmp.ne.s32.totalorder %s137, %s138
      %p150 = scmp.eq.s32.totalorder %s21, 1
      %p151 = por %p149, %p150
      %p153 = scmp.ne.s32.totalorder %s138, %s152
      %p154 = scmp.eq.s32.totalorder %s21, 0
      %p155 = por %p153, %p154
      %s157 = sadd.s32 %s156, 1
      %p160 = scmp.eq.s32.totalorder %s15, 1
      %p161 = scmp.ne.s32.totalorder %s156, %s158
      %p162 = scmp.eq.s32.totalorder %s15, 0
      %p163 = por %p161, %p162
      %p164 = scmp.ne.s32.totalorder %s156, %s158
      %p165 = scmp.eq.s32.totalorder %s20, 1
      %p166 = por %p164, %p165
      %p167 = scmp.ne.s32.totalorder %s158, %s159
      %p168 = scmp.eq.s32.totalorder %s20, 0
      %p169 = por %p167, %p168
      %p170 = scmp.ne.s32.totalorder %s158, %s159
      %p171 = scmp.eq.s32.totalorder %s21, 1
      %p172 = por %p170, %p171
      %p174 = scmp.ne.s32.totalorder %s159, %s173
      %p175 = scmp.eq.s32.totalorder %s21, 0
      %p176 = por %p174, %p175
      %s178 = sadd.s32 %s177, 1
      %p181 = scmp.eq.s32.totalorder %s15, 1
      %p182 = scmp.ne.s32.totalorder %s177, %s179
      %p183 = scmp.eq.s32.totalorder %s15, 0
      %p184 = por %p182, %p183
      %p185 = scmp.ne.s32.totalorder %s177, %s179
      %p186 = scmp.eq.s32.totalorder %s20, 1
      %p187 = por %p185, %p186
      %p188 = scmp.ne.s32.totalorder %s179, %s180
      %p189 = scmp.eq.s32.totalorder %s20, 0
      %p190 = por %p188, %p189
      %p191 = scmp.ne.s32.totalorder %s179, %s180
      %p192 = scmp.eq.s32.totalorder %s21, 1
      %p193 = por %p191, %p192
      %p195 = scmp.ne.s32.totalorder %s180, %s194
      %p196 = scmp.eq.s32.totalorder %s21, 0
      %p197 = por %p195, %p196
      %s198 = ssub.s32 %s22, %s34
      %s199 = ssub.s32 %s23, %s30
      %s200 = sor.u32 %s198, %s199
      %p201 = scmp.eq.s32.totalorder %s200, 0
      %s203 = sadd.s32 %s202, 1
      %s204 = scalar_select %p201, %s202, %s203
      %p207 = pneg %p201
      %p208 = scmp.eq.s32.totalorder %s15, 1
      %p209 = por %p207, %p208
      %p210 = scmp.ne.s32.totalorder %s202, %s205
      %p211 = scmp.eq.s32.totalorder %s15, 0
      %p212 = por %p210, %p211
      %p213 = scmp.ne.s32.totalorder %s202, %s205
      %p214 = scmp.eq.s32.totalorder %s20, 1
      %p215 = por %p213, %p214
      %p216 = scmp.ne.s32.totalorder %s205, %s206
      %p217 = scmp.eq.s32.totalorder %s20, 0
      %p218 = por %p216, %p217
      %p219 = scmp.ne.s32.totalorder %s205, %s206
      %p220 = scmp.eq.s32.totalorder %s21, 1
      %p221 = por %p219, %p220
      %p223 = scmp.ne.s32.totalorder %s206, %s222
      %p224 = scmp.eq.s32.totalorder %s21, 0
      %p225 = por %p223, %p224
      %p226 = scmp.le.s32.totalorder 1, %s15
      %p227 = scmp.lt.s32.totalorder %s15, 3
      %p228 = pnand %p226, %p227
      %p229 = pneg %p228
      // Predicated region
      $region9: #{tpu_custom_call.1} parent=5 // pred_check
        _
      $region10: #{tpu_custom_call.1} parent=5 // pred_check_branch
        %231 = sbr.rel (%p228) target = $region12
      $region11: #{tpu_custom_call.1} parent=5 // pred_region
        %s232 = ssub.s32 %s15, 1
        // Predicated region
        $region13: #{tpu_custom_call.1} parent=11 // pred_check
          %p233 = pneg %p148
        $region14: #{tpu_custom_call.1} parent=11 // pred_check_branch
          %235 = sbr.rel (%p233) target = $region16
        $region15: #{tpu_custom_call.1} parent=11 // pred_region
          _
        $region16: #{tpu_custom_call.1} parent=11 // pred_fallthru
          _
        // Predicated region
        $region17: #{tpu_custom_call.1} parent=11 // pred_check
          %p236 = pneg %p169
        $region18: #{tpu_custom_call.1} parent=11 // pred_check_branch
          %238 = sbr.rel (%p236) target = $region20
        $region19: #{tpu_custom_call.1} parent=11 // pred_region
          _
        $region20: #{tpu_custom_call.1} parent=11 // pred_fallthru
          _
        // Predicated region
        $region21: #{tpu_custom_call.1} parent=11 // pred_check
          %p239 = pneg %p190
        $region22: #{tpu_custom_call.1} parent=11 // pred_check_branch
          %241 = sbr.rel (%p239) target = $region24
        $region23: #{tpu_custom_call.1} parent=11 // pred_region
          _
        $region24: #{tpu_custom_call.1} parent=11 // pred_fallthru
          _
      $region12: #{tpu_custom_call.1} parent=5 // pred_fallthru
        _
      %p242 = scmp.lt.s32.totalorder %s15, 2
      // Predicated region
      $region25: #{tpu_custom_call.1} parent=5 // pred_check
        %p243 = pneg %p242
      $region26: #{tpu_custom_call.1} parent=5 // pred_check_branch
        %245 = sbr.rel (%p243) target = $region28
      $region27: #{tpu_custom_call.1} parent=5 // pred_region
        // Predicated region
        $region29: #{tpu_custom_call.1} parent=27 // pred_check
          %p246 = pneg %p49
        $region30: #{tpu_custom_call.1} parent=27 // pred_check_branch
          %248 = sbr.rel (%p246) target = $region32
        $region31: #{tpu_custom_call.1} parent=27 // pred_region
          %s249 = smul.u32 16, %s23
          %p250 = scmp.lt.s32.totalorder %s22, 1
          %s251 = scalar_select %p250, %s22, 1
          %p252 = scmp.lt.s32.totalorder %s249, 15
          %s253 = scalar_select %p252, %s249, 15
          %s254 = smul.addr %s253, 2
          %s255 = smul.addr %s251, 32
          %s256 = sadd.s32 %s254, %s255
          %s257 = smul.addr %s256, 4
          %s258 = scalar_lea.vmem %s0, %s257
          %s259 = smul.u32 16, %s23
        $region32: #{tpu_custom_call.1} parent=27 // pred_fallthru
          _
        // Predicated region
        $region33: #{tpu_custom_call.1} parent=27 // pred_check
          %p260 = pneg %p85
        $region34: #{tpu_custom_call.1} parent=27 // pred_check_branch
          %262 = sbr.rel (%p260) target = $region36
        $region35: #{tpu_custom_call.1} parent=27 // pred_region
          %s263 = smul.u32 %s23, 16
          %s264 = ssub.s32 %s263, 1
          %p265 = scmp.gt.s32.totalorder %s264, 0
          %s266 = scalar_select %p265, %s264, 0
          %p267 = scmp.lt.s32.totalorder %s22, 1
          %s268 = scalar_select %p267, %s22, 1
          %p269 = scmp.lt.s32.totalorder %s266, 15
          %s270 = scalar_select %p269, %s266, 15
          %s271 = smul.addr %s270, 2
          %s272 = smul.addr %s268, 32
          %s273 = sadd.s32 %s271, %s272
          %s274 = smul.addr %s273, 4
          %s275 = scalar_lea.vmem %s1, %s274
          %s276 = smul.u32 %s23, 16
          %s277 = ssub.s32 %s276, 1
          %p278 = scmp.gt.s32.totalorder %s277, 0
          %s279 = scalar_select %p278, %s277, 0
        $region36: #{tpu_custom_call.1} parent=27 // pred_fallthru
          _
        // Predicated region
        $region37: #{tpu_custom_call.1} parent=27 // pred_check
          %p280 = pneg %p121
        $region38: #{tpu_custom_call.1} parent=27 // pred_check_branch
          %282 = sbr.rel (%p280) target = $region40
        $region39: #{tpu_custom_call.1} parent=27 // pred_region
          %s283 = smul.u32 %s23, 16
          %s284 = sadd.s32 %s283, 16
          %p285 = scmp.lt.s32.totalorder %s284, 15
          %s286 = scalar_select %p285, %s284, 15
          %p287 = scmp.lt.s32.totalorder %s22, 1
          %s288 = scalar_select %p287, %s22, 1
          %p289 = scmp.lt.s32.totalorder %s286, 15
          %s290 = scalar_select %p289, %s286, 15
          %s291 = smul.addr %s290, 2
          %s292 = smul.addr %s288, 32
          %s293 = sadd.s32 %s291, %s292
          %s294 = smul.addr %s293, 4
          %s295 = scalar_lea.vmem %s2, %s294
          %s296 = smul.u32 %s23, 16
          %s297 = sadd.s32 %s296, 16
          %p298 = scmp.lt.s32.totalorder %s297, 15
          %s299 = scalar_select %p298, %s297, 15
        $region40: #{tpu_custom_call.1} parent=27 // pred_fallthru
          _
      $region28: #{tpu_custom_call.1} parent=5 // pred_fallthru
        _
      %p300 = scmp.le.s32.totalorder 1, %s15
      %p301 = scmp.lt.s32.totalorder %s15, 3
      %p302 = pnand %p300, %p301
      %p303 = pneg %p302
      // Predicated region
      $region41: #{tpu_custom_call.1} parent=5 // pred_check
        _
      $region42: #{tpu_custom_call.1} parent=5 // pred_check_branch
        %305 = sbr.rel (%p302) target = $region44
      $region43: #{tpu_custom_call.1} parent=5 // pred_region
        %s306 = ssub.s32 %s15, 1
        %s307 = smul.u32 16, %s25
        %p308 = scmp.lt.s32.totalorder %s24, 1
        %s309 = scalar_select %p308, %s24, 1
        %p310 = scmp.lt.s32.totalorder %s307, 15
        %s311 = scalar_select %p310, %s307, 15
        %s312 = smul.addr %s311, 2
        %s313 = smul.addr %s309, 32
        %s314 = sadd.s32 %s312, %s313
        %s315 = smul.addr %s314, 4
        %s316 = scalar_lea.vmem %s0, %s315
        %p317 = pneg %p55
        %p318 = pneg %p52
        %s319 = smul.u32 %s25, 16
        %s320 = ssub.s32 %s319, 1
        %p321 = scmp.gt.s32.totalorder %s320, 0
        %s322 = scalar_select %p321, %s320, 0
        %p323 = scmp.lt.s32.totalorder %s24, 1
        %s324 = scalar_select %p323, %s24, 1
        %p325 = scmp.lt.s32.totalorder %s322, 15
        %s326 = scalar_select %p325, %s322, 15
        %s327 = smul.addr %s326, 2
        %s328 = smul.addr %s324, 32
        %s329 = sadd.s32 %s327, %s328
        %s330 = smul.addr %s329, 4
        %s331 = scalar_lea.vmem %s1, %s330
        %p332 = pneg %p91
        %p333 = pneg %p88
        %s334 = smul.u32 %s25, 16
        %s335 = sadd.s32 %s334, 16
        %p336 = scmp.lt.s32.totalorder %s335, 15
        %s337 = scalar_select %p336, %s335, 15
        %p338 = scmp.lt.s32.totalorder %s24, 1
        %s339 = scalar_select %p338, %s24, 1
        %p340 = scmp.lt.s32.totalorder %s337, 15
        %s341 = scalar_select %p340, %s337, 15
        %s342 = smul.addr %s341, 2
        %s343 = smul.addr %s339, 32
        %s344 = sadd.s32 %s342, %s343
        %s345 = smul.addr %s344, 4
        %s346 = scalar_lea.vmem %s2, %s345
        %p347 = pneg %p127
        %p348 = pneg %p124
        %p349 = pneg %p148
        %p350 = pneg %p145
        %p351 = pneg %p169
        %p352 = pneg %p166
        %p353 = pneg %p190
        %p354 = pneg %p187
        %p355 = pneg %p218
        %p356 = pneg %p215
        %s357 = sand.u32 %s205, 1
        %s358 = scalar_lea.sflag [#allocation5], %s357
        %s359 = sand.u32 %s205, 1
        %s360 = smul.addr %s359, 128
        %s361 = scalar_lea.vmem [#allocation4], %s360
        %s362 = smul.u32 16, %s25
        %p363 = scmp.lt.s32.totalorder %s24, 1
        %s364 = scalar_select %p363, %s24, 1
        %p365 = scmp.lt.s32.totalorder %s362, 15
        %s366 = scalar_select %p365, %s362, 15
        %s367 = smul.addr %s366, 2
        %s368 = smul.addr %s364, 32
        %s369 = sadd.s32 %s367, %s368
        %s370 = smul.addr %s369, 4
        %s371 = scalar_lea.vmem %s0, %s370
        %s372 = smul.u32 16, %s25
        %s373 = smul.u32 %s25, 16
        %s374 = ssub.s32 %s373, 1
        %p375 = scmp.gt.s32.totalorder %s374, 0
        %s376 = scalar_select %p375, %s374, 0
        %p377 = scmp.lt.s32.totalorder %s24, 1
        %s378 = scalar_select %p377, %s24, 1
        %p379 = scmp.lt.s32.totalorder %s376, 15
        %s380 = scalar_select %p379, %s376, 15
        %s381 = smul.addr %s380, 2
        %s382 = smul.addr %s378, 32
        %s383 = sadd.s32 %s381, %s382
        %s384 = smul.addr %s383, 4
        %s385 = scalar_lea.vmem %s1, %s384
        %s386 = smul.u32 %s25, 16
        %s387 = ssub.s32 %s386, 1
        %p388 = scmp.gt.s32.totalorder %s387, 0
        %s389 = scalar_select %p388, %s387, 0
        %s390 = smul.u32 %s25, 16
        %s391 = sadd.s32 %s390, 16
        %p392 = scmp.lt.s32.totalorder %s391, 15
        %s393 = scalar_select %p392, %s391, 15
        %p394 = scmp.lt.s32.totalorder %s24, 1
        %s395 = scalar_select %p394, %s24, 1
        %p396 = scmp.lt.s32.totalorder %s393, 15
        %s397 = scalar_select %p396, %s393, 15
        %s398 = smul.addr %s397, 2
        %s399 = smul.addr %s395, 32
        %s400 = sadd.s32 %s398, %s399
        %s401 = smul.addr %s400, 4
        %s402 = scalar_lea.vmem %s2, %s401
        %s403 = smul.u32 %s25, 16
        %s404 = sadd.s32 %s403, 16
        %p405 = scmp.lt.s32.totalorder %s404, 15
        %s406 = scalar_select %p405, %s404, 15
        %s407 = smul.u32 16, %s25
        %vm409 = vcmask 16384
        %vm410 = vsmask.f32 256
        %vm411 = vmand %vm409, %vm410
        %v412 = vld [vmem:[#allocation2] sm:$0x1]
        %v413 = vsel %vm411, 0, %v412
        %414 = vst [vmem:[#allocation2] sm:$0x1] %v413
        %v415 = vld [vmem:[#allocation2 + $0xc] sm:$0x1]
        %v416 = vsel %vm411, 0, %v415
        %417 = vst [vmem:[#allocation2 + $0xc] sm:$0x1] %v416
        %v418 = vld [vmem:[#allocation2 + $0x18] sm:$0x1]
        %v419 = vsel %vm411, 0, %v418
        %420 = vst [vmem:[#allocation2 + $0x18] sm:$0x1] %v419
        %v421 = vld [vmem:[#allocation2 + $0x24] sm:$0x1]
        %v422 = vsel %vm411, 0, %v421
        %423 = vst [vmem:[#allocation2 + $0x24] sm:$0x1] %v422
        %v424 = vld [vmem:[#allocation2 + $0x30] sm:$0x1]
        %v425 = vsel %vm411, 0, %v424
        %426 = vst [vmem:[#allocation2 + $0x30] sm:$0x1] %v425
        %v427 = vld [vmem:[#allocation2 + $0x3c] sm:$0x1]
        %v428 = vsel %vm411, 0, %v427
        %429 = vst [vmem:[#allocation2 + $0x3c] sm:$0x1] %v428
        %v430 = vld [vmem:[#allocation2 + $0x48] sm:$0x1]
        %v431 = vsel %vm411, 0, %v430
        %432 = vst [vmem:[#allocation2 + $0x48] sm:$0x1] %v431
        %v433 = vld [vmem:[#allocation2 + $0x54] sm:$0x1]
        %v434 = vsel %vm411, 0, %v433
        %435 = vst [vmem:[#allocation2 + $0x54] sm:$0x1] %v434
        %v436 = vld [vmem:[#allocation2 + $0x60] sm:$0x1]
        %v437 = vsel %vm411, 0, %v436
        %438 = vst [vmem:[#allocation2 + $0x60] sm:$0x1] %v437
        %v439 = vld [vmem:[#allocation2 + $0x6c] sm:$0x1]
        %v440 = vsel %vm411, 0, %v439
        %441 = vst [vmem:[#allocation2 + $0x6c] sm:$0x1] %v440
        %v442 = vld [vmem:[#allocation2 + $0x78] sm:$0x1]
        %v443 = vsel %vm411, 0, %v442
        %444 = vst [vmem:[#allocation2 + $0x78] sm:$0x1] %v443
        %v445 = vld [vmem:[#allocation2 + $0x84] sm:$0x1]
        %v446 = vsel %vm411, 0, %v445
        %447 = vst [vmem:[#allocation2 + $0x84] sm:$0x1] %v446
        %v448 = vld [vmem:[#allocation2 + $0x90] sm:$0x1]
        %v449 = vsel %vm411, 0, %v448
        %450 = vst [vmem:[#allocation2 + $0x90] sm:$0x1] %v449
        %v451 = vld [vmem:[#allocation2 + $0x9c] sm:$0x1]
        %v452 = vsel %vm411, 0, %v451
        %453 = vst [vmem:[#allocation2 + $0x9c] sm:$0x1] %v452
        %v454 = vld [vmem:[#allocation2 + $0xa8] sm:$0x1]
        %v455 = vsel %vm411, 0, %v454
        %456 = vst [vmem:[#allocation2 + $0xa8] sm:$0x1] %v455
        %v457 = vld [vmem:[#allocation2 + $0xb4] sm:$0x1]
        %v458 = vsel %vm411, 0, %v457
        %459 = vst [vmem:[#allocation2 + $0xb4] sm:$0x1] %v458
        %v460 = vld [vmem:[#allocation2 + $0xc0] sm:$0x1]
        %v461 = vsel %vm411, 0, %v460
        %462 = vst [vmem:[#allocation2 + $0xc0] sm:$0x1] %v461
        %v463 = vld [vmem:[#allocation2 + $0xcc] sm:$0x1]
        %v464 = vsel %vm411, 0, %v463
        %465 = vst [vmem:[#allocation2 + $0xcc] sm:$0x1] %v464
        %vm466 = vsmask.f32 7938
        %vm467 = vmand %vm409, %vm466
        %v468 = vld [vmem:[#allocation2 + $0x8] sm:$0x1]
        %v469 = vsel %vm467, 0, %v468
        %470 = vst [vmem:[#allocation2 + $0x8] sm:$0x1] %v469
        %v471 = vld [vmem:[#allocation2 + $0x14] sm:$0x1]
        %v472 = vsel %vm467, 0, %v471
        %473 = vst [vmem:[#allocation2 + $0x14] sm:$0x1] %v472
        %v474 = vld [vmem:[#allocation2 + $0x20] sm:$0x1]
        %v475 = vsel %vm467, 0, %v474
        %476 = vst [vmem:[#allocation2 + $0x20] sm:$0x1] %v475
        %v477 = vld [vmem:[#allocation2 + $0x2c] sm:$0x1]
        %v478 = vsel %vm467, 0, %v477
        %479 = vst [vmem:[#allocation2 + $0x2c] sm:$0x1] %v478
        %v480 = vld [vmem:[#allocation2 + $0x38] sm:$0x1]
        %v481 = vsel %vm467, 0, %v480
        %482 = vst [vmem:[#allocation2 + $0x38] sm:$0x1] %v481
        %v483 = vld [vmem:[#allocation2 + $0x44] sm:$0x1]
        %v484 = vsel %vm467, 0, %v483
        %485 = vst [vmem:[#allocation2 + $0x44] sm:$0x1] %v484
        %v486 = vld [vmem:[#allocation2 + $0x50] sm:$0x1]
        %v487 = vsel %vm467, 0, %v486
        %488 = vst [vmem:[#allocation2 + $0x50] sm:$0x1] %v487
        %v489 = vld [vmem:[#allocation2 + $0x5c] sm:$0x1]
        %v490 = vsel %vm467, 0, %v489
        %491 = vst [vmem:[#allocation2 + $0x5c] sm:$0x1] %v490
        %v492 = vld [vmem:[#allocation2 + $0x68] sm:$0x1]
        %v493 = vsel %vm467, 0, %v492
        %494 = vst [vmem:[#allocation2 + $0x68] sm:$0x1] %v493
        %v495 = vld [vmem:[#allocation2 + $0x74] sm:$0x1]
        %v496 = vsel %vm467, 0, %v495
        %497 = vst [vmem:[#allocation2 + $0x74] sm:$0x1] %v496
        %v498 = vld [vmem:[#allocation2 + $0x80] sm:$0x1]
        %v499 = vsel %vm467, 0, %v498
        %500 = vst [vmem:[#allocation2 + $0x80] sm:$0x1] %v499
        %v501 = vld [vmem:[#allocation2 + $0x8c] sm:$0x1]
        %v502 = vsel %vm467, 0, %v501
        %503 = vst [vmem:[#allocation2 + $0x8c] sm:$0x1] %v502
        %v504 = vld [vmem:[#allocation2 + $0x98] sm:$0x1]
        %v505 = vsel %vm467, 0, %v504
        %506 = vst [vmem:[#allocation2 + $0x98] sm:$0x1] %v505
        %v507 = vld [vmem:[#allocation2 + $0xa4] sm:$0x1]
        %v508 = vsel %vm467, 0, %v507
        %509 = vst [vmem:[#allocation2 + $0xa4] sm:$0x1] %v508
        %v510 = vld [vmem:[#allocation2 + $0xb0] sm:$0x1]
        %v511 = vsel %vm467, 0, %v510
        %512 = vst [vmem:[#allocation2 + $0xb0] sm:$0x1] %v511
        %v513 = vld [vmem:[#allocation2 + $0xbc] sm:$0x1]
        %v514 = vsel %vm467, 0, %v513
        %515 = vst [vmem:[#allocation2 + $0xbc] sm:$0x1] %v514
        %v516 = vld [vmem:[#allocation2 + $0xc8] sm:$0x1]
        %v517 = vsel %vm467, 0, %v516
        %518 = vst [vmem:[#allocation2 + $0xc8] sm:$0x1] %v517
        %v519 = vld [vmem:[#allocation2 + $0xd4] sm:$0x1]
        %v520 = vsel %vm467, 0, %v519
        %521 = vst [vmem:[#allocation2 + $0xd4] sm:$0x1] %v520
        %v522 = vld [vmem:[%s371] sm:$0xf]
        %v523 = vld [vmem:[%s371 + $0x4] sm:$0xf]
        %v524 = vld [vmem:[%s371 + $0x8] sm:$0xf]
        %v525 = vld [vmem:[%s371 + $0xc] sm:$0xf]
        %v526 = vld [vmem:[%s371 + $0x10] sm:$0xf]
        %v527 = vld [vmem:[%s371 + $0x14] sm:$0xf]
        %v528 = vld [vmem:[%s371 + $0x18] sm:$0xf]
        %v529 = vld [vmem:[%s371 + $0x1c] sm:$0xf]
        %v530 = vld [vmem:[%s371 + $0x20] sm:$0xf]
        %v531 = vld [vmem:[%s371 + $0x24] sm:$0xf]
        %v532 = vld [vmem:[%s371 + $0x28] sm:$0xf]
        %v533 = vld [vmem:[%s371 + $0x2c] sm:$0xf]
        %v534 = vld [vmem:[%s371 + $0x30] sm:$0xf]
        %v535 = vld [vmem:[%s371 + $0x34] sm:$0xf]
        %v536 = vld [vmem:[%s371 + $0x38] sm:$0xf]
        %v537 = vld [vmem:[%s371 + $0x3c] sm:$0xf]
        %v538 = vld [vmem:[%s371 + $0x40] sm:$0xf]
        %v539 = vld [vmem:[%s371 + $0x44] sm:$0xf]
        %v540 = vld [vmem:[%s371 + $0x48] sm:$0xf]
        %v541 = vld [vmem:[%s371 + $0x4c] sm:$0xf]
        %v542 = vld [vmem:[%s371 + $0x50] sm:$0xf]
        %v543 = vld [vmem:[%s371 + $0x54] sm:$0xf]
        %v544 = vld [vmem:[%s371 + $0x58] sm:$0xf]
        %v545 = vld [vmem:[%s371 + $0x5c] sm:$0xf]
        %v546 = vld [vmem:[%s371 + $0x60] sm:$0xf]
        %v547 = vld [vmem:[%s371 + $0x64] sm:$0xf]
        %v548 = vld [vmem:[%s371 + $0x68] sm:$0xf]
        %v549 = vld [vmem:[%s371 + $0x6c] sm:$0xf]
        %v550 = vld [vmem:[%s371 + $0x70] sm:$0xf]
        %v551 = vld [vmem:[%s371 + $0x74] sm:$0xf]
        %v552 = vld [vmem:[%s371 + $0x78] sm:$0xf]
        %v553 = vld [vmem:[%s371 + $0x7c] sm:$0xf]
        %vm554 = vsmask.f32 4368
        %vm555 = vmor %vm410, %vm554
        %v557 = vshrl.u32 %v522, 16
        %v559 = vrot.slane %v557, 7
        %v560 = vshll.u32 %v522, 16
        %v562 = vor.u32 %v559, %v560
        %v563 = vrot.slane %v559, 4
        %v565 = vshrl.u32 %v523, 16
        %v567 = vrot.slane %v565, 7
        %v568 = vshll.u32 %v523, 16
        %v570 = vor.u32 %v567, %v568
        %v571 = vsel %vm555, %v563, %v570
        %v572 = vrot.slane %v567, 4
        %v574 = vshrl.u32 %v524, 16
        %v576 = vrot.slane %v574, 7
        %v577 = vshll.u32 %v524, 16
        %v579 = vor.u32 %v576, %v577
        %v580 = vrot.slane %v576, 4
        %v582 = vshrl.u32 %v525, 16
        %v584 = vrot.slane %v582, 7
        %v585 = vshll.u32 %v525, 16
        %v587 = vor.u32 %v584, %v585
        %v588 = vsel %vm555, %v580, %v587
        %v589 = vrot.slane %v584, 4
        %v591 = vshrl.u32 %v526, 16
        %v593 = vrot.slane %v591, 7
        %v594 = vshll.u32 %v526, 16
        %v596 = vor.u32 %v593, %v594
        %v597 = vrot.slane %v593, 4
        %v599 = vshrl.u32 %v527, 16
        %v601 = vrot.slane %v599, 7
        %v602 = vshll.u32 %v527, 16
        %v604 = vor.u32 %v601, %v602
        %v605 = vsel %vm555, %v597, %v604
        %v606 = vrot.slane %v601, 4
        %v608 = vshrl.u32 %v528, 16
        %v610 = vrot.slane %v608, 7
        %v611 = vshll.u32 %v528, 16
        %v613 = vor.u32 %v610, %v611
        %v614 = vrot.slane %v610, 4
        %v616 = vshrl.u32 %v529, 16
        %v618 = vrot.slane %v616, 7
        %v619 = vshll.u32 %v529, 16
        %v621 = vor.u32 %v618, %v619
        %v622 = vsel %vm555, %v614, %v621
        %v623 = vrot.slane %v618, 4
        %v625 = vshrl.u32 %v530, 16
        %v627 = vrot.slane %v625, 7
        %v628 = vshll.u32 %v530, 16
        %v630 = vor.u32 %v627, %v628
        %v631 = vrot.slane %v627, 4
        %v633 = vshrl.u32 %v531, 16
        %v635 = vrot.slane %v633, 7
        %v636 = vshll.u32 %v531, 16
        %v638 = vor.u32 %v635, %v636
        %v639 = vsel %vm555, %v631, %v638
        %v640 = vrot.slane %v635, 4
        %v642 = vshrl.u32 %v532, 16
        %v644 = vrot.slane %v642, 7
        %v645 = vshll.u32 %v532, 16
        %v647 = vor.u32 %v644, %v645
        %v648 = vrot.slane %v644, 4
        %v650 = vshrl.u32 %v533, 16
        %v652 = vrot.slane %v650, 7
        %v653 = vshll.u32 %v533, 16
        %v655 = vor.u32 %v652, %v653
        %v656 = vsel %vm555, %v648, %v655
        %v657 = vrot.slane %v652, 4
        %v659 = vshrl.u32 %v534, 16
        %v661 = vrot.slane %v659, 7
        %v662 = vshll.u32 %v534, 16
        %v664 = vor.u32 %v661, %v662
        %v665 = vrot.slane %v661, 4
        %v667 = vshrl.u32 %v535, 16
        %v669 = vrot.slane %v667, 7
        %v670 = vshll.u32 %v535, 16
        %v672 = vor.u32 %v669, %v670
        %v673 = vsel %vm555, %v665, %v672
        %v674 = vrot.slane %v669, 4
        %v676 = vshrl.u32 %v536, 16
        %v678 = vrot.slane %v676, 7
        %v679 = vshll.u32 %v536, 16
        %v681 = vor.u32 %v678, %v679
        %v682 = vrot.slane %v678, 4
        %v684 = vshrl.u32 %v537, 16
        %v686 = vrot.slane %v684, 7
        %v687 = vshll.u32 %v537, 16
        %v689 = vor.u32 %v686, %v687
        %v690 = vsel %vm555, %v682, %v689
        %v691 = vrot.slane %v686, 4
        %v693 = vshrl.u32 %v538, 16
        %v695 = vrot.slane %v693, 7
        %v696 = vshll.u32 %v538, 16
        %v698 = vor.u32 %v695, %v696
        %v699 = vrot.slane %v695, 4
        %v701 = vshrl.u32 %v539, 16
        %v703 = vrot.slane %v701, 7
        %v704 = vshll.u32 %v539, 16
        %v706 = vor.u32 %v703, %v704
        %v707 = vsel %vm555, %v699, %v706
        %v708 = vrot.slane %v703, 4
        %v710 = vshrl.u32 %v540, 16
        %v712 = vrot.slane %v710, 7
        %v713 = vshll.u32 %v540, 16
        %v715 = vor.u32 %v712, %v713
        %v716 = vrot.slane %v712, 4
        %v718 = vshrl.u32 %v541, 16
        %v720 = vrot.slane %v718, 7
        %v721 = vshll.u32 %v541, 16
        %v723 = vor.u32 %v720, %v721
        %v724 = vsel %vm555, %v716, %v723
        %v725 = vrot.slane %v720, 4
        %v727 = vshrl.u32 %v542, 16
        %v729 = vrot.slane %v727, 7
        %v730 = vshll.u32 %v542, 16
        %v732 = vor.u32 %v729, %v730
        %v733 = vrot.slane %v729, 4
        %v735 = vshrl.u32 %v543, 16
        %v737 = vrot.slane %v735, 7
        %v738 = vshll.u32 %v543, 16
        %v740 = vor.u32 %v737, %v738
        %v741 = vsel %vm555, %v733, %v740
        %v742 = vrot.slane %v737, 4
        %v744 = vshrl.u32 %v544, 16
        %v746 = vrot.slane %v744, 7
        %v747 = vshll.u32 %v544, 16
        %v749 = vor.u32 %v746, %v747
        %v750 = vrot.slane %v746, 4
        %v752 = vshrl.u32 %v545, 16
        %v754 = vrot.slane %v752, 7
        %v755 = vshll.u32 %v545, 16
        %v757 = vor.u32 %v754, %v755
        %v758 = vsel %vm555, %v750, %v757
        %v759 = vrot.slane %v754, 4
        %v761 = vshrl.u32 %v546, 16
        %v763 = vrot.slane %v761, 7
        %v764 = vshll.u32 %v546, 16
        %v766 = vor.u32 %v763, %v764
        %v767 = vrot.slane %v763, 4
        %v769 = vshrl.u32 %v547, 16
        %v771 = vrot.slane %v769, 7
        %v772 = vshll.u32 %v547, 16
        %v774 = vor.u32 %v771, %v772
        %v775 = vsel %vm555, %v767, %v774
        %v776 = vrot.slane %v771, 4
        %v778 = vshrl.u32 %v548, 16
        %v780 = vrot.slane %v778, 7
        %v781 = vshll.u32 %v548, 16
        %v783 = vor.u32 %v780, %v781
        %v784 = vrot.slane %v780, 4
        %v786 = vshrl.u32 %v549, 16
        %v788 = vrot.slane %v786, 7
        %v789 = vshll.u32 %v549, 16
        %v791 = vor.u32 %v788, %v789
        %v792 = vsel %vm555, %v784, %v791
        %v793 = vrot.slane %v788, 4
        %v795 = vshrl.u32 %v550, 16
        %v797 = vrot.slane %v795, 7
        %v798 = vshll.u32 %v550, 16
        %v800 = vor.u32 %v797, %v798
        %v801 = vrot.slane %v797, 4
        %v803 = vshrl.u32 %v551, 16
        %v805 = vrot.slane %v803, 7
        %v806 = vshll.u32 %v551, 16
        %v808 = vor.u32 %v805, %v806
        %v809 = vsel %vm555, %v801, %v808
        %v810 = vrot.slane %v805, 4
        %v812 = vshrl.u32 %v552, 16
        %v814 = vrot.slane %v812, 7
        %v815 = vshll.u32 %v552, 16
        %v817 = vor.u32 %v814, %v815
        %v818 = vrot.slane %v814, 4
        %v820 = vshrl.u32 %v553, 16
        %v822 = vrot.slane %v820, 7
        %v823 = vshll.u32 %v553, 16
        %v825 = vor.u32 %v822, %v823
        %v826 = vsel %vm555, %v818, %v825
        %v827 = vrot.slane %v822, 4
        %s876 = scalar_lea.vmem [#allocation2], 12
        %vm877 = vcmask 19456
        %vm878 = vmand %vm877, %vm466
        %v879 = vld [vmem:[%s876] sm:$0xf]
        %v880 = vsel %vm878, %v562, %v879
        %881 = vst [vmem:[%s876] sm:$0xf] %v880
        %vm882 = vcmask 19456
        %883 = vst.msk [vmem:[%s876 + $0x4] sm:$0xf] %vm882, %v571
        %v884 = vld [vmem:[%s876 + $0x8] sm:$0x1]
        %v885 = vsel %vm411, %v572, %v884
        %886 = vst [vmem:[%s876 + $0x8] sm:$0x1] %v885
        %v887 = vld [vmem:[%s876 + $0xc] sm:$0xf]
        %v888 = vsel %vm878, %v579, %v887
        %889 = vst [vmem:[%s876 + $0xc] sm:$0xf] %v888
        %890 = vst.msk [vmem:[%s876 + $0x10] sm:$0xf] %vm882, %v588
        %v891 = vld [vmem:[%s876 + $0x14] sm:$0x1]
        %v892 = vsel %vm411, %v589, %v891
        %893 = vst [vmem:[%s876 + $0x14] sm:$0x1] %v892
        %v894 = vld [vmem:[%s876 + $0x18] sm:$0xf]
        %v895 = vsel %vm878, %v596, %v894
        %896 = vst [vmem:[%s876 + $0x18] sm:$0xf] %v895
        %897 = vst.msk [vmem:[%s876 + $0x1c] sm:$0xf] %vm882, %v605
        %v898 = vld [vmem:[%s876 + $0x20] sm:$0x1]
        %v899 = vsel %vm411, %v606, %v898
        %900 = vst [vmem:[%s876 + $0x20] sm:$0x1] %v899
        %v901 = vld [vmem:[%s876 + $0x24] sm:$0xf]
        %v902 = vsel %vm878, %v613, %v901
        %903 = vst [vmem:[%s876 + $0x24] sm:$0xf] %v902
        %904 = vst.msk [vmem:[%s876 + $0x28] sm:$0xf] %vm882, %v622
        %v905 = vld [vmem:[%s876 + $0x2c] sm:$0x1]
        %v906 = vsel %vm411, %v623, %v905
        %907 = vst [vmem:[%s876 + $0x2c] sm:$0x1] %v906
        %v908 = vld [vmem:[%s876 + $0x30] sm:$0xf]
        %v909 = vsel %vm878, %v630, %v908
        %910 = vst [vmem:[%s876 + $0x30] sm:$0xf] %v909
        %911 = vst.msk [vmem:[%s876 + $0x34] sm:$0xf] %vm882, %v639
        %v912 = vld [vmem:[%s876 + $0x38] sm:$0x1]
        %v913 = vsel %vm411, %v640, %v912
        %914 = vst [vmem:[%s876 + $0x38] sm:$0x1] %v913
        %v915 = vld [vmem:[%s876 + $0x3c] sm:$0xf]
        %v916 = vsel %vm878, %v647, %v915
        %917 = vst [vmem:[%s876 + $0x3c] sm:$0xf] %v916
        %918 = vst.msk [vmem:[%s876 + $0x40] sm:$0xf] %vm882, %v656
        %v919 = vld [vmem:[%s876 + $0x44] sm:$0x1]
        %v920 = vsel %vm411, %v657, %v919
        %921 = vst [vmem:[%s876 + $0x44] sm:$0x1] %v920
        %v922 = vld [vmem:[%s876 + $0x48] sm:$0xf]
        %v923 = vsel %vm878, %v664, %v922
        %924 = vst [vmem:[%s876 + $0x48] sm:$0xf] %v923
        %925 = vst.msk [vmem:[%s876 + $0x4c] sm:$0xf] %vm882, %v673
        %v926 = vld [vmem:[%s876 + $0x50] sm:$0x1]
        %v927 = vsel %vm411, %v674, %v926
        %928 = vst [vmem:[%s876 + $0x50] sm:$0x1] %v927
        %v929 = vld [vmem:[%s876 + $0x54] sm:$0xf]
        %v930 = vsel %vm878, %v681, %v929
        %931 = vst [vmem:[%s876 + $0x54] sm:$0xf] %v930
        %932 = vst.msk [vmem:[%s876 + $0x58] sm:$0xf] %vm882, %v690
        %v933 = vld [vmem:[%s876 + $0x5c] sm:$0x1]
        %v934 = vsel %vm411, %v691, %v933
        %935 = vst [vmem:[%s876 + $0x5c] sm:$0x1] %v934
        %v936 = vld [vmem:[%s876 + $0x60] sm:$0xf]
        %v937 = vsel %vm878, %v698, %v936
        %938 = vst [vmem:[%s876 + $0x60] sm:$0xf] %v937
        %939 = vst.msk [vmem:[%s876 + $0x64] sm:$0xf] %vm882, %v707
        %v940 = vld [vmem:[%s876 + $0x68] sm:$0x1]
        %v941 = vsel %vm411, %v708, %v940
        %942 = vst [vmem:[%s876 + $0x68] sm:$0x1] %v941
        %v943 = vld [vmem:[%s876 + $0x6c] sm:$0xf]
        %v944 = vsel %vm878, %v715, %v943
        %945 = vst [vmem:[%s876 + $0x6c] sm:$0xf] %v944
        %946 = vst.msk [vmem:[%s876 + $0x70] sm:$0xf] %vm882, %v724
        %v947 = vld [vmem:[%s876 + $0x74] sm:$0x1]
        %v948 = vsel %vm411, %v725, %v947
        %949 = vst [vmem:[%s876 + $0x74] sm:$0x1] %v948
        %v950 = vld [vmem:[%s876 + $0x78] sm:$0xf]
        %v951 = vsel %vm878, %v732, %v950
        %952 = vst [vmem:[%s876 + $0x78] sm:$0xf] %v951
        %953 = vst.msk [vmem:[%s876 + $0x7c] sm:$0xf] %vm882, %v741
        %v954 = vld [vmem:[%s876 + $0x80] sm:$0x1]
        %v955 = vsel %vm411, %v742, %v954
        %956 = vst [vmem:[%s876 + $0x80] sm:$0x1] %v955
        %v957 = vld [vmem:[%s876 + $0x84] sm:$0xf]
        %v958 = vsel %vm878, %v749, %v957
        %959 = vst [vmem:[%s876 + $0x84] sm:$0xf] %v958
        %960 = vst.msk [vmem:[%s876 + $0x88] sm:$0xf] %vm882, %v758
        %v961 = vld [vmem:[%s876 + $0x8c] sm:$0x1]
        %v962 = vsel %vm411, %v759, %v961
        %963 = vst [vmem:[%s876 + $0x8c] sm:$0x1] %v962
        %v964 = vld [vmem:[%s876 + $0x90] sm:$0xf]
        %v965 = vsel %vm878, %v766, %v964
        %966 = vst [vmem:[%s876 + $0x90] sm:$0xf] %v965
        %967 = vst.msk [vmem:[%s876 + $0x94] sm:$0xf] %vm882, %v775
        %v968 = vld [vmem:[%s876 + $0x98] sm:$0x1]
        %v969 = vsel %vm411, %v776, %v968
        %970 = vst [vmem:[%s876 + $0x98] sm:$0x1] %v969
        %v971 = vld [vmem:[%s876 + $0x9c] sm:$0xf]
        %v972 = vsel %vm878, %v783, %v971
        %973 = vst [vmem:[%s876 + $0x9c] sm:$0xf] %v972
        %974 = vst.msk [vmem:[%s876 + $0xa0] sm:$0xf] %vm882, %v792
        %v975 = vld [vmem:[%s876 + $0xa4] sm:$0x1]
        %v976 = vsel %vm411, %v793, %v975
        %977 = vst [vmem:[%s876 + $0xa4] sm:$0x1] %v976
        %v978 = vld [vmem:[%s876 + $0xa8] sm:$0xf]
        %v979 = vsel %vm878, %v800, %v978
        %980 = vst [vmem:[%s876 + $0xa8] sm:$0xf] %v979
        %981 = vst.msk [vmem:[%s876 + $0xac] sm:$0xf] %vm882, %v809
        %v982 = vld [vmem:[%s876 + $0xb0] sm:$0x1]
        %v983 = vsel %vm411, %v810, %v982
        %984 = vst [vmem:[%s876 + $0xb0] sm:$0x1] %v983
        %v985 = vld [vmem:[%s876 + $0xb4] sm:$0xf]
        %v986 = vsel %vm878, %v817, %v985
        %987 = vst [vmem:[%s876 + $0xb4] sm:$0xf] %v986
        %988 = vst.msk [vmem:[%s876 + $0xb8] sm:$0xf] %vm882, %v826
        %v989 = vld [vmem:[%s876 + $0xbc] sm:$0x1]
        %v990 = vsel %vm411, %v827, %v989
        %991 = vst [vmem:[%s876 + $0xbc] sm:$0x1] %v990
        %p992 = scmp.eq.s32.totalorder %s25, 0
        // Predicated region
        $region45: #{tpu_custom_call.1} parent=43 // pred_check
          %p993 = pneg %p992
        $region46: #{tpu_custom_call.1} parent=43 // pred_check_branch
          %995 = sbr.rel (%p993) target = $region48
        $region47: #{tpu_custom_call.1} parent=43 // pred_region
          %v996 = vld [vmem:[#allocation2] sm:$0xf]
          %v997 = vsel %vm878, 0, %v996
          %998 = vst [vmem:[#allocation2] sm:$0xf] %v997
          %999 = vst.msk [vmem:[#allocation2 + $0x4] sm:$0xf] %vm882, 0
          %v1000 = vld [vmem:[#allocation2 + $0x8] sm:$0x1]
          %v1001 = vsel %vm411, 0, %v1000
          %1002 = vst [vmem:[#allocation2 + $0x8] sm:$0x1] %v1001
        $region48: #{tpu_custom_call.1} parent=43 // pred_fallthru
          _
        %p1003 = scmp.gt.s32.totalorder %s25, 0
        // Predicated region
        $region49: #{tpu_custom_call.1} parent=43 // pred_check
          %p1004 = pneg %p1003
        $region50: #{tpu_custom_call.1} parent=43 // pred_check_branch
          %1006 = sbr.rel (%p1004) target = $region52
        $region51: #{tpu_custom_call.1} parent=43 // pred_region
          %v1007 = vld [vmem:[%s385] sm:$0xf]
          %v1008 = vld [vmem:[%s385 + $0x4] sm:$0xf]
          %v1010 = vshrl.u32 %v1007, 16
          %v1012 = vrot.slane %v1010, 7
          %v1013 = vshll.u32 %v1007, 16
          %v1015 = vor.u32 %v1012, %v1013
          %v1016 = vrot.slane %v1012, 4
          %v1018 = vshrl.u32 %v1008, 16
          %v1020 = vrot.slane %v1018, 7
          %v1021 = vshll.u32 %v1008, 16
          %v1023 = vor.u32 %v1020, %v1021
          %v1024 = vsel %vm555, %v1016, %v1023
          %v1025 = vrot.slane %v1020, 4
          %v1029 = vld [vmem:[#allocation2] sm:$0xf]
          %v1030 = vsel %vm878, %v1015, %v1029
          %1031 = vst [vmem:[#allocation2] sm:$0xf] %v1030
          %1032 = vst.msk [vmem:[#allocation2 + $0x4] sm:$0xf] %vm882, %v1024
          %v1033 = vld [vmem:[#allocation2 + $0x8] sm:$0x1]
          %v1034 = vsel %vm411, %v1025, %v1033
          %1035 = vst [vmem:[#allocation2 + $0x8] sm:$0x1] %v1034
        $region52: #{tpu_custom_call.1} parent=43 // pred_fallthru
          _
        // Predicated region
        $region53: #{tpu_custom_call.1} parent=43 // pred_check
          %p1036 = pneg %p992
        $region54: #{tpu_custom_call.1} parent=43 // pred_check_branch
          %1038 = sbr.rel (%p1036) target = $region56
        $region55: #{tpu_custom_call.1} parent=43 // pred_region
          %s1039 = scalar_lea.vmem [#allocation2], 204
          %v1040 = vld [vmem:[%s1039] sm:$0xf]
          %v1041 = vsel %vm878, 0, %v1040
          %1042 = vst [vmem:[%s1039] sm:$0xf] %v1041
          %1043 = vst.msk [vmem:[%s1039 + $0x4] sm:$0xf] %vm882, 0
          %v1044 = vld [vmem:[%s1039 + $0x8] sm:$0x1]
          %v1045 = vsel %vm411, 0, %v1044
          %1046 = vst [vmem:[%s1039 + $0x8] sm:$0x1] %v1045
        $region56: #{tpu_custom_call.1} parent=43 // pred_fallthru
          _
        %p1047 = scmp.lt.s32.totalorder %s25, 0
        // Predicated region
        $region57: #{tpu_custom_call.1} parent=43 // pred_check
          %p1048 = pneg %p1047
        $region58: #{tpu_custom_call.1} parent=43 // pred_check_branch
          %1050 = sbr.rel (%p1048) target = $region60
        $region59: #{tpu_custom_call.1} parent=43 // pred_region
          %v1051 = vld [vmem:[%s402] sm:$0xf]
          %v1052 = vld [vmem:[%s402 + $0x4] sm:$0xf]
          %v1054 = vshrl.u32 %v1051, 16
          %v1056 = vrot.slane %v1054, 7
          %v1057 = vshll.u32 %v1051, 16
          %v1059 = vor.u32 %v1056, %v1057
          %v1060 = vrot.slane %v1056, 4
          %v1062 = vshrl.u32 %v1052, 16
          %v1064 = vrot.slane %v1062, 7
          %v1065 = vshll.u32 %v1052, 16
          %v1067 = vor.u32 %v1064, %v1065
          %v1068 = vsel %vm555, %v1060, %v1067
          %v1069 = vrot.slane %v1064, 4
          %s1073 = scalar_lea.vmem [#allocation2], 204
          %v1074 = vld [vmem:[%s1073] sm:$0xf]
          %v1075 = vsel %vm878, %v1059, %v1074
          %1076 = vst [vmem:[%s1073] sm:$0xf] %v1075
          %1077 = vst.msk [vmem:[%s1073 + $0x4] sm:$0xf] %vm882, %v1068
          %v1078 = vld [vmem:[%s1073 + $0x8] sm:$0x1]
          %v1079 = vsel %vm411, %v1069, %v1078
          %1080 = vst [vmem:[%s1073 + $0x8] sm:$0x1] %v1079
        $region60: #{tpu_custom_call.1} parent=43 // pred_fallthru
          _
        %v1081 = vld [vmem:[#allocation2] sm:$0xf]
        %v1082 = vld [vmem:[#allocation2 + $0x4] sm:$0xf]
        %v1083 = vld [vmem:[#allocation2 + $0xc] sm:$0xf]
        %v1084 = vld [vmem:[#allocation2 + $0x10] sm:$0xf]
        %v1085 = vld [vmem:[#allocation2 + $0x18] sm:$0xf]
        %v1086 = vld [vmem:[#allocation2 + $0x1c] sm:$0xf]
        %v1087 = vld [vmem:[#allocation2 + $0x24] sm:$0xf]
        %v1088 = vld [vmem:[#allocation2 + $0x28] sm:$0xf]
        %v1089 = vld [vmem:[#allocation2 + $0x30] sm:$0xf]
        %v1090 = vld [vmem:[#allocation2 + $0x34] sm:$0xf]
        %v1091 = vld [vmem:[#allocation2 + $0x3c] sm:$0xf]
        %v1092 = vld [vmem:[#allocation2 + $0x40] sm:$0xf]
        %v1093 = vld [vmem:[#allocation2 + $0x48] sm:$0xf]
        %v1094 = vld [vmem:[#allocation2 + $0x4c] sm:$0xf]
        %v1095 = vld [vmem:[#allocation2 + $0x54] sm:$0xf]
        %v1096 = vld [vmem:[#allocation2 + $0x58] sm:$0xf]
        %v1097 = vld [vmem:[#allocation2 + $0x60] sm:$0xf]
        %v1098 = vld [vmem:[#allocation2 + $0x64] sm:$0xf]
        %v1099 = vld [vmem:[#allocation2 + $0x6c] sm:$0xf]
        %v1100 = vld [vmem:[#allocation2 + $0x70] sm:$0xf]
        %v1101 = vld [vmem:[#allocation2 + $0x78] sm:$0xf]
        %v1102 = vld [vmem:[#allocation2 + $0x7c] sm:$0xf]
        %v1103 = vld [vmem:[#allocation2 + $0x84] sm:$0xf]
        %v1104 = vld [vmem:[#allocation2 + $0x88] sm:$0xf]
        %v1105 = vld [vmem:[#allocation2 + $0x90] sm:$0xf]
        %v1106 = vld [vmem:[#allocation2 + $0x94] sm:$0xf]
        %v1107 = vld [vmem:[#allocation2 + $0x9c] sm:$0xf]
        %v1108 = vld [vmem:[#allocation2 + $0xa0] sm:$0xf]
        %v1109 = vld [vmem:[#allocation2 + $0xa8] sm:$0xf]
        %v1110 = vld [vmem:[#allocation2 + $0xac] sm:$0xf]
        %v1111 = vld [vmem:[#allocation2 + $0xb4] sm:$0xf]
        %v1112 = vld [vmem:[#allocation2 + $0xb8] sm:$0xf]
        %v1113 = vld [vmem:[%s3] sm:$0x3]
        %v1146 = vunpack.c.l.b16 %v1081
        %v1147 = vunpack.c.l.b16 %v1082
        %v1148 = vunpack.c.l.b16 %v1083
        %v1149 = vunpack.c.l.b16 %v1084
        %v1150 = vunpack.c.l.b16 %v1085
        %v1151 = vunpack.c.l.b16 %v1086
        %v1152 = vunpack.c.l.b16 %v1087
        %v1153 = vunpack.c.l.b16 %v1088
        %v1154 = vunpack.c.l.b16 %v1089
        %v1155 = vunpack.c.l.b16 %v1090
        %v1156 = vunpack.c.l.b16 %v1091
        %v1157 = vunpack.c.l.b16 %v1092
        %v1158 = vunpack.c.l.b16 %v1093
        %v1159 = vunpack.c.l.b16 %v1094
        %v1160 = vunpack.c.l.b16 %v1095
        %v1161 = vunpack.c.l.b16 %v1096
        %v1162 = vunpack.c.l.b16 %v1097
        %v1163 = vunpack.c.l.b16 %v1098
        %v1164 = vunpack.c.l.b16 %v1099
        %v1165 = vunpack.c.l.b16 %v1100
        %v1166 = vunpack.c.l.b16 %v1101
        %v1167 = vunpack.c.l.b16 %v1102
        %v1168 = vunpack.c.l.b16 %v1103
        %v1169 = vunpack.c.l.b16 %v1104
        %v1170 = vunpack.c.l.b16 %v1105
        %v1171 = vunpack.c.l.b16 %v1106
        %v1172 = vunpack.c.l.b16 %v1107
        %v1173 = vunpack.c.l.b16 %v1108
        %v1174 = vunpack.c.l.b16 %v1109
        %v1175 = vunpack.c.l.b16 %v1110
        %v1176 = vunpack.c.l.b16 %v1111
        %v1177 = vunpack.c.l.b16 %v1112
        %v1178 = vpack.c.b16 %v1147, %v1146
        %v1179 = vpack.c.b16 %v1149, %v1148
        %v1180 = vpack.c.b16 %v1151, %v1150
        %v1181 = vpack.c.b16 %v1153, %v1152
        %v1182 = vpack.c.b16 %v1155, %v1154
        %v1183 = vpack.c.b16 %v1157, %v1156
        %v1184 = vpack.c.b16 %v1159, %v1158
        %v1185 = vpack.c.b16 %v1161, %v1160
        %v1186 = vpack.c.b16 %v1163, %v1162
        %v1187 = vpack.c.b16 %v1165, %v1164
        %v1188 = vpack.c.b16 %v1167, %v1166
        %v1189 = vpack.c.b16 %v1169, %v1168
        %v1190 = vpack.c.b16 %v1171, %v1170
        %v1191 = vpack.c.b16 %v1173, %v1172
        %v1192 = vpack.c.b16 %v1175, %v1174
        %v1193 = vpack.c.b16 %v1177, %v1176
        %vm1194 = vcmask 23552
        %v1196 = vsel %vm1194, %v1178, 0
        %v1199 = vsel %vm1194, %v1179, 0
        %v1202 = vsel %vm1194, %v1180, 0
        %v1205 = vsel %vm1194, %v1181, 0
        %v1208 = vsel %vm1194, %v1182, 0
        %v1211 = vsel %vm1194, %v1183, 0
        %v1214 = vsel %vm1194, %v1184, 0
        %v1217 = vsel %vm1194, %v1185, 0
        %v1220 = vsel %vm1194, %v1186, 0
        %v1223 = vsel %vm1194, %v1187, 0
        %v1226 = vsel %vm1194, %v1188, 0
        %v1229 = vsel %vm1194, %v1189, 0
        %v1232 = vsel %vm1194, %v1190, 0
        %v1235 = vsel %vm1194, %v1191, 0
        %v1238 = vsel %vm1194, %v1192, 0
        %v1241 = vsel %vm1194, %v1193, 0
        %vm1243 = vcmask 1040384
        %vm1244 = vcmask 1041408
        %v1245 = vsel %vm1243, 4294967295, 65535
        %v1246 = vsel %vm1244, %v1245, 0
        %v1248 = vand.u32 %v1113, %v1246
        %1250 = vmatprep.subr.bf16.mxu0 0
        %1251 = vmatpush1.bf16.msra.mxu0 %v1248
        %1252 = vmatprep.subr.bf16.mxu0 0
        %1253 = vmatpush1.bf16.msra.mxu0 0
        %1254 = vmatprep.subr.bf16.mxu0 0
        %1255 = vmatpush1.bf16.msra.mxu0 0
        %1256 = vmatprep.subr.bf16.mxu0 0
        %1257 = vmatpush1.bf16.msra.mxu0 0
        %1258 = vmatprep.subr.bf16.mxu0 0
        %1259 = vmatpush1.bf16.msra.mxu0 0
        %1260 = vmatprep.subr.bf16.mxu0 0
        %1261 = vmatpush1.bf16.msra.mxu0 0
        %1262 = vmatprep.subr.bf16.mxu0 0
        %1263 = vmatpush1.bf16.msra.mxu0 0
        %1264 = vmatprep.subr.bf16.mxu0 0
        %1265 = vmatpush1.bf16.msra.mxu0 0
        %1266 = vmatprep.subr.bf16.mxu0 0
        %1267 = vmatpush1.bf16.msra.mxu0 0
        %1268 = vmatprep.subr.bf16.mxu0 0
        %1269 = vmatpush1.bf16.msra.mxu0 0
        %1270 = vmatprep.subr.bf16.mxu0 0
        %1271 = vmatpush1.bf16.msra.mxu0 0
        %1272 = vmatprep.subr.bf16.mxu0 0
        %1273 = vmatpush1.bf16.msra.mxu0 0
        %1274 = vmatprep.subr.bf16.mxu0 0
        %1275 = vmatpush1.bf16.msra.mxu0 0
        %1276 = vmatprep.subr.bf16.mxu0 0
        %1277 = vmatpush1.bf16.msra.mxu0 0
        %1278 = vmatprep.subr.bf16.mxu0 0
        %1279 = vmatpush1.bf16.msra.mxu0 0
        %1280 = vmatprep.subr.bf16.mxu0 0
        %1281 = vmatpush1.bf16.msra.mxu0 0
        %1282 = vmatprep.mubr.bf16.mxu0 0
        %1283 = vmatmul.mubr.bf16.gmra.mrb[0].mxu0 %v1196
        %v1284 = vpop.f32.mrb[0].mxu0
        %v1285 = vadd.f32 0.0, %v1284
        %v1286 = vpop.f32.mrb[0].mxu0
        %v1287 = vpop.f32.mrb[0].mxu0
        %v1288 = vadd.f32 0.0, %v1287
        %v1289 = vpop.f32.mrb[0].mxu0
        %1290 = vmatprep.mubr.bf16.mxu0 0
        %1291 = vmatmul.mubr.bf16.gmra.mrb[0].mxu0 %v1199
        %v1292 = vpop.f32.mrb[0].mxu0
        %v1293 = vadd.f32 0.0, %v1292
        %v1294 = vpop.f32.mrb[0].mxu0
        %v1295 = vpop.f32.mrb[0].mxu0
        %v1296 = vadd.f32 0.0, %v1295
        %v1297 = vpop.f32.mrb[0].mxu0
        %1298 = vmatprep.mubr.bf16.mxu0 0
        %1299 = vmatmul.mubr.bf16.gmra.mrb[0].mxu0 %v1202
        %v1300 = vpop.f32.mrb[0].mxu0
        %v1301 = vadd.f32 0.0, %v1300
        %v1302 = vpop.f32.mrb[0].mxu0
        %v1303 = vpop.f32.mrb[0].mxu0
        %v1304 = vadd.f32 0.0, %v1303
        %v1305 = vpop.f32.mrb[0].mxu0
        %1306 = vmatprep.mubr.bf16.mxu0 0
        %1307 = vmatmul.mubr.bf16.gmra.mrb[0].mxu0 %v1205
        %v1308 = vpop.f32.mrb[0].mxu0
        %v1309 = vadd.f32 0.0, %v1308
        %v1310 = vpop.f32.mrb[0].mxu0
        %v1311 = vpop.f32.mrb[0].mxu0
        %v1312 = vadd.f32 0.0, %v1311
        %v1313 = vpop.f32.mrb[0].mxu0
        %1314 = vmatprep.mubr.bf16.mxu0 0
        %1315 = vmatmul.mubr.bf16.gmra.mrb[0].mxu0 %v1208
        %v1316 = vpop.f32.mrb[0].mxu0
        %v1317 = vadd.f32 0.0, %v1316
        %v1318 = vpop.f32.mrb[0].mxu0
        %v1319 = vpop.f32.mrb[0].mxu0
        %v1320 = vadd.f32 0.0, %v1319
        %v1321 = vpop.f32.mrb[0].mxu0
        %1322 = vmatprep.mubr.bf16.mxu0 0
        %1323 = vmatmul.mubr.bf16.gmra.mrb[0].mxu0 %v1211
        %v1324 = vpop.f32.mrb[0].mxu0
        %v1325 = vadd.f32 0.0, %v1324
        %v1326 = vpop.f32.mrb[0].mxu0
        %v1327 = vpop.f32.mrb[0].mxu0
        %v1328 = vadd.f32 0.0, %v1327
        %v1329 = vpop.f32.mrb[0].mxu0
        %1330 = vmatprep.mubr.bf16.mxu0 0
        %1331 = vmatmul.mubr.bf16.gmra.mrb[0].mxu0 %v1214
        %v1332 = vpop.f32.mrb[0].mxu0
        %v1333 = vadd.f32 0.0, %v1332
        %v1334 = vpop.f32.mrb[0].mxu0
        %v1335 = vpop.f32.mrb[0].mxu0
        %v1336 = vadd.f32 0.0, %v1335
        %v1337 = vpop.f32.mrb[0].mxu0
        %1338 = vmatprep.mubr.bf16.mxu0 0
        %1339 = vmatmul.mubr.bf16.gmra.mrb[0].mxu0 %v1217
        %v1340 = vpop.f32.mrb[0].mxu0
        %v1341 = vadd.f32 0.0, %v1340
        %v1342 = vpop.f32.mrb[0].mxu0
        %v1343 = vpop.f32.mrb[0].mxu0
        %v1344 = vadd.f32 0.0, %v1343
        %v1345 = vpop.f32.mrb[0].mxu0
        %1346 = vmatprep.mubr.bf16.mxu0 0
        %1347 = vmatmul.mubr.bf16.gmra.mrb[0].mxu0 %v1220
        %v1348 = vpop.f32.mrb[0].mxu0
        %v1349 = vadd.f32 0.0, %v1348
        %v1350 = vpop.f32.mrb[0].mxu0
        %v1351 = vpop.f32.mrb[0].mxu0
        %v1352 = vadd.f32 0.0, %v1351
        %v1353 = vpop.f32.mrb[0].mxu0
        %1354 = vmatprep.mubr.bf16.mxu0 0
        %1355 = vmatmul.mubr.bf16.gmra.mrb[0].mxu0 %v1223
        %v1356 = vpop.f32.mrb[0].mxu0
        %v1357 = vadd.f32 0.0, %v1356
        %v1358 = vpop.f32.mrb[0].mxu0
        %v1359 = vpop.f32.mrb[0].mxu0
        %v1360 = vadd.f32 0.0, %v1359
        %v1361 = vpop.f32.mrb[0].mxu0
        %1362 = vmatprep.mubr.bf16.mxu0 0
        %1363 = vmatmul.mubr.bf16.gmra.mrb[0].mxu0 %v1226
        %v1364 = vpop.f32.mrb[0].mxu0
        %v1365 = vadd.f32 0.0, %v1364
        %v1366 = vpop.f32.mrb[0].mxu0
        %v1367 = vpop.f32.mrb[0].mxu0
        %v1368 = vadd.f32 0.0, %v1367
        %v1369 = vpop.f32.mrb[0].mxu0
        %1370 = vmatprep.mubr.bf16.mxu0 0
        %1371 = vmatmul.mubr.bf16.gmra.mrb[0].mxu0 %v1229
        %v1372 = vpop.f32.mrb[0].mxu0
        %v1373 = vadd.f32 0.0, %v1372
        %v1374 = vpop.f32.mrb[0].mxu0
        %v1375 = vpop.f32.mrb[0].mxu0
        %v1376 = vadd.f32 0.0, %v1375
        %v1377 = vpop.f32.mrb[0].mxu0
        %1378 = vmatprep.mubr.bf16.mxu0 0
        %1379 = vmatmul.mubr.bf16.gmra.mrb[0].mxu0 %v1232
        %v1380 = vpop.f32.mrb[0].mxu0
        %v1381 = vadd.f32 0.0, %v1380
        %v1382 = vpop.f32.mrb[0].mxu0
        %v1383 = vpop.f32.mrb[0].mxu0
        %v1384 = vadd.f32 0.0, %v1383
        %v1385 = vpop.f32.mrb[0].mxu0
        %1386 = vmatprep.mubr.bf16.mxu0 0
        %1387 = vmatmul.mubr.bf16.gmra.mrb[0].mxu0 %v1235
        %v1388 = vpop.f32.mrb[0].mxu0
        %v1389 = vadd.f32 0.0, %v1388
        %v1390 = vpop.f32.mrb[0].mxu0
        %v1391 = vpop.f32.mrb[0].mxu0
        %v1392 = vadd.f32 0.0, %v1391
        %v1393 = vpop.f32.mrb[0].mxu0
        %1394 = vmatprep.mubr.bf16.mxu0 0
        %1395 = vmatmul.mubr.bf16.gmra.mrb[0].mxu0 %v1238
        %v1396 = vpop.f32.mrb[0].mxu0
        %v1397 = vadd.f32 0.0, %v1396
        %v1398 = vpop.f32.mrb[0].mxu0
        %v1399 = vpop.f32.mrb[0].mxu0
        %v1400 = vadd.f32 0.0, %v1399
        %v1401 = vpop.f32.mrb[0].mxu0
        %1402 = vmatprep.mubr.bf16.mxu0 0
        %1403 = vmatmul.mubr.bf16.gmra.mrb[0].mxu0 %v1241
        %v1404 = vpop.f32.mrb[0].mxu0
        %v1405 = vadd.f32 0.0, %v1404
        %v1406 = vpop.f32.mrb[0].mxu0
        %v1407 = vpop.f32.mrb[0].mxu0
        %v1408 = vadd.f32 0.0, %v1407
        %v1409 = vpop.f32.mrb[0].mxu0
        %1410 = vdwg.mxu0
        %vm1411 = vcmask 523264
        %1412 = vst.msk [vmem:[#allocation3] sm:$0xff] %vm1411, %v1285
        %1413 = vst.msk [vmem:[#allocation3 + $0x8] sm:$0xff] %vm1411, %v1288
        %1414 = vst.msk [vmem:[#allocation3 + $0x10] sm:$0xff] %vm1411, %v1293
        %1415 = vst.msk [vmem:[#allocation3 + $0x18] sm:$0xff] %vm1411, %v1296
        %1416 = vst.msk [vmem:[#allocation3 + $0x20] sm:$0xff] %vm1411, %v1301
        %1417 = vst.msk [vmem:[#allocation3 + $0x28] sm:$0xff] %vm1411, %v1304
        %1418 = vst.msk [vmem:[#allocation3 + $0x30] sm:$0xff] %vm1411, %v1309
        %1419 = vst.msk [vmem:[#allocation3 + $0x38] sm:$0xff] %vm1411, %v1312
        %1420 = vst.msk [vmem:[#allocation3 + $0x40] sm:$0xff] %vm1411, %v1317
        %1421 = vst.msk [vmem:[#allocation3 + $0x48] sm:$0xff] %vm1411, %v1320
        %1422 = vst.msk [vmem:[#allocation3 + $0x50] sm:$0xff] %vm1411, %v1325
        %1423 = vst.msk [vmem:[#allocation3 + $0x58] sm:$0xff] %vm1411, %v1328
        %1424 = vst.msk [vmem:[#allocation3 + $0x60] sm:$0xff] %vm1411, %v1333
        %1425 = vst.msk [vmem:[#allocation3 + $0x68] sm:$0xff] %vm1411, %v1336
        %1426 = vst.msk [vmem:[#allocation3 + $0x70] sm:$0xff] %vm1411, %v1341
        %1427 = vst.msk [vmem:[#allocation3 + $0x78] sm:$0xff] %vm1411, %v1344
        %1428 = vst.msk [vmem:[#allocation3 + $0x80] sm:$0xff] %vm1411, %v1349
        %1429 = vst.msk [vmem:[#allocation3 + $0x88] sm:$0xff] %vm1411, %v1352
        %1430 = vst.msk [vmem:[#allocation3 + $0x90] sm:$0xff] %vm1411, %v1357
        %1431 = vst.msk [vmem:[#allocation3 + $0x98] sm:$0xff] %vm1411, %v1360
        %1432 = vst.msk [vmem:[#allocation3 + $0xa0] sm:$0xff] %vm1411, %v1365
        %1433 = vst.msk [vmem:[#allocation3 + $0xa8] sm:$0xff] %vm1411, %v1368
        %1434 = vst.msk [vmem:[#allocation3 + $0xb0] sm:$0xff] %vm1411, %v1373
        %1435 = vst.msk [vmem:[#allocation3 + $0xb8] sm:$0xff] %vm1411, %v1376
        %1436 = vst.msk [vmem:[#allocation3 + $0xc0] sm:$0xff] %vm1411, %v1381
        %1437 = vst.msk [vmem:[#allocation3 + $0xc8] sm:$0xff] %vm1411, %v1384
        %1438 = vst.msk [vmem:[#allocation3 + $0xd0] sm:$0xff] %vm1411, %v1389
        %1439 = vst.msk [vmem:[#allocation3 + $0xd8] sm:$0xff] %vm1411, %v1392
        %1440 = vst.msk [vmem:[#allocation3 + $0xe0] sm:$0xff] %vm1411, %v1397
        %1441 = vst.msk [vmem:[#allocation3 + $0xe8] sm:$0xff] %vm1411, %v1400
        %1442 = vst.msk [vmem:[#allocation3 + $0xf0] sm:$0xff] %vm1411, %v1405
        %1443 = vst.msk [vmem:[#allocation3 + $0xf8] sm:$0xff] %vm1411, %v1408
        %v1444 = vld [vmem:[#allocation2] sm:$0xf]
        %v1445 = vld [vmem:[#allocation2 + $0x4] sm:$0xf]
        %v1446 = vld [vmem:[#allocation2 + $0x8] sm:$0x1]
        %v1447 = vld [vmem:[#allocation2 + $0xc] sm:$0xf]
        %v1448 = vld [vmem:[#allocation2 + $0x10] sm:$0xf]
        %v1449 = vld [vmem:[#allocation2 + $0x14] sm:$0x1]
        %v1450 = vld [vmem:[#allocation2 + $0x18] sm:$0xf]
        %v1451 = vld [vmem:[#allocation2 + $0x1c] sm:$0xf]
        %v1452 = vld [vmem:[#allocation2 + $0x20] sm:$0x1]
        %v1453 = vld [vmem:[#allocation2 + $0x24] sm:$0xf]
        %v1454 = vld [vmem:[#allocation2 + $0x28] sm:$0xf]
        %v1455 = vld [vmem:[#allocation2 + $0x2c] sm:$0x1]
        %v1456 = vld [vmem:[#allocation2 + $0x30] sm:$0xf]
        %v1457 = vld [vmem:[#allocation2 + $0x34] sm:$0xf]
        %v1458 = vld [vmem:[#allocation2 + $0x38] sm:$0x1]
        %v1459 = vld [vmem:[#allocation2 + $0x3c] sm:$0xf]
        %v1460 = vld [vmem:[#allocation2 + $0x40] sm:$0xf]
        %v1461 = vld [vmem:[#allocation2 + $0x44] sm:$0x1]
        %v1462 = vld [vmem:[#allocation2 + $0x48] sm:$0xf]
        %v1463 = vld [vmem:[#allocation2 + $0x4c] sm:$0xf]
        %v1464 = vld [vmem:[#allocation2 + $0x50] sm:$0x1]
        %v1465 = vld [vmem:[#allocation2 + $0x54] sm:$0xf]
        %v1466 = vld [vmem:[#allocation2 + $0x58] sm:$0xf]
        %v1467 = vld [vmem:[#allocation2 + $0x5c] sm:$0x1]
        %v1468 = vld [vmem:[#allocation2 + $0x60] sm:$0xf]
        %v1469 = vld [vmem:[#allocation2 + $0x64] sm:$0xf]
        %v1470 = vld [vmem:[#allocation2 + $0x68] sm:$0x1]
        %v1471 = vld [vmem:[#allocation2 + $0x6c] sm:$0xf]
        %v1472 = vld [vmem:[#allocation2 + $0x70] sm:$0xf]
        %v1473 = vld [vmem:[#allocation2 + $0x74] sm:$0x1]
        %v1474 = vld [vmem:[#allocation2 + $0x78] sm:$0xf]
        %v1475 = vld [vmem:[#allocation2 + $0x7c] sm:$0xf]
        %v1476 = vld [vmem:[#allocation2 + $0x80] sm:$0x1]
        %v1477 = vld [vmem:[#allocation2 + $0x84] sm:$0xf]
        %v1478 = vld [vmem:[#allocation2 + $0x88] sm:$0xf]
        %v1479 = vld [vmem:[#allocation2 + $0x8c] sm:$0x1]
        %v1480 = vld [vmem:[#allocation2 + $0x90] sm:$0xf]
        %v1481 = vld [vmem:[#allocation2 + $0x94] sm:$0xf]
        %v1482 = vld [vmem:[#allocation2 + $0x98] sm:$0x1]
        %v1483 = vld [vmem:[#allocation2 + $0x9c] sm:$0xf]
        %v1484 = vld [vmem:[#allocation2 + $0xa0] sm:$0xf]
        %v1485 = vld [vmem:[#allocation2 + $0xa4] sm:$0x1]
        %v1486 = vld [vmem:[#allocation2 + $0xa8] sm:$0xf]
        %v1487 = vld [vmem:[#allocation2 + $0xac] sm:$0xf]
        %v1488 = vld [vmem:[#allocation2 + $0xb0] sm:$0x1]
        %v1489 = vld [vmem:[#allocation2 + $0xb4] sm:$0xf]
        %v1490 = vld [vmem:[#allocation2 + $0xb8] sm:$0xf]
        %v1491 = vld [vmem:[#allocation2 + $0xbc] sm:$0x1]
        %vm1492 = vsmask.f32 3328
        %vm1493 = vsmask.f32 7440
        %vm1494 = vmor %vm1492, %vm1493
        %v1496 = vshrl.u32 %v1444, 16
        %v1498 = vrot.slane %v1496, 4
        %v1499 = vshll.u32 %v1444, 16
        %v1501 = vrot.slane %v1499, 5
        %v1502 = vor.u32 %v1498, %v1501
        %v1503 = vrot.slane %v1502, 4
        %v1505 = vshll.u32 %v1445, 16
        %v1507 = vrot.slane %v1505, 5
        %v1508 = vsel %vm1494, %v1503, %v1507
        %v1509 = vshrl.u32 %v1445, 16
        %v1511 = vrot.slane %v1509, 4
        %v1512 = vor.u32 %v1511, %v1507
        %v1513 = vrot.slane %v1512, 4
        %v1515 = vshll.u32 %v1446, 16
        %v1517 = vrot.slane %v1515, 5
        %v1518 = vsel %vm1494, %v1513, %v1517
        %v1520 = vshrl.u32 %v1447, 16
        %v1522 = vrot.slane %v1520, 4
        %v1523 = vshll.u32 %v1447, 16
        %v1525 = vrot.slane %v1523, 5
        %v1526 = vor.u32 %v1522, %v1525
        %v1527 = vrot.slane %v1526, 4
        %v1529 = vshll.u32 %v1448, 16
        %v1531 = vrot.slane %v1529, 5
        %v1532 = vsel %vm1494, %v1527, %v1531
        %v1533 = vshrl.u32 %v1448, 16
        %v1535 = vrot.slane %v1533, 4
        %v1536 = vor.u32 %v1535, %v1531
        %v1537 = vrot.slane %v1536, 4
        %v1539 = vshll.u32 %v1449, 16
        %v1541 = vrot.slane %v1539, 5
        %v1542 = vsel %vm1494, %v1537, %v1541
        %v1544 = vshrl.u32 %v1450, 16
        %v1546 = vrot.slane %v1544, 4
        %v1547 = vshll.u32 %v1450, 16
        %v1549 = vrot.slane %v1547, 5
        %v1550 = vor.u32 %v1546, %v1549
        %v1551 = vrot.slane %v1550, 4
        %v1553 = vshll.u32 %v1451, 16
        %v1555 = vrot.slane %v1553, 5
        %v1556 = vsel %vm1494, %v1551, %v1555
        %v1557 = vshrl.u32 %v1451, 16
        %v1559 = vrot.slane %v1557, 4
        %v1560 = vor.u32 %v1559, %v1555
        %v1561 = vrot.slane %v1560, 4
        %v1563 = vshll.u32 %v1452, 16
        %v1565 = vrot.slane %v1563, 5
        %v1566 = vsel %vm1494, %v1561, %v1565
        %v1568 = vshrl.u32 %v1453, 16
        %v1570 = vrot.slane %v1568, 4
        %v1571 = vshll.u32 %v1453, 16
        %v1573 = vrot.slane %v1571, 5
        %v1574 = vor.u32 %v1570, %v1573
        %v1575 = vrot.slane %v1574, 4
        %v1577 = vshll.u32 %v1454, 16
        %v1579 = vrot.slane %v1577, 5
        %v1580 = vsel %vm1494, %v1575, %v1579
        %v1581 = vshrl.u32 %v1454, 16
        %v1583 = vrot.slane %v1581, 4
        %v1584 = vor.u32 %v1583, %v1579
        %v1585 = vrot.slane %v1584, 4
        %v1587 = vshll.u32 %v1455, 16
        %v1589 = vrot.slane %v1587, 5
        %v1590 = vsel %vm1494, %v1585, %v1589
        %v1592 = vshrl.u32 %v1456, 16
        %v1594 = vrot.slane %v1592, 4
        %v1595 = vshll.u32 %v1456, 16
        %v1597 = vrot.slane %v1595, 5
        %v1598 = vor.u32 %v1594, %v1597
        %v1599 = vrot.slane %v1598, 4
        %v1601 = vshll.u32 %v1457, 16
        %v1603 = vrot.slane %v1601, 5
        %v1604 = vsel %vm1494, %v1599, %v1603
        %v1605 = vshrl.u32 %v1457, 16
        %v1607 = vrot.slane %v1605, 4
        %v1608 = vor.u32 %v1607, %v1603
        %v1609 = vrot.slane %v1608, 4
        %v1611 = vshll.u32 %v1458, 16
        %v1613 = vrot.slane %v1611, 5
        %v1614 = vsel %vm1494, %v1609, %v1613
        %v1616 = vshrl.u32 %v1459, 16
        %v1618 = vrot.slane %v1616, 4
        %v1619 = vshll.u32 %v1459, 16
        %v1621 = vrot.slane %v1619, 5
        %v1622 = vor.u32 %v1618, %v1621
        %v1623 = vrot.slane %v1622, 4
        %v1625 = vshll.u32 %v1460, 16
        %v1627 = vrot.slane %v1625, 5
        %v1628 = vsel %vm1494, %v1623, %v1627
        %v1629 = vshrl.u32 %v1460, 16
        %v1631 = vrot.slane %v1629, 4
        %v1632 = vor.u32 %v1631, %v1627
        %v1633 = vrot.slane %v1632, 4
        %v1635 = vshll.u32 %v1461, 16
        %v1637 = vrot.slane %v1635, 5
        %v1638 = vsel %vm1494, %v1633, %v1637
        %v1640 = vshrl.u32 %v1462, 16
        %v1642 = vrot.slane %v1640, 4
        %v1643 = vshll.u32 %v1462, 16
        %v1645 = vrot.slane %v1643, 5
        %v1646 = vor.u32 %v1642, %v1645
        %v1647 = vrot.slane %v1646, 4
        %v1649 = vshll.u32 %v1463, 16
        %v1651 = vrot.slane %v1649, 5
        %v1652 = vsel %vm1494, %v1647, %v1651
        %v1653 = vshrl.u32 %v1463, 16
        %v1655 = vrot.slane %v1653, 4
        %v1656 = vor.u32 %v1655, %v1651
        %v1657 = vrot.slane %v1656, 4
        %v1659 = vshll.u32 %v1464, 16
        %v1661 = vrot.slane %v1659, 5
        %v1662 = vsel %vm1494, %v1657, %v1661
        %v1664 = vshrl.u32 %v1465, 16
        %v1666 = vrot.slane %v1664, 4
        %v1667 = vshll.u32 %v1465, 16
        %v1669 = vrot.slane %v1667, 5
        %v1670 = vor.u32 %v1666, %v1669
        %v1671 = vrot.slane %v1670, 4
        %v1673 = vshll.u32 %v1466, 16
        %v1675 = vrot.slane %v1673, 5
        %v1676 = vsel %vm1494, %v1671, %v1675
        %v1677 = vshrl.u32 %v1466, 16
        %v1679 = vrot.slane %v1677, 4
        %v1680 = vor.u32 %v1679, %v1675
        %v1681 = vrot.slane %v1680, 4
        %v1683 = vshll.u32 %v1467, 16
        %v1685 = vrot.slane %v1683, 5
        %v1686 = vsel %vm1494, %v1681, %v1685
        %v1688 = vshrl.u32 %v1468, 16
        %v1690 = vrot.slane %v1688, 4
        %v1691 = vshll.u32 %v1468, 16
        %v1693 = vrot.slane %v1691, 5
        %v1694 = vor.u32 %v1690, %v1693
        %v1695 = vrot.slane %v1694, 4
        %v1697 = vshll.u32 %v1469, 16
        %v1699 = vrot.slane %v1697, 5
        %v1700 = vsel %vm1494, %v1695, %v1699
        %v1701 = vshrl.u32 %v1469, 16
        %v1703 = vrot.slane %v1701, 4
        %v1704 = vor.u32 %v1703, %v1699
        %v1705 = vrot.slane %v1704, 4
        %v1707 = vshll.u32 %v1470, 16
        %v1709 = vrot.slane %v1707, 5
        %v1710 = vsel %vm1494, %v1705, %v1709
        %v1712 = vshrl.u32 %v1471, 16
        %v1714 = vrot.slane %v1712, 4
        %v1715 = vshll.u32 %v1471, 16
        %v1717 = vrot.slane %v1715, 5
        %v1718 = vor.u32 %v1714, %v1717
        %v1719 = vrot.slane %v1718, 4
        %v1721 = vshll.u32 %v1472, 16
        %v1723 = vrot.slane %v1721, 5
        %v1724 = vsel %vm1494, %v1719, %v1723
        %v1725 = vshrl.u32 %v1472, 16
        %v1727 = vrot.slane %v1725, 4
        %v1728 = vor.u32 %v1727, %v1723
        %v1729 = vrot.slane %v1728, 4
        %v1731 = vshll.u32 %v1473, 16
        %v1733 = vrot.slane %v1731, 5
        %v1734 = vsel %vm1494, %v1729, %v1733
        %v1736 = vshrl.u32 %v1474, 16
        %v1738 = vrot.slane %v1736, 4
        %v1739 = vshll.u32 %v1474, 16
        %v1741 = vrot.slane %v1739, 5
        %v1742 = vor.u32 %v1738, %v1741
        %v1743 = vrot.slane %v1742, 4
        %v1745 = vshll.u32 %v1475, 16
        %v1747 = vrot.slane %v1745, 5
        %v1748 = vsel %vm1494, %v1743, %v1747
        %v1749 = vshrl.u32 %v1475, 16
        %v1751 = vrot.slane %v1749, 4
        %v1752 = vor.u32 %v1751, %v1747
        %v1753 = vrot.slane %v1752, 4
        %v1755 = vshll.u32 %v1476, 16
        %v1757 = vrot.slane %v1755, 5
        %v1758 = vsel %vm1494, %v1753, %v1757
        %v1760 = vshrl.u32 %v1477, 16
        %v1762 = vrot.slane %v1760, 4
        %v1763 = vshll.u32 %v1477, 16
        %v1765 = vrot.slane %v1763, 5
        %v1766 = vor.u32 %v1762, %v1765
        %v1767 = vrot.slane %v1766, 4
        %v1769 = vshll.u32 %v1478, 16
        %v1771 = vrot.slane %v1769, 5
        %v1772 = vsel %vm1494, %v1767, %v1771
        %v1773 = vshrl.u32 %v1478, 16
        %v1775 = vrot.slane %v1773, 4
        %v1776 = vor.u32 %v1775, %v1771
        %v1777 = vrot.slane %v1776, 4
        %v1779 = vshll.u32 %v1479, 16
        %v1781 = vrot.slane %v1779, 5
        %v1782 = vsel %vm1494, %v1777, %v1781
        %v1784 = vshrl.u32 %v1480, 16
        %v1786 = vrot.slane %v1784, 4
        %v1787 = vshll.u32 %v1480, 16
        %v1789 = vrot.slane %v1787, 5
        %v1790 = vor.u32 %v1786, %v1789
        %v1791 = vrot.slane %v1790, 4
        %v1793 = vshll.u32 %v1481, 16
        %v1795 = vrot.slane %v1793, 5
        %v1796 = vsel %vm1494, %v1791, %v1795
        %v1797 = vshrl.u32 %v1481, 16
        %v1799 = vrot.slane %v1797, 4
        %v1800 = vor.u32 %v1799, %v1795
        %v1801 = vrot.slane %v1800, 4
        %v1803 = vshll.u32 %v1482, 16
        %v1805 = vrot.slane %v1803, 5
        %v1806 = vsel %vm1494, %v1801, %v1805
        %v1808 = vshrl.u32 %v1483, 16
        %v1810 = vrot.slane %v1808, 4
        %v1811 = vshll.u32 %v1483, 16
        %v1813 = vrot.slane %v1811, 5
        %v1814 = vor.u32 %v1810, %v1813
        %v1815 = vrot.slane %v1814, 4
        %v1817 = vshll.u32 %v1484, 16
        %v1819 = vrot.slane %v1817, 5
        %v1820 = vsel %vm1494, %v1815, %v1819
        %v1821 = vshrl.u32 %v1484, 16
        %v1823 = vrot.slane %v1821, 4
        %v1824 = vor.u32 %v1823, %v1819
        %v1825 = vrot.slane %v1824, 4
        %v1827 = vshll.u32 %v1485, 16
        %v1829 = vrot.slane %v1827, 5
        %v1830 = vsel %vm1494, %v1825, %v1829
        %v1832 = vshrl.u32 %v1486, 16
        %v1834 = vrot.slane %v1832, 4
        %v1835 = vshll.u32 %v1486, 16
        %v1837 = vrot.slane %v1835, 5
        %v1838 = vor.u32 %v1834, %v1837
        %v1839 = vrot.slane %v1838, 4
        %v1841 = vshll.u32 %v1487, 16
        %v1843 = vrot.slane %v1841, 5
        %v1844 = vsel %vm1494, %v1839, %v1843
        %v1845 = vshrl.u32 %v1487, 16
        %v1847 = vrot.slane %v1845, 4
        %v1848 = vor.u32 %v1847, %v1843
        %v1849 = vrot.slane %v1848, 4
        %v1851 = vshll.u32 %v1488, 16
        %v1853 = vrot.slane %v1851, 5
        %v1854 = vsel %vm1494, %v1849, %v1853
        %v1856 = vshrl.u32 %v1489, 16
        %v1858 = vrot.slane %v1856, 4
        %v1859 = vshll.u32 %v1489, 16
        %v1861 = vrot.slane %v1859, 5
        %v1862 = vor.u32 %v1858, %v1861
        %v1863 = vrot.slane %v1862, 4
        %v1865 = vshll.u32 %v1490, 16
        %v1867 = vrot.slane %v1865, 5
        %v1868 = vsel %vm1494, %v1863, %v1867
        %v1869 = vshrl.u32 %v1490, 16
        %v1871 = vrot.slane %v1869, 4
        %v1872 = vor.u32 %v1871, %v1867
        %v1873 = vrot.slane %v1872, 4
        %v1875 = vshll.u32 %v1491, 16
        %v1877 = vrot.slane %v1875, 5
        %v1878 = vsel %vm1494, %v1873, %v1877
        %s1879 = scalar_lea.vmem %s3, 2
        %v1880 = vld [vmem:[%s1879] sm:$0x3]
        %v1881 = vunpack.c.l.b16 %v1508
        %v1882 = vunpack.c.l.b16 %v1518
        %v1883 = vunpack.c.l.b16 %v1532
        %v1884 = vunpack.c.l.b16 %v1542
        %v1885 = vunpack.c.l.b16 %v1556
        %v1886 = vunpack.c.l.b16 %v1566
        %v1887 = vunpack.c.l.b16 %v1580
        %v1888 = vunpack.c.l.b16 %v1590
        %v1889 = vunpack.c.l.b16 %v1604
        %v1890 = vunpack.c.l.b16 %v1614
        %v1891 = vunpack.c.l.b16 %v1628
        %v1892 = vunpack.c.l.b16 %v1638
        %v1893 = vunpack.c.l.b16 %v1652
        %v1894 = vunpack.c.l.b16 %v1662
        %v1895 = vunpack.c.l.b16 %v1676
        %v1896 = vunpack.c.l.b16 %v1686
        %v1897 = vunpack.c.l.b16 %v1700
        %v1898 = vunpack.c.l.b16 %v1710
        %v1899 = vunpack.c.l.b16 %v1724
        %v1900 = vunpack.c.l.b16 %v1734
        %v1901 = vunpack.c.l.b16 %v1748
        %v1902 = vunpack.c.l.b16 %v1758
        %v1903 = vunpack.c.l.b16 %v1772
        %v1904 = vunpack.c.l.b16 %v1782
        %v1905 = vunpack.c.l.b16 %v1796
        %v1906 = vunpack.c.l.b16 %v1806
        %v1907 = vunpack.c.l.b16 %v1820
        %v1908 = vunpack.c.l.b16 %v1830
        %v1909 = vunpack.c.l.b16 %v1844
        %v1910 = vunpack.c.l.b16 %v1854
        %v1911 = vunpack.c.l.b16 %v1868
        %v1912 = vunpack.c.l.b16 %v1878
        %v1913 = vpack.c.b16 %v1882, %v1881
        %v1914 = vpack.c.b16 %v1884, %v1883
        %v1915 = vpack.c.b16 %v1886, %v1885
        %v1916 = vpack.c.b16 %v1888, %v1887
        %v1917 = vpack.c.b16 %v1890, %v1889
        %v1918 = vpack.c.b16 %v1892, %v1891
        %v1919 = vpack.c.b16 %v1894, %v1893
        %v1920 = vpack.c.b16 %v1896, %v1895
        %v1921 = vpack.c.b16 %v1898, %v1897
        %v1922 = vpack.c.b16 %v1900, %v1899
        %v1923 = vpack.c.b16 %v1902, %v1901
        %v1924 = vpack.c.b16 %v1904, %v1903
        %v1925 = vpack.c.b16 %v1906, %v1905
        %v1926 = vpack.c.b16 %v1908, %v1907
        %v1927 = vpack.c.b16 %v1910, %v1909
        %v1928 = vpack.c.b16 %v1912, %v1911
        %v1930 = vsel %vm1194, %v1913, 0
        %v1933 = vsel %vm1194, %v1914, 0
        %v1936 = vsel %vm1194, %v1915, 0
        %v1939 = vsel %vm1194, %v1916, 0
        %v1942 = vsel %vm1194, %v1917, 0
        %v1945 = vsel %vm1194, %v1918, 0
        %v1948 = vsel %vm1194, %v1919, 0
        %v1951 = vsel %vm1194, %v1920, 0
        %v1954 = vsel %vm1194, %v1921, 0
        %v1957 = vsel %vm1194, %v1922, 0
        %v1960 = vsel %vm1194, %v1923, 0
        %v1963 = vsel %vm1194, %v1924, 0
        %v1966 = vsel %vm1194, %v1925, 0
        %v1969 = vsel %vm1194, %v1926, 0
        %v1972 = vsel %vm1194, %v1927, 0
        %v1975 = vsel %vm1194, %v1928, 0
        %v1978 = vand.u32 %v1880, %v1246
        %1980 = vmatprep.subr.bf16.mxu0 0
        %1981 = vmatpush1.bf16.msra.mxu0 %v1978
        %1982 = vmatprep.subr.bf16.mxu0 0
        %1983 = vmatpush1.bf16.msra.mxu0 0
        %1984 = vmatprep.subr.bf16.mxu0 0
        %1985 = vmatpush1.bf16.msra.mxu0 0
        %1986 = vmatprep.subr.bf16.mxu0 0
        %1987 = vmatpush1.bf16.msra.mxu0 0
        %1988 = vmatprep.subr.bf16.mxu0 0
        %1989 = vmatpush1.bf16.msra.mxu0 0
        %1990 = vmatprep.subr.bf16.mxu0 0
        %1991 = vmatpush1.bf16.msra.mxu0 0
        %1992 = vmatprep.subr.bf16.mxu0 0
        %1993 = vmatpush1.bf16.msra.mxu0 0
        %1994 = vmatprep.subr.bf16.mxu0 0
        %1995 = vmatpush1.bf16.msra.mxu0 0
        %1996 = vmatprep.subr.bf16.mxu0 0
        %1997 = vmatpush1.bf16.msra.mxu0 0
        %1998 = vmatprep.subr.bf16.mxu0 0
        %1999 = vmatpush1.bf16.msra.mxu0 0
        %2000 = vmatprep.subr.bf16.mxu0 0
        %2001 = vmatpush1.bf16.msra.mxu0 0
        %2002 = vmatprep.subr.bf16.mxu0 0
        %2003 = vmatpush1.bf16.msra.mxu0 0
        %2004 = vmatprep.subr.bf16.mxu0 0
        %2005 = vmatpush1.bf16.msra.mxu0 0
        %2006 = vmatprep.subr.bf16.mxu0 0
        %2007 = vmatpush1.bf16.msra.mxu0 0
        %2008 = vmatprep.subr.bf16.mxu0 0
        %2009 = vmatpush1.bf16.msra.mxu0 0
        %2010 = vmatprep.subr.bf16.mxu0 0
        %2011 = vmatpush1.bf16.msra.mxu0 0
        %2012 = vmatprep.mubr.bf16.mxu0 0
        %2013 = vmatmul.mubr.bf16.gmra.mrb[0].mxu0 %v1930
        %v2014 = vpop.f32.mrb[0].mxu0
        %v2015 = vadd.f32 0.0, %v2014
        %v2016 = vpop.f32.mrb[0].mxu0
        %v2017 = vpop.f32.mrb[0].mxu0
        %v2018 = vadd.f32 0.0, %v2017
        %v2019 = vpop.f32.mrb[0].mxu0
        %2020 = vmatprep.mubr.bf16.mxu0 0
        %2021 = vmatmul.mubr.bf16.gmra.mrb[0].mxu0 %v1933
        %v2022 = vpop.f32.mrb[0].mxu0
        %v2023 = vadd.f32 0.0, %v2022
        %v2024 = vpop.f32.mrb[0].mxu0
        %v2025 = vpop.f32.mrb[0].mxu0
        %v2026 = vadd.f32 0.0, %v2025
        %v2027 = vpop.f32.mrb[0].mxu0
        %2028 = vmatprep.mubr.bf16.mxu0 0
        %2029 = vmatmul.mubr.bf16.gmra.mrb[0].mxu0 %v1936
        %v2030 = vpop.f32.mrb[0].mxu0
        %v2031 = vadd.f32 0.0, %v2030
        %v2032 = vpop.f32.mrb[0].mxu0
        %v2033 = vpop.f32.mrb[0].mxu0
        %v2034 = vadd.f32 0.0, %v2033
        %v2035 = vpop.f32.mrb[0].mxu0
        %2036 = vmatprep.mubr.bf16.mxu0 0
        %2037 = vmatmul.mubr.bf16.gmra.mrb[0].mxu0 %v1939
        %v2038 = vpop.f32.mrb[0].mxu0
        %v2039 = vadd.f32 0.0, %v2038
        %v2040 = vpop.f32.mrb[0].mxu0
        %v2041 = vpop.f32.mrb[0].mxu0
        %v2042 = vadd.f32 0.0, %v2041
        %v2043 = vpop.f32.mrb[0].mxu0
        %2044 = vmatprep.mubr.bf16.mxu0 0
        %2045 = vmatmul.mubr.bf16.gmra.mrb[0].mxu0 %v1942
        %v2046 = vpop.f32.mrb[0].mxu0
        %v2047 = vadd.f32 0.0, %v2046
        %v2048 = vpop.f32.mrb[0].mxu0
        %v2049 = vpop.f32.mrb[0].mxu0
        %v2050 = vadd.f32 0.0, %v2049
        %v2051 = vpop.f32.mrb[0].mxu0
        %2052 = vmatprep.mubr.bf16.mxu0 0
        %2053 = vmatmul.mubr.bf16.gmra.mrb[0].mxu0 %v1945
        %v2054 = vpop.f32.mrb[0].mxu0
        %v2055 = vadd.f32 0.0, %v2054
        %v2056 = vpop.f32.mrb[0].mxu0
        %v2057 = vpop.f32.mrb[0].mxu0
        %v2058 = vadd.f32 0.0, %v2057
        %v2059 = vpop.f32.mrb[0].mxu0
        %2060 = vmatprep.mubr.bf16.mxu0 0
        %2061 = vmatmul.mubr.bf16.gmra.mrb[0].mxu0 %v1948
        %v2062 = vpop.f32.mrb[0].mxu0
        %v2063 = vadd.f32 0.0, %v2062
        %v2064 = vpop.f32.mrb[0].mxu0
        %v2065 = vpop.f32.mrb[0].mxu0
        %v2066 = vadd.f32 0.0, %v2065
        %v2067 = vpop.f32.mrb[0].mxu0
        %2068 = vmatprep.mubr.bf16.mxu0 0
        %2069 = vmatmul.mubr.bf16.gmra.mrb[0].mxu0 %v1951
        %v2070 = vpop.f32.mrb[0].mxu0
        %v2071 = vadd.f32 0.0, %v2070
        %v2072 = vpop.f32.mrb[0].mxu0
        %v2073 = vpop.f32.mrb[0].mxu0
        %v2074 = vadd.f32 0.0, %v2073
        %v2075 = vpop.f32.mrb[0].mxu0
        %2076 = vmatprep.mubr.bf16.mxu0 0
        %2077 = vmatmul.mubr.bf16.gmra.mrb[0].mxu0 %v1954
        %v2078 = vpop.f32.mrb[0].mxu0
        %v2079 = vadd.f32 0.0, %v2078
        %v2080 = vpop.f32.mrb[0].mxu0
        %v2081 = vpop.f32.mrb[0].mxu0
        %v2082 = vadd.f32 0.0, %v2081
        %v2083 = vpop.f32.mrb[0].mxu0
        %2084 = vmatprep.mubr.bf16.mxu0 0
        %2085 = vmatmul.mubr.bf16.gmra.mrb[0].mxu0 %v1957
        %v2086 = vpop.f32.mrb[0].mxu0
        %v2087 = vadd.f32 0.0, %v2086
        %v2088 = vpop.f32.mrb[0].mxu0
        %v2089 = vpop.f32.mrb[0].mxu0
        %v2090 = vadd.f32 0.0, %v2089
        %v2091 = vpop.f32.mrb[0].mxu0
        %2092 = vmatprep.mubr.bf16.mxu0 0
        %2093 = vmatmul.mubr.bf16.gmra.mrb[0].mxu0 %v1960
        %v2094 = vpop.f32.mrb[0].mxu0
        %v2095 = vadd.f32 0.0, %v2094
        %v2096 = vpop.f32.mrb[0].mxu0
        %v2097 = vpop.f32.mrb[0].mxu0
        %v2098 = vadd.f32 0.0, %v2097
        %v2099 = vpop.f32.mrb[0].mxu0
        %2100 = vmatprep.mubr.bf16.mxu0 0
        %2101 = vmatmul.mubr.bf16.gmra.mrb[0].mxu0 %v1963
        %v2102 = vpop.f32.mrb[0].mxu0
        %v2103 = vadd.f32 0.0, %v2102
        %v2104 = vpop.f32.mrb[0].mxu0
        %v2105 = vpop.f32.mrb[0].mxu0
        %v2106 = vadd.f32 0.0, %v2105
        %v2107 = vpop.f32.mrb[0].mxu0
        %2108 = vmatprep.mubr.bf16.mxu0 0
        %2109 = vmatmul.mubr.bf16.gmra.mrb[0].mxu0 %v1966
        %v2110 = vpop.f32.mrb[0].mxu0
        %v2111 = vadd.f32 0.0, %v2110
        %v2112 = vpop.f32.mrb[0].mxu0
        %v2113 = vpop.f32.mrb[0].mxu0
        %v2114 = vadd.f32 0.0, %v2113
        %v2115 = vpop.f32.mrb[0].mxu0
        %2116 = vmatprep.mubr.bf16.mxu0 0
        %2117 = vmatmul.mubr.bf16.gmra.mrb[0].mxu0 %v1969
        %v2118 = vpop.f32.mrb[0].mxu0
        %v2119 = vadd.f32 0.0, %v2118
        %v2120 = vpop.f32.mrb[0].mxu0
        %v2121 = vpop.f32.mrb[0].mxu0
        %v2122 = vadd.f32 0.0, %v2121
        %v2123 = vpop.f32.mrb[0].mxu0
        %2124 = vmatprep.mubr.bf16.mxu0 0
        %2125 = vmatmul.mubr.bf16.gmra.mrb[0].mxu0 %v1972
        %v2126 = vpop.f32.mrb[0].mxu0
        %v2127 = vadd.f32 0.0, %v2126
        %v2128 = vpop.f32.mrb[0].mxu0
        %v2129 = vpop.f32.mrb[0].mxu0
        %v2130 = vadd.f32 0.0, %v2129
        %v2131 = vpop.f32.mrb[0].mxu0
        %2132 = vmatprep.mubr.bf16.mxu0 0
        %2133 = vmatmul.mubr.bf16.gmra.mrb[0].mxu0 %v1975
        %v2134 = vpop.f32.mrb[0].mxu0
        %v2135 = vadd.f32 0.0, %v2134
        %v2136 = vpop.f32.mrb[0].mxu0
        %v2137 = vpop.f32.mrb[0].mxu0
        %v2138 = vadd.f32 0.0, %v2137
        %v2139 = vpop.f32.mrb[0].mxu0
        %2140 = vdwg.mxu0
        %v2141 = vld [vmem:[#allocation3] sm:$0xff]
        %v2142 = vld [vmem:[#allocation3 + $0x8] sm:$0xff]
        %v2143 = vld [vmem:[#allocation3 + $0x10] sm:$0xff]
        %v2144 = vld [vmem:[#allocation3 + $0x18] sm:$0xff]
        %v2145 = vld [vmem:[#allocation3 + $0x20] sm:$0xff]
        %v2146 = vld [vmem:[#allocation3 + $0x28] sm:$0xff]
        %v2147 = vld [vmem:[#allocation3 + $0x30] sm:$0xff]
        %v2148 = vld [vmem:[#allocation3 + $0x38] sm:$0xff]
        %v2149 = vld [vmem:[#allocation3 + $0x40] sm:$0xff]
        %v2150 = vld [vmem:[#allocation3 + $0x48] sm:$0xff]
        %v2151 = vld [vmem:[#allocation3 + $0x50] sm:$0xff]
        %v2152 = vld [vmem:[#allocation3 + $0x58] sm:$0xff]
        %v2153 = vld [vmem:[#allocation3 + $0x60] sm:$0xff]
        %v2154 = vld [vmem:[#allocation3 + $0x68] sm:$0xff]
        %v2155 = vld [vmem:[#allocation3 + $0x70] sm:$0xff]
        %v2156 = vld [vmem:[#allocation3 + $0x78] sm:$0xff]
        %v2157 = vld [vmem:[#allocation3 + $0x80] sm:$0xff]
        %v2158 = vld [vmem:[#allocation3 + $0x88] sm:$0xff]
        %v2159 = vld [vmem:[#allocation3 + $0x90] sm:$0xff]
        %v2160 = vld [vmem:[#allocation3 + $0x98] sm:$0xff]
        %v2161 = vld [vmem:[#allocation3 + $0xa0] sm:$0xff]
        %v2162 = vld [vmem:[#allocation3 + $0xa8] sm:$0xff]
        %v2163 = vld [vmem:[#allocation3 + $0xb0] sm:$0xff]
        %v2164 = vld [vmem:[#allocation3 + $0xb8] sm:$0xff]
        %v2165 = vld [vmem:[#allocation3 + $0xc0] sm:$0xff]
        %v2166 = vld [vmem:[#allocation3 + $0xc8] sm:$0xff]
        %v2167 = vld [vmem:[#allocation3 + $0xd0] sm:$0xff]
        %v2168 = vld [vmem:[#allocation3 + $0xd8] sm:$0xff]
        %v2169 = vld [vmem:[#allocation3 + $0xe0] sm:$0xff]
        %v2170 = vld [vmem:[#allocation3 + $0xe8] sm:$0xff]
        %v2171 = vld [vmem:[#allocation3 + $0xf0] sm:$0xff]
        %v2172 = vld [vmem:[#allocation3 + $0xf8] sm:$0xff]
        %v2173 = vadd.f32 %v2141, %v2015
        %v2174 = vadd.f32 %v2142, %v2018
        %v2175 = vadd.f32 %v2143, %v2023
        %v2176 = vadd.f32 %v2144, %v2026
        %v2177 = vadd.f32 %v2145, %v2031
        %v2178 = vadd.f32 %v2146, %v2034
        %v2179 = vadd.f32 %v2147, %v2039
        %v2180 = vadd.f32 %v2148, %v2042
        %v2181 = vadd.f32 %v2149, %v2047
        %v2182 = vadd.f32 %v2150, %v2050
        %v2183 = vadd.f32 %v2151, %v2055
        %v2184 = vadd.f32 %v2152, %v2058
        %v2185 = vadd.f32 %v2153, %v2063
        %v2186 = vadd.f32 %v2154, %v2066
        %v2187 = vadd.f32 %v2155, %v2071
        %v2188 = vadd.f32 %v2156, %v2074
        %v2189 = vadd.f32 %v2157, %v2079
        %v2190 = vadd.f32 %v2158, %v2082
        %v2191 = vadd.f32 %v2159, %v2087
        %v2192 = vadd.f32 %v2160, %v2090
        %v2193 = vadd.f32 %v2161, %v2095
        %v2194 = vadd.f32 %v2162, %v2098
        %v2195 = vadd.f32 %v2163, %v2103
        %v2196 = vadd.f32 %v2164, %v2106
        %v2197 = vadd.f32 %v2165, %v2111
        %v2198 = vadd.f32 %v2166, %v2114
        %v2199 = vadd.f32 %v2167, %v2119
        %v2200 = vadd.f32 %v2168, %v2122
        %v2201 = vadd.f32 %v2169, %v2127
        %v2202 = vadd.f32 %v2170, %v2130
        %v2203 = vadd.f32 %v2171, %v2135
        %v2204 = vadd.f32 %v2172, %v2138
        %2205 = vst.msk [vmem:[#allocation3] sm:$0xff] %vm1411, %v2173
        %2206 = vst.msk [vmem:[#allocation3 + $0x8] sm:$0xff] %vm1411, %v2174
        %2207 = vst.msk [vmem:[#allocation3 + $0x10] sm:$0xff] %vm1411, %v2175
        %2208 = vst.msk [vmem:[#allocation3 + $0x18] sm:$0xff] %vm1411, %v2176
        %2209 = vst.msk [vmem:[#allocation3 + $0x20] sm:$0xff] %vm1411, %v2177
        %2210 = vst.msk [vmem:[#allocation3 + $0x28] sm:$0xff] %vm1411, %v2178
        %2211 = vst.msk [vmem:[#allocation3 + $0x30] sm:$0xff] %vm1411, %v2179
        %2212 = vst.msk [vmem:[#allocation3 + $0x38] sm:$0xff] %vm1411, %v2180
        %2213 = vst.msk [vmem:[#allocation3 + $0x40] sm:$0xff] %vm1411, %v2181
        %2214 = vst.msk [vmem:[#allocation3 + $0x48] sm:$0xff] %vm1411, %v2182
        %2215 = vst.msk [vmem:[#allocation3 + $0x50] sm:$0xff] %vm1411, %v2183
        %2216 = vst.msk [vmem:[#allocation3 + $0x58] sm:$0xff] %vm1411, %v2184
        %2217 = vst.msk [vmem:[#allocation3 + $0x60] sm:$0xff] %vm1411, %v2185
        %2218 = vst.msk [vmem:[#allocation3 + $0x68] sm:$0xff] %vm1411, %v2186
        %2219 = vst.msk [vmem:[#allocation3 + $0x70] sm:$0xff] %vm1411, %v2187
        %2220 = vst.msk [vmem:[#allocation3 + $0x78] sm:$0xff] %vm1411, %v2188
        %2221 = vst.msk [vmem:[#allocation3 + $0x80] sm:$0xff] %vm1411, %v2189
        %2222 = vst.msk [vmem:[#allocation3 + $0x88] sm:$0xff] %vm1411, %v2190
        %2223 = vst.msk [vmem:[#allocation3 + $0x90] sm:$0xff] %vm1411, %v2191
        %2224 = vst.msk [vmem:[#allocation3 + $0x98] sm:$0xff] %vm1411, %v2192
        %2225 = vst.msk [vmem:[#allocation3 + $0xa0] sm:$0xff] %vm1411, %v2193
        %2226 = vst.msk [vmem:[#allocation3 + $0xa8] sm:$0xff] %vm1411, %v2194
        %2227 = vst.msk [vmem:[#allocation3 + $0xb0] sm:$0xff] %vm1411, %v2195
        %2228 = vst.msk [vmem:[#allocation3 + $0xb8] sm:$0xff] %vm1411, %v2196
        %2229 = vst.msk [vmem:[#allocation3 + $0xc0] sm:$0xff] %vm1411, %v2197
        %2230 = vst.msk [vmem:[#allocation3 + $0xc8] sm:$0xff] %vm1411, %v2198
        %2231 = vst.msk [vmem:[#allocation3 + $0xd0] sm:$0xff] %vm1411, %v2199
        %2232 = vst.msk [vmem:[#allocation3 + $0xd8] sm:$0xff] %vm1411, %v2200
        %2233 = vst.msk [vmem:[#allocation3 + $0xe0] sm:$0xff] %vm1411, %v2201
        %2234 = vst.msk [vmem:[#allocation3 + $0xe8] sm:$0xff] %vm1411, %v2202
        %2235 = vst.msk [vmem:[#allocation3 + $0xf0] sm:$0xff] %vm1411, %v2203
        %2236 = vst.msk [vmem:[#allocation3 + $0xf8] sm:$0xff] %vm1411, %v2204
        %v2237 = vld [vmem:[#allocation2] sm:$0xe]
        %v2238 = vld [vmem:[#allocation2 + $0x4] sm:$0xf]
        %v2239 = vld [vmem:[#allocation2 + $0x8] sm:$0x1]
        %v2240 = vld [vmem:[#allocation2 + $0xc] sm:$0xe]
        %v2241 = vld [vmem:[#allocation2 + $0x10] sm:$0xf]
        %v2242 = vld [vmem:[#allocation2 + $0x14] sm:$0x1]
        %v2243 = vld [vmem:[#allocation2 + $0x18] sm:$0xe]
        %v2244 = vld [vmem:[#allocation2 + $0x1c] sm:$0xf]
        %v2245 = vld [vmem:[#allocation2 + $0x20] sm:$0x1]
        %v2246 = vld [vmem:[#allocation2 + $0x24] sm:$0xe]
        %v2247 = vld [vmem:[#allocation2 + $0x28] sm:$0xf]
        %v2248 = vld [vmem:[#allocation2 + $0x2c] sm:$0x1]
        %v2249 = vld [vmem:[#allocation2 + $0x30] sm:$0xe]
        %v2250 = vld [vmem:[#allocation2 + $0x34] sm:$0xf]
        %v2251 = vld [vmem:[#allocation2 + $0x38] sm:$0x1]
        %v2252 = vld [vmem:[#allocation2 + $0x3c] sm:$0xe]
        %v2253 = vld [vmem:[#allocation2 + $0x40] sm:$0xf]
        %v2254 = vld [vmem:[#allocation2 + $0x44] sm:$0x1]
        %v2255 = vld [vmem:[#allocation2 + $0x48] sm:$0xe]
        %v2256 = vld [vmem:[#allocation2 + $0x4c] sm:$0xf]
        %v2257 = vld [vmem:[#allocation2 + $0x50] sm:$0x1]
        %v2258 = vld [vmem:[#allocation2 + $0x54] sm:$0xe]
        %v2259 = vld [vmem:[#allocation2 + $0x58] sm:$0xf]
        %v2260 = vld [vmem:[#allocation2 + $0x5c] sm:$0x1]
        %v2261 = vld [vmem:[#allocation2 + $0x60] sm:$0xe]
        %v2262 = vld [vmem:[#allocation2 + $0x64] sm:$0xf]
        %v2263 = vld [vmem:[#allocation2 + $0x68] sm:$0x1]
        %v2264 = vld [vmem:[#allocation2 + $0x6c] sm:$0xe]
        %v2265 = vld [vmem:[#allocation2 + $0x70] sm:$0xf]
        %v2266 = vld [vmem:[#allocation2 + $0x74] sm:$0x1]
        %v2267 = vld [vmem:[#allocation2 + $0x78] sm:$0xe]
        %v2268 = vld [vmem:[#allocation2 + $0x7c] sm:$0xf]
        %v2269 = vld [vmem:[#allocation2 + $0x80] sm:$0x1]
        %v2270 = vld [vmem:[#allocation2 + $0x84] sm:$0xe]
        %v2271 = vld [vmem:[#allocation2 + $0x88] sm:$0xf]
        %v2272 = vld [vmem:[#allocation2 + $0x8c] sm:$0x1]
        %v2273 = vld [vmem:[#allocation2 + $0x90] sm:$0xe]
        %v2274 = vld [vmem:[#allocation2 + $0x94] sm:$0xf]
        %v2275 = vld [vmem:[#allocation2 + $0x98] sm:$0x1]
        %v2276 = vld [vmem:[#allocation2 + $0x9c] sm:$0xe]
        %v2277 = vld [vmem:[#allocation2 + $0xa0] sm:$0xf]
        %v2278 = vld [vmem:[#allocation2 + $0xa4] sm:$0x1]
        %v2279 = vld [vmem:[#allocation2 + $0xa8] sm:$0xe]
        %v2280 = vld [vmem:[#allocation2 + $0xac] sm:$0xf]
        %v2281 = vld [vmem:[#allocation2 + $0xb0] sm:$0x1]
        %v2282 = vld [vmem:[#allocation2 + $0xb4] sm:$0xe]
        %v2283 = vld [vmem:[#allocation2 + $0xb8] sm:$0xf]
        %v2284 = vld [vmem:[#allocation2 + $0xbc] sm:$0x1]
        %vm2333 = vcmask 1042432
        %vm2334 = vcmask 1046532
        %vm2335 = vmor %vm2333, %vm2334
        %v2336 = vrot.slane %v2237, 5
        %v2337 = vrot.slane %v2336, 4
        %v2338 = vrot.slane %v2238, 5
        %v2339 = vsel %vm2335, %v2337, %v2338
        %v2340 = vrot.slane %v2338, 4
        %v2341 = vrot.slane %v2239, 5
        %v2342 = vsel %vm2335, %v2340, %v2341
        %v2343 = vrot.slane %v2240, 5
        %v2344 = vrot.slane %v2343, 4
        %v2345 = vrot.slane %v2241, 5
        %v2346 = vsel %vm2335, %v2344, %v2345
        %v2347 = vrot.slane %v2345, 4
        %v2348 = vrot.slane %v2242, 5
        %v2349 = vsel %vm2335, %v2347, %v2348
        %v2350 = vrot.slane %v2243, 5
        %v2351 = vrot.slane %v2350, 4
        %v2352 = vrot.slane %v2244, 5
        %v2353 = vsel %vm2335, %v2351, %v2352
        %v2354 = vrot.slane %v2352, 4
        %v2355 = vrot.slane %v2245, 5
        %v2356 = vsel %vm2335, %v2354, %v2355
        %v2357 = vrot.slane %v2246, 5
        %v2358 = vrot.slane %v2357, 4
        %v2359 = vrot.slane %v2247, 5
        %v2360 = vsel %vm2335, %v2358, %v2359
        %v2361 = vrot.slane %v2359, 4
        %v2362 = vrot.slane %v2248, 5
        %v2363 = vsel %vm2335, %v2361, %v2362
        %v2364 = vrot.slane %v2249, 5
        %v2365 = vrot.slane %v2364, 4
        %v2366 = vrot.slane %v2250, 5
        %v2367 = vsel %vm2335, %v2365, %v2366
        %v2368 = vrot.slane %v2366, 4
        %v2369 = vrot.slane %v2251, 5
        %v2370 = vsel %vm2335, %v2368, %v2369
        %v2371 = vrot.slane %v2252, 5
        %v2372 = vrot.slane %v2371, 4
        %v2373 = vrot.slane %v2253, 5
        %v2374 = vsel %vm2335, %v2372, %v2373
        %v2375 = vrot.slane %v2373, 4
        %v2376 = vrot.slane %v2254, 5
        %v2377 = vsel %vm2335, %v2375, %v2376
        %v2378 = vrot.slane %v2255, 5
        %v2379 = vrot.slane %v2378, 4
        %v2380 = vrot.slane %v2256, 5
        %v2381 = vsel %vm2335, %v2379, %v2380
        %v2382 = vrot.slane %v2380, 4
        %v2383 = vrot.slane %v2257, 5
        %v2384 = vsel %vm2335, %v2382, %v2383
        %v2385 = vrot.slane %v2258, 5
        %v2386 = vrot.slane %v2385, 4
        %v2387 = vrot.slane %v2259, 5
        %v2388 = vsel %vm2335, %v2386, %v2387
        %v2389 = vrot.slane %v2387, 4
        %v2390 = vrot.slane %v2260, 5
        %v2391 = vsel %vm2335, %v2389, %v2390
        %v2392 = vrot.slane %v2261, 5
        %v2393 = vrot.slane %v2392, 4
        %v2394 = vrot.slane %v2262, 5
        %v2395 = vsel %vm2335, %v2393, %v2394
        %v2396 = vrot.slane %v2394, 4
        %v2397 = vrot.slane %v2263, 5
        %v2398 = vsel %vm2335, %v2396, %v2397
        %v2399 = vrot.slane %v2264, 5
        %v2400 = vrot.slane %v2399, 4
        %v2401 = vrot.slane %v2265, 5
        %v2402 = vsel %vm2335, %v2400, %v2401
        %v2403 = vrot.slane %v2401, 4
        %v2404 = vrot.slane %v2266, 5
        %v2405 = vsel %vm2335, %v2403, %v2404
        %v2406 = vrot.slane %v2267, 5
        %v2407 = vrot.slane %v2406, 4
        %v2408 = vrot.slane %v2268, 5
        %v2409 = vsel %vm2335, %v2407, %v2408
        %v2410 = vrot.slane %v2408, 4
        %v2411 = vrot.slane %v2269, 5
        %v2412 = vsel %vm2335, %v2410, %v2411
        %v2413 = vrot.slane %v2270, 5
        %v2414 = vrot.slane %v2413, 4
        %v2415 = vrot.slane %v2271, 5
        %v2416 = vsel %vm2335, %v2414, %v2415
        %v2417 = vrot.slane %v2415, 4
        %v2418 = vrot.slane %v2272, 5
        %v2419 = vsel %vm2335, %v2417, %v2418
        %v2420 = vrot.slane %v2273, 5
        %v2421 = vrot.slane %v2420, 4
        %v2422 = vrot.slane %v2274, 5
        %v2423 = vsel %vm2335, %v2421, %v2422
        %v2424 = vrot.slane %v2422, 4
        %v2425 = vrot.slane %v2275, 5
        %v2426 = vsel %vm2335, %v2424, %v2425
        %v2427 = vrot.slane %v2276, 5
        %v2428 = vrot.slane %v2427, 4
        %v2429 = vrot.slane %v2277, 5
        %v2430 = vsel %vm2335, %v2428, %v2429
        %v2431 = vrot.slane %v2429, 4
        %v2432 = vrot.slane %v2278, 5
        %v2433 = vsel %vm2335, %v2431, %v2432
        %v2434 = vrot.slane %v2279, 5
        %v2435 = vrot.slane %v2434, 4
        %v2436 = vrot.slane %v2280, 5
        %v2437 = vsel %vm2335, %v2435, %v2436
        %v2438 = vrot.slane %v2436, 4
        %v2439 = vrot.slane %v2281, 5
        %v2440 = vsel %vm2335, %v2438, %v2439
        %v2441 = vrot.slane %v2282, 5
        %v2442 = vrot.slane %v2441, 4
        %v2443 = vrot.slane %v2283, 5
        %v2444 = vsel %vm2335, %v2442, %v2443
        %v2445 = vrot.slane %v2443, 4
        %v2446 = vrot.slane %v2284, 5
        %v2447 = vsel %vm2335, %v2445, %v2446
        %s2448 = scalar_lea.vmem %s3, 4
        %v2449 = vld [vmem:[%s2448] sm:$0x3]
        %v2450 = vunpack.c.l.b16 %v2339
        %v2451 = vunpack.c.l.b16 %v2342
        %v2452 = vunpack.c.l.b16 %v2346
        %v2453 = vunpack.c.l.b16 %v2349
        %v2454 = vunpack.c.l.b16 %v2353
        %v2455 = vunpack.c.l.b16 %v2356
        %v2456 = vunpack.c.l.b16 %v2360
        %v2457 = vunpack.c.l.b16 %v2363
        %v2458 = vunpack.c.l.b16 %v2367
        %v2459 = vunpack.c.l.b16 %v2370
        %v2460 = vunpack.c.l.b16 %v2374
        %v2461 = vunpack.c.l.b16 %v2377
        %v2462 = vunpack.c.l.b16 %v2381
        %v2463 = vunpack.c.l.b16 %v2384
        %v2464 = vunpack.c.l.b16 %v2388
        %v2465 = vunpack.c.l.b16 %v2391
        %v2466 = vunpack.c.l.b16 %v2395
        %v2467 = vunpack.c.l.b16 %v2398
        %v2468 = vunpack.c.l.b16 %v2402
        %v2469 = vunpack.c.l.b16 %v2405
        %v2470 = vunpack.c.l.b16 %v2409
        %v2471 = vunpack.c.l.b16 %v2412
        %v2472 = vunpack.c.l.b16 %v2416
        %v2473 = vunpack.c.l.b16 %v2419
        %v2474 = vunpack.c.l.b16 %v2423
        %v2475 = vunpack.c.l.b16 %v2426
        %v2476 = vunpack.c.l.b16 %v2430
        %v2477 = vunpack.c.l.b16 %v2433
        %v2478 = vunpack.c.l.b16 %v2437
        %v2479 = vunpack.c.l.b16 %v2440
        %v2480 = vunpack.c.l.b16 %v2444
        %v2481 = vunpack.c.l.b16 %v2447
        %v2482 = vpack.c.b16 %v2451, %v2450
        %v2483 = vpack.c.b16 %v2453, %v2452
        %v2484 = vpack.c.b16 %v2455, %v2454
        %v2485 = vpack.c.b16 %v2457, %v2456
        %v2486 = vpack.c.b16 %v2459, %v2458
        %v2487 = vpack.c.b16 %v2461, %v2460
        %v2488 = vpack.c.b16 %v2463, %v2462
        %v2489 = vpack.c.b16 %v2465, %v2464
        %v2490 = vpack.c.b16 %v2467, %v2466
        %v2491 = vpack.c.b16 %v2469, %v2468
        %v2492 = vpack.c.b16 %v2471, %v2470
        %v2493 = vpack.c.b16 %v2473, %v2472
        %v2494 = vpack.c.b16 %v2475, %v2474
        %v2495 = vpack.c.b16 %v2477, %v2476
        %v2496 = vpack.c.b16 %v2479, %v2478
        %v2497 = vpack.c.b16 %v2481, %v2480
        %v2499 = vsel %vm1194, %v2482, 0
        %v2502 = vsel %vm1194, %v2483, 0
        %v2505 = vsel %vm1194, %v2484, 0
        %v2508 = vsel %vm1194, %v2485, 0
        %v2511 = vsel %vm1194, %v2486, 0
        %v2514 = vsel %vm1194, %v2487, 0
        %v2517 = vsel %vm1194, %v2488, 0
        %v2520 = vsel %vm1194, %v2489, 0
        %v2523 = vsel %vm1194, %v2490, 0
        %v2526 = vsel %vm1194, %v2491, 0
        %v2529 = vsel %vm1194, %v2492, 0
        %v2532 = vsel %vm1194, %v2493, 0
        %v2535 = vsel %vm1194, %v2494, 0
        %v2538 = vsel %vm1194, %v2495, 0
        %v2541 = vsel %vm1194, %v2496, 0
        %v2544 = vsel %vm1194, %v2497, 0
        %v2547 = vand.u32 %v2449, %v1246
        %2549 = vmatprep.subr.bf16.mxu0 0
        %2550 = vmatpush1.bf16.msra.mxu0 %v2547
        %2551 = vmatprep.subr.bf16.mxu0 0
        %2552 = vmatpush1.bf16.msra.mxu0 0
        %2553 = vmatprep.subr.bf16.mxu0 0
        %2554 = vmatpush1.bf16.msra.mxu0 0
        %2555 = vmatprep.subr.bf16.mxu0 0
        %2556 = vmatpush1.bf16.msra.mxu0 0
        %2557 = vmatprep.subr.bf16.mxu0 0
        %2558 = vmatpush1.bf16.msra.mxu0 0
        %2559 = vmatprep.subr.bf16.mxu0 0
        %2560 = vmatpush1.bf16.msra.mxu0 0
        %2561 = vmatprep.subr.bf16.mxu0 0
        %2562 = vmatpush1.bf16.msra.mxu0 0
        %2563 = vmatprep.subr.bf16.mxu0 0
        %2564 = vmatpush1.bf16.msra.mxu0 0
        %2565 = vmatprep.subr.bf16.mxu0 0
        %2566 = vmatpush1.bf16.msra.mxu0 0
        %2567 = vmatprep.subr.bf16.mxu0 0
        %2568 = vmatpush1.bf16.msra.mxu0 0
        %2569 = vmatprep.subr.bf16.mxu0 0
        %2570 = vmatpush1.bf16.msra.mxu0 0
        %2571 = vmatprep.subr.bf16.mxu0 0
        %2572 = vmatpush1.bf16.msra.mxu0 0
        %2573 = vmatprep.subr.bf16.mxu0 0
        %2574 = vmatpush1.bf16.msra.mxu0 0
        %2575 = vmatprep.subr.bf16.mxu0 0
        %2576 = vmatpush1.bf16.msra.mxu0 0
        %2577 = vmatprep.subr.bf16.mxu0 0
        %2578 = vmatpush1.bf16.msra.mxu0 0
        %2579 = vmatprep.subr.bf16.mxu0 0
        %2580 = vmatpush1.bf16.msra.mxu0 0
        %2581 = vmatprep.mubr.bf16.mxu0 0
        %2582 = vmatmul.mubr.bf16.gmra.mrb[0].mxu0 %v2499
        %v2583 = vpop.f32.mrb[0].mxu0
        %v2584 = vadd.f32 0.0, %v2583
        %v2585 = vpop.f32.mrb[0].mxu0
        %v2586 = vpop.f32.mrb[0].mxu0
        %v2587 = vadd.f32 0.0, %v2586
        %v2588 = vpop.f32.mrb[0].mxu0
        %2589 = vmatprep.mubr.bf16.mxu0 0
        %2590 = vmatmul.mubr.bf16.gmra.mrb[0].mxu0 %v2502
        %v2591 = vpop.f32.mrb[0].mxu0
        %v2592 = vadd.f32 0.0, %v2591
        %v2593 = vpop.f32.mrb[0].mxu0
        %v2594 = vpop.f32.mrb[0].mxu0
        %v2595 = vadd.f32 0.0, %v2594
        %v2596 = vpop.f32.mrb[0].mxu0
        %2597 = vmatprep.mubr.bf16.mxu0 0
        %2598 = vmatmul.mubr.bf16.gmra.mrb[0].mxu0 %v2505
        %v2599 = vpop.f32.mrb[0].mxu0
        %v2600 = vadd.f32 0.0, %v2599
        %v2601 = vpop.f32.mrb[0].mxu0
        %v2602 = vpop.f32.mrb[0].mxu0
        %v2603 = vadd.f32 0.0, %v2602
        %v2604 = vpop.f32.mrb[0].mxu0
        %2605 = vmatprep.mubr.bf16.mxu0 0
        %2606 = vmatmul.mubr.bf16.gmra.mrb[0].mxu0 %v2508
        %v2607 = vpop.f32.mrb[0].mxu0
        %v2608 = vadd.f32 0.0, %v2607
        %v2609 = vpop.f32.mrb[0].mxu0
        %v2610 = vpop.f32.mrb[0].mxu0
        %v2611 = vadd.f32 0.0, %v2610
        %v2612 = vpop.f32.mrb[0].mxu0
        %2613 = vmatprep.mubr.bf16.mxu0 0
        %2614 = vmatmul.mubr.bf16.gmra.mrb[0].mxu0 %v2511
        %v2615 = vpop.f32.mrb[0].mxu0
        %v2616 = vadd.f32 0.0, %v2615
        %v2617 = vpop.f32.mrb[0].mxu0
        %v2618 = vpop.f32.mrb[0].mxu0
        %v2619 = vadd.f32 0.0, %v2618
        %v2620 = vpop.f32.mrb[0].mxu0
        %2621 = vmatprep.mubr.bf16.mxu0 0
        %2622 = vmatmul.mubr.bf16.gmra.mrb[0].mxu0 %v2514
        %v2623 = vpop.f32.mrb[0].mxu0
        %v2624 = vadd.f32 0.0, %v2623
        %v2625 = vpop.f32.mrb[0].mxu0
        %v2626 = vpop.f32.mrb[0].mxu0
        %v2627 = vadd.f32 0.0, %v2626
        %v2628 = vpop.f32.mrb[0].mxu0
        %2629 = vmatprep.mubr.bf16.mxu0 0
        %2630 = vmatmul.mubr.bf16.gmra.mrb[0].mxu0 %v2517
        %v2631 = vpop.f32.mrb[0].mxu0
        %v2632 = vadd.f32 0.0, %v2631
        %v2633 = vpop.f32.mrb[0].mxu0
        %v2634 = vpop.f32.mrb[0].mxu0
        %v2635 = vadd.f32 0.0, %v2634
        %v2636 = vpop.f32.mrb[0].mxu0
        %2637 = vmatprep.mubr.bf16.mxu0 0
        %2638 = vmatmul.mubr.bf16.gmra.mrb[0].mxu0 %v2520
        %v2639 = vpop.f32.mrb[0].mxu0
        %v2640 = vadd.f32 0.0, %v2639
        %v2641 = vpop.f32.mrb[0].mxu0
        %v2642 = vpop.f32.mrb[0].mxu0
        %v2643 = vadd.f32 0.0, %v2642
        %v2644 = vpop.f32.mrb[0].mxu0
        %2645 = vmatprep.mubr.bf16.mxu0 0
        %2646 = vmatmul.mubr.bf16.gmra.mrb[0].mxu0 %v2523
        %v2647 = vpop.f32.mrb[0].mxu0
        %v2648 = vadd.f32 0.0, %v2647
        %v2649 = vpop.f32.mrb[0].mxu0
        %v2650 = vpop.f32.mrb[0].mxu0
        %v2651 = vadd.f32 0.0, %v2650
        %v2652 = vpop.f32.mrb[0].mxu0
        %2653 = vmatprep.mubr.bf16.mxu0 0
        %2654 = vmatmul.mubr.bf16.gmra.mrb[0].mxu0 %v2526
        %v2655 = vpop.f32.mrb[0].mxu0
        %v2656 = vadd.f32 0.0, %v2655
        %v2657 = vpop.f32.mrb[0].mxu0
        %v2658 = vpop.f32.mrb[0].mxu0
        %v2659 = vadd.f32 0.0, %v2658
        %v2660 = vpop.f32.mrb[0].mxu0
        %2661 = vmatprep.mubr.bf16.mxu0 0
        %2662 = vmatmul.mubr.bf16.gmra.mrb[0].mxu0 %v2529
        %v2663 = vpop.f32.mrb[0].mxu0
        %v2664 = vadd.f32 0.0, %v2663
        %v2665 = vpop.f32.mrb[0].mxu0
        %v2666 = vpop.f32.mrb[0].mxu0
        %v2667 = vadd.f32 0.0, %v2666
        %v2668 = vpop.f32.mrb[0].mxu0
        %2669 = vmatprep.mubr.bf16.mxu0 0
        %2670 = vmatmul.mubr.bf16.gmra.mrb[0].mxu0 %v2532
        %v2671 = vpop.f32.mrb[0].mxu0
        %v2672 = vadd.f32 0.0, %v2671
        %v2673 = vpop.f32.mrb[0].mxu0
        %v2674 = vpop.f32.mrb[0].mxu0
        %v2675 = vadd.f32 0.0, %v2674
        %v2676 = vpop.f32.mrb[0].mxu0
        %2677 = vmatprep.mubr.bf16.mxu0 0
        %2678 = vmatmul.mubr.bf16.gmra.mrb[0].mxu0 %v2535
        %v2679 = vpop.f32.mrb[0].mxu0
        %v2680 = vadd.f32 0.0, %v2679
        %v2681 = vpop.f32.mrb[0].mxu0
        %v2682 = vpop.f32.mrb[0].mxu0
        %v2683 = vadd.f32 0.0, %v2682
        %v2684 = vpop.f32.mrb[0].mxu0
        %2685 = vmatprep.mubr.bf16.mxu0 0
        %2686 = vmatmul.mubr.bf16.gmra.mrb[0].mxu0 %v2538
        %v2687 = vpop.f32.mrb[0].mxu0
        %v2688 = vadd.f32 0.0, %v2687
        %v2689 = vpop.f32.mrb[0].mxu0
        %v2690 = vpop.f32.mrb[0].mxu0
        %v2691 = vadd.f32 0.0, %v2690
        %v2692 = vpop.f32.mrb[0].mxu0
        %2693 = vmatprep.mubr.bf16.mxu0 0
        %2694 = vmatmul.mubr.bf16.gmra.mrb[0].mxu0 %v2541
        %v2695 = vpop.f32.mrb[0].mxu0
        %v2696 = vadd.f32 0.0, %v2695
        %v2697 = vpop.f32.mrb[0].mxu0
        %v2698 = vpop.f32.mrb[0].mxu0
        %v2699 = vadd.f32 0.0, %v2698
        %v2700 = vpop.f32.mrb[0].mxu0
        %2701 = vmatprep.mubr.bf16.mxu0 0
        %2702 = vmatmul.mubr.bf16.gmra.mrb[0].mxu0 %v2544
        %v2703 = vpop.f32.mrb[0].mxu0
        %v2704 = vadd.f32 0.0, %v2703
        %v2705 = vpop.f32.mrb[0].mxu0
        %v2706 = vpop.f32.mrb[0].mxu0
        %v2707 = vadd.f32 0.0, %v2706
        %v2708 = vpop.f32.mrb[0].mxu0
        %2709 = vdwg.mxu0
        %v2710 = vld [vmem:[#allocation3] sm:$0xff]
        %v2711 = vld [vmem:[#allocation3 + $0x8] sm:$0xff]
        %v2712 = vld [vmem:[#allocation3 + $0x10] sm:$0xff]
        %v2713 = vld [vmem:[#allocation3 + $0x18] sm:$0xff]
        %v2714 = vld [vmem:[#allocation3 + $0x20] sm:$0xff]
        %v2715 = vld [vmem:[#allocation3 + $0x28] sm:$0xff]
        %v2716 = vld [vmem:[#allocation3 + $0x30] sm:$0xff]
        %v2717 = vld [vmem:[#allocation3 + $0x38] sm:$0xff]
        %v2718 = vld [vmem:[#allocation3 + $0x40] sm:$0xff]
        %v2719 = vld [vmem:[#allocation3 + $0x48] sm:$0xff]
        %v2720 = vld [vmem:[#allocation3 + $0x50] sm:$0xff]
        %v2721 = vld [vmem:[#allocation3 + $0x58] sm:$0xff]
        %v2722 = vld [vmem:[#allocation3 + $0x60] sm:$0xff]
        %v2723 = vld [vmem:[#allocation3 + $0x68] sm:$0xff]
        %v2724 = vld [vmem:[#allocation3 + $0x70] sm:$0xff]
        %v2725 = vld [vmem:[#allocation3 + $0x78] sm:$0xff]
        %v2726 = vld [vmem:[#allocation3 + $0x80] sm:$0xff]
        %v2727 = vld [vmem:[#allocation3 + $0x88] sm:$0xff]
        %v2728 = vld [vmem:[#allocation3 + $0x90] sm:$0xff]
        %v2729 = vld [vmem:[#allocation3 + $0x98] sm:$0xff]
        %v2730 = vld [vmem:[#allocation3 + $0xa0] sm:$0xff]
        %v2731 = vld [vmem:[#allocation3 + $0xa8] sm:$0xff]
        %v2732 = vld [vmem:[#allocation3 + $0xb0] sm:$0xff]
        %v2733 = vld [vmem:[#allocation3 + $0xb8] sm:$0xff]
        %v2734 = vld [vmem:[#allocation3 + $0xc0] sm:$0xff]
        %v2735 = vld [vmem:[#allocation3 + $0xc8] sm:$0xff]
        %v2736 = vld [vmem:[#allocation3 + $0xd0] sm:$0xff]
        %v2737 = vld [vmem:[#allocation3 + $0xd8] sm:$0xff]
        %v2738 = vld [vmem:[#allocation3 + $0xe0] sm:$0xff]
        %v2739 = vld [vmem:[#allocation3 + $0xe8] sm:$0xff]
        %v2740 = vld [vmem:[#allocation3 + $0xf0] sm:$0xff]
        %v2741 = vld [vmem:[#allocation3 + $0xf8] sm:$0xff]
        %v2742 = vadd.f32 %v2710, %v2584
        %v2743 = vadd.f32 %v2711, %v2587
        %v2744 = vadd.f32 %v2712, %v2592
        %v2745 = vadd.f32 %v2713, %v2595
        %v2746 = vadd.f32 %v2714, %v2600
        %v2747 = vadd.f32 %v2715, %v2603
        %v2748 = vadd.f32 %v2716, %v2608
        %v2749 = vadd.f32 %v2717, %v2611
        %v2750 = vadd.f32 %v2718, %v2616
        %v2751 = vadd.f32 %v2719, %v2619
        %v2752 = vadd.f32 %v2720, %v2624
        %v2753 = vadd.f32 %v2721, %v2627
        %v2754 = vadd.f32 %v2722, %v2632
        %v2755 = vadd.f32 %v2723, %v2635
        %v2756 = vadd.f32 %v2724, %v2640
        %v2757 = vadd.f32 %v2725, %v2643
        %v2758 = vadd.f32 %v2726, %v2648
        %v2759 = vadd.f32 %v2727, %v2651
        %v2760 = vadd.f32 %v2728, %v2656
        %v2761 = vadd.f32 %v2729, %v2659
        %v2762 = vadd.f32 %v2730, %v2664
        %v2763 = vadd.f32 %v2731, %v2667
        %v2764 = vadd.f32 %v2732, %v2672
        %v2765 = vadd.f32 %v2733, %v2675
        %v2766 = vadd.f32 %v2734, %v2680
        %v2767 = vadd.f32 %v2735, %v2683
        %v2768 = vadd.f32 %v2736, %v2688
        %v2769 = vadd.f32 %v2737, %v2691
        %v2770 = vadd.f32 %v2738, %v2696
        %v2771 = vadd.f32 %v2739, %v2699
        %v2772 = vadd.f32 %v2740, %v2704
        %v2773 = vadd.f32 %v2741, %v2707
        %2774 = vst.msk [vmem:[#allocation3] sm:$0xff] %vm1411, %v2742
        %2775 = vst.msk [vmem:[#allocation3 + $0x8] sm:$0xff] %vm1411, %v2743
        %2776 = vst.msk [vmem:[#allocation3 + $0x10] sm:$0xff] %vm1411, %v2744
        %2777 = vst.msk [vmem:[#allocation3 + $0x18] sm:$0xff] %vm1411, %v2745
        %2778 = vst.msk [vmem:[#allocation3 + $0x20] sm:$0xff] %vm1411, %v2746
        %2779 = vst.msk [vmem:[#allocation3 + $0x28] sm:$0xff] %vm1411, %v2747
        %2780 = vst.msk [vmem:[#allocation3 + $0x30] sm:$0xff] %vm1411, %v2748
        %2781 = vst.msk [vmem:[#allocation3 + $0x38] sm:$0xff] %vm1411, %v2749
        %2782 = vst.msk [vmem:[#allocation3 + $0x40] sm:$0xff] %vm1411, %v2750
        %2783 = vst.msk [vmem:[#allocation3 + $0x48] sm:$0xff] %vm1411, %v2751
        %2784 = vst.msk [vmem:[#allocation3 + $0x50] sm:$0xff] %vm1411, %v2752
        %2785 = vst.msk [vmem:[#allocation3 + $0x58] sm:$0xff] %vm1411, %v2753
        %2786 = vst.msk [vmem:[#allocation3 + $0x60] sm:$0xff] %vm1411, %v2754
        %2787 = vst.msk [vmem:[#allocation3 + $0x68] sm:$0xff] %vm1411, %v2755
        %2788 = vst.msk [vmem:[#allocation3 + $0x70] sm:$0xff] %vm1411, %v2756
        %2789 = vst.msk [vmem:[#allocation3 + $0x78] sm:$0xff] %vm1411, %v2757
        %2790 = vst.msk [vmem:[#allocation3 + $0x80] sm:$0xff] %vm1411, %v2758
        %2791 = vst.msk [vmem:[#allocation3 + $0x88] sm:$0xff] %vm1411, %v2759
        %2792 = vst.msk [vmem:[#allocation3 + $0x90] sm:$0xff] %vm1411, %v2760
        %2793 = vst.msk [vmem:[#allocation3 + $0x98] sm:$0xff] %vm1411, %v2761
        %2794 = vst.msk [vmem:[#allocation3 + $0xa0] sm:$0xff] %vm1411, %v2762
        %2795 = vst.msk [vmem:[#allocation3 + $0xa8] sm:$0xff] %vm1411, %v2763
        %2796 = vst.msk [vmem:[#allocation3 + $0xb0] sm:$0xff] %vm1411, %v2764
        %2797 = vst.msk [vmem:[#allocation3 + $0xb8] sm:$0xff] %vm1411, %v2765
        %2798 = vst.msk [vmem:[#allocation3 + $0xc0] sm:$0xff] %vm1411, %v2766
        %2799 = vst.msk [vmem:[#allocation3 + $0xc8] sm:$0xff] %vm1411, %v2767
        %2800 = vst.msk [vmem:[#allocation3 + $0xd0] sm:$0xff] %vm1411, %v2768
        %2801 = vst.msk [vmem:[#allocation3 + $0xd8] sm:$0xff] %vm1411, %v2769
        %2802 = vst.msk [vmem:[#allocation3 + $0xe0] sm:$0xff] %vm1411, %v2770
        %2803 = vst.msk [vmem:[#allocation3 + $0xe8] sm:$0xff] %vm1411, %v2771
        %2804 = vst.msk [vmem:[#allocation3 + $0xf0] sm:$0xff] %vm1411, %v2772
        %2805 = vst.msk [vmem:[#allocation3 + $0xf8] sm:$0xff] %vm1411, %v2773
        %v2806 = vld [vmem:[%s876] sm:$0xf]
        %v2807 = vld [vmem:[%s876 + $0x4] sm:$0xf]
        %v2808 = vld [vmem:[%s876 + $0xc] sm:$0xf]
        %v2809 = vld [vmem:[%s876 + $0x10] sm:$0xf]
        %v2810 = vld [vmem:[%s876 + $0x18] sm:$0xf]
        %v2811 = vld [vmem:[%s876 + $0x1c] sm:$0xf]
        %v2812 = vld [vmem:[%s876 + $0x24] sm:$0xf]
        %v2813 = vld [vmem:[%s876 + $0x28] sm:$0xf]
        %v2814 = vld [vmem:[%s876 + $0x30] sm:$0xf]
        %v2815 = vld [vmem:[%s876 + $0x34] sm:$0xf]
        %v2816 = vld [vmem:[%s876 + $0x3c] sm:$0xf]
        %v2817 = vld [vmem:[%s876 + $0x40] sm:$0xf]
        %v2818 = vld [vmem:[%s876 + $0x48] sm:$0xf]
        %v2819 = vld [vmem:[%s876 + $0x4c] sm:$0xf]
        %v2820 = vld [vmem:[%s876 + $0x54] sm:$0xf]
        %v2821 = vld [vmem:[%s876 + $0x58] sm:$0xf]
        %v2822 = vld [vmem:[%s876 + $0x60] sm:$0xf]
        %v2823 = vld [vmem:[%s876 + $0x64] sm:$0xf]
        %v2824 = vld [vmem:[%s876 + $0x6c] sm:$0xf]
        %v2825 = vld [vmem:[%s876 + $0x70] sm:$0xf]
        %v2826 = vld [vmem:[%s876 + $0x78] sm:$0xf]
        %v2827 = vld [vmem:[%s876 + $0x7c] sm:$0xf]
        %v2828 = vld [vmem:[%s876 + $0x84] sm:$0xf]
        %v2829 = vld [vmem:[%s876 + $0x88] sm:$0xf]
        %v2830 = vld [vmem:[%s876 + $0x90] sm:$0xf]
        %v2831 = vld [vmem:[%s876 + $0x94] sm:$0xf]
        %v2832 = vld [vmem:[%s876 + $0x9c] sm:$0xf]
        %v2833 = vld [vmem:[%s876 + $0xa0] sm:$0xf]
        %v2834 = vld [vmem:[%s876 + $0xa8] sm:$0xf]
        %v2835 = vld [vmem:[%s876 + $0xac] sm:$0xf]
        %v2836 = vld [vmem:[%s876 + $0xb4] sm:$0xf]
        %v2837 = vld [vmem:[%s876 + $0xb8] sm:$0xf]
        %s2838 = scalar_lea.vmem %s3, 6
        %v2839 = vld [vmem:[%s2838] sm:$0x3]
        %v2872 = vunpack.c.l.b16 %v2806
        %v2873 = vunpack.c.l.b16 %v2807
        %v2874 = vunpack.c.l.b16 %v2808
        %v2875 = vunpack.c.l.b16 %v2809
        %v2876 = vunpack.c.l.b16 %v2810
        %v2877 = vunpack.c.l.b16 %v2811
        %v2878 = vunpack.c.l.b16 %v2812
        %v2879 = vunpack.c.l.b16 %v2813
        %v2880 = vunpack.c.l.b16 %v2814
        %v2881 = vunpack.c.l.b16 %v2815
        %v2882 = vunpack.c.l.b16 %v2816
        %v2883 = vunpack.c.l.b16 %v2817
        %v2884 = vunpack.c.l.b16 %v2818
        %v2885 = vunpack.c.l.b16 %v2819
        %v2886 = vunpack.c.l.b16 %v2820
        %v2887 = vunpack.c.l.b16 %v2821
        %v2888 = vunpack.c.l.b16 %v2822
        %v2889 = vunpack.c.l.b16 %v2823
        %v2890 = vunpack.c.l.b16 %v2824
        %v2891 = vunpack.c.l.b16 %v2825
        %v2892 = vunpack.c.l.b16 %v2826
        %v2893 = vunpack.c.l.b16 %v2827
        %v2894 = vunpack.c.l.b16 %v2828
        %v2895 = vunpack.c.l.b16 %v2829
        %v2896 = vunpack.c.l.b16 %v2830
        %v2897 = vunpack.c.l.b16 %v2831
        %v2898 = vunpack.c.l.b16 %v2832
        %v2899 = vunpack.c.l.b16 %v2833
        %v2900 = vunpack.c.l.b16 %v2834
        %v2901 = vunpack.c.l.b16 %v2835
        %v2902 = vunpack.c.l.b16 %v2836
        %v2903 = vunpack.c.l.b16 %v2837
        %v2904 = vpack.c.b16 %v2873, %v2872
        %v2905 = vpack.c.b16 %v2875, %v2874
        %v2906 = vpack.c.b16 %v2877, %v2876
        %v2907 = vpack.c.b16 %v2879, %v2878
        %v2908 = vpack.c.b16 %v2881, %v2880
        %v2909 = vpack.c.b16 %v2883, %v2882
        %v2910 = vpack.c.b16 %v2885, %v2884
        %v2911 = vpack.c.b16 %v2887, %v2886
        %v2912 = vpack.c.b16 %v2889, %v2888
        %v2913 = vpack.c.b16 %v2891, %v2890
        %v2914 = vpack.c.b16 %v2893, %v2892
        %v2915 = vpack.c.b16 %v2895, %v2894
        %v2916 = vpack.c.b16 %v2897, %v2896
        %v2917 = vpack.c.b16 %v2899, %v2898
        %v2918 = vpack.c.b16 %v2901, %v2900
        %v2919 = vpack.c.b16 %v2903, %v2902
        %v2921 = vsel %vm1194, %v2904, 0
        %v2924 = vsel %vm1194, %v2905, 0
        %v2927 = vsel %vm1194, %v2906, 0
        %v2930 = vsel %vm1194, %v2907, 0
        %v2933 = vsel %vm1194, %v2908, 0
        %v2936 = vsel %vm1194, %v2909, 0
        %v2939 = vsel %vm1194, %v2910, 0
        %v2942 = vsel %vm1194, %v2911, 0
        %v2945 = vsel %vm1194, %v2912, 0
        %v2948 = vsel %vm1194, %v2913, 0
        %v2951 = vsel %vm1194, %v2914, 0
        %v2954 = vsel %vm1194, %v2915, 0
        %v2957 = vsel %vm1194, %v2916, 0
        %v2960 = vsel %vm1194, %v2917, 0
        %v2963 = vsel %vm1194, %v2918, 0
        %v2966 = vsel %vm1194, %v2919, 0
        %v2969 = vand.u32 %v2839, %v1246
        %2971 = vmatprep.subr.bf16.mxu0 0
        %2972 = vmatpush1.bf16.msra.mxu0 %v2969
        %2973 = vmatprep.subr.bf16.mxu0 0
        %2974 = vmatpush1.bf16.msra.mxu0 0
        %2975 = vmatprep.subr.bf16.mxu0 0
        %2976 = vmatpush1.bf16.msra.mxu0 0
        %2977 = vmatprep.subr.bf16.mxu0 0
        %2978 = vmatpush1.bf16.msra.mxu0 0
        %2979 = vmatprep.subr.bf16.mxu0 0
        %2980 = vmatpush1.bf16.msra.mxu0 0
        %2981 = vmatprep.subr.bf16.mxu0 0
        %2982 = vmatpush1.bf16.msra.mxu0 0
        %2983 = vmatprep.subr.bf16.mxu0 0
        %2984 = vmatpush1.bf16.msra.mxu0 0
        %2985 = vmatprep.subr.bf16.mxu0 0
        %2986 = vmatpush1.bf16.msra.mxu0 0
        %2987 = vmatprep.subr.bf16.mxu0 0
        %2988 = vmatpush1.bf16.msra.mxu0 0
        %2989 = vmatprep.subr.bf16.mxu0 0
        %2990 = vmatpush1.bf16.msra.mxu0 0
        %2991 = vmatprep.subr.bf16.mxu0 0
        %2992 = vmatpush1.bf16.msra.mxu0 0
        %2993 = vmatprep.subr.bf16.mxu0 0
        %2994 = vmatpush1.bf16.msra.mxu0 0
        %2995 = vmatprep.subr.bf16.mxu0 0
        %2996 = vmatpush1.bf16.msra.mxu0 0
        %2997 = vmatprep.subr.bf16.mxu0 0
        %2998 = vmatpush1.bf16.msra.mxu0 0
        %2999 = vmatprep.subr.bf16.mxu0 0
        %3000 = vmatpush1.bf16.msra.mxu0 0
        %3001 = vmatprep.subr.bf16.mxu0 0
        %3002 = vmatpush1.bf16.msra.mxu0 0
        %3003 = vmatprep.mubr.bf16.mxu0 0
        %3004 = vmatmul.mubr.bf16.gmra.mrb[0].mxu0 %v2921
        %v3005 = vpop.f32.mrb[0].mxu0
        %v3006 = vadd.f32 0.0, %v3005
        %v3007 = vpop.f32.mrb[0].mxu0
        %v3008 = vpop.f32.mrb[0].mxu0
        %v3009 = vadd.f32 0.0, %v3008
        %v3010 = vpop.f32.mrb[0].mxu0
        %3011 = vmatprep.mubr.bf16.mxu0 0
        %3012 = vmatmul.mubr.bf16.gmra.mrb[0].mxu0 %v2924
        %v3013 = vpop.f32.mrb[0].mxu0
        %v3014 = vadd.f32 0.0, %v3013
        %v3015 = vpop.f32.mrb[0].mxu0
        %v3016 = vpop.f32.mrb[0].mxu0
        %v3017 = vadd.f32 0.0, %v3016
        %v3018 = vpop.f32.mrb[0].mxu0
        %3019 = vmatprep.mubr.bf16.mxu0 0
        %3020 = vmatmul.mubr.bf16.gmra.mrb[0].mxu0 %v2927
        %v3021 = vpop.f32.mrb[0].mxu0
        %v3022 = vadd.f32 0.0, %v3021
        %v3023 = vpop.f32.mrb[0].mxu0
        %v3024 = vpop.f32.mrb[0].mxu0
        %v3025 = vadd.f32 0.0, %v3024
        %v3026 = vpop.f32.mrb[0].mxu0
        %3027 = vmatprep.mubr.bf16.mxu0 0
        %3028 = vmatmul.mubr.bf16.gmra.mrb[0].mxu0 %v2930
        %v3029 = vpop.f32.mrb[0].mxu0
        %v3030 = vadd.f32 0.0, %v3029
        %v3031 = vpop.f32.mrb[0].mxu0
        %v3032 = vpop.f32.mrb[0].mxu0
        %v3033 = vadd.f32 0.0, %v3032
        %v3034 = vpop.f32.mrb[0].mxu0
        %3035 = vmatprep.mubr.bf16.mxu0 0
        %3036 = vmatmul.mubr.bf16.gmra.mrb[0].mxu0 %v2933
        %v3037 = vpop.f32.mrb[0].mxu0
        %v3038 = vadd.f32 0.0, %v3037
        %v3039 = vpop.f32.mrb[0].mxu0
        %v3040 = vpop.f32.mrb[0].mxu0
        %v3041 = vadd.f32 0.0, %v3040
        %v3042 = vpop.f32.mrb[0].mxu0
        %3043 = vmatprep.mubr.bf16.mxu0 0
        %3044 = vmatmul.mubr.bf16.gmra.mrb[0].mxu0 %v2936
        %v3045 = vpop.f32.mrb[0].mxu0
        %v3046 = vadd.f32 0.0, %v3045
        %v3047 = vpop.f32.mrb[0].mxu0
        %v3048 = vpop.f32.mrb[0].mxu0
        %v3049 = vadd.f32 0.0, %v3048
        %v3050 = vpop.f32.mrb[0].mxu0
        %3051 = vmatprep.mubr.bf16.mxu0 0
        %3052 = vmatmul.mubr.bf16.gmra.mrb[0].mxu0 %v2939
        %v3053 = vpop.f32.mrb[0].mxu0
        %v3054 = vadd.f32 0.0, %v3053
        %v3055 = vpop.f32.mrb[0].mxu0
        %v3056 = vpop.f32.mrb[0].mxu0
        %v3057 = vadd.f32 0.0, %v3056
        %v3058 = vpop.f32.mrb[0].mxu0
        %3059 = vmatprep.mubr.bf16.mxu0 0
        %3060 = vmatmul.mubr.bf16.gmra.mrb[0].mxu0 %v2942
        %v3061 = vpop.f32.mrb[0].mxu0
        %v3062 = vadd.f32 0.0, %v3061
        %v3063 = vpop.f32.mrb[0].mxu0
        %v3064 = vpop.f32.mrb[0].mxu0
        %v3065 = vadd.f32 0.0, %v3064
        %v3066 = vpop.f32.mrb[0].mxu0
        %3067 = vmatprep.mubr.bf16.mxu0 0
        %3068 = vmatmul.mubr.bf16.gmra.mrb[0].mxu0 %v2945
        %v3069 = vpop.f32.mrb[0].mxu0
        %v3070 = vadd.f32 0.0, %v3069
        %v3071 = vpop.f32.mrb[0].mxu0
        %v3072 = vpop.f32.mrb[0].mxu0
        %v3073 = vadd.f32 0.0, %v3072
        %v3074 = vpop.f32.mrb[0].mxu0
        %3075 = vmatprep.mubr.bf16.mxu0 0
        %3076 = vmatmul.mubr.bf16.gmra.mrb[0].mxu0 %v2948
        %v3077 = vpop.f32.mrb[0].mxu0
        %v3078 = vadd.f32 0.0, %v3077
        %v3079 = vpop.f32.mrb[0].mxu0
        %v3080 = vpop.f32.mrb[0].mxu0
        %v3081 = vadd.f32 0.0, %v3080
        %v3082 = vpop.f32.mrb[0].mxu0
        %3083 = vmatprep.mubr.bf16.mxu0 0
        %3084 = vmatmul.mubr.bf16.gmra.mrb[0].mxu0 %v2951
        %v3085 = vpop.f32.mrb[0].mxu0
        %v3086 = vadd.f32 0.0, %v3085
        %v3087 = vpop.f32.mrb[0].mxu0
        %v3088 = vpop.f32.mrb[0].mxu0
        %v3089 = vadd.f32 0.0, %v3088
        %v3090 = vpop.f32.mrb[0].mxu0
        %3091 = vmatprep.mubr.bf16.mxu0 0
        %3092 = vmatmul.mubr.bf16.gmra.mrb[0].mxu0 %v2954
        %v3093 = vpop.f32.mrb[0].mxu0
        %v3094 = vadd.f32 0.0, %v3093
        %v3095 = vpop.f32.mrb[0].mxu0
        %v3096 = vpop.f32.mrb[0].mxu0
        %v3097 = vadd.f32 0.0, %v3096
        %v3098 = vpop.f32.mrb[0].mxu0
        %3099 = vmatprep.mubr.bf16.mxu0 0
        %3100 = vmatmul.mubr.bf16.gmra.mrb[0].mxu0 %v2957
        %v3101 = vpop.f32.mrb[0].mxu0
        %v3102 = vadd.f32 0.0, %v3101
        %v3103 = vpop.f32.mrb[0].mxu0
        %v3104 = vpop.f32.mrb[0].mxu0
        %v3105 = vadd.f32 0.0, %v3104
        %v3106 = vpop.f32.mrb[0].mxu0
        %3107 = vmatprep.mubr.bf16.mxu0 0
        %3108 = vmatmul.mubr.bf16.gmra.mrb[0].mxu0 %v2960
        %v3109 = vpop.f32.mrb[0].mxu0
        %v3110 = vadd.f32 0.0, %v3109
        %v3111 = vpop.f32.mrb[0].mxu0
        %v3112 = vpop.f32.mrb[0].mxu0
        %v3113 = vadd.f32 0.0, %v3112
        %v3114 = vpop.f32.mrb[0].mxu0
        %3115 = vmatprep.mubr.bf16.mxu0 0
        %3116 = vmatmul.mubr.bf16.gmra.mrb[0].mxu0 %v2963
        %v3117 = vpop.f32.mrb[0].mxu0
        %v3118 = vadd.f32 0.0, %v3117
        %v3119 = vpop.f32.mrb[0].mxu0
        %v3120 = vpop.f32.mrb[0].mxu0
        %v3121 = vadd.f32 0.0, %v3120
        %v3122 = vpop.f32.mrb[0].mxu0
        %3123 = vmatprep.mubr.bf16.mxu0 0
        %3124 = vmatmul.mubr.bf16.gmra.mrb[0].mxu0 %v2966
        %v3125 = vpop.f32.mrb[0].mxu0
        %v3126 = vadd.f32 0.0, %v3125
        %v3127 = vpop.f32.mrb[0].mxu0
        %v3128 = vpop.f32.mrb[0].mxu0
        %v3129 = vadd.f32 0.0, %v3128
        %v3130 = vpop.f32.mrb[0].mxu0
        %3131 = vdwg.mxu0
        %v3132 = vld [vmem:[#allocation3] sm:$0xff]
        %v3133 = vld [vmem:[#allocation3 + $0x8] sm:$0xff]
        %v3134 = vld [vmem:[#allocation3 + $0x10] sm:$0xff]
        %v3135 = vld [vmem:[#allocation3 + $0x18] sm:$0xff]
        %v3136 = vld [vmem:[#allocation3 + $0x20] sm:$0xff]
        %v3137 = vld [vmem:[#allocation3 + $0x28] sm:$0xff]
        %v3138 = vld [vmem:[#allocation3 + $0x30] sm:$0xff]
        %v3139 = vld [vmem:[#allocation3 + $0x38] sm:$0xff]
        %v3140 = vld [vmem:[#allocation3 + $0x40] sm:$0xff]
        %v3141 = vld [vmem:[#allocation3 + $0x48] sm:$0xff]
        %v3142 = vld [vmem:[#allocation3 + $0x50] sm:$0xff]
        %v3143 = vld [vmem:[#allocation3 + $0x58] sm:$0xff]
        %v3144 = vld [vmem:[#allocation3 + $0x60] sm:$0xff]
        %v3145 = vld [vmem:[#allocation3 + $0x68] sm:$0xff]
        %v3146 = vld [vmem:[#allocation3 + $0x70] sm:$0xff]
        %v3147 = vld [vmem:[#allocation3 + $0x78] sm:$0xff]
        %v3148 = vld [vmem:[#allocation3 + $0x80] sm:$0xff]
        %v3149 = vld [vmem:[#allocation3 + $0x88] sm:$0xff]
        %v3150 = vld [vmem:[#allocation3 + $0x90] sm:$0xff]
        %v3151 = vld [vmem:[#allocation3 + $0x98] sm:$0xff]
        %v3152 = vld [vmem:[#allocation3 + $0xa0] sm:$0xff]
        %v3153 = vld [vmem:[#allocation3 + $0xa8] sm:$0xff]
        %v3154 = vld [vmem:[#allocation3 + $0xb0] sm:$0xff]
        %v3155 = vld [vmem:[#allocation3 + $0xb8] sm:$0xff]
        %v3156 = vld [vmem:[#allocation3 + $0xc0] sm:$0xff]
        %v3157 = vld [vmem:[#allocation3 + $0xc8] sm:$0xff]
        %v3158 = vld [vmem:[#allocation3 + $0xd0] sm:$0xff]
        %v3159 = vld [vmem:[#allocation3 + $0xd8] sm:$0xff]
        %v3160 = vld [vmem:[#allocation3 + $0xe0] sm:$0xff]
        %v3161 = vld [vmem:[#allocation3 + $0xe8] sm:$0xff]
        %v3162 = vld [vmem:[#allocation3 + $0xf0] sm:$0xff]
        %v3163 = vld [vmem:[#allocation3 + $0xf8] sm:$0xff]
        %v3164 = vadd.f32 %v3132, %v3006
        %v3165 = vadd.f32 %v3133, %v3009
        %v3166 = vadd.f32 %v3134, %v3014
        %v3167 = vadd.f32 %v3135, %v3017
        %v3168 = vadd.f32 %v3136, %v3022
        %v3169 = vadd.f32 %v3137, %v3025
        %v3170 = vadd.f32 %v3138, %v3030
        %v3171 = vadd.f32 %v3139, %v3033
        %v3172 = vadd.f32 %v3140, %v3038
        %v3173 = vadd.f32 %v3141, %v3041
        %v3174 = vadd.f32 %v3142, %v3046
        %v3175 = vadd.f32 %v3143, %v3049
        %v3176 = vadd.f32 %v3144, %v3054
        %v3177 = vadd.f32 %v3145, %v3057
        %v3178 = vadd.f32 %v3146, %v3062
        %v3179 = vadd.f32 %v3147, %v3065
        %v3180 = vadd.f32 %v3148, %v3070
        %v3181 = vadd.f32 %v3149, %v3073
        %v3182 = vadd.f32 %v3150, %v3078
        %v3183 = vadd.f32 %v3151, %v3081
        %v3184 = vadd.f32 %v3152, %v3086
        %v3185 = vadd.f32 %v3153, %v3089
        %v3186 = vadd.f32 %v3154, %v3094
        %v3187 = vadd.f32 %v3155, %v3097
        %v3188 = vadd.f32 %v3156, %v3102
        %v3189 = vadd.f32 %v3157, %v3105
        %v3190 = vadd.f32 %v3158, %v3110
        %v3191 = vadd.f32 %v3159, %v3113
        %v3192 = vadd.f32 %v3160, %v3118
        %v3193 = vadd.f32 %v3161, %v3121
        %v3194 = vadd.f32 %v3162, %v3126
        %v3195 = vadd.f32 %v3163, %v3129
        %3196 = vst.msk [vmem:[#allocation3] sm:$0xff] %vm1411, %v3164
        %3197 = vst.msk [vmem:[#allocation3 + $0x8] sm:$0xff] %vm1411, %v3165
        %3198 = vst.msk [vmem:[#allocation3 + $0x10] sm:$0xff] %vm1411, %v3166
        %3199 = vst.msk [vmem:[#allocation3 + $0x18] sm:$0xff] %vm1411, %v3167
        %3200 = vst.msk [vmem:[#allocation3 + $0x20] sm:$0xff] %vm1411, %v3168
        %3201 = vst.msk [vmem:[#allocation3 + $0x28] sm:$0xff] %vm1411, %v3169
        %3202 = vst.msk [vmem:[#allocation3 + $0x30] sm:$0xff] %vm1411, %v3170
        %3203 = vst.msk [vmem:[#allocation3 + $0x38] sm:$0xff] %vm1411, %v3171
        %3204 = vst.msk [vmem:[#allocation3 + $0x40] sm:$0xff] %vm1411, %v3172
        %3205 = vst.msk [vmem:[#allocation3 + $0x48] sm:$0xff] %vm1411, %v3173
        %3206 = vst.msk [vmem:[#allocation3 + $0x50] sm:$0xff] %vm1411, %v3174
        %3207 = vst.msk [vmem:[#allocation3 + $0x58] sm:$0xff] %vm1411, %v3175
        %3208 = vst.msk [vmem:[#allocation3 + $0x60] sm:$0xff] %vm1411, %v3176
        %3209 = vst.msk [vmem:[#allocation3 + $0x68] sm:$0xff] %vm1411, %v3177
        %3210 = vst.msk [vmem:[#allocation3 + $0x70] sm:$0xff] %vm1411, %v3178
        %3211 = vst.msk [vmem:[#allocation3 + $0x78] sm:$0xff] %vm1411, %v3179
        %3212 = vst.msk [vmem:[#allocation3 + $0x80] sm:$0xff] %vm1411, %v3180
        %3213 = vst.msk [vmem:[#allocation3 + $0x88] sm:$0xff] %vm1411, %v3181
        %3214 = vst.msk [vmem:[#allocation3 + $0x90] sm:$0xff] %vm1411, %v3182
        %3215 = vst.msk [vmem:[#allocation3 + $0x98] sm:$0xff] %vm1411, %v3183
        %3216 = vst.msk [vmem:[#allocation3 + $0xa0] sm:$0xff] %vm1411, %v3184
        %3217 = vst.msk [vmem:[#allocation3 + $0xa8] sm:$0xff] %vm1411, %v3185
        %3218 = vst.msk [vmem:[#allocation3 + $0xb0] sm:$0xff] %vm1411, %v3186
        %3219 = vst.msk [vmem:[#allocation3 + $0xb8] sm:$0xff] %vm1411, %v3187
        %3220 = vst.msk [vmem:[#allocation3 + $0xc0] sm:$0xff] %vm1411, %v3188
        %3221 = vst.msk [vmem:[#allocation3 + $0xc8] sm:$0xff] %vm1411, %v3189
        %3222 = vst.msk [vmem:[#allocation3 + $0xd0] sm:$0xff] %vm1411, %v3190
        %3223 = vst.msk [vmem:[#allocation3 + $0xd8] sm:$0xff] %vm1411, %v3191
        %3224 = vst.msk [vmem:[#allocation3 + $0xe0] sm:$0xff] %vm1411, %v3192
        %3225 = vst.msk [vmem:[#allocation3 + $0xe8] sm:$0xff] %vm1411, %v3193
        %3226 = vst.msk [vmem:[#allocation3 + $0xf0] sm:$0xff] %vm1411, %v3194
        %3227 = vst.msk [vmem:[#allocation3 + $0xf8] sm:$0xff] %vm1411, %v3195
        %v3228 = vld [vmem:[%s876] sm:$0xf]
        %v3229 = vld [vmem:[%s876 + $0x4] sm:$0xf]
        %v3230 = vld [vmem:[%s876 + $0x8] sm:$0x1]
        %v3231 = vld [vmem:[%s876 + $0xc] sm:$0xf]
        %v3232 = vld [vmem:[%s876 + $0x10] sm:$0xf]
        %v3233 = vld [vmem:[%s876 + $0x14] sm:$0x1]
        %v3234 = vld [vmem:[%s876 + $0x18] sm:$0xf]
        %v3235 = vld [vmem:[%s876 + $0x1c] sm:$0xf]
        %v3236 = vld [vmem:[%s876 + $0x20] sm:$0x1]
        %v3237 = vld [vmem:[%s876 + $0x24] sm:$0xf]
        %v3238 = vld [vmem:[%s876 + $0x28] sm:$0xf]
        %v3239 = vld [vmem:[%s876 + $0x2c] sm:$0x1]
        %v3240 = vld [vmem:[%s876 + $0x30] sm:$0xf]
        %v3241 = vld [vmem:[%s876 + $0x34] sm:$0xf]
        %v3242 = vld [vmem:[%s876 + $0x38] sm:$0x1]
        %v3243 = vld [vmem:[%s876 + $0x3c] sm:$0xf]
        %v3244 = vld [vmem:[%s876 + $0x40] sm:$0xf]
        %v3245 = vld [vmem:[%s876 + $0x44] sm:$0x1]
        %v3246 = vld [vmem:[%s876 + $0x48] sm:$0xf]
        %v3247 = vld [vmem:[%s876 + $0x4c] sm:$0xf]
        %v3248 = vld [vmem:[%s876 + $0x50] sm:$0x1]
        %v3249 = vld [vmem:[%s876 + $0x54] sm:$0xf]
        %v3250 = vld [vmem:[%s876 + $0x58] sm:$0xf]
        %v3251 = vld [vmem:[%s876 + $0x5c] sm:$0x1]
        %v3252 = vld [vmem:[%s876 + $0x60] sm:$0xf]
        %v3253 = vld [vmem:[%s876 + $0x64] sm:$0xf]
        %v3254 = vld [vmem:[%s876 + $0x68] sm:$0x1]
        %v3255 = vld [vmem:[%s876 + $0x6c] sm:$0xf]
        %v3256 = vld [vmem:[%s876 + $0x70] sm:$0xf]
        %v3257 = vld [vmem:[%s876 + $0x74] sm:$0x1]
        %v3258 = vld [vmem:[%s876 + $0x78] sm:$0xf]
        %v3259 = vld [vmem:[%s876 + $0x7c] sm:$0xf]
        %v3260 = vld [vmem:[%s876 + $0x80] sm:$0x1]
        %v3261 = vld [vmem:[%s876 + $0x84] sm:$0xf]
        %v3262 = vld [vmem:[%s876 + $0x88] sm:$0xf]
        %v3263 = vld [vmem:[%s876 + $0x8c] sm:$0x1]
        %v3264 = vld [vmem:[%s876 + $0x90] sm:$0xf]
        %v3265 = vld [vmem:[%s876 + $0x94] sm:$0xf]
        %v3266 = vld [vmem:[%s876 + $0x98] sm:$0x1]
        %v3267 = vld [vmem:[%s876 + $0x9c] sm:$0xf]
        %v3268 = vld [vmem:[%s876 + $0xa0] sm:$0xf]
        %v3269 = vld [vmem:[%s876 + $0xa4] sm:$0x1]
        %v3270 = vld [vmem:[%s876 + $0xa8] sm:$0xf]
        %v3271 = vld [vmem:[%s876 + $0xac] sm:$0xf]
        %v3272 = vld [vmem:[%s876 + $0xb0] sm:$0x1]
        %v3273 = vld [vmem:[%s876 + $0xb4] sm:$0xf]
        %v3274 = vld [vmem:[%s876 + $0xb8] sm:$0xf]
        %v3275 = vld [vmem:[%s876 + $0xbc] sm:$0x1]
        %v3277 = vshrl.u32 %v3228, 16
        %v3279 = vrot.slane %v3277, 4
        %v3280 = vshll.u32 %v3228, 16
        %v3282 = vrot.slane %v3280, 5
        %v3283 = vor.u32 %v3279, %v3282
        %v3284 = vrot.slane %v3283, 4
        %v3286 = vshll.u32 %v3229, 16
        %v3288 = vrot.slane %v3286, 5
        %v3289 = vsel %vm1494, %v3284, %v3288
        %v3290 = vshrl.u32 %v3229, 16
        %v3292 = vrot.slane %v3290, 4
        %v3293 = vor.u32 %v3292, %v3288
        %v3294 = vrot.slane %v3293, 4
        %v3296 = vshll.u32 %v3230, 16
        %v3298 = vrot.slane %v3296, 5
        %v3299 = vsel %vm1494, %v3294, %v3298
        %v3301 = vshrl.u32 %v3231, 16
        %v3303 = vrot.slane %v3301, 4
        %v3304 = vshll.u32 %v3231, 16
        %v3306 = vrot.slane %v3304, 5
        %v3307 = vor.u32 %v3303, %v3306
        %v3308 = vrot.slane %v3307, 4
        %v3310 = vshll.u32 %v3232, 16
        %v3312 = vrot.slane %v3310, 5
        %v3313 = vsel %vm1494, %v3308, %v3312
        %v3314 = vshrl.u32 %v3232, 16
        %v3316 = vrot.slane %v3314, 4
        %v3317 = vor.u32 %v3316, %v3312
        %v3318 = vrot.slane %v3317, 4
        %v3320 = vshll.u32 %v3233, 16
        %v3322 = vrot.slane %v3320, 5
        %v3323 = vsel %vm1494, %v3318, %v3322
        %v3325 = vshrl.u32 %v3234, 16
        %v3327 = vrot.slane %v3325, 4
        %v3328 = vshll.u32 %v3234, 16
        %v3330 = vrot.slane %v3328, 5
        %v3331 = vor.u32 %v3327, %v3330
        %v3332 = vrot.slane %v3331, 4
        %v3334 = vshll.u32 %v3235, 16
        %v3336 = vrot.slane %v3334, 5
        %v3337 = vsel %vm1494, %v3332, %v3336
        %v3338 = vshrl.u32 %v3235, 16
        %v3340 = vrot.slane %v3338, 4
        %v3341 = vor.u32 %v3340, %v3336
        %v3342 = vrot.slane %v3341, 4
        %v3344 = vshll.u32 %v3236, 16
        %v3346 = vrot.slane %v3344, 5
        %v3347 = vsel %vm1494, %v3342, %v3346
        %v3349 = vshrl.u32 %v3237, 16
        %v3351 = vrot.slane %v3349, 4
        %v3352 = vshll.u32 %v3237, 16
        %v3354 = vrot.slane %v3352, 5
        %v3355 = vor.u32 %v3351, %v3354
        %v3356 = vrot.slane %v3355, 4
        %v3358 = vshll.u32 %v3238, 16
        %v3360 = vrot.slane %v3358, 5
        %v3361 = vsel %vm1494, %v3356, %v3360
        %v3362 = vshrl.u32 %v3238, 16
        %v3364 = vrot.slane %v3362, 4
        %v3365 = vor.u32 %v3364, %v3360
        %v3366 = vrot.slane %v3365, 4
        %v3368 = vshll.u32 %v3239, 16
        %v3370 = vrot.slane %v3368, 5
        %v3371 = vsel %vm1494, %v3366, %v3370
        %v3373 = vshrl.u32 %v3240, 16
        %v3375 = vrot.slane %v3373, 4
        %v3376 = vshll.u32 %v3240, 16
        %v3378 = vrot.slane %v3376, 5
        %v3379 = vor.u32 %v3375, %v3378
        %v3380 = vrot.slane %v3379, 4
        %v3382 = vshll.u32 %v3241, 16
        %v3384 = vrot.slane %v3382, 5
        %v3385 = vsel %vm1494, %v3380, %v3384
        %v3386 = vshrl.u32 %v3241, 16
        %v3388 = vrot.slane %v3386, 4
        %v3389 = vor.u32 %v3388, %v3384
        %v3390 = vrot.slane %v3389, 4
        %v3392 = vshll.u32 %v3242, 16
        %v3394 = vrot.slane %v3392, 5
        %v3395 = vsel %vm1494, %v3390, %v3394
        %v3397 = vshrl.u32 %v3243, 16
        %v3399 = vrot.slane %v3397, 4
        %v3400 = vshll.u32 %v3243, 16
        %v3402 = vrot.slane %v3400, 5
        %v3403 = vor.u32 %v3399, %v3402
        %v3404 = vrot.slane %v3403, 4
        %v3406 = vshll.u32 %v3244, 16
        %v3408 = vrot.slane %v3406, 5
        %v3409 = vsel %vm1494, %v3404, %v3408
        %v3410 = vshrl.u32 %v3244, 16
        %v3412 = vrot.slane %v3410, 4
        %v3413 = vor.u32 %v3412, %v3408
        %v3414 = vrot.slane %v3413, 4
        %v3416 = vshll.u32 %v3245, 16
        %v3418 = vrot.slane %v3416, 5
        %v3419 = vsel %vm1494, %v3414, %v3418
        %v3421 = vshrl.u32 %v3246, 16
        %v3423 = vrot.slane %v3421, 4
        %v3424 = vshll.u32 %v3246, 16
        %v3426 = vrot.slane %v3424, 5
        %v3427 = vor.u32 %v3423, %v3426
        %v3428 = vrot.slane %v3427, 4
        %v3430 = vshll.u32 %v3247, 16
        %v3432 = vrot.slane %v3430, 5
        %v3433 = vsel %vm1494, %v3428, %v3432
        %v3434 = vshrl.u32 %v3247, 16
        %v3436 = vrot.slane %v3434, 4
        %v3437 = vor.u32 %v3436, %v3432
        %v3438 = vrot.slane %v3437, 4
        %v3440 = vshll.u32 %v3248, 16
        %v3442 = vrot.slane %v3440, 5
        %v3443 = vsel %vm1494, %v3438, %v3442
        %v3445 = vshrl.u32 %v3249, 16
        %v3447 = vrot.slane %v3445, 4
        %v3448 = vshll.u32 %v3249, 16
        %v3450 = vrot.slane %v3448, 5
        %v3451 = vor.u32 %v3447, %v3450
        %v3452 = vrot.slane %v3451, 4
        %v3454 = vshll.u32 %v3250, 16
        %v3456 = vrot.slane %v3454, 5
        %v3457 = vsel %vm1494, %v3452, %v3456
        %v3458 = vshrl.u32 %v3250, 16
        %v3460 = vrot.slane %v3458, 4
        %v3461 = vor.u32 %v3460, %v3456
        %v3462 = vrot.slane %v3461, 4
        %v3464 = vshll.u32 %v3251, 16
        %v3466 = vrot.slane %v3464, 5
        %v3467 = vsel %vm1494, %v3462, %v3466
        %v3469 = vshrl.u32 %v3252, 16
        %v3471 = vrot.slane %v3469, 4
        %v3472 = vshll.u32 %v3252, 16
        %v3474 = vrot.slane %v3472, 5
        %v3475 = vor.u32 %v3471, %v3474
        %v3476 = vrot.slane %v3475, 4
        %v3478 = vshll.u32 %v3253, 16
        %v3480 = vrot.slane %v3478, 5
        %v3481 = vsel %vm1494, %v3476, %v3480
        %v3482 = vshrl.u32 %v3253, 16
        %v3484 = vrot.slane %v3482, 4
        %v3485 = vor.u32 %v3484, %v3480
        %v3486 = vrot.slane %v3485, 4
        %v3488 = vshll.u32 %v3254, 16
        %v3490 = vrot.slane %v3488, 5
        %v3491 = vsel %vm1494, %v3486, %v3490
        %v3493 = vshrl.u32 %v3255, 16
        %v3495 = vrot.slane %v3493, 4
        %v3496 = vshll.u32 %v3255, 16
        %v3498 = vrot.slane %v3496, 5
        %v3499 = vor.u32 %v3495, %v3498
        %v3500 = vrot.slane %v3499, 4
        %v3502 = vshll.u32 %v3256, 16
        %v3504 = vrot.slane %v3502, 5
        %v3505 = vsel %vm1494, %v3500, %v3504
        %v3506 = vshrl.u32 %v3256, 16
        %v3508 = vrot.slane %v3506, 4
        %v3509 = vor.u32 %v3508, %v3504
        %v3510 = vrot.slane %v3509, 4
        %v3512 = vshll.u32 %v3257, 16
        %v3514 = vrot.slane %v3512, 5
        %v3515 = vsel %vm1494, %v3510, %v3514
        %v3517 = vshrl.u32 %v3258, 16
        %v3519 = vrot.slane %v3517, 4
        %v3520 = vshll.u32 %v3258, 16
        %v3522 = vrot.slane %v3520, 5
        %v3523 = vor.u32 %v3519, %v3522
        %v3524 = vrot.slane %v3523, 4
        %v3526 = vshll.u32 %v3259, 16
        %v3528 = vrot.slane %v3526, 5
        %v3529 = vsel %vm1494, %v3524, %v3528
        %v3530 = vshrl.u32 %v3259, 16
        %v3532 = vrot.slane %v3530, 4
        %v3533 = vor.u32 %v3532, %v3528
        %v3534 = vrot.slane %v3533, 4
        %v3536 = vshll.u32 %v3260, 16
        %v3538 = vrot.slane %v3536, 5
        %v3539 = vsel %vm1494, %v3534, %v3538
        %v3541 = vshrl.u32 %v3261, 16
        %v3543 = vrot.slane %v3541, 4
        %v3544 = vshll.u32 %v3261, 16
        %v3546 = vrot.slane %v3544, 5
        %v3547 = vor.u32 %v3543, %v3546
        %v3548 = vrot.slane %v3547, 4
        %v3550 = vshll.u32 %v3262, 16
        %v3552 = vrot.slane %v3550, 5
        %v3553 = vsel %vm1494, %v3548, %v3552
        %v3554 = vshrl.u32 %v3262, 16
        %v3556 = vrot.slane %v3554, 4
        %v3557 = vor.u32 %v3556, %v3552
        %v3558 = vrot.slane %v3557, 4
        %v3560 = vshll.u32 %v3263, 16
        %v3562 = vrot.slane %v3560, 5
        %v3563 = vsel %vm1494, %v3558, %v3562
        %v3565 = vshrl.u32 %v3264, 16
        %v3567 = vrot.slane %v3565, 4
        %v3568 = vshll.u32 %v3264, 16
        %v3570 = vrot.slane %v3568, 5
        %v3571 = vor.u32 %v3567, %v3570
        %v3572 = vrot.slane %v3571, 4
        %v3574 = vshll.u32 %v3265, 16
        %v3576 = vrot.slane %v3574, 5
        %v3577 = vsel %vm1494, %v3572, %v3576
        %v3578 = vshrl.u32 %v3265, 16
        %v3580 = vrot.slane %v3578, 4
        %v3581 = vor.u32 %v3580, %v3576
        %v3582 = vrot.slane %v3581, 4
        %v3584 = vshll.u32 %v3266, 16
        %v3586 = vrot.slane %v3584, 5
        %v3587 = vsel %vm1494, %v3582, %v3586
        %v3589 = vshrl.u32 %v3267, 16
        %v3591 = vrot.slane %v3589, 4
        %v3592 = vshll.u32 %v3267, 16
        %v3594 = vrot.slane %v3592, 5
        %v3595 = vor.u32 %v3591, %v3594
        %v3596 = vrot.slane %v3595, 4
        %v3598 = vshll.u32 %v3268, 16
        %v3600 = vrot.slane %v3598, 5
        %v3601 = vsel %vm1494, %v3596, %v3600
        %v3602 = vshrl.u32 %v3268, 16
        %v3604 = vrot.slane %v3602, 4
        %v3605 = vor.u32 %v3604, %v3600
        %v3606 = vrot.slane %v3605, 4
        %v3608 = vshll.u32 %v3269, 16
        %v3610 = vrot.slane %v3608, 5
        %v3611 = vsel %vm1494, %v3606, %v3610
        %v3613 = vshrl.u32 %v3270, 16
        %v3615 = vrot.slane %v3613, 4
        %v3616 = vshll.u32 %v3270, 16
        %v3618 = vrot.slane %v3616, 5
        %v3619 = vor.u32 %v3615, %v3618
        %v3620 = vrot.slane %v3619, 4
        %v3622 = vshll.u32 %v3271, 16
        %v3624 = vrot.slane %v3622, 5
        %v3625 = vsel %vm1494, %v3620, %v3624
        %v3626 = vshrl.u32 %v3271, 16
        %v3628 = vrot.slane %v3626, 4
        %v3629 = vor.u32 %v3628, %v3624
        %v3630 = vrot.slane %v3629, 4
        %v3632 = vshll.u32 %v3272, 16
        %v3634 = vrot.slane %v3632, 5
        %v3635 = vsel %vm1494, %v3630, %v3634
        %v3637 = vshrl.u32 %v3273, 16
        %v3639 = vrot.slane %v3637, 4
        %v3640 = vshll.u32 %v3273, 16
        %v3642 = vrot.slane %v3640, 5
        %v3643 = vor.u32 %v3639, %v3642
        %v3644 = vrot.slane %v3643, 4
        %v3646 = vshll.u32 %v3274, 16
        %v3648 = vrot.slane %v3646, 5
        %v3649 = vsel %vm1494, %v3644, %v3648
        %v3650 = vshrl.u32 %v3274, 16
        %v3652 = vrot.slane %v3650, 4
        %v3653 = vor.u32 %v3652, %v3648
        %v3654 = vrot.slane %v3653, 4
        %v3656 = vshll.u32 %v3275, 16
        %v3658 = vrot.slane %v3656, 5
        %v3659 = vsel %vm1494, %v3654, %v3658
        %s3660 = scalar_lea.vmem %s3, 8
        %v3661 = vld [vmem:[%s3660] sm:$0x3]
        %v3662 = vunpack.c.l.b16 %v3289
        %v3663 = vunpack.c.l.b16 %v3299
        %v3664 = vunpack.c.l.b16 %v3313
        %v3665 = vunpack.c.l.b16 %v3323
        %v3666 = vunpack.c.l.b16 %v3337
        %v3667 = vunpack.c.l.b16 %v3347
        %v3668 = vunpack.c.l.b16 %v3361
        %v3669 = vunpack.c.l.b16 %v3371
        %v3670 = vunpack.c.l.b16 %v3385
        %v3671 = vunpack.c.l.b16 %v3395
        %v3672 = vunpack.c.l.b16 %v3409
        %v3673 = vunpack.c.l.b16 %v3419
        %v3674 = vunpack.c.l.b16 %v3433
        %v3675 = vunpack.c.l.b16 %v3443
        %v3676 = vunpack.c.l.b16 %v3457
        %v3677 = vunpack.c.l.b16 %v3467
        %v3678 = vunpack.c.l.b16 %v3481
        %v3679 = vunpack.c.l.b16 %v3491
        %v3680 = vunpack.c.l.b16 %v3505
        %v3681 = vunpack.c.l.b16 %v3515
        %v3682 = vunpack.c.l.b16 %v3529
        %v3683 = vunpack.c.l.b16 %v3539
        %v3684 = vunpack.c.l.b16 %v3553
        %v3685 = vunpack.c.l.b16 %v3563
        %v3686 = vunpack.c.l.b16 %v3577
        %v3687 = vunpack.c.l.b16 %v3587
        %v3688 = vunpack.c.l.b16 %v3601
        %v3689 = vunpack.c.l.b16 %v3611
        %v3690 = vunpack.c.l.b16 %v3625
        %v3691 = vunpack.c.l.b16 %v3635
        %v3692 = vunpack.c.l.b16 %v3649
        %v3693 = vunpack.c.l.b16 %v3659
        %v3694 = vpack.c.b16 %v3663, %v3662
        %v3695 = vpack.c.b16 %v3665, %v3664
        %v3696 = vpack.c.b16 %v3667, %v3666
        %v3697 = vpack.c.b16 %v3669, %v3668
        %v3698 = vpack.c.b16 %v3671, %v3670
        %v3699 = vpack.c.b16 %v3673, %v3672
        %v3700 = vpack.c.b16 %v3675, %v3674
        %v3701 = vpack.c.b16 %v3677, %v3676
        %v3702 = vpack.c.b16 %v3679, %v3678
        %v3703 = vpack.c.b16 %v3681, %v3680
        %v3704 = vpack.c.b16 %v3683, %v3682
        %v3705 = vpack.c.b16 %v3685, %v3684
        %v3706 = vpack.c.b16 %v3687, %v3686
        %v3707 = vpack.c.b16 %v3689, %v3688
        %v3708 = vpack.c.b16 %v3691, %v3690
        %v3709 = vpack.c.b16 %v3693, %v3692
        %v3711 = vsel %vm1194, %v3694, 0
        %v3714 = vsel %vm1194, %v3695, 0
        %v3717 = vsel %vm1194, %v3696, 0
        %v3720 = vsel %vm1194, %v3697, 0
        %v3723 = vsel %vm1194, %v3698, 0
        %v3726 = vsel %vm1194, %v3699, 0
        %v3729 = vsel %vm1194, %v3700, 0
        %v3732 = vsel %vm1194, %v3701, 0
        %v3735 = vsel %vm1194, %v3702, 0
        %v3738 = vsel %vm1194, %v3703, 0
        %v3741 = vsel %vm1194, %v3704, 0
        %v3744 = vsel %vm1194, %v3705, 0
        %v3747 = vsel %vm1194, %v3706, 0
        %v3750 = vsel %vm1194, %v3707, 0
        %v3753 = vsel %vm1194, %v3708, 0
        %v3756 = vsel %vm1194, %v3709, 0
        %v3759 = vand.u32 %v3661, %v1246
        %3761 = vmatprep.subr.bf16.mxu0 0
        %3762 = vmatpush1.bf16.msra.mxu0 %v3759
        %3763 = vmatprep.subr.bf16.mxu0 0
        %3764 = vmatpush1.bf16.msra.mxu0 0
        %3765 = vmatprep.subr.bf16.mxu0 0
        %3766 = vmatpush1.bf16.msra.mxu0 0
        %3767 = vmatprep.subr.bf16.mxu0 0
        %3768 = vmatpush1.bf16.msra.mxu0 0
        %3769 = vmatprep.subr.bf16.mxu0 0
        %3770 = vmatpush1.bf16.msra.mxu0 0
        %3771 = vmatprep.subr.bf16.mxu0 0
        %3772 = vmatpush1.bf16.msra.mxu0 0
        %3773 = vmatprep.subr.bf16.mxu0 0
        %3774 = vmatpush1.bf16.msra.mxu0 0
        %3775 = vmatprep.subr.bf16.mxu0 0
        %3776 = vmatpush1.bf16.msra.mxu0 0
        %3777 = vmatprep.subr.bf16.mxu0 0
        %3778 = vmatpush1.bf16.msra.mxu0 0
        %3779 = vmatprep.subr.bf16.mxu0 0
        %3780 = vmatpush1.bf16.msra.mxu0 0
        %3781 = vmatprep.subr.bf16.mxu0 0
        %3782 = vmatpush1.bf16.msra.mxu0 0
        %3783 = vmatprep.subr.bf16.mxu0 0
        %3784 = vmatpush1.bf16.msra.mxu0 0
        %3785 = vmatprep.subr.bf16.mxu0 0
        %3786 = vmatpush1.bf16.msra.mxu0 0
        %3787 = vmatprep.subr.bf16.mxu0 0
        %3788 = vmatpush1.bf16.msra.mxu0 0
        %3789 = vmatprep.subr.bf16.mxu0 0
        %3790 = vmatpush1.bf16.msra.mxu0 0
        %3791 = vmatprep.subr.bf16.mxu0 0
        %3792 = vmatpush1.bf16.msra.mxu0 0
        %3793 = vmatprep.mubr.bf16.mxu0 0
        %3794 = vmatmul.mubr.bf16.gmra.mrb[0].mxu0 %v3711
        %v3795 = vpop.f32.mrb[0].mxu0
        %v3796 = vadd.f32 0.0, %v3795
        %v3797 = vpop.f32.mrb[0].mxu0
        %v3798 = vpop.f32.mrb[0].mxu0
        %v3799 = vadd.f32 0.0, %v3798
        %v3800 = vpop.f32.mrb[0].mxu0
        %3801 = vmatprep.mubr.bf16.mxu0 0
        %3802 = vmatmul.mubr.bf16.gmra.mrb[0].mxu0 %v3714
        %v3803 = vpop.f32.mrb[0].mxu0
        %v3804 = vadd.f32 0.0, %v3803
        %v3805 = vpop.f32.mrb[0].mxu0
        %v3806 = vpop.f32.mrb[0].mxu0
        %v3807 = vadd.f32 0.0, %v3806
        %v3808 = vpop.f32.mrb[0].mxu0
        %3809 = vmatprep.mubr.bf16.mxu0 0
        %3810 = vmatmul.mubr.bf16.gmra.mrb[0].mxu0 %v3717
        %v3811 = vpop.f32.mrb[0].mxu0
        %v3812 = vadd.f32 0.0, %v3811
        %v3813 = vpop.f32.mrb[0].mxu0
        %v3814 = vpop.f32.mrb[0].mxu0
        %v3815 = vadd.f32 0.0, %v3814
        %v3816 = vpop.f32.mrb[0].mxu0
        %3817 = vmatprep.mubr.bf16.mxu0 0
        %3818 = vmatmul.mubr.bf16.gmra.mrb[0].mxu0 %v3720
        %v3819 = vpop.f32.mrb[0].mxu0
        %v3820 = vadd.f32 0.0, %v3819
        %v3821 = vpop.f32.mrb[0].mxu0
        %v3822 = vpop.f32.mrb[0].mxu0
        %v3823 = vadd.f32 0.0, %v3822
        %v3824 = vpop.f32.mrb[0].mxu0
        %3825 = vmatprep.mubr.bf16.mxu0 0
        %3826 = vmatmul.mubr.bf16.gmra.mrb[0].mxu0 %v3723
        %v3827 = vpop.f32.mrb[0].mxu0
        %v3828 = vadd.f32 0.0, %v3827
        %v3829 = vpop.f32.mrb[0].mxu0
        %v3830 = vpop.f32.mrb[0].mxu0
        %v3831 = vadd.f32 0.0, %v3830
        %v3832 = vpop.f32.mrb[0].mxu0
        %3833 = vmatprep.mubr.bf16.mxu0 0
        %3834 = vmatmul.mubr.bf16.gmra.mrb[0].mxu0 %v3726
        %v3835 = vpop.f32.mrb[0].mxu0
        %v3836 = vadd.f32 0.0, %v3835
        %v3837 = vpop.f32.mrb[0].mxu0
        %v3838 = vpop.f32.mrb[0].mxu0
        %v3839 = vadd.f32 0.0, %v3838
        %v3840 = vpop.f32.mrb[0].mxu0
        %3841 = vmatprep.mubr.bf16.mxu0 0
        %3842 = vmatmul.mubr.bf16.gmra.mrb[0].mxu0 %v3729
        %v3843 = vpop.f32.mrb[0].mxu0
        %v3844 = vadd.f32 0.0, %v3843
        %v3845 = vpop.f32.mrb[0].mxu0
        %v3846 = vpop.f32.mrb[0].mxu0
        %v3847 = vadd.f32 0.0, %v3846
        %v3848 = vpop.f32.mrb[0].mxu0
        %3849 = vmatprep.mubr.bf16.mxu0 0
        %3850 = vmatmul.mubr.bf16.gmra.mrb[0].mxu0 %v3732
        %v3851 = vpop.f32.mrb[0].mxu0
        %v3852 = vadd.f32 0.0, %v3851
        %v3853 = vpop.f32.mrb[0].mxu0
        %v3854 = vpop.f32.mrb[0].mxu0
        %v3855 = vadd.f32 0.0, %v3854
        %v3856 = vpop.f32.mrb[0].mxu0
        %3857 = vmatprep.mubr.bf16.mxu0 0
        %3858 = vmatmul.mubr.bf16.gmra.mrb[0].mxu0 %v3735
        %v3859 = vpop.f32.mrb[0].mxu0
        %v3860 = vadd.f32 0.0, %v3859
        %v3861 = vpop.f32.mrb[0].mxu0
        %v3862 = vpop.f32.mrb[0].mxu0
        %v3863 = vadd.f32 0.0, %v3862
        %v3864 = vpop.f32.mrb[0].mxu0
        %3865 = vmatprep.mubr.bf16.mxu0 0
        %3866 = vmatmul.mubr.bf16.gmra.mrb[0].mxu0 %v3738
        %v3867 = vpop.f32.mrb[0].mxu0
        %v3868 = vadd.f32 0.0, %v3867
        %v3869 = vpop.f32.mrb[0].mxu0
        %v3870 = vpop.f32.mrb[0].mxu0
        %v3871 = vadd.f32 0.0, %v3870
        %v3872 = vpop.f32.mrb[0].mxu0
        %3873 = vmatprep.mubr.bf16.mxu0 0
        %3874 = vmatmul.mubr.bf16.gmra.mrb[0].mxu0 %v3741
        %v3875 = vpop.f32.mrb[0].mxu0
        %v3876 = vadd.f32 0.0, %v3875
        %v3877 = vpop.f32.mrb[0].mxu0
        %v3878 = vpop.f32.mrb[0].mxu0
        %v3879 = vadd.f32 0.0, %v3878
        %v3880 = vpop.f32.mrb[0].mxu0
        %3881 = vmatprep.mubr.bf16.mxu0 0
        %3882 = vmatmul.mubr.bf16.gmra.mrb[0].mxu0 %v3744
        %v3883 = vpop.f32.mrb[0].mxu0
        %v3884 = vadd.f32 0.0, %v3883
        %v3885 = vpop.f32.mrb[0].mxu0
        %v3886 = vpop.f32.mrb[0].mxu0
        %v3887 = vadd.f32 0.0, %v3886
        %v3888 = vpop.f32.mrb[0].mxu0
        %3889 = vmatprep.mubr.bf16.mxu0 0
        %3890 = vmatmul.mubr.bf16.gmra.mrb[0].mxu0 %v3747
        %v3891 = vpop.f32.mrb[0].mxu0
        %v3892 = vadd.f32 0.0, %v3891
        %v3893 = vpop.f32.mrb[0].mxu0
        %v3894 = vpop.f32.mrb[0].mxu0
        %v3895 = vadd.f32 0.0, %v3894
        %v3896 = vpop.f32.mrb[0].mxu0
        %3897 = vmatprep.mubr.bf16.mxu0 0
        %3898 = vmatmul.mubr.bf16.gmra.mrb[0].mxu0 %v3750
        %v3899 = vpop.f32.mrb[0].mxu0
        %v3900 = vadd.f32 0.0, %v3899
        %v3901 = vpop.f32.mrb[0].mxu0
        %v3902 = vpop.f32.mrb[0].mxu0
        %v3903 = vadd.f32 0.0, %v3902
        %v3904 = vpop.f32.mrb[0].mxu0
        %3905 = vmatprep.mubr.bf16.mxu0 0
        %3906 = vmatmul.mubr.bf16.gmra.mrb[0].mxu0 %v3753
        %v3907 = vpop.f32.mrb[0].mxu0
        %v3908 = vadd.f32 0.0, %v3907
        %v3909 = vpop.f32.mrb[0].mxu0
        %v3910 = vpop.f32.mrb[0].mxu0
        %v3911 = vadd.f32 0.0, %v3910
        %v3912 = vpop.f32.mrb[0].mxu0
        %3913 = vmatprep.mubr.bf16.mxu0 0
        %3914 = vmatmul.mubr.bf16.gmra.mrb[0].mxu0 %v3756
        %v3915 = vpop.f32.mrb[0].mxu0
        %v3916 = vadd.f32 0.0, %v3915
        %v3917 = vpop.f32.mrb[0].mxu0
        %v3918 = vpop.f32.mrb[0].mxu0
        %v3919 = vadd.f32 0.0, %v3918
        %v3920 = vpop.f32.mrb[0].mxu0
        %3921 = vdwg.mxu0
        %v3922 = vld [vmem:[#allocation3] sm:$0xff]
        %v3923 = vld [vmem:[#allocation3 + $0x8] sm:$0xff]
        %v3924 = vld [vmem:[#allocation3 + $0x10] sm:$0xff]
        %v3925 = vld [vmem:[#allocation3 + $0x18] sm:$0xff]
        %v3926 = vld [vmem:[#allocation3 + $0x20] sm:$0xff]
        %v3927 = vld [vmem:[#allocation3 + $0x28] sm:$0xff]
        %v3928 = vld [vmem:[#allocation3 + $0x30] sm:$0xff]
        %v3929 = vld [vmem:[#allocation3 + $0x38] sm:$0xff]
        %v3930 = vld [vmem:[#allocation3 + $0x40] sm:$0xff]
        %v3931 = vld [vmem:[#allocation3 + $0x48] sm:$0xff]
        %v3932 = vld [vmem:[#allocation3 + $0x50] sm:$0xff]
        %v3933 = vld [vmem:[#allocation3 + $0x58] sm:$0xff]
        %v3934 = vld [vmem:[#allocation3 + $0x60] sm:$0xff]
        %v3935 = vld [vmem:[#allocation3 + $0x68] sm:$0xff]
        %v3936 = vld [vmem:[#allocation3 + $0x70] sm:$0xff]
        %v3937 = vld [vmem:[#allocation3 + $0x78] sm:$0xff]
        %v3938 = vld [vmem:[#allocation3 + $0x80] sm:$0xff]
        %v3939 = vld [vmem:[#allocation3 + $0x88] sm:$0xff]
        %v3940 = vld [vmem:[#allocation3 + $0x90] sm:$0xff]
        %v3941 = vld [vmem:[#allocation3 + $0x98] sm:$0xff]
        %v3942 = vld [vmem:[#allocation3 + $0xa0] sm:$0xff]
        %v3943 = vld [vmem:[#allocation3 + $0xa8] sm:$0xff]
        %v3944 = vld [vmem:[#allocation3 + $0xb0] sm:$0xff]
        %v3945 = vld [vmem:[#allocation3 + $0xb8] sm:$0xff]
        %v3946 = vld [vmem:[#allocation3 + $0xc0] sm:$0xff]
        %v3947 = vld [vmem:[#allocation3 + $0xc8] sm:$0xff]
        %v3948 = vld [vmem:[#allocation3 + $0xd0] sm:$0xff]
        %v3949 = vld [vmem:[#allocation3 + $0xd8] sm:$0xff]
        %v3950 = vld [vmem:[#allocation3 + $0xe0] sm:$0xff]
        %v3951 = vld [vmem:[#allocation3 + $0xe8] sm:$0xff]
        %v3952 = vld [vmem:[#allocation3 + $0xf0] sm:$0xff]
        %v3953 = vld [vmem:[#allocation3 + $0xf8] sm:$0xff]
        %v3954 = vadd.f32 %v3922, %v3796
        %v3955 = vadd.f32 %v3923, %v3799
        %v3956 = vadd.f32 %v3924, %v3804
        %v3957 = vadd.f32 %v3925, %v3807
        %v3958 = vadd.f32 %v3926, %v3812
        %v3959 = vadd.f32 %v3927, %v3815
        %v3960 = vadd.f32 %v3928, %v3820
        %v3961 = vadd.f32 %v3929, %v3823
        %v3962 = vadd.f32 %v3930, %v3828
        %v3963 = vadd.f32 %v3931, %v3831
        %v3964 = vadd.f32 %v3932, %v3836
        %v3965 = vadd.f32 %v3933, %v3839
        %v3966 = vadd.f32 %v3934, %v3844
        %v3967 = vadd.f32 %v3935, %v3847
        %v3968 = vadd.f32 %v3936, %v3852
        %v3969 = vadd.f32 %v3937, %v3855
        %v3970 = vadd.f32 %v3938, %v3860
        %v3971 = vadd.f32 %v3939, %v3863
        %v3972 = vadd.f32 %v3940, %v3868
        %v3973 = vadd.f32 %v3941, %v3871
        %v3974 = vadd.f32 %v3942, %v3876
        %v3975 = vadd.f32 %v3943, %v3879
        %v3976 = vadd.f32 %v3944, %v3884
        %v3977 = vadd.f32 %v3945, %v3887
        %v3978 = vadd.f32 %v3946, %v3892
        %v3979 = vadd.f32 %v3947, %v3895
        %v3980 = vadd.f32 %v3948, %v3900
        %v3981 = vadd.f32 %v3949, %v3903
        %v3982 = vadd.f32 %v3950, %v3908
        %v3983 = vadd.f32 %v3951, %v3911
        %v3984 = vadd.f32 %v3952, %v3916
        %v3985 = vadd.f32 %v3953, %v3919
        %3986 = vst.msk [vmem:[#allocation3] sm:$0xff] %vm1411, %v3954
        %3987 = vst.msk [vmem:[#allocation3 + $0x8] sm:$0xff] %vm1411, %v3955
        %3988 = vst.msk [vmem:[#allocation3 + $0x10] sm:$0xff] %vm1411, %v3956
        %3989 = vst.msk [vmem:[#allocation3 + $0x18] sm:$0xff] %vm1411, %v3957
        %3990 = vst.msk [vmem:[#allocation3 + $0x20] sm:$0xff] %vm1411, %v3958
        %3991 = vst.msk [vmem:[#allocation3 + $0x28] sm:$0xff] %vm1411, %v3959
        %3992 = vst.msk [vmem:[#allocation3 + $0x30] sm:$0xff] %vm1411, %v3960
        %3993 = vst.msk [vmem:[#allocation3 + $0x38] sm:$0xff] %vm1411, %v3961
        %3994 = vst.msk [vmem:[#allocation3 + $0x40] sm:$0xff] %vm1411, %v3962
        %3995 = vst.msk [vmem:[#allocation3 + $0x48] sm:$0xff] %vm1411, %v3963
        %3996 = vst.msk [vmem:[#allocation3 + $0x50] sm:$0xff] %vm1411, %v3964
        %3997 = vst.msk [vmem:[#allocation3 + $0x58] sm:$0xff] %vm1411, %v3965
        %3998 = vst.msk [vmem:[#allocation3 + $0x60] sm:$0xff] %vm1411, %v3966
        %3999 = vst.msk [vmem:[#allocation3 + $0x68] sm:$0xff] %vm1411, %v3967
        %4000 = vst.msk [vmem:[#allocation3 + $0x70] sm:$0xff] %vm1411, %v3968
        %4001 = vst.msk [vmem:[#allocation3 + $0x78] sm:$0xff] %vm1411, %v3969
        %4002 = vst.msk [vmem:[#allocation3 + $0x80] sm:$0xff] %vm1411, %v3970
        %4003 = vst.msk [vmem:[#allocation3 + $0x88] sm:$0xff] %vm1411, %v3971
        %4004 = vst.msk [vmem:[#allocation3 + $0x90] sm:$0xff] %vm1411, %v3972
        %4005 = vst.msk [vmem:[#allocation3 + $0x98] sm:$0xff] %vm1411, %v3973
        %4006 = vst.msk [vmem:[#allocation3 + $0xa0] sm:$0xff] %vm1411, %v3974
        %4007 = vst.msk [vmem:[#allocation3 + $0xa8] sm:$0xff] %vm1411, %v3975
        %4008 = vst.msk [vmem:[#allocation3 + $0xb0] sm:$0xff] %vm1411, %v3976
        %4009 = vst.msk [vmem:[#allocation3 + $0xb8] sm:$0xff] %vm1411, %v3977
        %4010 = vst.msk [vmem:[#allocation3 + $0xc0] sm:$0xff] %vm1411, %v3978
        %4011 = vst.msk [vmem:[#allocation3 + $0xc8] sm:$0xff] %vm1411, %v3979
        %4012 = vst.msk [vmem:[#allocation3 + $0xd0] sm:$0xff] %vm1411, %v3980
        %4013 = vst.msk [vmem:[#allocation3 + $0xd8] sm:$0xff] %vm1411, %v3981
        %4014 = vst.msk [vmem:[#allocation3 + $0xe0] sm:$0xff] %vm1411, %v3982
        %4015 = vst.msk [vmem:[#allocation3 + $0xe8] sm:$0xff] %vm1411, %v3983
        %4016 = vst.msk [vmem:[#allocation3 + $0xf0] sm:$0xff] %vm1411, %v3984
        %4017 = vst.msk [vmem:[#allocation3 + $0xf8] sm:$0xff] %vm1411, %v3985
        %v4018 = vld [vmem:[%s876] sm:$0xe]
        %v4019 = vld [vmem:[%s876 + $0x4] sm:$0xf]
        %v4020 = vld [vmem:[%s876 + $0x8] sm:$0x1]
        %v4021 = vld [vmem:[%s876 + $0xc] sm:$0xe]
        %v4022 = vld [vmem:[%s876 + $0x10] sm:$0xf]
        %v4023 = vld [vmem:[%s876 + $0x14] sm:$0x1]
        %v4024 = vld [vmem:[%s876 + $0x18] sm:$0xe]
        %v4025 = vld [vmem:[%s876 + $0x1c] sm:$0xf]
        %v4026 = vld [vmem:[%s876 + $0x20] sm:$0x1]
        %v4027 = vld [vmem:[%s876 + $0x24] sm:$0xe]
        %v4028 = vld [vmem:[%s876 + $0x28] sm:$0xf]
        %v4029 = vld [vmem:[%s876 + $0x2c] sm:$0x1]
        %v4030 = vld [vmem:[%s876 + $0x30] sm:$0xe]
        %v4031 = vld [vmem:[%s876 + $0x34] sm:$0xf]
        %v4032 = vld [vmem:[%s876 + $0x38] sm:$0x1]
        %v4033 = vld [vmem:[%s876 + $0x3c] sm:$0xe]
        %v4034 = vld [vmem:[%s876 + $0x40] sm:$0xf]
        %v4035 = vld [vmem:[%s876 + $0x44] sm:$0x1]
        %v4036 = vld [vmem:[%s876 + $0x48] sm:$0xe]
        %v4037 = vld [vmem:[%s876 + $0x4c] sm:$0xf]
        %v4038 = vld [vmem:[%s876 + $0x50] sm:$0x1]
        %v4039 = vld [vmem:[%s876 + $0x54] sm:$0xe]
        %v4040 = vld [vmem:[%s876 + $0x58] sm:$0xf]
        %v4041 = vld [vmem:[%s876 + $0x5c] sm:$0x1]
        %v4042 = vld [vmem:[%s876 + $0x60] sm:$0xe]
        %v4043 = vld [vmem:[%s876 + $0x64] sm:$0xf]
        %v4044 = vld [vmem:[%s876 + $0x68] sm:$0x1]
        %v4045 = vld [vmem:[%s876 + $0x6c] sm:$0xe]
        %v4046 = vld [vmem:[%s876 + $0x70] sm:$0xf]
        %v4047 = vld [vmem:[%s876 + $0x74] sm:$0x1]
        %v4048 = vld [vmem:[%s876 + $0x78] sm:$0xe]
        %v4049 = vld [vmem:[%s876 + $0x7c] sm:$0xf]
        %v4050 = vld [vmem:[%s876 + $0x80] sm:$0x1]
        %v4051 = vld [vmem:[%s876 + $0x84] sm:$0xe]
        %v4052 = vld [vmem:[%s876 + $0x88] sm:$0xf]
        %v4053 = vld [vmem:[%s876 + $0x8c] sm:$0x1]
        %v4054 = vld [vmem:[%s876 + $0x90] sm:$0xe]
        %v4055 = vld [vmem:[%s876 + $0x94] sm:$0xf]
        %v4056 = vld [vmem:[%s876 + $0x98] sm:$0x1]
        %v4057 = vld [vmem:[%s876 + $0x9c] sm:$0xe]
        %v4058 = vld [vmem:[%s876 + $0xa0] sm:$0xf]
        %v4059 = vld [vmem:[%s876 + $0xa4] sm:$0x1]
        %v4060 = vld [vmem:[%s876 + $0xa8] sm:$0xe]
        %v4061 = vld [vmem:[%s876 + $0xac] sm:$0xf]
        %v4062 = vld [vmem:[%s876 + $0xb0] sm:$0x1]
        %v4063 = vld [vmem:[%s876 + $0xb4] sm:$0xe]
        %v4064 = vld [vmem:[%s876 + $0xb8] sm:$0xf]
        %v4065 = vld [vmem:[%s876 + $0xbc] sm:$0x1]
        %v4114 = vrot.slane %v4018, 5
        %v4115 = vrot.slane %v4114, 4
        %v4116 = vrot.slane %v4019, 5
        %v4117 = vsel %vm2335, %v4115, %v4116
        %v4118 = vrot.slane %v4116, 4
        %v4119 = vrot.slane %v4020, 5
        %v4120 = vsel %vm2335, %v4118, %v4119
        %v4121 = vrot.slane %v4021, 5
        %v4122 = vrot.slane %v4121, 4
        %v4123 = vrot.slane %v4022, 5
        %v4124 = vsel %vm2335, %v4122, %v4123
        %v4125 = vrot.slane %v4123, 4
        %v4126 = vrot.slane %v4023, 5
        %v4127 = vsel %vm2335, %v4125, %v4126
        %v4128 = vrot.slane %v4024, 5
        %v4129 = vrot.slane %v4128, 4
        %v4130 = vrot.slane %v4025, 5
        %v4131 = vsel %vm2335, %v4129, %v4130
        %v4132 = vrot.slane %v4130, 4
        %v4133 = vrot.slane %v4026, 5
        %v4134 = vsel %vm2335, %v4132, %v4133
        %v4135 = vrot.slane %v4027, 5
        %v4136 = vrot.slane %v4135, 4
        %v4137 = vrot.slane %v4028, 5
        %v4138 = vsel %vm2335, %v4136, %v4137
        %v4139 = vrot.slane %v4137, 4
        %v4140 = vrot.slane %v4029, 5
        %v4141 = vsel %vm2335, %v4139, %v4140
        %v4142 = vrot.slane %v4030, 5
        %v4143 = vrot.slane %v4142, 4
        %v4144 = vrot.slane %v4031, 5
        %v4145 = vsel %vm2335, %v4143, %v4144
        %v4146 = vrot.slane %v4144, 4
        %v4147 = vrot.slane %v4032, 5
        %v4148 = vsel %vm2335, %v4146, %v4147
        %v4149 = vrot.slane %v4033, 5
        %v4150 = vrot.slane %v4149, 4
        %v4151 = vrot.slane %v4034, 5
        %v4152 = vsel %vm2335, %v4150, %v4151
        %v4153 = vrot.slane %v4151, 4
        %v4154 = vrot.slane %v4035, 5
        %v4155 = vsel %vm2335, %v4153, %v4154
        %v4156 = vrot.slane %v4036, 5
        %v4157 = vrot.slane %v4156, 4
        %v4158 = vrot.slane %v4037, 5
        %v4159 = vsel %vm2335, %v4157, %v4158
        %v4160 = vrot.slane %v4158, 4
        %v4161 = vrot.slane %v4038, 5
        %v4162 = vsel %vm2335, %v4160, %v4161
        %v4163 = vrot.slane %v4039, 5
        %v4164 = vrot.slane %v4163, 4
        %v4165 = vrot.slane %v4040, 5
        %v4166 = vsel %vm2335, %v4164, %v4165
        %v4167 = vrot.slane %v4165, 4
        %v4168 = vrot.slane %v4041, 5
        %v4169 = vsel %vm2335, %v4167, %v4168
        %v4170 = vrot.slane %v4042, 5
        %v4171 = vrot.slane %v4170, 4
        %v4172 = vrot.slane %v4043, 5
        %v4173 = vsel %vm2335, %v4171, %v4172
        %v4174 = vrot.slane %v4172, 4
        %v4175 = vrot.slane %v4044, 5
        %v4176 = vsel %vm2335, %v4174, %v4175
        %v4177 = vrot.slane %v4045, 5
        %v4178 = vrot.slane %v4177, 4
        %v4179 = vrot.slane %v4046, 5
        %v4180 = vsel %vm2335, %v4178, %v4179
        %v4181 = vrot.slane %v4179, 4
        %v4182 = vrot.slane %v4047, 5
        %v4183 = vsel %vm2335, %v4181, %v4182
        %v4184 = vrot.slane %v4048, 5
        %v4185 = vrot.slane %v4184, 4
        %v4186 = vrot.slane %v4049, 5
        %v4187 = vsel %vm2335, %v4185, %v4186
        %v4188 = vrot.slane %v4186, 4
        %v4189 = vrot.slane %v4050, 5
        %v4190 = vsel %vm2335, %v4188, %v4189
        %v4191 = vrot.slane %v4051, 5
        %v4192 = vrot.slane %v4191, 4
        %v4193 = vrot.slane %v4052, 5
        %v4194 = vsel %vm2335, %v4192, %v4193
        %v4195 = vrot.slane %v4193, 4
        %v4196 = vrot.slane %v4053, 5
        %v4197 = vsel %vm2335, %v4195, %v4196
        %v4198 = vrot.slane %v4054, 5
        %v4199 = vrot.slane %v4198, 4
        %v4200 = vrot.slane %v4055, 5
        %v4201 = vsel %vm2335, %v4199, %v4200
        %v4202 = vrot.slane %v4200, 4
        %v4203 = vrot.slane %v4056, 5
        %v4204 = vsel %vm2335, %v4202, %v4203
        %v4205 = vrot.slane %v4057, 5
        %v4206 = vrot.slane %v4205, 4
        %v4207 = vrot.slane %v4058, 5
        %v4208 = vsel %vm2335, %v4206, %v4207
        %v4209 = vrot.slane %v4207, 4
        %v4210 = vrot.slane %v4059, 5
        %v4211 = vsel %vm2335, %v4209, %v4210
        %v4212 = vrot.slane %v4060, 5
        %v4213 = vrot.slane %v4212, 4
        %v4214 = vrot.slane %v4061, 5
        %v4215 = vsel %vm2335, %v4213, %v4214
        %v4216 = vrot.slane %v4214, 4
        %v4217 = vrot.slane %v4062, 5
        %v4218 = vsel %vm2335, %v4216, %v4217
        %v4219 = vrot.slane %v4063, 5
        %v4220 = vrot.slane %v4219, 4
        %v4221 = vrot.slane %v4064, 5
        %v4222 = vsel %vm2335, %v4220, %v4221
        %v4223 = vrot.slane %v4221, 4
        %v4224 = vrot.slane %v4065, 5
        %v4225 = vsel %vm2335, %v4223, %v4224
        %s4226 = scalar_lea.vmem %s3, 10
        %v4227 = vld [vmem:[%s4226] sm:$0x3]
        %v4228 = vunpack.c.l.b16 %v4117
        %v4229 = vunpack.c.l.b16 %v4120
        %v4230 = vunpack.c.l.b16 %v4124
        %v4231 = vunpack.c.l.b16 %v4127
        %v4232 = vunpack.c.l.b16 %v4131
        %v4233 = vunpack.c.l.b16 %v4134
        %v4234 = vunpack.c.l.b16 %v4138
        %v4235 = vunpack.c.l.b16 %v4141
        %v4236 = vunpack.c.l.b16 %v4145
        %v4237 = vunpack.c.l.b16 %v4148
        %v4238 = vunpack.c.l.b16 %v4152
        %v4239 = vunpack.c.l.b16 %v4155
        %v4240 = vunpack.c.l.b16 %v4159
        %v4241 = vunpack.c.l.b16 %v4162
        %v4242 = vunpack.c.l.b16 %v4166
        %v4243 = vunpack.c.l.b16 %v4169
        %v4244 = vunpack.c.l.b16 %v4173
        %v4245 = vunpack.c.l.b16 %v4176
        %v4246 = vunpack.c.l.b16 %v4180
        %v4247 = vunpack.c.l.b16 %v4183
        %v4248 = vunpack.c.l.b16 %v4187
        %v4249 = vunpack.c.l.b16 %v4190
        %v4250 = vunpack.c.l.b16 %v4194
        %v4251 = vunpack.c.l.b16 %v4197
        %v4252 = vunpack.c.l.b16 %v4201
        %v4253 = vunpack.c.l.b16 %v4204
        %v4254 = vunpack.c.l.b16 %v4208
        %v4255 = vunpack.c.l.b16 %v4211
        %v4256 = vunpack.c.l.b16 %v4215
        %v4257 = vunpack.c.l.b16 %v4218
        %v4258 = vunpack.c.l.b16 %v4222
        %v4259 = vunpack.c.l.b16 %v4225
        %v4260 = vpack.c.b16 %v4229, %v4228
        %v4261 = vpack.c.b16 %v4231, %v4230
        %v4262 = vpack.c.b16 %v4233, %v4232
        %v4263 = vpack.c.b16 %v4235, %v4234
        %v4264 = vpack.c.b16 %v4237, %v4236
        %v4265 = vpack.c.b16 %v4239, %v4238
        %v4266 = vpack.c.b16 %v4241, %v4240
        %v4267 = vpack.c.b16 %v4243, %v4242
        %v4268 = vpack.c.b16 %v4245, %v4244
        %v4269 = vpack.c.b16 %v4247, %v4246
        %v4270 = vpack.c.b16 %v4249, %v4248
        %v4271 = vpack.c.b16 %v4251, %v4250
        %v4272 = vpack.c.b16 %v4253, %v4252
        %v4273 = vpack.c.b16 %v4255, %v4254
        %v4274 = vpack.c.b16 %v4257, %v4256
        %v4275 = vpack.c.b16 %v4259, %v4258
        %v4277 = vsel %vm1194, %v4260, 0
        %v4280 = vsel %vm1194, %v4261, 0
        %v4283 = vsel %vm1194, %v4262, 0
        %v4286 = vsel %vm1194, %v4263, 0
        %v4289 = vsel %vm1194, %v4264, 0
        %v4292 = vsel %vm1194, %v4265, 0
        %v4295 = vsel %vm1194, %v4266, 0
        %v4298 = vsel %vm1194, %v4267, 0
        %v4301 = vsel %vm1194, %v4268, 0
        %v4304 = vsel %vm1194, %v4269, 0
        %v4307 = vsel %vm1194, %v4270, 0
        %v4310 = vsel %vm1194, %v4271, 0
        %v4313 = vsel %vm1194, %v4272, 0
        %v4316 = vsel %vm1194, %v4273, 0
        %v4319 = vsel %vm1194, %v4274, 0
        %v4322 = vsel %vm1194, %v4275, 0
        %v4325 = vand.u32 %v4227, %v1246
        %4327 = vmatprep.subr.bf16.mxu0 0
        %4328 = vmatpush1.bf16.msra.mxu0 %v4325
        %4329 = vmatprep.subr.bf16.mxu0 0
        %4330 = vmatpush1.bf16.msra.mxu0 0
        %4331 = vmatprep.subr.bf16.mxu0 0
        %4332 = vmatpush1.bf16.msra.mxu0 0
        %4333 = vmatprep.subr.bf16.mxu0 0
        %4334 = vmatpush1.bf16.msra.mxu0 0
        %4335 = vmatprep.subr.bf16.mxu0 0
        %4336 = vmatpush1.bf16.msra.mxu0 0
        %4337 = vmatprep.subr.bf16.mxu0 0
        %4338 = vmatpush1.bf16.msra.mxu0 0
        %4339 = vmatprep.subr.bf16.mxu0 0
        %4340 = vmatpush1.bf16.msra.mxu0 0
        %4341 = vmatprep.subr.bf16.mxu0 0
        %4342 = vmatpush1.bf16.msra.mxu0 0
        %4343 = vmatprep.subr.bf16.mxu0 0
        %4344 = vmatpush1.bf16.msra.mxu0 0
        %4345 = vmatprep.subr.bf16.mxu0 0
        %4346 = vmatpush1.bf16.msra.mxu0 0
        %4347 = vmatprep.subr.bf16.mxu0 0
        %4348 = vmatpush1.bf16.msra.mxu0 0
        %4349 = vmatprep.subr.bf16.mxu0 0
        %4350 = vmatpush1.bf16.msra.mxu0 0
        %4351 = vmatprep.subr.bf16.mxu0 0
        %4352 = vmatpush1.bf16.msra.mxu0 0
        %4353 = vmatprep.subr.bf16.mxu0 0
        %4354 = vmatpush1.bf16.msra.mxu0 0
        %4355 = vmatprep.subr.bf16.mxu0 0
        %4356 = vmatpush1.bf16.msra.mxu0 0
        %4357 = vmatprep.subr.bf16.mxu0 0
        %4358 = vmatpush1.bf16.msra.mxu0 0
        %4359 = vmatprep.mubr.bf16.mxu0 0
        %4360 = vmatmul.mubr.bf16.gmra.mrb[0].mxu0 %v4277
        %v4361 = vpop.f32.mrb[0].mxu0
        %v4362 = vadd.f32 0.0, %v4361
        %v4363 = vpop.f32.mrb[0].mxu0
        %v4364 = vpop.f32.mrb[0].mxu0
        %v4365 = vadd.f32 0.0, %v4364
        %v4366 = vpop.f32.mrb[0].mxu0
        %4367 = vmatprep.mubr.bf16.mxu0 0
        %4368 = vmatmul.mubr.bf16.gmra.mrb[0].mxu0 %v4280
        %v4369 = vpop.f32.mrb[0].mxu0
        %v4370 = vadd.f32 0.0, %v4369
        %v4371 = vpop.f32.mrb[0].mxu0
        %v4372 = vpop.f32.mrb[0].mxu0
        %v4373 = vadd.f32 0.0, %v4372
        %v4374 = vpop.f32.mrb[0].mxu0
        %4375 = vmatprep.mubr.bf16.mxu0 0
        %4376 = vmatmul.mubr.bf16.gmra.mrb[0].mxu0 %v4283
        %v4377 = vpop.f32.mrb[0].mxu0
        %v4378 = vadd.f32 0.0, %v4377
        %v4379 = vpop.f32.mrb[0].mxu0
        %v4380 = vpop.f32.mrb[0].mxu0
        %v4381 = vadd.f32 0.0, %v4380
        %v4382 = vpop.f32.mrb[0].mxu0
        %4383 = vmatprep.mubr.bf16.mxu0 0
        %4384 = vmatmul.mubr.bf16.gmra.mrb[0].mxu0 %v4286
        %v4385 = vpop.f32.mrb[0].mxu0
        %v4386 = vadd.f32 0.0, %v4385
        %v4387 = vpop.f32.mrb[0].mxu0
        %v4388 = vpop.f32.mrb[0].mxu0
        %v4389 = vadd.f32 0.0, %v4388
        %v4390 = vpop.f32.mrb[0].mxu0
        %4391 = vmatprep.mubr.bf16.mxu0 0
        %4392 = vmatmul.mubr.bf16.gmra.mrb[0].mxu0 %v4289
        %v4393 = vpop.f32.mrb[0].mxu0
        %v4394 = vadd.f32 0.0, %v4393
        %v4395 = vpop.f32.mrb[0].mxu0
        %v4396 = vpop.f32.mrb[0].mxu0
        %v4397 = vadd.f32 0.0, %v4396
        %v4398 = vpop.f32.mrb[0].mxu0
        %4399 = vmatprep.mubr.bf16.mxu0 0
        %4400 = vmatmul.mubr.bf16.gmra.mrb[0].mxu0 %v4292
        %v4401 = vpop.f32.mrb[0].mxu0
        %v4402 = vadd.f32 0.0, %v4401
        %v4403 = vpop.f32.mrb[0].mxu0
        %v4404 = vpop.f32.mrb[0].mxu0
        %v4405 = vadd.f32 0.0, %v4404
        %v4406 = vpop.f32.mrb[0].mxu0
        %4407 = vmatprep.mubr.bf16.mxu0 0
        %4408 = vmatmul.mubr.bf16.gmra.mrb[0].mxu0 %v4295
        %v4409 = vpop.f32.mrb[0].mxu0
        %v4410 = vadd.f32 0.0, %v4409
        %v4411 = vpop.f32.mrb[0].mxu0
        %v4412 = vpop.f32.mrb[0].mxu0
        %v4413 = vadd.f32 0.0, %v4412
        %v4414 = vpop.f32.mrb[0].mxu0
        %4415 = vmatprep.mubr.bf16.mxu0 0
        %4416 = vmatmul.mubr.bf16.gmra.mrb[0].mxu0 %v4298
        %v4417 = vpop.f32.mrb[0].mxu0
        %v4418 = vadd.f32 0.0, %v4417
        %v4419 = vpop.f32.mrb[0].mxu0
        %v4420 = vpop.f32.mrb[0].mxu0
        %v4421 = vadd.f32 0.0, %v4420
        %v4422 = vpop.f32.mrb[0].mxu0
        %4423 = vmatprep.mubr.bf16.mxu0 0
        %4424 = vmatmul.mubr.bf16.gmra.mrb[0].mxu0 %v4301
        %v4425 = vpop.f32.mrb[0].mxu0
        %v4426 = vadd.f32 0.0, %v4425
        %v4427 = vpop.f32.mrb[0].mxu0
        %v4428 = vpop.f32.mrb[0].mxu0
        %v4429 = vadd.f32 0.0, %v4428
        %v4430 = vpop.f32.mrb[0].mxu0
        %4431 = vmatprep.mubr.bf16.mxu0 0
        %4432 = vmatmul.mubr.bf16.gmra.mrb[0].mxu0 %v4304
        %v4433 = vpop.f32.mrb[0].mxu0
        %v4434 = vadd.f32 0.0, %v4433
        %v4435 = vpop.f32.mrb[0].mxu0
        %v4436 = vpop.f32.mrb[0].mxu0
        %v4437 = vadd.f32 0.0, %v4436
        %v4438 = vpop.f32.mrb[0].mxu0
        %4439 = vmatprep.mubr.bf16.mxu0 0
        %4440 = vmatmul.mubr.bf16.gmra.mrb[0].mxu0 %v4307
        %v4441 = vpop.f32.mrb[0].mxu0
        %v4442 = vadd.f32 0.0, %v4441
        %v4443 = vpop.f32.mrb[0].mxu0
        %v4444 = vpop.f32.mrb[0].mxu0
        %v4445 = vadd.f32 0.0, %v4444
        %v4446 = vpop.f32.mrb[0].mxu0
        %4447 = vmatprep.mubr.bf16.mxu0 0
        %4448 = vmatmul.mubr.bf16.gmra.mrb[0].mxu0 %v4310
        %v4449 = vpop.f32.mrb[0].mxu0
        %v4450 = vadd.f32 0.0, %v4449
        %v4451 = vpop.f32.mrb[0].mxu0
        %v4452 = vpop.f32.mrb[0].mxu0
        %v4453 = vadd.f32 0.0, %v4452
        %v4454 = vpop.f32.mrb[0].mxu0
        %4455 = vmatprep.mubr.bf16.mxu0 0
        %4456 = vmatmul.mubr.bf16.gmra.mrb[0].mxu0 %v4313
        %v4457 = vpop.f32.mrb[0].mxu0
        %v4458 = vadd.f32 0.0, %v4457
        %v4459 = vpop.f32.mrb[0].mxu0
        %v4460 = vpop.f32.mrb[0].mxu0
        %v4461 = vadd.f32 0.0, %v4460
        %v4462 = vpop.f32.mrb[0].mxu0
        %4463 = vmatprep.mubr.bf16.mxu0 0
        %4464 = vmatmul.mubr.bf16.gmra.mrb[0].mxu0 %v4316
        %v4465 = vpop.f32.mrb[0].mxu0
        %v4466 = vadd.f32 0.0, %v4465
        %v4467 = vpop.f32.mrb[0].mxu0
        %v4468 = vpop.f32.mrb[0].mxu0
        %v4469 = vadd.f32 0.0, %v4468
        %v4470 = vpop.f32.mrb[0].mxu0
        %4471 = vmatprep.mubr.bf16.mxu0 0
        %4472 = vmatmul.mubr.bf16.gmra.mrb[0].mxu0 %v4319
        %v4473 = vpop.f32.mrb[0].mxu0
        %v4474 = vadd.f32 0.0, %v4473
        %v4475 = vpop.f32.mrb[0].mxu0
        %v4476 = vpop.f32.mrb[0].mxu0
        %v4477 = vadd.f32 0.0, %v4476
        %v4478 = vpop.f32.mrb[0].mxu0
        %4479 = vmatprep.mubr.bf16.mxu0 0
        %4480 = vmatmul.mubr.bf16.gmra.mrb[0].mxu0 %v4322
        %v4481 = vpop.f32.mrb[0].mxu0
        %v4482 = vadd.f32 0.0, %v4481
        %v4483 = vpop.f32.mrb[0].mxu0
        %v4484 = vpop.f32.mrb[0].mxu0
        %v4485 = vadd.f32 0.0, %v4484
        %v4486 = vpop.f32.mrb[0].mxu0
        %4487 = vdwg.mxu0
        %v4488 = vld [vmem:[#allocation3] sm:$0xff]
        %v4489 = vld [vmem:[#allocation3 + $0x8] sm:$0xff]
        %v4490 = vld [vmem:[#allocation3 + $0x10] sm:$0xff]
        %v4491 = vld [vmem:[#allocation3 + $0x18] sm:$0xff]
        %v4492 = vld [vmem:[#allocation3 + $0x20] sm:$0xff]
        %v4493 = vld [vmem:[#allocation3 + $0x28] sm:$0xff]
        %v4494 = vld [vmem:[#allocation3 + $0x30] sm:$0xff]
        %v4495 = vld [vmem:[#allocation3 + $0x38] sm:$0xff]
        %v4496 = vld [vmem:[#allocation3 + $0x40] sm:$0xff]
        %v4497 = vld [vmem:[#allocation3 + $0x48] sm:$0xff]
        %v4498 = vld [vmem:[#allocation3 + $0x50] sm:$0xff]
        %v4499 = vld [vmem:[#allocation3 + $0x58] sm:$0xff]
        %v4500 = vld [vmem:[#allocation3 + $0x60] sm:$0xff]
        %v4501 = vld [vmem:[#allocation3 + $0x68] sm:$0xff]
        %v4502 = vld [vmem:[#allocation3 + $0x70] sm:$0xff]
        %v4503 = vld [vmem:[#allocation3 + $0x78] sm:$0xff]
        %v4504 = vld [vmem:[#allocation3 + $0x80] sm:$0xff]
        %v4505 = vld [vmem:[#allocation3 + $0x88] sm:$0xff]
        %v4506 = vld [vmem:[#allocation3 + $0x90] sm:$0xff]
        %v4507 = vld [vmem:[#allocation3 + $0x98] sm:$0xff]
        %v4508 = vld [vmem:[#allocation3 + $0xa0] sm:$0xff]
        %v4509 = vld [vmem:[#allocation3 + $0xa8] sm:$0xff]
        %v4510 = vld [vmem:[#allocation3 + $0xb0] sm:$0xff]
        %v4511 = vld [vmem:[#allocation3 + $0xb8] sm:$0xff]
        %v4512 = vld [vmem:[#allocation3 + $0xc0] sm:$0xff]
        %v4513 = vld [vmem:[#allocation3 + $0xc8] sm:$0xff]
        %v4514 = vld [vmem:[#allocation3 + $0xd0] sm:$0xff]
        %v4515 = vld [vmem:[#allocation3 + $0xd8] sm:$0xff]
        %v4516 = vld [vmem:[#allocation3 + $0xe0] sm:$0xff]
        %v4517 = vld [vmem:[#allocation3 + $0xe8] sm:$0xff]
        %v4518 = vld [vmem:[#allocation3 + $0xf0] sm:$0xff]
        %v4519 = vld [vmem:[#allocation3 + $0xf8] sm:$0xff]
        %v4520 = vadd.f32 %v4488, %v4362
        %v4521 = vadd.f32 %v4489, %v4365
        %v4522 = vadd.f32 %v4490, %v4370
        %v4523 = vadd.f32 %v4491, %v4373
        %v4524 = vadd.f32 %v4492, %v4378
        %v4525 = vadd.f32 %v4493, %v4381
        %v4526 = vadd.f32 %v4494, %v4386
        %v4527 = vadd.f32 %v4495, %v4389
        %v4528 = vadd.f32 %v4496, %v4394
        %v4529 = vadd.f32 %v4497, %v4397
        %v4530 = vadd.f32 %v4498, %v4402
        %v4531 = vadd.f32 %v4499, %v4405
        %v4532 = vadd.f32 %v4500, %v4410
        %v4533 = vadd.f32 %v4501, %v4413
        %v4534 = vadd.f32 %v4502, %v4418
        %v4535 = vadd.f32 %v4503, %v4421
        %v4536 = vadd.f32 %v4504, %v4426
        %v4537 = vadd.f32 %v4505, %v4429
        %v4538 = vadd.f32 %v4506, %v4434
        %v4539 = vadd.f32 %v4507, %v4437
        %v4540 = vadd.f32 %v4508, %v4442
        %v4541 = vadd.f32 %v4509, %v4445
        %v4542 = vadd.f32 %v4510, %v4450
        %v4543 = vadd.f32 %v4511, %v4453
        %v4544 = vadd.f32 %v4512, %v4458
        %v4545 = vadd.f32 %v4513, %v4461
        %v4546 = vadd.f32 %v4514, %v4466
        %v4547 = vadd.f32 %v4515, %v4469
        %v4548 = vadd.f32 %v4516, %v4474
        %v4549 = vadd.f32 %v4517, %v4477
        %v4550 = vadd.f32 %v4518, %v4482
        %v4551 = vadd.f32 %v4519, %v4485
        %4552 = vst.msk [vmem:[#allocation3] sm:$0xff] %vm1411, %v4520
        %4553 = vst.msk [vmem:[#allocation3 + $0x8] sm:$0xff] %vm1411, %v4521
        %4554 = vst.msk [vmem:[#allocation3 + $0x10] sm:$0xff] %vm1411, %v4522
        %4555 = vst.msk [vmem:[#allocation3 + $0x18] sm:$0xff] %vm1411, %v4523
        %4556 = vst.msk [vmem:[#allocation3 + $0x20] sm:$0xff] %vm1411, %v4524
        %4557 = vst.msk [vmem:[#allocation3 + $0x28] sm:$0xff] %vm1411, %v4525
        %4558 = vst.msk [vmem:[#allocation3 + $0x30] sm:$0xff] %vm1411, %v4526
        %4559 = vst.msk [vmem:[#allocation3 + $0x38] sm:$0xff] %vm1411, %v4527
        %4560 = vst.msk [vmem:[#allocation3 + $0x40] sm:$0xff] %vm1411, %v4528
        %4561 = vst.msk [vmem:[#allocation3 + $0x48] sm:$0xff] %vm1411, %v4529
        %4562 = vst.msk [vmem:[#allocation3 + $0x50] sm:$0xff] %vm1411, %v4530
        %4563 = vst.msk [vmem:[#allocation3 + $0x58] sm:$0xff] %vm1411, %v4531
        %4564 = vst.msk [vmem:[#allocation3 + $0x60] sm:$0xff] %vm1411, %v4532
        %4565 = vst.msk [vmem:[#allocation3 + $0x68] sm:$0xff] %vm1411, %v4533
        %4566 = vst.msk [vmem:[#allocation3 + $0x70] sm:$0xff] %vm1411, %v4534
        %4567 = vst.msk [vmem:[#allocation3 + $0x78] sm:$0xff] %vm1411, %v4535
        %4568 = vst.msk [vmem:[#allocation3 + $0x80] sm:$0xff] %vm1411, %v4536
        %4569 = vst.msk [vmem:[#allocation3 + $0x88] sm:$0xff] %vm1411, %v4537
        %4570 = vst.msk [vmem:[#allocation3 + $0x90] sm:$0xff] %vm1411, %v4538
        %4571 = vst.msk [vmem:[#allocation3 + $0x98] sm:$0xff] %vm1411, %v4539
        %4572 = vst.msk [vmem:[#allocation3 + $0xa0] sm:$0xff] %vm1411, %v4540
        %4573 = vst.msk [vmem:[#allocation3 + $0xa8] sm:$0xff] %vm1411, %v4541
        %4574 = vst.msk [vmem:[#allocation3 + $0xb0] sm:$0xff] %vm1411, %v4542
        %4575 = vst.msk [vmem:[#allocation3 + $0xb8] sm:$0xff] %vm1411, %v4543
        %4576 = vst.msk [vmem:[#allocation3 + $0xc0] sm:$0xff] %vm1411, %v4544
        %4577 = vst.msk [vmem:[#allocation3 + $0xc8] sm:$0xff] %vm1411, %v4545
        %4578 = vst.msk [vmem:[#allocation3 + $0xd0] sm:$0xff] %vm1411, %v4546
        %4579 = vst.msk [vmem:[#allocation3 + $0xd8] sm:$0xff] %vm1411, %v4547
        %4580 = vst.msk [vmem:[#allocation3 + $0xe0] sm:$0xff] %vm1411, %v4548
        %4581 = vst.msk [vmem:[#allocation3 + $0xe8] sm:$0xff] %vm1411, %v4549
        %4582 = vst.msk [vmem:[#allocation3 + $0xf0] sm:$0xff] %vm1411, %v4550
        %4583 = vst.msk [vmem:[#allocation3 + $0xf8] sm:$0xff] %vm1411, %v4551
        %s4584 = scalar_lea.vmem [#allocation2], 24
        %v4585 = vld [vmem:[%s4584] sm:$0xf]
        %v4586 = vld [vmem:[%s4584 + $0x4] sm:$0xf]
        %v4587 = vld [vmem:[%s4584 + $0xc] sm:$0xf]
        %v4588 = vld [vmem:[%s4584 + $0x10] sm:$0xf]
        %v4589 = vld [vmem:[%s4584 + $0x18] sm:$0xf]
        %v4590 = vld [vmem:[%s4584 + $0x1c] sm:$0xf]
        %v4591 = vld [vmem:[%s4584 + $0x24] sm:$0xf]
        %v4592 = vld [vmem:[%s4584 + $0x28] sm:$0xf]
        %v4593 = vld [vmem:[%s4584 + $0x30] sm:$0xf]
        %v4594 = vld [vmem:[%s4584 + $0x34] sm:$0xf]
        %v4595 = vld [vmem:[%s4584 + $0x3c] sm:$0xf]
        %v4596 = vld [vmem:[%s4584 + $0x40] sm:$0xf]
        %v4597 = vld [vmem:[%s4584 + $0x48] sm:$0xf]
        %v4598 = vld [vmem:[%s4584 + $0x4c] sm:$0xf]
        %v4599 = vld [vmem:[%s4584 + $0x54] sm:$0xf]
        %v4600 = vld [vmem:[%s4584 + $0x58] sm:$0xf]
        %v4601 = vld [vmem:[%s4584 + $0x60] sm:$0xf]
        %v4602 = vld [vmem:[%s4584 + $0x64] sm:$0xf]
        %v4603 = vld [vmem:[%s4584 + $0x6c] sm:$0xf]
        %v4604 = vld [vmem:[%s4584 + $0x70] sm:$0xf]
        %v4605 = vld [vmem:[%s4584 + $0x78] sm:$0xf]
        %v4606 = vld [vmem:[%s4584 + $0x7c] sm:$0xf]
        %v4607 = vld [vmem:[%s4584 + $0x84] sm:$0xf]
        %v4608 = vld [vmem:[%s4584 + $0x88] sm:$0xf]
        %v4609 = vld [vmem:[%s4584 + $0x90] sm:$0xf]
        %v4610 = vld [vmem:[%s4584 + $0x94] sm:$0xf]
        %v4611 = vld [vmem:[%s4584 + $0x9c] sm:$0xf]
        %v4612 = vld [vmem:[%s4584 + $0xa0] sm:$0xf]
        %v4613 = vld [vmem:[%s4584 + $0xa8] sm:$0xf]
        %v4614 = vld [vmem:[%s4584 + $0xac] sm:$0xf]
        %v4615 = vld [vmem:[%s4584 + $0xb4] sm:$0xf]
        %v4616 = vld [vmem:[%s4584 + $0xb8] sm:$0xf]
        %s4617 = scalar_lea.vmem %s3, 12
        %v4618 = vld [vmem:[%s4617] sm:$0x3]
        %v4651 = vunpack.c.l.b16 %v4585
        %v4652 = vunpack.c.l.b16 %v4586
        %v4653 = vunpack.c.l.b16 %v4587
        %v4654 = vunpack.c.l.b16 %v4588
        %v4655 = vunpack.c.l.b16 %v4589
        %v4656 = vunpack.c.l.b16 %v4590
        %v4657 = vunpack.c.l.b16 %v4591
        %v4658 = vunpack.c.l.b16 %v4592
        %v4659 = vunpack.c.l.b16 %v4593
        %v4660 = vunpack.c.l.b16 %v4594
        %v4661 = vunpack.c.l.b16 %v4595
        %v4662 = vunpack.c.l.b16 %v4596
        %v4663 = vunpack.c.l.b16 %v4597
        %v4664 = vunpack.c.l.b16 %v4598
        %v4665 = vunpack.c.l.b16 %v4599
        %v4666 = vunpack.c.l.b16 %v4600
        %v4667 = vunpack.c.l.b16 %v4601
        %v4668 = vunpack.c.l.b16 %v4602
        %v4669 = vunpack.c.l.b16 %v4603
        %v4670 = vunpack.c.l.b16 %v4604
        %v4671 = vunpack.c.l.b16 %v4605
        %v4672 = vunpack.c.l.b16 %v4606
        %v4673 = vunpack.c.l.b16 %v4607
        %v4674 = vunpack.c.l.b16 %v4608
        %v4675 = vunpack.c.l.b16 %v4609
        %v4676 = vunpack.c.l.b16 %v4610
        %v4677 = vunpack.c.l.b16 %v4611
        %v4678 = vunpack.c.l.b16 %v4612
        %v4679 = vunpack.c.l.b16 %v4613
        %v4680 = vunpack.c.l.b16 %v4614
        %v4681 = vunpack.c.l.b16 %v4615
        %v4682 = vunpack.c.l.b16 %v4616
        %v4683 = vpack.c.b16 %v4652, %v4651
        %v4684 = vpack.c.b16 %v4654, %v4653
        %v4685 = vpack.c.b16 %v4656, %v4655
        %v4686 = vpack.c.b16 %v4658, %v4657
        %v4687 = vpack.c.b16 %v4660, %v4659
        %v4688 = vpack.c.b16 %v4662, %v4661
        %v4689 = vpack.c.b16 %v4664, %v4663
        %v4690 = vpack.c.b16 %v4666, %v4665
        %v4691 = vpack.c.b16 %v4668, %v4667
        %v4692 = vpack.c.b16 %v4670, %v4669
        %v4693 = vpack.c.b16 %v4672, %v4671
        %v4694 = vpack.c.b16 %v4674, %v4673
        %v4695 = vpack.c.b16 %v4676, %v4675
        %v4696 = vpack.c.b16 %v4678, %v4677
        %v4697 = vpack.c.b16 %v4680, %v4679
        %v4698 = vpack.c.b16 %v4682, %v4681
        %v4700 = vsel %vm1194, %v4683, 0
        %v4703 = vsel %vm1194, %v4684, 0
        %v4706 = vsel %vm1194, %v4685, 0
        %v4709 = vsel %vm1194, %v4686, 0
        %v4712 = vsel %vm1194, %v4687, 0
        %v4715 = vsel %vm1194, %v4688, 0
        %v4718 = vsel %vm1194, %v4689, 0
        %v4721 = vsel %vm1194, %v4690, 0
        %v4724 = vsel %vm1194, %v4691, 0
        %v4727 = vsel %vm1194, %v4692, 0
        %v4730 = vsel %vm1194, %v4693, 0
        %v4733 = vsel %vm1194, %v4694, 0
        %v4736 = vsel %vm1194, %v4695, 0
        %v4739 = vsel %vm1194, %v4696, 0
        %v4742 = vsel %vm1194, %v4697, 0
        %v4745 = vsel %vm1194, %v4698, 0
        %v4748 = vand.u32 %v4618, %v1246
        %4750 = vmatprep.subr.bf16.mxu0 0
        %4751 = vmatpush1.bf16.msra.mxu0 %v4748
        %4752 = vmatprep.subr.bf16.mxu0 0
        %4753 = vmatpush1.bf16.msra.mxu0 0
        %4754 = vmatprep.subr.bf16.mxu0 0
        %4755 = vmatpush1.bf16.msra.mxu0 0
        %4756 = vmatprep.subr.bf16.mxu0 0
        %4757 = vmatpush1.bf16.msra.mxu0 0
        %4758 = vmatprep.subr.bf16.mxu0 0
        %4759 = vmatpush1.bf16.msra.mxu0 0
        %4760 = vmatprep.subr.bf16.mxu0 0
        %4761 = vmatpush1.bf16.msra.mxu0 0
        %4762 = vmatprep.subr.bf16.mxu0 0
        %4763 = vmatpush1.bf16.msra.mxu0 0
        %4764 = vmatprep.subr.bf16.mxu0 0
        %4765 = vmatpush1.bf16.msra.mxu0 0
        %4766 = vmatprep.subr.bf16.mxu0 0
        %4767 = vmatpush1.bf16.msra.mxu0 0
        %4768 = vmatprep.subr.bf16.mxu0 0
        %4769 = vmatpush1.bf16.msra.mxu0 0
        %4770 = vmatprep.subr.bf16.mxu0 0
        %4771 = vmatpush1.bf16.msra.mxu0 0
        %4772 = vmatprep.subr.bf16.mxu0 0
        %4773 = vmatpush1.bf16.msra.mxu0 0
        %4774 = vmatprep.subr.bf16.mxu0 0
        %4775 = vmatpush1.bf16.msra.mxu0 0
        %4776 = vmatprep.subr.bf16.mxu0 0
        %4777 = vmatpush1.bf16.msra.mxu0 0
        %4778 = vmatprep.subr.bf16.mxu0 0
        %4779 = vmatpush1.bf16.msra.mxu0 0
        %4780 = vmatprep.subr.bf16.mxu0 0
        %4781 = vmatpush1.bf16.msra.mxu0 0
        %4782 = vmatprep.mubr.bf16.mxu0 0
        %4783 = vmatmul.mubr.bf16.gmra.mrb[0].mxu0 %v4700
        %v4784 = vpop.f32.mrb[0].mxu0
        %v4785 = vadd.f32 0.0, %v4784
        %v4786 = vpop.f32.mrb[0].mxu0
        %v4787 = vpop.f32.mrb[0].mxu0
        %v4788 = vadd.f32 0.0, %v4787
        %v4789 = vpop.f32.mrb[0].mxu0
        %4790 = vmatprep.mubr.bf16.mxu0 0
        %4791 = vmatmul.mubr.bf16.gmra.mrb[0].mxu0 %v4703
        %v4792 = vpop.f32.mrb[0].mxu0
        %v4793 = vadd.f32 0.0, %v4792
        %v4794 = vpop.f32.mrb[0].mxu0
        %v4795 = vpop.f32.mrb[0].mxu0
        %v4796 = vadd.f32 0.0, %v4795
        %v4797 = vpop.f32.mrb[0].mxu0
        %4798 = vmatprep.mubr.bf16.mxu0 0
        %4799 = vmatmul.mubr.bf16.gmra.mrb[0].mxu0 %v4706
        %v4800 = vpop.f32.mrb[0].mxu0
        %v4801 = vadd.f32 0.0, %v4800
        %v4802 = vpop.f32.mrb[0].mxu0
        %v4803 = vpop.f32.mrb[0].mxu0
        %v4804 = vadd.f32 0.0, %v4803
        %v4805 = vpop.f32.mrb[0].mxu0
        %4806 = vmatprep.mubr.bf16.mxu0 0
        %4807 = vmatmul.mubr.bf16.gmra.mrb[0].mxu0 %v4709
        %v4808 = vpop.f32.mrb[0].mxu0
        %v4809 = vadd.f32 0.0, %v4808
        %v4810 = vpop.f32.mrb[0].mxu0
        %v4811 = vpop.f32.mrb[0].mxu0
        %v4812 = vadd.f32 0.0, %v4811
        %v4813 = vpop.f32.mrb[0].mxu0
        %4814 = vmatprep.mubr.bf16.mxu0 0
        %4815 = vmatmul.mubr.bf16.gmra.mrb[0].mxu0 %v4712
        %v4816 = vpop.f32.mrb[0].mxu0
        %v4817 = vadd.f32 0.0, %v4816
        %v4818 = vpop.f32.mrb[0].mxu0
        %v4819 = vpop.f32.mrb[0].mxu0
        %v4820 = vadd.f32 0.0, %v4819
        %v4821 = vpop.f32.mrb[0].mxu0
        %4822 = vmatprep.mubr.bf16.mxu0 0
        %4823 = vmatmul.mubr.bf16.gmra.mrb[0].mxu0 %v4715
        %v4824 = vpop.f32.mrb[0].mxu0
        %v4825 = vadd.f32 0.0, %v4824
        %v4826 = vpop.f32.mrb[0].mxu0
        %v4827 = vpop.f32.mrb[0].mxu0
        %v4828 = vadd.f32 0.0, %v4827
        %v4829 = vpop.f32.mrb[0].mxu0
        %4830 = vmatprep.mubr.bf16.mxu0 0
        %4831 = vmatmul.mubr.bf16.gmra.mrb[0].mxu0 %v4718
        %v4832 = vpop.f32.mrb[0].mxu0
        %v4833 = vadd.f32 0.0, %v4832
        %v4834 = vpop.f32.mrb[0].mxu0
        %v4835 = vpop.f32.mrb[0].mxu0
        %v4836 = vadd.f32 0.0, %v4835
        %v4837 = vpop.f32.mrb[0].mxu0
        %4838 = vmatprep.mubr.bf16.mxu0 0
        %4839 = vmatmul.mubr.bf16.gmra.mrb[0].mxu0 %v4721
        %v4840 = vpop.f32.mrb[0].mxu0
        %v4841 = vadd.f32 0.0, %v4840
        %v4842 = vpop.f32.mrb[0].mxu0
        %v4843 = vpop.f32.mrb[0].mxu0
        %v4844 = vadd.f32 0.0, %v4843
        %v4845 = vpop.f32.mrb[0].mxu0
        %4846 = vmatprep.mubr.bf16.mxu0 0
        %4847 = vmatmul.mubr.bf16.gmra.mrb[0].mxu0 %v4724
        %v4848 = vpop.f32.mrb[0].mxu0
        %v4849 = vadd.f32 0.0, %v4848
        %v4850 = vpop.f32.mrb[0].mxu0
        %v4851 = vpop.f32.mrb[0].mxu0
        %v4852 = vadd.f32 0.0, %v4851
        %v4853 = vpop.f32.mrb[0].mxu0
        %4854 = vmatprep.mubr.bf16.mxu0 0
        %4855 = vmatmul.mubr.bf16.gmra.mrb[0].mxu0 %v4727
        %v4856 = vpop.f32.mrb[0].mxu0
        %v4857 = vadd.f32 0.0, %v4856
        %v4858 = vpop.f32.mrb[0].mxu0
        %v4859 = vpop.f32.mrb[0].mxu0
        %v4860 = vadd.f32 0.0, %v4859
        %v4861 = vpop.f32.mrb[0].mxu0
        %4862 = vmatprep.mubr.bf16.mxu0 0
        %4863 = vmatmul.mubr.bf16.gmra.mrb[0].mxu0 %v4730
        %v4864 = vpop.f32.mrb[0].mxu0
        %v4865 = vadd.f32 0.0, %v4864
        %v4866 = vpop.f32.mrb[0].mxu0
        %v4867 = vpop.f32.mrb[0].mxu0
        %v4868 = vadd.f32 0.0, %v4867
        %v4869 = vpop.f32.mrb[0].mxu0
        %4870 = vmatprep.mubr.bf16.mxu0 0
        %4871 = vmatmul.mubr.bf16.gmra.mrb[0].mxu0 %v4733
        %v4872 = vpop.f32.mrb[0].mxu0
        %v4873 = vadd.f32 0.0, %v4872
        %v4874 = vpop.f32.mrb[0].mxu0
        %v4875 = vpop.f32.mrb[0].mxu0
        %v4876 = vadd.f32 0.0, %v4875
        %v4877 = vpop.f32.mrb[0].mxu0
        %4878 = vmatprep.mubr.bf16.mxu0 0
        %4879 = vmatmul.mubr.bf16.gmra.mrb[0].mxu0 %v4736
        %v4880 = vpop.f32.mrb[0].mxu0
        %v4881 = vadd.f32 0.0, %v4880
        %v4882 = vpop.f32.mrb[0].mxu0
        %v4883 = vpop.f32.mrb[0].mxu0
        %v4884 = vadd.f32 0.0, %v4883
        %v4885 = vpop.f32.mrb[0].mxu0
        %4886 = vmatprep.mubr.bf16.mxu0 0
        %4887 = vmatmul.mubr.bf16.gmra.mrb[0].mxu0 %v4739
        %v4888 = vpop.f32.mrb[0].mxu0
        %v4889 = vadd.f32 0.0, %v4888
        %v4890 = vpop.f32.mrb[0].mxu0
        %v4891 = vpop.f32.mrb[0].mxu0
        %v4892 = vadd.f32 0.0, %v4891
        %v4893 = vpop.f32.mrb[0].mxu0
        %4894 = vmatprep.mubr.bf16.mxu0 0
        %4895 = vmatmul.mubr.bf16.gmra.mrb[0].mxu0 %v4742
        %v4896 = vpop.f32.mrb[0].mxu0
        %v4897 = vadd.f32 0.0, %v4896
        %v4898 = vpop.f32.mrb[0].mxu0
        %v4899 = vpop.f32.mrb[0].mxu0
        %v4900 = vadd.f32 0.0, %v4899
        %v4901 = vpop.f32.mrb[0].mxu0
        %4902 = vmatprep.mubr.bf16.mxu0 0
        %4903 = vmatmul.mubr.bf16.gmra.mrb[0].mxu0 %v4745
        %v4904 = vpop.f32.mrb[0].mxu0
        %v4905 = vadd.f32 0.0, %v4904
        %v4906 = vpop.f32.mrb[0].mxu0
        %v4907 = vpop.f32.mrb[0].mxu0
        %v4908 = vadd.f32 0.0, %v4907
        %v4909 = vpop.f32.mrb[0].mxu0
        %4910 = vdwg.mxu0
        %v4911 = vld [vmem:[#allocation3] sm:$0xff]
        %v4912 = vld [vmem:[#allocation3 + $0x8] sm:$0xff]
        %v4913 = vld [vmem:[#allocation3 + $0x10] sm:$0xff]
        %v4914 = vld [vmem:[#allocation3 + $0x18] sm:$0xff]
        %v4915 = vld [vmem:[#allocation3 + $0x20] sm:$0xff]
        %v4916 = vld [vmem:[#allocation3 + $0x28] sm:$0xff]
        %v4917 = vld [vmem:[#allocation3 + $0x30] sm:$0xff]
        %v4918 = vld [vmem:[#allocation3 + $0x38] sm:$0xff]
        %v4919 = vld [vmem:[#allocation3 + $0x40] sm:$0xff]
        %v4920 = vld [vmem:[#allocation3 + $0x48] sm:$0xff]
        %v4921 = vld [vmem:[#allocation3 + $0x50] sm:$0xff]
        %v4922 = vld [vmem:[#allocation3 + $0x58] sm:$0xff]
        %v4923 = vld [vmem:[#allocation3 + $0x60] sm:$0xff]
        %v4924 = vld [vmem:[#allocation3 + $0x68] sm:$0xff]
        %v4925 = vld [vmem:[#allocation3 + $0x70] sm:$0xff]
        %v4926 = vld [vmem:[#allocation3 + $0x78] sm:$0xff]
        %v4927 = vld [vmem:[#allocation3 + $0x80] sm:$0xff]
        %v4928 = vld [vmem:[#allocation3 + $0x88] sm:$0xff]
        %v4929 = vld [vmem:[#allocation3 + $0x90] sm:$0xff]
        %v4930 = vld [vmem:[#allocation3 + $0x98] sm:$0xff]
        %v4931 = vld [vmem:[#allocation3 + $0xa0] sm:$0xff]
        %v4932 = vld [vmem:[#allocation3 + $0xa8] sm:$0xff]
        %v4933 = vld [vmem:[#allocation3 + $0xb0] sm:$0xff]
        %v4934 = vld [vmem:[#allocation3 + $0xb8] sm:$0xff]
        %v4935 = vld [vmem:[#allocation3 + $0xc0] sm:$0xff]
        %v4936 = vld [vmem:[#allocation3 + $0xc8] sm:$0xff]
        %v4937 = vld [vmem:[#allocation3 + $0xd0] sm:$0xff]
        %v4938 = vld [vmem:[#allocation3 + $0xd8] sm:$0xff]
        %v4939 = vld [vmem:[#allocation3 + $0xe0] sm:$0xff]
        %v4940 = vld [vmem:[#allocation3 + $0xe8] sm:$0xff]
        %v4941 = vld [vmem:[#allocation3 + $0xf0] sm:$0xff]
        %v4942 = vld [vmem:[#allocation3 + $0xf8] sm:$0xff]
        %v4943 = vadd.f32 %v4911, %v4785
        %v4944 = vadd.f32 %v4912, %v4788
        %v4945 = vadd.f32 %v4913, %v4793
        %v4946 = vadd.f32 %v4914, %v4796
        %v4947 = vadd.f32 %v4915, %v4801
        %v4948 = vadd.f32 %v4916, %v4804
        %v4949 = vadd.f32 %v4917, %v4809
        %v4950 = vadd.f32 %v4918, %v4812
        %v4951 = vadd.f32 %v4919, %v4817
        %v4952 = vadd.f32 %v4920, %v4820
        %v4953 = vadd.f32 %v4921, %v4825
        %v4954 = vadd.f32 %v4922, %v4828
        %v4955 = vadd.f32 %v4923, %v4833
        %v4956 = vadd.f32 %v4924, %v4836
        %v4957 = vadd.f32 %v4925, %v4841
        %v4958 = vadd.f32 %v4926, %v4844
        %v4959 = vadd.f32 %v4927, %v4849
        %v4960 = vadd.f32 %v4928, %v4852
        %v4961 = vadd.f32 %v4929, %v4857
        %v4962 = vadd.f32 %v4930, %v4860
        %v4963 = vadd.f32 %v4931, %v4865
        %v4964 = vadd.f32 %v4932, %v4868
        %v4965 = vadd.f32 %v4933, %v4873
        %v4966 = vadd.f32 %v4934, %v4876
        %v4967 = vadd.f32 %v4935, %v4881
        %v4968 = vadd.f32 %v4936, %v4884
        %v4969 = vadd.f32 %v4937, %v4889
        %v4970 = vadd.f32 %v4938, %v4892
        %v4971 = vadd.f32 %v4939, %v4897
        %v4972 = vadd.f32 %v4940, %v4900
        %v4973 = vadd.f32 %v4941, %v4905
        %v4974 = vadd.f32 %v4942, %v4908
        %4975 = vst.msk [vmem:[#allocation3] sm:$0xff] %vm1411, %v4943
        %4976 = vst.msk [vmem:[#allocation3 + $0x8] sm:$0xff] %vm1411, %v4944
        %4977 = vst.msk [vmem:[#allocation3 + $0x10] sm:$0xff] %vm1411, %v4945
        %4978 = vst.msk [vmem:[#allocation3 + $0x18] sm:$0xff] %vm1411, %v4946
        %4979 = vst.msk [vmem:[#allocation3 + $0x20] sm:$0xff] %vm1411, %v4947
        %4980 = vst.msk [vmem:[#allocation3 + $0x28] sm:$0xff] %vm1411, %v4948
        %4981 = vst.msk [vmem:[#allocation3 + $0x30] sm:$0xff] %vm1411, %v4949
        %4982 = vst.msk [vmem:[#allocation3 + $0x38] sm:$0xff] %vm1411, %v4950
        %4983 = vst.msk [vmem:[#allocation3 + $0x40] sm:$0xff] %vm1411, %v4951
        %4984 = vst.msk [vmem:[#allocation3 + $0x48] sm:$0xff] %vm1411, %v4952
        %4985 = vst.msk [vmem:[#allocation3 + $0x50] sm:$0xff] %vm1411, %v4953
        %4986 = vst.msk [vmem:[#allocation3 + $0x58] sm:$0xff] %vm1411, %v4954
        %4987 = vst.msk [vmem:[#allocation3 + $0x60] sm:$0xff] %vm1411, %v4955
        %4988 = vst.msk [vmem:[#allocation3 + $0x68] sm:$0xff] %vm1411, %v4956
        %4989 = vst.msk [vmem:[#allocation3 + $0x70] sm:$0xff] %vm1411, %v4957
        %4990 = vst.msk [vmem:[#allocation3 + $0x78] sm:$0xff] %vm1411, %v4958
        %4991 = vst.msk [vmem:[#allocation3 + $0x80] sm:$0xff] %vm1411, %v4959
        %4992 = vst.msk [vmem:[#allocation3 + $0x88] sm:$0xff] %vm1411, %v4960
        %4993 = vst.msk [vmem:[#allocation3 + $0x90] sm:$0xff] %vm1411, %v4961
        %4994 = vst.msk [vmem:[#allocation3 + $0x98] sm:$0xff] %vm1411, %v4962
        %4995 = vst.msk [vmem:[#allocation3 + $0xa0] sm:$0xff] %vm1411, %v4963
        %4996 = vst.msk [vmem:[#allocation3 + $0xa8] sm:$0xff] %vm1411, %v4964
        %4997 = vst.msk [vmem:[#allocation3 + $0xb0] sm:$0xff] %vm1411, %v4965
        %4998 = vst.msk [vmem:[#allocation3 + $0xb8] sm:$0xff] %vm1411, %v4966
        %4999 = vst.msk [vmem:[#allocation3 + $0xc0] sm:$0xff] %vm1411, %v4967
        %5000 = vst.msk [vmem:[#allocation3 + $0xc8] sm:$0xff] %vm1411, %v4968
        %5001 = vst.msk [vmem:[#allocation3 + $0xd0] sm:$0xff] %vm1411, %v4969
        %5002 = vst.msk [vmem:[#allocation3 + $0xd8] sm:$0xff] %vm1411, %v4970
        %5003 = vst.msk [vmem:[#allocation3 + $0xe0] sm:$0xff] %vm1411, %v4971
        %5004 = vst.msk [vmem:[#allocation3 + $0xe8] sm:$0xff] %vm1411, %v4972
        %5005 = vst.msk [vmem:[#allocation3 + $0xf0] sm:$0xff] %vm1411, %v4973
        %5006 = vst.msk [vmem:[#allocation3 + $0xf8] sm:$0xff] %vm1411, %v4974
        %v5007 = vld [vmem:[%s4584] sm:$0xf]
        %v5008 = vld [vmem:[%s4584 + $0x4] sm:$0xf]
        %v5009 = vld [vmem:[%s4584 + $0x8] sm:$0x1]
        %v5010 = vld [vmem:[%s4584 + $0xc] sm:$0xf]
        %v5011 = vld [vmem:[%s4584 + $0x10] sm:$0xf]
        %v5012 = vld [vmem:[%s4584 + $0x14] sm:$0x1]
        %v5013 = vld [vmem:[%s4584 + $0x18] sm:$0xf]
        %v5014 = vld [vmem:[%s4584 + $0x1c] sm:$0xf]
        %v5015 = vld [vmem:[%s4584 + $0x20] sm:$0x1]
        %v5016 = vld [vmem:[%s4584 + $0x24] sm:$0xf]
        %v5017 = vld [vmem:[%s4584 + $0x28] sm:$0xf]
        %v5018 = vld [vmem:[%s4584 + $0x2c] sm:$0x1]
        %v5019 = vld [vmem:[%s4584 + $0x30] sm:$0xf]
        %v5020 = vld [vmem:[%s4584 + $0x34] sm:$0xf]
        %v5021 = vld [vmem:[%s4584 + $0x38] sm:$0x1]
        %v5022 = vld [vmem:[%s4584 + $0x3c] sm:$0xf]
        %v5023 = vld [vmem:[%s4584 + $0x40] sm:$0xf]
        %v5024 = vld [vmem:[%s4584 + $0x44] sm:$0x1]
        %v5025 = vld [vmem:[%s4584 + $0x48] sm:$0xf]
        %v5026 = vld [vmem:[%s4584 + $0x4c] sm:$0xf]
        %v5027 = vld [vmem:[%s4584 + $0x50] sm:$0x1]
        %v5028 = vld [vmem:[%s4584 + $0x54] sm:$0xf]
        %v5029 = vld [vmem:[%s4584 + $0x58] sm:$0xf]
        %v5030 = vld [vmem:[%s4584 + $0x5c] sm:$0x1]
        %v5031 = vld [vmem:[%s4584 + $0x60] sm:$0xf]
        %v5032 = vld [vmem:[%s4584 + $0x64] sm:$0xf]
        %v5033 = vld [vmem:[%s4584 + $0x68] sm:$0x1]
        %v5034 = vld [vmem:[%s4584 + $0x6c] sm:$0xf]
        %v5035 = vld [vmem:[%s4584 + $0x70] sm:$0xf]
        %v5036 = vld [vmem:[%s4584 + $0x74] sm:$0x1]
        %v5037 = vld [vmem:[%s4584 + $0x78] sm:$0xf]
        %v5038 = vld [vmem:[%s4584 + $0x7c] sm:$0xf]
        %v5039 = vld [vmem:[%s4584 + $0x80] sm:$0x1]
        %v5040 = vld [vmem:[%s4584 + $0x84] sm:$0xf]
        %v5041 = vld [vmem:[%s4584 + $0x88] sm:$0xf]
        %v5042 = vld [vmem:[%s4584 + $0x8c] sm:$0x1]
        %v5043 = vld [vmem:[%s4584 + $0x90] sm:$0xf]
        %v5044 = vld [vmem:[%s4584 + $0x94] sm:$0xf]
        %v5045 = vld [vmem:[%s4584 + $0x98] sm:$0x1]
        %v5046 = vld [vmem:[%s4584 + $0x9c] sm:$0xf]
        %v5047 = vld [vmem:[%s4584 + $0xa0] sm:$0xf]
        %v5048 = vld [vmem:[%s4584 + $0xa4] sm:$0x1]
        %v5049 = vld [vmem:[%s4584 + $0xa8] sm:$0xf]
        %v5050 = vld [vmem:[%s4584 + $0xac] sm:$0xf]
        %v5051 = vld [vmem:[%s4584 + $0xb0] sm:$0x1]
        %v5052 = vld [vmem:[%s4584 + $0xb4] sm:$0xf]
        %v5053 = vld [vmem:[%s4584 + $0xb8] sm:$0xf]
        %v5054 = vld [vmem:[%s4584 + $0xbc] sm:$0x1]
        %v5056 = vshrl.u32 %v5007, 16
        %v5058 = vrot.slane %v5056, 4
        %v5059 = vshll.u32 %v5007, 16
        %v5061 = vrot.slane %v5059, 5
        %v5062 = vor.u32 %v5058, %v5061
        %v5063 = vrot.slane %v5062, 4
        %v5065 = vshll.u32 %v5008, 16
        %v5067 = vrot.slane %v5065, 5
        %v5068 = vsel %vm1494, %v5063, %v5067
        %v5069 = vshrl.u32 %v5008, 16
        %v5071 = vrot.slane %v5069, 4
        %v5072 = vor.u32 %v5071, %v5067
        %v5073 = vrot.slane %v5072, 4
        %v5075 = vshll.u32 %v5009, 16
        %v5077 = vrot.slane %v5075, 5
        %v5078 = vsel %vm1494, %v5073, %v5077
        %v5080 = vshrl.u32 %v5010, 16
        %v5082 = vrot.slane %v5080, 4
        %v5083 = vshll.u32 %v5010, 16
        %v5085 = vrot.slane %v5083, 5
        %v5086 = vor.u32 %v5082, %v5085
        %v5087 = vrot.slane %v5086, 4
        %v5089 = vshll.u32 %v5011, 16
        %v5091 = vrot.slane %v5089, 5
        %v5092 = vsel %vm1494, %v5087, %v5091
        %v5093 = vshrl.u32 %v5011, 16
        %v5095 = vrot.slane %v5093, 4
        %v5096 = vor.u32 %v5095, %v5091
        %v5097 = vrot.slane %v5096, 4
        %v5099 = vshll.u32 %v5012, 16
        %v5101 = vrot.slane %v5099, 5
        %v5102 = vsel %vm1494, %v5097, %v5101
        %v5104 = vshrl.u32 %v5013, 16
        %v5106 = vrot.slane %v5104, 4
        %v5107 = vshll.u32 %v5013, 16
        %v5109 = vrot.slane %v5107, 5
        %v5110 = vor.u32 %v5106, %v5109
        %v5111 = vrot.slane %v5110, 4
        %v5113 = vshll.u32 %v5014, 16
        %v5115 = vrot.slane %v5113, 5
        %v5116 = vsel %vm1494, %v5111, %v5115
        %v5117 = vshrl.u32 %v5014, 16
        %v5119 = vrot.slane %v5117, 4
        %v5120 = vor.u32 %v5119, %v5115
        %v5121 = vrot.slane %v5120, 4
        %v5123 = vshll.u32 %v5015, 16
        %v5125 = vrot.slane %v5123, 5
        %v5126 = vsel %vm1494, %v5121, %v5125
        %v5128 = vshrl.u32 %v5016, 16
        %v5130 = vrot.slane %v5128, 4
        %v5131 = vshll.u32 %v5016, 16
        %v5133 = vrot.slane %v5131, 5
        %v5134 = vor.u32 %v5130, %v5133
        %v5135 = vrot.slane %v5134, 4
        %v5137 = vshll.u32 %v5017, 16
        %v5139 = vrot.slane %v5137, 5
        %v5140 = vsel %vm1494, %v5135, %v5139
        %v5141 = vshrl.u32 %v5017, 16
        %v5143 = vrot.slane %v5141, 4
        %v5144 = vor.u32 %v5143, %v5139
        %v5145 = vrot.slane %v5144, 4
        %v5147 = vshll.u32 %v5018, 16
        %v5149 = vrot.slane %v5147, 5
        %v5150 = vsel %vm1494, %v5145, %v5149
        %v5152 = vshrl.u32 %v5019, 16
        %v5154 = vrot.slane %v5152, 4
        %v5155 = vshll.u32 %v5019, 16
        %v5157 = vrot.slane %v5155, 5
        %v5158 = vor.u32 %v5154, %v5157
        %v5159 = vrot.slane %v5158, 4
        %v5161 = vshll.u32 %v5020, 16
        %v5163 = vrot.slane %v5161, 5
        %v5164 = vsel %vm1494, %v5159, %v5163
        %v5165 = vshrl.u32 %v5020, 16
        %v5167 = vrot.slane %v5165, 4
        %v5168 = vor.u32 %v5167, %v5163
        %v5169 = vrot.slane %v5168, 4
        %v5171 = vshll.u32 %v5021, 16
        %v5173 = vrot.slane %v5171, 5
        %v5174 = vsel %vm1494, %v5169, %v5173
        %v5176 = vshrl.u32 %v5022, 16
        %v5178 = vrot.slane %v5176, 4
        %v5179 = vshll.u32 %v5022, 16
        %v5181 = vrot.slane %v5179, 5
        %v5182 = vor.u32 %v5178, %v5181
        %v5183 = vrot.slane %v5182, 4
        %v5185 = vshll.u32 %v5023, 16
        %v5187 = vrot.slane %v5185, 5
        %v5188 = vsel %vm1494, %v5183, %v5187
        %v5189 = vshrl.u32 %v5023, 16
        %v5191 = vrot.slane %v5189, 4
        %v5192 = vor.u32 %v5191, %v5187
        %v5193 = vrot.slane %v5192, 4
        %v5195 = vshll.u32 %v5024, 16
        %v5197 = vrot.slane %v5195, 5
        %v5198 = vsel %vm1494, %v5193, %v5197
        %v5200 = vshrl.u32 %v5025, 16
        %v5202 = vrot.slane %v5200, 4
        %v5203 = vshll.u32 %v5025, 16
        %v5205 = vrot.slane %v5203, 5
        %v5206 = vor.u32 %v5202, %v5205
        %v5207 = vrot.slane %v5206, 4
        %v5209 = vshll.u32 %v5026, 16
        %v5211 = vrot.slane %v5209, 5
        %v5212 = vsel %vm1494, %v5207, %v5211
        %v5213 = vshrl.u32 %v5026, 16
        %v5215 = vrot.slane %v5213, 4
        %v5216 = vor.u32 %v5215, %v5211
        %v5217 = vrot.slane %v5216, 4
        %v5219 = vshll.u32 %v5027, 16
        %v5221 = vrot.slane %v5219, 5
        %v5222 = vsel %vm1494, %v5217, %v5221
        %v5224 = vshrl.u32 %v5028, 16
        %v5226 = vrot.slane %v5224, 4
        %v5227 = vshll.u32 %v5028, 16
        %v5229 = vrot.slane %v5227, 5
        %v5230 = vor.u32 %v5226, %v5229
        %v5231 = vrot.slane %v5230, 4
        %v5233 = vshll.u32 %v5029, 16
        %v5235 = vrot.slane %v5233, 5
        %v5236 = vsel %vm1494, %v5231, %v5235
        %v5237 = vshrl.u32 %v5029, 16
        %v5239 = vrot.slane %v5237, 4
        %v5240 = vor.u32 %v5239, %v5235
        %v5241 = vrot.slane %v5240, 4
        %v5243 = vshll.u32 %v5030, 16
        %v5245 = vrot.slane %v5243, 5
        %v5246 = vsel %vm1494, %v5241, %v5245
        %v5248 = vshrl.u32 %v5031, 16
        %v5250 = vrot.slane %v5248, 4
        %v5251 = vshll.u32 %v5031, 16
        %v5253 = vrot.slane %v5251, 5
        %v5254 = vor.u32 %v5250, %v5253
        %v5255 = vrot.slane %v5254, 4
        %v5257 = vshll.u32 %v5032, 16
        %v5259 = vrot.slane %v5257, 5
        %v5260 = vsel %vm1494, %v5255, %v5259
        %v5261 = vshrl.u32 %v5032, 16
        %v5263 = vrot.slane %v5261, 4
        %v5264 = vor.u32 %v5263, %v5259
        %v5265 = vrot.slane %v5264, 4
        %v5267 = vshll.u32 %v5033, 16
        %v5269 = vrot.slane %v5267, 5
        %v5270 = vsel %vm1494, %v5265, %v5269
        %v5272 = vshrl.u32 %v5034, 16
        %v5274 = vrot.slane %v5272, 4
        %v5275 = vshll.u32 %v5034, 16
        %v5277 = vrot.slane %v5275, 5
        %v5278 = vor.u32 %v5274, %v5277
        %v5279 = vrot.slane %v5278, 4
        %v5281 = vshll.u32 %v5035, 16
        %v5283 = vrot.slane %v5281, 5
        %v5284 = vsel %vm1494, %v5279, %v5283
        %v5285 = vshrl.u32 %v5035, 16
        %v5287 = vrot.slane %v5285, 4
        %v5288 = vor.u32 %v5287, %v5283
        %v5289 = vrot.slane %v5288, 4
        %v5291 = vshll.u32 %v5036, 16
        %v5293 = vrot.slane %v5291, 5
        %v5294 = vsel %vm1494, %v5289, %v5293
        %v5296 = vshrl.u32 %v5037, 16
        %v5298 = vrot.slane %v5296, 4
        %v5299 = vshll.u32 %v5037, 16
        %v5301 = vrot.slane %v5299, 5
        %v5302 = vor.u32 %v5298, %v5301
        %v5303 = vrot.slane %v5302, 4
        %v5305 = vshll.u32 %v5038, 16
        %v5307 = vrot.slane %v5305, 5
        %v5308 = vsel %vm1494, %v5303, %v5307
        %v5309 = vshrl.u32 %v5038, 16
        %v5311 = vrot.slane %v5309, 4
        %v5312 = vor.u32 %v5311, %v5307
        %v5313 = vrot.slane %v5312, 4
        %v5315 = vshll.u32 %v5039, 16
        %v5317 = vrot.slane %v5315, 5
        %v5318 = vsel %vm1494, %v5313, %v5317
        %v5320 = vshrl.u32 %v5040, 16
        %v5322 = vrot.slane %v5320, 4
        %v5323 = vshll.u32 %v5040, 16
        %v5325 = vrot.slane %v5323, 5
        %v5326 = vor.u32 %v5322, %v5325
        %v5327 = vrot.slane %v5326, 4
        %v5329 = vshll.u32 %v5041, 16
        %v5331 = vrot.slane %v5329, 5
        %v5332 = vsel %vm1494, %v5327, %v5331
        %v5333 = vshrl.u32 %v5041, 16
        %v5335 = vrot.slane %v5333, 4
        %v5336 = vor.u32 %v5335, %v5331
        %v5337 = vrot.slane %v5336, 4
        %v5339 = vshll.u32 %v5042, 16
        %v5341 = vrot.slane %v5339, 5
        %v5342 = vsel %vm1494, %v5337, %v5341
        %v5344 = vshrl.u32 %v5043, 16
        %v5346 = vrot.slane %v5344, 4
        %v5347 = vshll.u32 %v5043, 16
        %v5349 = vrot.slane %v5347, 5
        %v5350 = vor.u32 %v5346, %v5349
        %v5351 = vrot.slane %v5350, 4
        %v5353 = vshll.u32 %v5044, 16
        %v5355 = vrot.slane %v5353, 5
        %v5356 = vsel %vm1494, %v5351, %v5355
        %v5357 = vshrl.u32 %v5044, 16
        %v5359 = vrot.slane %v5357, 4
        %v5360 = vor.u32 %v5359, %v5355
        %v5361 = vrot.slane %v5360, 4
        %v5363 = vshll.u32 %v5045, 16
        %v5365 = vrot.slane %v5363, 5
        %v5366 = vsel %vm1494, %v5361, %v5365
        %v5368 = vshrl.u32 %v5046, 16
        %v5370 = vrot.slane %v5368, 4
        %v5371 = vshll.u32 %v5046, 16
        %v5373 = vrot.slane %v5371, 5
        %v5374 = vor.u32 %v5370, %v5373
        %v5375 = vrot.slane %v5374, 4
        %v5377 = vshll.u32 %v5047, 16
        %v5379 = vrot.slane %v5377, 5
        %v5380 = vsel %vm1494, %v5375, %v5379
        %v5381 = vshrl.u32 %v5047, 16
        %v5383 = vrot.slane %v5381, 4
        %v5384 = vor.u32 %v5383, %v5379
        %v5385 = vrot.slane %v5384, 4
        %v5387 = vshll.u32 %v5048, 16
        %v5389 = vrot.slane %v5387, 5
        %v5390 = vsel %vm1494, %v5385, %v5389
        %v5392 = vshrl.u32 %v5049, 16
        %v5394 = vrot.slane %v5392, 4
        %v5395 = vshll.u32 %v5049, 16
        %v5397 = vrot.slane %v5395, 5
        %v5398 = vor.u32 %v5394, %v5397
        %v5399 = vrot.slane %v5398, 4
        %v5401 = vshll.u32 %v5050, 16
        %v5403 = vrot.slane %v5401, 5
        %v5404 = vsel %vm1494, %v5399, %v5403
        %v5405 = vshrl.u32 %v5050, 16
        %v5407 = vrot.slane %v5405, 4
        %v5408 = vor.u32 %v5407, %v5403
        %v5409 = vrot.slane %v5408, 4
        %v5411 = vshll.u32 %v5051, 16
        %v5413 = vrot.slane %v5411, 5
        %v5414 = vsel %vm1494, %v5409, %v5413
        %v5416 = vshrl.u32 %v5052, 16
        %v5418 = vrot.slane %v5416, 4
        %v5419 = vshll.u32 %v5052, 16
        %v5421 = vrot.slane %v5419, 5
        %v5422 = vor.u32 %v5418, %v5421
        %v5423 = vrot.slane %v5422, 4
        %v5425 = vshll.u32 %v5053, 16
        %v5427 = vrot.slane %v5425, 5
        %v5428 = vsel %vm1494, %v5423, %v5427
        %v5429 = vshrl.u32 %v5053, 16
        %v5431 = vrot.slane %v5429, 4
        %v5432 = vor.u32 %v5431, %v5427
        %v5433 = vrot.slane %v5432, 4
        %v5435 = vshll.u32 %v5054, 16
        %v5437 = vrot.slane %v5435, 5
        %v5438 = vsel %vm1494, %v5433, %v5437
        %s5439 = scalar_lea.vmem %s3, 14
        %v5440 = vld [vmem:[%s5439] sm:$0x3]
        %v5441 = vunpack.c.l.b16 %v5068
        %v5442 = vunpack.c.l.b16 %v5078
        %v5443 = vunpack.c.l.b16 %v5092
        %v5444 = vunpack.c.l.b16 %v5102
        %v5445 = vunpack.c.l.b16 %v5116
        %v5446 = vunpack.c.l.b16 %v5126
        %v5447 = vunpack.c.l.b16 %v5140
        %v5448 = vunpack.c.l.b16 %v5150
        %v5449 = vunpack.c.l.b16 %v5164
        %v5450 = vunpack.c.l.b16 %v5174
        %v5451 = vunpack.c.l.b16 %v5188
        %v5452 = vunpack.c.l.b16 %v5198
        %v5453 = vunpack.c.l.b16 %v5212
        %v5454 = vunpack.c.l.b16 %v5222
        %v5455 = vunpack.c.l.b16 %v5236
        %v5456 = vunpack.c.l.b16 %v5246
        %v5457 = vunpack.c.l.b16 %v5260
        %v5458 = vunpack.c.l.b16 %v5270
        %v5459 = vunpack.c.l.b16 %v5284
        %v5460 = vunpack.c.l.b16 %v5294
        %v5461 = vunpack.c.l.b16 %v5308
        %v5462 = vunpack.c.l.b16 %v5318
        %v5463 = vunpack.c.l.b16 %v5332
        %v5464 = vunpack.c.l.b16 %v5342
        %v5465 = vunpack.c.l.b16 %v5356
        %v5466 = vunpack.c.l.b16 %v5366
        %v5467 = vunpack.c.l.b16 %v5380
        %v5468 = vunpack.c.l.b16 %v5390
        %v5469 = vunpack.c.l.b16 %v5404
        %v5470 = vunpack.c.l.b16 %v5414
        %v5471 = vunpack.c.l.b16 %v5428
        %v5472 = vunpack.c.l.b16 %v5438
        %v5473 = vpack.c.b16 %v5442, %v5441
        %v5474 = vpack.c.b16 %v5444, %v5443
        %v5475 = vpack.c.b16 %v5446, %v5445
        %v5476 = vpack.c.b16 %v5448, %v5447
        %v5477 = vpack.c.b16 %v5450, %v5449
        %v5478 = vpack.c.b16 %v5452, %v5451
        %v5479 = vpack.c.b16 %v5454, %v5453
        %v5480 = vpack.c.b16 %v5456, %v5455
        %v5481 = vpack.c.b16 %v5458, %v5457
        %v5482 = vpack.c.b16 %v5460, %v5459
        %v5483 = vpack.c.b16 %v5462, %v5461
        %v5484 = vpack.c.b16 %v5464, %v5463
        %v5485 = vpack.c.b16 %v5466, %v5465
        %v5486 = vpack.c.b16 %v5468, %v5467
        %v5487 = vpack.c.b16 %v5470, %v5469
        %v5488 = vpack.c.b16 %v5472, %v5471
        %v5490 = vsel %vm1194, %v5473, 0
        %v5493 = vsel %vm1194, %v5474, 0
        %v5496 = vsel %vm1194, %v5475, 0
        %v5499 = vsel %vm1194, %v5476, 0
        %v5502 = vsel %vm1194, %v5477, 0
        %v5505 = vsel %vm1194, %v5478, 0
        %v5508 = vsel %vm1194, %v5479, 0
        %v5511 = vsel %vm1194, %v5480, 0
        %v5514 = vsel %vm1194, %v5481, 0
        %v5517 = vsel %vm1194, %v5482, 0
        %v5520 = vsel %vm1194, %v5483, 0
        %v5523 = vsel %vm1194, %v5484, 0
        %v5526 = vsel %vm1194, %v5485, 0
        %v5529 = vsel %vm1194, %v5486, 0
        %v5532 = vsel %vm1194, %v5487, 0
        %v5535 = vsel %vm1194, %v5488, 0
        %v5538 = vand.u32 %v5440, %v1246
        %5540 = vmatprep.subr.bf16.mxu0 0
        %5541 = vmatpush1.bf16.msra.mxu0 %v5538
        %5542 = vmatprep.subr.bf16.mxu0 0
        %5543 = vmatpush1.bf16.msra.mxu0 0
        %5544 = vmatprep.subr.bf16.mxu0 0
        %5545 = vmatpush1.bf16.msra.mxu0 0
        %5546 = vmatprep.subr.bf16.mxu0 0
        %5547 = vmatpush1.bf16.msra.mxu0 0
        %5548 = vmatprep.subr.bf16.mxu0 0
        %5549 = vmatpush1.bf16.msra.mxu0 0
        %5550 = vmatprep.subr.bf16.mxu0 0
        %5551 = vmatpush1.bf16.msra.mxu0 0
        %5552 = vmatprep.subr.bf16.mxu0 0
        %5553 = vmatpush1.bf16.msra.mxu0 0
        %5554 = vmatprep.subr.bf16.mxu0 0
        %5555 = vmatpush1.bf16.msra.mxu0 0
        %5556 = vmatprep.subr.bf16.mxu0 0
        %5557 = vmatpush1.bf16.msra.mxu0 0
        %5558 = vmatprep.subr.bf16.mxu0 0
        %5559 = vmatpush1.bf16.msra.mxu0 0
        %5560 = vmatprep.subr.bf16.mxu0 0
        %5561 = vmatpush1.bf16.msra.mxu0 0
        %5562 = vmatprep.subr.bf16.mxu0 0
        %5563 = vmatpush1.bf16.msra.mxu0 0
        %5564 = vmatprep.subr.bf16.mxu0 0
        %5565 = vmatpush1.bf16.msra.mxu0 0
        %5566 = vmatprep.subr.bf16.mxu0 0
        %5567 = vmatpush1.bf16.msra.mxu0 0
        %5568 = vmatprep.subr.bf16.mxu0 0
        %5569 = vmatpush1.bf16.msra.mxu0 0
        %5570 = vmatprep.subr.bf16.mxu0 0
        %5571 = vmatpush1.bf16.msra.mxu0 0
        %5572 = vmatprep.mubr.bf16.mxu0 0
        %5573 = vmatmul.mubr.bf16.gmra.mrb[0].mxu0 %v5490
        %v5574 = vpop.f32.mrb[0].mxu0
        %v5575 = vadd.f32 0.0, %v5574
        %v5576 = vpop.f32.mrb[0].mxu0
        %v5577 = vpop.f32.mrb[0].mxu0
        %v5578 = vadd.f32 0.0, %v5577
        %v5579 = vpop.f32.mrb[0].mxu0
        %5580 = vmatprep.mubr.bf16.mxu0 0
        %5581 = vmatmul.mubr.bf16.gmra.mrb[0].mxu0 %v5493
        %v5582 = vpop.f32.mrb[0].mxu0
        %v5583 = vadd.f32 0.0, %v5582
        %v5584 = vpop.f32.mrb[0].mxu0
        %v5585 = vpop.f32.mrb[0].mxu0
        %v5586 = vadd.f32 0.0, %v5585
        %v5587 = vpop.f32.mrb[0].mxu0
        %5588 = vmatprep.mubr.bf16.mxu0 0
        %5589 = vmatmul.mubr.bf16.gmra.mrb[0].mxu0 %v5496
        %v5590 = vpop.f32.mrb[0].mxu0
        %v5591 = vadd.f32 0.0, %v5590
        %v5592 = vpop.f32.mrb[0].mxu0
        %v5593 = vpop.f32.mrb[0].mxu0
        %v5594 = vadd.f32 0.0, %v5593
        %v5595 = vpop.f32.mrb[0].mxu0
        %5596 = vmatprep.mubr.bf16.mxu0 0
        %5597 = vmatmul.mubr.bf16.gmra.mrb[0].mxu0 %v5499
        %v5598 = vpop.f32.mrb[0].mxu0
        %v5599 = vadd.f32 0.0, %v5598
        %v5600 = vpop.f32.mrb[0].mxu0
        %v5601 = vpop.f32.mrb[0].mxu0
        %v5602 = vadd.f32 0.0, %v5601
        %v5603 = vpop.f32.mrb[0].mxu0
        %5604 = vmatprep.mubr.bf16.mxu0 0
        %5605 = vmatmul.mubr.bf16.gmra.mrb[0].mxu0 %v5502
        %v5606 = vpop.f32.mrb[0].mxu0
        %v5607 = vadd.f32 0.0, %v5606
        %v5608 = vpop.f32.mrb[0].mxu0
        %v5609 = vpop.f32.mrb[0].mxu0
        %v5610 = vadd.f32 0.0, %v5609
        %v5611 = vpop.f32.mrb[0].mxu0
        %5612 = vmatprep.mubr.bf16.mxu0 0
        %5613 = vmatmul.mubr.bf16.gmra.mrb[0].mxu0 %v5505
        %v5614 = vpop.f32.mrb[0].mxu0
        %v5615 = vadd.f32 0.0, %v5614
        %v5616 = vpop.f32.mrb[0].mxu0
        %v5617 = vpop.f32.mrb[0].mxu0
        %v5618 = vadd.f32 0.0, %v5617
        %v5619 = vpop.f32.mrb[0].mxu0
        %5620 = vmatprep.mubr.bf16.mxu0 0
        %5621 = vmatmul.mubr.bf16.gmra.mrb[0].mxu0 %v5508
        %v5622 = vpop.f32.mrb[0].mxu0
        %v5623 = vadd.f32 0.0, %v5622
        %v5624 = vpop.f32.mrb[0].mxu0
        %v5625 = vpop.f32.mrb[0].mxu0
        %v5626 = vadd.f32 0.0, %v5625
        %v5627 = vpop.f32.mrb[0].mxu0
        %5628 = vmatprep.mubr.bf16.mxu0 0
        %5629 = vmatmul.mubr.bf16.gmra.mrb[0].mxu0 %v5511
        %v5630 = vpop.f32.mrb[0].mxu0
        %v5631 = vadd.f32 0.0, %v5630
        %v5632 = vpop.f32.mrb[0].mxu0
        %v5633 = vpop.f32.mrb[0].mxu0
        %v5634 = vadd.f32 0.0, %v5633
        %v5635 = vpop.f32.mrb[0].mxu0
        %5636 = vmatprep.mubr.bf16.mxu0 0
        %5637 = vmatmul.mubr.bf16.gmra.mrb[0].mxu0 %v5514
        %v5638 = vpop.f32.mrb[0].mxu0
        %v5639 = vadd.f32 0.0, %v5638
        %v5640 = vpop.f32.mrb[0].mxu0
        %v5641 = vpop.f32.mrb[0].mxu0
        %v5642 = vadd.f32 0.0, %v5641
        %v5643 = vpop.f32.mrb[0].mxu0
        %5644 = vmatprep.mubr.bf16.mxu0 0
        %5645 = vmatmul.mubr.bf16.gmra.mrb[0].mxu0 %v5517
        %v5646 = vpop.f32.mrb[0].mxu0
        %v5647 = vadd.f32 0.0, %v5646
        %v5648 = vpop.f32.mrb[0].mxu0
        %v5649 = vpop.f32.mrb[0].mxu0
        %v5650 = vadd.f32 0.0, %v5649
        %v5651 = vpop.f32.mrb[0].mxu0
        %5652 = vmatprep.mubr.bf16.mxu0 0
        %5653 = vmatmul.mubr.bf16.gmra.mrb[0].mxu0 %v5520
        %v5654 = vpop.f32.mrb[0].mxu0
        %v5655 = vadd.f32 0.0, %v5654
        %v5656 = vpop.f32.mrb[0].mxu0
        %v5657 = vpop.f32.mrb[0].mxu0
        %v5658 = vadd.f32 0.0, %v5657
        %v5659 = vpop.f32.mrb[0].mxu0
        %5660 = vmatprep.mubr.bf16.mxu0 0
        %5661 = vmatmul.mubr.bf16.gmra.mrb[0].mxu0 %v5523
        %v5662 = vpop.f32.mrb[0].mxu0
        %v5663 = vadd.f32 0.0, %v5662
        %v5664 = vpop.f32.mrb[0].mxu0
        %v5665 = vpop.f32.mrb[0].mxu0
        %v5666 = vadd.f32 0.0, %v5665
        %v5667 = vpop.f32.mrb[0].mxu0
        %5668 = vmatprep.mubr.bf16.mxu0 0
        %5669 = vmatmul.mubr.bf16.gmra.mrb[0].mxu0 %v5526
        %v5670 = vpop.f32.mrb[0].mxu0
        %v5671 = vadd.f32 0.0, %v5670
        %v5672 = vpop.f32.mrb[0].mxu0
        %v5673 = vpop.f32.mrb[0].mxu0
        %v5674 = vadd.f32 0.0, %v5673
        %v5675 = vpop.f32.mrb[0].mxu0
        %5676 = vmatprep.mubr.bf16.mxu0 0
        %5677 = vmatmul.mubr.bf16.gmra.mrb[0].mxu0 %v5529
        %v5678 = vpop.f32.mrb[0].mxu0
        %v5679 = vadd.f32 0.0, %v5678
        %v5680 = vpop.f32.mrb[0].mxu0
        %v5681 = vpop.f32.mrb[0].mxu0
        %v5682 = vadd.f32 0.0, %v5681
        %v5683 = vpop.f32.mrb[0].mxu0
        %5684 = vmatprep.mubr.bf16.mxu0 0
        %5685 = vmatmul.mubr.bf16.gmra.mrb[0].mxu0 %v5532
        %v5686 = vpop.f32.mrb[0].mxu0
        %v5687 = vadd.f32 0.0, %v5686
        %v5688 = vpop.f32.mrb[0].mxu0
        %v5689 = vpop.f32.mrb[0].mxu0
        %v5690 = vadd.f32 0.0, %v5689
        %v5691 = vpop.f32.mrb[0].mxu0
        %5692 = vmatprep.mubr.bf16.mxu0 0
        %5693 = vmatmul.mubr.bf16.gmra.mrb[0].mxu0 %v5535
        %v5694 = vpop.f32.mrb[0].mxu0
        %v5695 = vadd.f32 0.0, %v5694
        %v5696 = vpop.f32.mrb[0].mxu0
        %v5697 = vpop.f32.mrb[0].mxu0
        %v5698 = vadd.f32 0.0, %v5697
        %v5699 = vpop.f32.mrb[0].mxu0
        %5700 = vdwg.mxu0
        %v5701 = vld [vmem:[#allocation3] sm:$0xff]
        %v5702 = vld [vmem:[#allocation3 + $0x8] sm:$0xff]
        %v5703 = vld [vmem:[#allocation3 + $0x10] sm:$0xff]
        %v5704 = vld [vmem:[#allocation3 + $0x18] sm:$0xff]
        %v5705 = vld [vmem:[#allocation3 + $0x20] sm:$0xff]
        %v5706 = vld [vmem:[#allocation3 + $0x28] sm:$0xff]
        %v5707 = vld [vmem:[#allocation3 + $0x30] sm:$0xff]
        %v5708 = vld [vmem:[#allocation3 + $0x38] sm:$0xff]
        %v5709 = vld [vmem:[#allocation3 + $0x40] sm:$0xff]
        %v5710 = vld [vmem:[#allocation3 + $0x48] sm:$0xff]
        %v5711 = vld [vmem:[#allocation3 + $0x50] sm:$0xff]
        %v5712 = vld [vmem:[#allocation3 + $0x58] sm:$0xff]
        %v5713 = vld [vmem:[#allocation3 + $0x60] sm:$0xff]
        %v5714 = vld [vmem:[#allocation3 + $0x68] sm:$0xff]
        %v5715 = vld [vmem:[#allocation3 + $0x70] sm:$0xff]
        %v5716 = vld [vmem:[#allocation3 + $0x78] sm:$0xff]
        %v5717 = vld [vmem:[#allocation3 + $0x80] sm:$0xff]
        %v5718 = vld [vmem:[#allocation3 + $0x88] sm:$0xff]
        %v5719 = vld [vmem:[#allocation3 + $0x90] sm:$0xff]
        %v5720 = vld [vmem:[#allocation3 + $0x98] sm:$0xff]
        %v5721 = vld [vmem:[#allocation3 + $0xa0] sm:$0xff]
        %v5722 = vld [vmem:[#allocation3 + $0xa8] sm:$0xff]
        %v5723 = vld [vmem:[#allocation3 + $0xb0] sm:$0xff]
        %v5724 = vld [vmem:[#allocation3 + $0xb8] sm:$0xff]
        %v5725 = vld [vmem:[#allocation3 + $0xc0] sm:$0xff]
        %v5726 = vld [vmem:[#allocation3 + $0xc8] sm:$0xff]
        %v5727 = vld [vmem:[#allocation3 + $0xd0] sm:$0xff]
        %v5728 = vld [vmem:[#allocation3 + $0xd8] sm:$0xff]
        %v5729 = vld [vmem:[#allocation3 + $0xe0] sm:$0xff]
        %v5730 = vld [vmem:[#allocation3 + $0xe8] sm:$0xff]
        %v5731 = vld [vmem:[#allocation3 + $0xf0] sm:$0xff]
        %v5732 = vld [vmem:[#allocation3 + $0xf8] sm:$0xff]
        %v5733 = vadd.f32 %v5701, %v5575
        %v5734 = vadd.f32 %v5702, %v5578
        %v5735 = vadd.f32 %v5703, %v5583
        %v5736 = vadd.f32 %v5704, %v5586
        %v5737 = vadd.f32 %v5705, %v5591
        %v5738 = vadd.f32 %v5706, %v5594
        %v5739 = vadd.f32 %v5707, %v5599
        %v5740 = vadd.f32 %v5708, %v5602
        %v5741 = vadd.f32 %v5709, %v5607
        %v5742 = vadd.f32 %v5710, %v5610
        %v5743 = vadd.f32 %v5711, %v5615
        %v5744 = vadd.f32 %v5712, %v5618
        %v5745 = vadd.f32 %v5713, %v5623
        %v5746 = vadd.f32 %v5714, %v5626
        %v5747 = vadd.f32 %v5715, %v5631
        %v5748 = vadd.f32 %v5716, %v5634
        %v5749 = vadd.f32 %v5717, %v5639
        %v5750 = vadd.f32 %v5718, %v5642
        %v5751 = vadd.f32 %v5719, %v5647
        %v5752 = vadd.f32 %v5720, %v5650
        %v5753 = vadd.f32 %v5721, %v5655
        %v5754 = vadd.f32 %v5722, %v5658
        %v5755 = vadd.f32 %v5723, %v5663
        %v5756 = vadd.f32 %v5724, %v5666
        %v5757 = vadd.f32 %v5725, %v5671
        %v5758 = vadd.f32 %v5726, %v5674
        %v5759 = vadd.f32 %v5727, %v5679
        %v5760 = vadd.f32 %v5728, %v5682
        %v5761 = vadd.f32 %v5729, %v5687
        %v5762 = vadd.f32 %v5730, %v5690
        %v5763 = vadd.f32 %v5731, %v5695
        %v5764 = vadd.f32 %v5732, %v5698
        %5765 = vst.msk [vmem:[#allocation3] sm:$0xff] %vm1411, %v5733
        %5766 = vst.msk [vmem:[#allocation3 + $0x8] sm:$0xff] %vm1411, %v5734
        %5767 = vst.msk [vmem:[#allocation3 + $0x10] sm:$0xff] %vm1411, %v5735
        %5768 = vst.msk [vmem:[#allocation3 + $0x18] sm:$0xff] %vm1411, %v5736
        %5769 = vst.msk [vmem:[#allocation3 + $0x20] sm:$0xff] %vm1411, %v5737
        %5770 = vst.msk [vmem:[#allocation3 + $0x28] sm:$0xff] %vm1411, %v5738
        %5771 = vst.msk [vmem:[#allocation3 + $0x30] sm:$0xff] %vm1411, %v5739
        %5772 = vst.msk [vmem:[#allocation3 + $0x38] sm:$0xff] %vm1411, %v5740
        %5773 = vst.msk [vmem:[#allocation3 + $0x40] sm:$0xff] %vm1411, %v5741
        %5774 = vst.msk [vmem:[#allocation3 + $0x48] sm:$0xff] %vm1411, %v5742
        %5775 = vst.msk [vmem:[#allocation3 + $0x50] sm:$0xff] %vm1411, %v5743
        %5776 = vst.msk [vmem:[#allocation3 + $0x58] sm:$0xff] %vm1411, %v5744
        %5777 = vst.msk [vmem:[#allocation3 + $0x60] sm:$0xff] %vm1411, %v5745
        %5778 = vst.msk [vmem:[#allocation3 + $0x68] sm:$0xff] %vm1411, %v5746
        %5779 = vst.msk [vmem:[#allocation3 + $0x70] sm:$0xff] %vm1411, %v5747
        %5780 = vst.msk [vmem:[#allocation3 + $0x78] sm:$0xff] %vm1411, %v5748
        %5781 = vst.msk [vmem:[#allocation3 + $0x80] sm:$0xff] %vm1411, %v5749
        %5782 = vst.msk [vmem:[#allocation3 + $0x88] sm:$0xff] %vm1411, %v5750
        %5783 = vst.msk [vmem:[#allocation3 + $0x90] sm:$0xff] %vm1411, %v5751
        %5784 = vst.msk [vmem:[#allocation3 + $0x98] sm:$0xff] %vm1411, %v5752
        %5785 = vst.msk [vmem:[#allocation3 + $0xa0] sm:$0xff] %vm1411, %v5753
        %5786 = vst.msk [vmem:[#allocation3 + $0xa8] sm:$0xff] %vm1411, %v5754
        %5787 = vst.msk [vmem:[#allocation3 + $0xb0] sm:$0xff] %vm1411, %v5755
        %5788 = vst.msk [vmem:[#allocation3 + $0xb8] sm:$0xff] %vm1411, %v5756
        %5789 = vst.msk [vmem:[#allocation3 + $0xc0] sm:$0xff] %vm1411, %v5757
        %5790 = vst.msk [vmem:[#allocation3 + $0xc8] sm:$0xff] %vm1411, %v5758
        %5791 = vst.msk [vmem:[#allocation3 + $0xd0] sm:$0xff] %vm1411, %v5759
        %5792 = vst.msk [vmem:[#allocation3 + $0xd8] sm:$0xff] %vm1411, %v5760
        %5793 = vst.msk [vmem:[#allocation3 + $0xe0] sm:$0xff] %vm1411, %v5761
        %5794 = vst.msk [vmem:[#allocation3 + $0xe8] sm:$0xff] %vm1411, %v5762
        %5795 = vst.msk [vmem:[#allocation3 + $0xf0] sm:$0xff] %vm1411, %v5763
        %5796 = vst.msk [vmem:[#allocation3 + $0xf8] sm:$0xff] %vm1411, %v5764
        %v5797 = vld [vmem:[%s4584] sm:$0xe]
        %v5798 = vld [vmem:[%s4584 + $0x4] sm:$0xf]
        %v5799 = vld [vmem:[%s4584 + $0x8] sm:$0x1]
        %v5800 = vld [vmem:[%s4584 + $0xc] sm:$0xe]
        %v5801 = vld [vmem:[%s4584 + $0x10] sm:$0xf]
        %v5802 = vld [vmem:[%s4584 + $0x14] sm:$0x1]
        %v5803 = vld [vmem:[%s4584 + $0x18] sm:$0xe]
        %v5804 = vld [vmem:[%s4584 + $0x1c] sm:$0xf]
        %v5805 = vld [vmem:[%s4584 + $0x20] sm:$0x1]
        %v5806 = vld [vmem:[%s4584 + $0x24] sm:$0xe]
        %v5807 = vld [vmem:[%s4584 + $0x28] sm:$0xf]
        %v5808 = vld [vmem:[%s4584 + $0x2c] sm:$0x1]
        %v5809 = vld [vmem:[%s4584 + $0x30] sm:$0xe]
        %v5810 = vld [vmem:[%s4584 + $0x34] sm:$0xf]
        %v5811 = vld [vmem:[%s4584 + $0x38] sm:$0x1]
        %v5812 = vld [vmem:[%s4584 + $0x3c] sm:$0xe]
        %v5813 = vld [vmem:[%s4584 + $0x40] sm:$0xf]
        %v5814 = vld [vmem:[%s4584 + $0x44] sm:$0x1]
        %v5815 = vld [vmem:[%s4584 + $0x48] sm:$0xe]
        %v5816 = vld [vmem:[%s4584 + $0x4c] sm:$0xf]
        %v5817 = vld [vmem:[%s4584 + $0x50] sm:$0x1]
        %v5818 = vld [vmem:[%s4584 + $0x54] sm:$0xe]
        %v5819 = vld [vmem:[%s4584 + $0x58] sm:$0xf]
        %v5820 = vld [vmem:[%s4584 + $0x5c] sm:$0x1]
        %v5821 = vld [vmem:[%s4584 + $0x60] sm:$0xe]
        %v5822 = vld [vmem:[%s4584 + $0x64] sm:$0xf]
        %v5823 = vld [vmem:[%s4584 + $0x68] sm:$0x1]
        %v5824 = vld [vmem:[%s4584 + $0x6c] sm:$0xe]
        %v5825 = vld [vmem:[%s4584 + $0x70] sm:$0xf]
        %v5826 = vld [vmem:[%s4584 + $0x74] sm:$0x1]
        %v5827 = vld [vmem:[%s4584 + $0x78] sm:$0xe]
        %v5828 = vld [vmem:[%s4584 + $0x7c] sm:$0xf]
        %v5829 = vld [vmem:[%s4584 + $0x80] sm:$0x1]
        %v5830 = vld [vmem:[%s4584 + $0x84] sm:$0xe]
        %v5831 = vld [vmem:[%s4584 + $0x88] sm:$0xf]
        %v5832 = vld [vmem:[%s4584 + $0x8c] sm:$0x1]
        %v5833 = vld [vmem:[%s4584 + $0x90] sm:$0xe]
        %v5834 = vld [vmem:[%s4584 + $0x94] sm:$0xf]
        %v5835 = vld [vmem:[%s4584 + $0x98] sm:$0x1]
        %v5836 = vld [vmem:[%s4584 + $0x9c] sm:$0xe]
        %v5837 = vld [vmem:[%s4584 + $0xa0] sm:$0xf]
        %v5838 = vld [vmem:[%s4584 + $0xa4] sm:$0x1]
        %v5839 = vld [vmem:[%s4584 + $0xa8] sm:$0xe]
        %v5840 = vld [vmem:[%s4584 + $0xac] sm:$0xf]
        %v5841 = vld [vmem:[%s4584 + $0xb0] sm:$0x1]
        %v5842 = vld [vmem:[%s4584 + $0xb4] sm:$0xe]
        %v5843 = vld [vmem:[%s4584 + $0xb8] sm:$0xf]
        %v5844 = vld [vmem:[%s4584 + $0xbc] sm:$0x1]
        %v5893 = vrot.slane %v5797, 5
        %v5894 = vrot.slane %v5893, 4
        %v5895 = vrot.slane %v5798, 5
        %v5896 = vsel %vm2335, %v5894, %v5895
        %v5897 = vrot.slane %v5895, 4
        %v5898 = vrot.slane %v5799, 5
        %v5899 = vsel %vm2335, %v5897, %v5898
        %v5900 = vrot.slane %v5800, 5
        %v5901 = vrot.slane %v5900, 4
        %v5902 = vrot.slane %v5801, 5
        %v5903 = vsel %vm2335, %v5901, %v5902
        %v5904 = vrot.slane %v5902, 4
        %v5905 = vrot.slane %v5802, 5
        %v5906 = vsel %vm2335, %v5904, %v5905
        %v5907 = vrot.slane %v5803, 5
        %v5908 = vrot.slane %v5907, 4
        %v5909 = vrot.slane %v5804, 5
        %v5910 = vsel %vm2335, %v5908, %v5909
        %v5911 = vrot.slane %v5909, 4
        %v5912 = vrot.slane %v5805, 5
        %v5913 = vsel %vm2335, %v5911, %v5912
        %v5914 = vrot.slane %v5806, 5
        %v5915 = vrot.slane %v5914, 4
        %v5916 = vrot.slane %v5807, 5
        %v5917 = vsel %vm2335, %v5915, %v5916
        %v5918 = vrot.slane %v5916, 4
        %v5919 = vrot.slane %v5808, 5
        %v5920 = vsel %vm2335, %v5918, %v5919
        %v5921 = vrot.slane %v5809, 5
        %v5922 = vrot.slane %v5921, 4
        %v5923 = vrot.slane %v5810, 5
        %v5924 = vsel %vm2335, %v5922, %v5923
        %v5925 = vrot.slane %v5923, 4
        %v5926 = vrot.slane %v5811, 5
        %v5927 = vsel %vm2335, %v5925, %v5926
        %v5928 = vrot.slane %v5812, 5
        %v5929 = vrot.slane %v5928, 4
        %v5930 = vrot.slane %v5813, 5
        %v5931 = vsel %vm2335, %v5929, %v5930
        %v5932 = vrot.slane %v5930, 4
        %v5933 = vrot.slane %v5814, 5
        %v5934 = vsel %vm2335, %v5932, %v5933
        %v5935 = vrot.slane %v5815, 5
        %v5936 = vrot.slane %v5935, 4
        %v5937 = vrot.slane %v5816, 5
        %v5938 = vsel %vm2335, %v5936, %v5937
        %v5939 = vrot.slane %v5937, 4
        %v5940 = vrot.slane %v5817, 5
        %v5941 = vsel %vm2335, %v5939, %v5940
        %v5942 = vrot.slane %v5818, 5
        %v5943 = vrot.slane %v5942, 4
        %v5944 = vrot.slane %v5819, 5
        %v5945 = vsel %vm2335, %v5943, %v5944
        %v5946 = vrot.slane %v5944, 4
        %v5947 = vrot.slane %v5820, 5
        %v5948 = vsel %vm2335, %v5946, %v5947
        %v5949 = vrot.slane %v5821, 5
        %v5950 = vrot.slane %v5949, 4
        %v5951 = vrot.slane %v5822, 5
        %v5952 = vsel %vm2335, %v5950, %v5951
        %v5953 = vrot.slane %v5951, 4
        %v5954 = vrot.slane %v5823, 5
        %v5955 = vsel %vm2335, %v5953, %v5954
        %v5956 = vrot.slane %v5824, 5
        %v5957 = vrot.slane %v5956, 4
        %v5958 = vrot.slane %v5825, 5
        %v5959 = vsel %vm2335, %v5957, %v5958
        %v5960 = vrot.slane %v5958, 4
        %v5961 = vrot.slane %v5826, 5
        %v5962 = vsel %vm2335, %v5960, %v5961
        %v5963 = vrot.slane %v5827, 5
        %v5964 = vrot.slane %v5963, 4
        %v5965 = vrot.slane %v5828, 5
        %v5966 = vsel %vm2335, %v5964, %v5965
        %v5967 = vrot.slane %v5965, 4
        %v5968 = vrot.slane %v5829, 5
        %v5969 = vsel %vm2335, %v5967, %v5968
        %v5970 = vrot.slane %v5830, 5
        %v5971 = vrot.slane %v5970, 4
        %v5972 = vrot.slane %v5831, 5
        %v5973 = vsel %vm2335, %v5971, %v5972
        %v5974 = vrot.slane %v5972, 4
        %v5975 = vrot.slane %v5832, 5
        %v5976 = vsel %vm2335, %v5974, %v5975
        %v5977 = vrot.slane %v5833, 5
        %v5978 = vrot.slane %v5977, 4
        %v5979 = vrot.slane %v5834, 5
        %v5980 = vsel %vm2335, %v5978, %v5979
        %v5981 = vrot.slane %v5979, 4
        %v5982 = vrot.slane %v5835, 5
        %v5983 = vsel %vm2335, %v5981, %v5982
        %v5984 = vrot.slane %v5836, 5
        %v5985 = vrot.slane %v5984, 4
        %v5986 = vrot.slane %v5837, 5
        %v5987 = vsel %vm2335, %v5985, %v5986
        %v5988 = vrot.slane %v5986, 4
        %v5989 = vrot.slane %v5838, 5
        %v5990 = vsel %vm2335, %v5988, %v5989
        %v5991 = vrot.slane %v5839, 5
        %v5992 = vrot.slane %v5991, 4
        %v5993 = vrot.slane %v5840, 5
        %v5994 = vsel %vm2335, %v5992, %v5993
        %v5995 = vrot.slane %v5993, 4
        %v5996 = vrot.slane %v5841, 5
        %v5997 = vsel %vm2335, %v5995, %v5996
        %v5998 = vrot.slane %v5842, 5
        %v5999 = vrot.slane %v5998, 4
        %v6000 = vrot.slane %v5843, 5
        %v6001 = vsel %vm2335, %v5999, %v6000
        %v6002 = vrot.slane %v6000, 4
        %v6003 = vrot.slane %v5844, 5
        %v6004 = vsel %vm2335, %v6002, %v6003
        %s6005 = scalar_lea.vmem %s3, 16
        %v6006 = vld [vmem:[%s6005] sm:$0x3]
        %v6007 = vunpack.c.l.b16 %v5896
        %v6008 = vunpack.c.l.b16 %v5899
        %v6009 = vunpack.c.l.b16 %v5903
        %v6010 = vunpack.c.l.b16 %v5906
        %v6011 = vunpack.c.l.b16 %v5910
        %v6012 = vunpack.c.l.b16 %v5913
        %v6013 = vunpack.c.l.b16 %v5917
        %v6014 = vunpack.c.l.b16 %v5920
        %v6015 = vunpack.c.l.b16 %v5924
        %v6016 = vunpack.c.l.b16 %v5927
        %v6017 = vunpack.c.l.b16 %v5931
        %v6018 = vunpack.c.l.b16 %v5934
        %v6019 = vunpack.c.l.b16 %v5938
        %v6020 = vunpack.c.l.b16 %v5941
        %v6021 = vunpack.c.l.b16 %v5945
        %v6022 = vunpack.c.l.b16 %v5948
        %v6023 = vunpack.c.l.b16 %v5952
        %v6024 = vunpack.c.l.b16 %v5955
        %v6025 = vunpack.c.l.b16 %v5959
        %v6026 = vunpack.c.l.b16 %v5962
        %v6027 = vunpack.c.l.b16 %v5966
        %v6028 = vunpack.c.l.b16 %v5969
        %v6029 = vunpack.c.l.b16 %v5973
        %v6030 = vunpack.c.l.b16 %v5976
        %v6031 = vunpack.c.l.b16 %v5980
        %v6032 = vunpack.c.l.b16 %v5983
        %v6033 = vunpack.c.l.b16 %v5987
        %v6034 = vunpack.c.l.b16 %v5990
        %v6035 = vunpack.c.l.b16 %v5994
        %v6036 = vunpack.c.l.b16 %v5997
        %v6037 = vunpack.c.l.b16 %v6001
        %v6038 = vunpack.c.l.b16 %v6004
        %v6039 = vpack.c.b16 %v6008, %v6007
        %v6040 = vpack.c.b16 %v6010, %v6009
        %v6041 = vpack.c.b16 %v6012, %v6011
        %v6042 = vpack.c.b16 %v6014, %v6013
        %v6043 = vpack.c.b16 %v6016, %v6015
        %v6044 = vpack.c.b16 %v6018, %v6017
        %v6045 = vpack.c.b16 %v6020, %v6019
        %v6046 = vpack.c.b16 %v6022, %v6021
        %v6047 = vpack.c.b16 %v6024, %v6023
        %v6048 = vpack.c.b16 %v6026, %v6025
        %v6049 = vpack.c.b16 %v6028, %v6027
        %v6050 = vpack.c.b16 %v6030, %v6029
        %v6051 = vpack.c.b16 %v6032, %v6031
        %v6052 = vpack.c.b16 %v6034, %v6033
        %v6053 = vpack.c.b16 %v6036, %v6035
        %v6054 = vpack.c.b16 %v6038, %v6037
        %v6056 = vsel %vm1194, %v6039, 0
        %v6059 = vsel %vm1194, %v6040, 0
        %v6062 = vsel %vm1194, %v6041, 0
        %v6065 = vsel %vm1194, %v6042, 0
        %v6068 = vsel %vm1194, %v6043, 0
        %v6071 = vsel %vm1194, %v6044, 0
        %v6074 = vsel %vm1194, %v6045, 0
        %v6077 = vsel %vm1194, %v6046, 0
        %v6080 = vsel %vm1194, %v6047, 0
        %v6083 = vsel %vm1194, %v6048, 0
        %v6086 = vsel %vm1194, %v6049, 0
        %v6089 = vsel %vm1194, %v6050, 0
        %v6092 = vsel %vm1194, %v6051, 0
        %v6095 = vsel %vm1194, %v6052, 0
        %v6098 = vsel %vm1194, %v6053, 0
        %v6101 = vsel %vm1194, %v6054, 0
        %v6104 = vand.u32 %v6006, %v1246
        %6106 = vmatprep.subr.bf16.mxu0 0
        %6107 = vmatpush1.bf16.msra.mxu0 %v6104
        %6108 = vmatprep.subr.bf16.mxu0 0
        %6109 = vmatpush1.bf16.msra.mxu0 0
        %6110 = vmatprep.subr.bf16.mxu0 0
        %6111 = vmatpush1.bf16.msra.mxu0 0
        %6112 = vmatprep.subr.bf16.mxu0 0
        %6113 = vmatpush1.bf16.msra.mxu0 0
        %6114 = vmatprep.subr.bf16.mxu0 0
        %6115 = vmatpush1.bf16.msra.mxu0 0
        %6116 = vmatprep.subr.bf16.mxu0 0
        %6117 = vmatpush1.bf16.msra.mxu0 0
        %6118 = vmatprep.subr.bf16.mxu0 0
        %6119 = vmatpush1.bf16.msra.mxu0 0
        %6120 = vmatprep.subr.bf16.mxu0 0
        %6121 = vmatpush1.bf16.msra.mxu0 0
        %6122 = vmatprep.subr.bf16.mxu0 0
        %6123 = vmatpush1.bf16.msra.mxu0 0
        %6124 = vmatprep.subr.bf16.mxu0 0
        %6125 = vmatpush1.bf16.msra.mxu0 0
        %6126 = vmatprep.subr.bf16.mxu0 0
        %6127 = vmatpush1.bf16.msra.mxu0 0
        %6128 = vmatprep.subr.bf16.mxu0 0
        %6129 = vmatpush1.bf16.msra.mxu0 0
        %6130 = vmatprep.subr.bf16.mxu0 0
        %6131 = vmatpush1.bf16.msra.mxu0 0
        %6132 = vmatprep.subr.bf16.mxu0 0
        %6133 = vmatpush1.bf16.msra.mxu0 0
        %6134 = vmatprep.subr.bf16.mxu0 0
        %6135 = vmatpush1.bf16.msra.mxu0 0
        %6136 = vmatprep.subr.bf16.mxu0 0
        %6137 = vmatpush1.bf16.msra.mxu0 0
        %6138 = vmatprep.mubr.bf16.mxu0 0
        %6139 = vmatmul.mubr.bf16.gmra.mrb[0].mxu0 %v6056
        %v6140 = vpop.f32.mrb[0].mxu0
        %v6141 = vadd.f32 0.0, %v6140
        %v6142 = vpop.f32.mrb[0].mxu0
        %v6143 = vpop.f32.mrb[0].mxu0
        %v6144 = vadd.f32 0.0, %v6143
        %v6145 = vpop.f32.mrb[0].mxu0
        %6146 = vmatprep.mubr.bf16.mxu0 0
        %6147 = vmatmul.mubr.bf16.gmra.mrb[0].mxu0 %v6059
        %v6148 = vpop.f32.mrb[0].mxu0
        %v6149 = vadd.f32 0.0, %v6148
        %v6150 = vpop.f32.mrb[0].mxu0
        %v6151 = vpop.f32.mrb[0].mxu0
        %v6152 = vadd.f32 0.0, %v6151
        %v6153 = vpop.f32.mrb[0].mxu0
        %6154 = vmatprep.mubr.bf16.mxu0 0
        %6155 = vmatmul.mubr.bf16.gmra.mrb[0].mxu0 %v6062
        %v6156 = vpop.f32.mrb[0].mxu0
        %v6157 = vadd.f32 0.0, %v6156
        %v6158 = vpop.f32.mrb[0].mxu0
        %v6159 = vpop.f32.mrb[0].mxu0
        %v6160 = vadd.f32 0.0, %v6159
        %v6161 = vpop.f32.mrb[0].mxu0
        %6162 = vmatprep.mubr.bf16.mxu0 0
        %6163 = vmatmul.mubr.bf16.gmra.mrb[0].mxu0 %v6065
        %v6164 = vpop.f32.mrb[0].mxu0
        %v6165 = vadd.f32 0.0, %v6164
        %v6166 = vpop.f32.mrb[0].mxu0
        %v6167 = vpop.f32.mrb[0].mxu0
        %v6168 = vadd.f32 0.0, %v6167
        %v6169 = vpop.f32.mrb[0].mxu0
        %6170 = vmatprep.mubr.bf16.mxu0 0
        %6171 = vmatmul.mubr.bf16.gmra.mrb[0].mxu0 %v6068
        %v6172 = vpop.f32.mrb[0].mxu0
        %v6173 = vadd.f32 0.0, %v6172
        %v6174 = vpop.f32.mrb[0].mxu0
        %v6175 = vpop.f32.mrb[0].mxu0
        %v6176 = vadd.f32 0.0, %v6175
        %v6177 = vpop.f32.mrb[0].mxu0
        %6178 = vmatprep.mubr.bf16.mxu0 0
        %6179 = vmatmul.mubr.bf16.gmra.mrb[0].mxu0 %v6071
        %v6180 = vpop.f32.mrb[0].mxu0
        %v6181 = vadd.f32 0.0, %v6180
        %v6182 = vpop.f32.mrb[0].mxu0
        %v6183 = vpop.f32.mrb[0].mxu0
        %v6184 = vadd.f32 0.0, %v6183
        %v6185 = vpop.f32.mrb[0].mxu0
        %6186 = vmatprep.mubr.bf16.mxu0 0
        %6187 = vmatmul.mubr.bf16.gmra.mrb[0].mxu0 %v6074
        %v6188 = vpop.f32.mrb[0].mxu0
        %v6189 = vadd.f32 0.0, %v6188
        %v6190 = vpop.f32.mrb[0].mxu0
        %v6191 = vpop.f32.mrb[0].mxu0
        %v6192 = vadd.f32 0.0, %v6191
        %v6193 = vpop.f32.mrb[0].mxu0
        %6194 = vmatprep.mubr.bf16.mxu0 0
        %6195 = vmatmul.mubr.bf16.gmra.mrb[0].mxu0 %v6077
        %v6196 = vpop.f32.mrb[0].mxu0
        %v6197 = vadd.f32 0.0, %v6196
        %v6198 = vpop.f32.mrb[0].mxu0
        %v6199 = vpop.f32.mrb[0].mxu0
        %v6200 = vadd.f32 0.0, %v6199
        %v6201 = vpop.f32.mrb[0].mxu0
        %6202 = vmatprep.mubr.bf16.mxu0 0
        %6203 = vmatmul.mubr.bf16.gmra.mrb[0].mxu0 %v6080
        %v6204 = vpop.f32.mrb[0].mxu0
        %v6205 = vadd.f32 0.0, %v6204
        %v6206 = vpop.f32.mrb[0].mxu0
        %v6207 = vpop.f32.mrb[0].mxu0
        %v6208 = vadd.f32 0.0, %v6207
        %v6209 = vpop.f32.mrb[0].mxu0
        %6210 = vmatprep.mubr.bf16.mxu0 0
        %6211 = vmatmul.mubr.bf16.gmra.mrb[0].mxu0 %v6083
        %v6212 = vpop.f32.mrb[0].mxu0
        %v6213 = vadd.f32 0.0, %v6212
        %v6214 = vpop.f32.mrb[0].mxu0
        %v6215 = vpop.f32.mrb[0].mxu0
        %v6216 = vadd.f32 0.0, %v6215
        %v6217 = vpop.f32.mrb[0].mxu0
        %6218 = vmatprep.mubr.bf16.mxu0 0
        %6219 = vmatmul.mubr.bf16.gmra.mrb[0].mxu0 %v6086
        %v6220 = vpop.f32.mrb[0].mxu0
        %v6221 = vadd.f32 0.0, %v6220
        %v6222 = vpop.f32.mrb[0].mxu0
        %v6223 = vpop.f32.mrb[0].mxu0
        %v6224 = vadd.f32 0.0, %v6223
        %v6225 = vpop.f32.mrb[0].mxu0
        %6226 = vmatprep.mubr.bf16.mxu0 0
        %6227 = vmatmul.mubr.bf16.gmra.mrb[0].mxu0 %v6089
        %v6228 = vpop.f32.mrb[0].mxu0
        %v6229 = vadd.f32 0.0, %v6228
        %v6230 = vpop.f32.mrb[0].mxu0
        %v6231 = vpop.f32.mrb[0].mxu0
        %v6232 = vadd.f32 0.0, %v6231
        %v6233 = vpop.f32.mrb[0].mxu0
        %6234 = vmatprep.mubr.bf16.mxu0 0
        %6235 = vmatmul.mubr.bf16.gmra.mrb[0].mxu0 %v6092
        %v6236 = vpop.f32.mrb[0].mxu0
        %v6237 = vadd.f32 0.0, %v6236
        %v6238 = vpop.f32.mrb[0].mxu0
        %v6239 = vpop.f32.mrb[0].mxu0
        %v6240 = vadd.f32 0.0, %v6239
        %v6241 = vpop.f32.mrb[0].mxu0
        %6242 = vmatprep.mubr.bf16.mxu0 0
        %6243 = vmatmul.mubr.bf16.gmra.mrb[0].mxu0 %v6095
        %v6244 = vpop.f32.mrb[0].mxu0
        %v6245 = vadd.f32 0.0, %v6244
        %v6246 = vpop.f32.mrb[0].mxu0
        %v6247 = vpop.f32.mrb[0].mxu0
        %v6248 = vadd.f32 0.0, %v6247
        %v6249 = vpop.f32.mrb[0].mxu0
        %6250 = vmatprep.mubr.bf16.mxu0 0
        %6251 = vmatmul.mubr.bf16.gmra.mrb[0].mxu0 %v6098
        %v6252 = vpop.f32.mrb[0].mxu0
        %v6253 = vadd.f32 0.0, %v6252
        %v6254 = vpop.f32.mrb[0].mxu0
        %v6255 = vpop.f32.mrb[0].mxu0
        %v6256 = vadd.f32 0.0, %v6255
        %v6257 = vpop.f32.mrb[0].mxu0
        %6258 = vmatprep.mubr.bf16.mxu0 0
        %6259 = vmatmul.mubr.bf16.gmra.mrb[0].mxu0 %v6101
        %v6260 = vpop.f32.mrb[0].mxu0
        %v6261 = vadd.f32 0.0, %v6260
        %v6262 = vpop.f32.mrb[0].mxu0
        %v6263 = vpop.f32.mrb[0].mxu0
        %v6264 = vadd.f32 0.0, %v6263
        %v6265 = vpop.f32.mrb[0].mxu0
        %6266 = vdwg.mxu0
        %v6267 = vld [vmem:[#allocation3] sm:$0xff]
        %v6268 = vld [vmem:[#allocation3 + $0x8] sm:$0xff]
        %v6269 = vld [vmem:[#allocation3 + $0x10] sm:$0xff]
        %v6270 = vld [vmem:[#allocation3 + $0x18] sm:$0xff]
        %v6271 = vld [vmem:[#allocation3 + $0x20] sm:$0xff]
        %v6272 = vld [vmem:[#allocation3 + $0x28] sm:$0xff]
        %v6273 = vld [vmem:[#allocation3 + $0x30] sm:$0xff]
        %v6274 = vld [vmem:[#allocation3 + $0x38] sm:$0xff]
        %v6275 = vld [vmem:[#allocation3 + $0x40] sm:$0xff]
        %v6276 = vld [vmem:[#allocation3 + $0x48] sm:$0xff]
        %v6277 = vld [vmem:[#allocation3 + $0x50] sm:$0xff]
        %v6278 = vld [vmem:[#allocation3 + $0x58] sm:$0xff]
        %v6279 = vld [vmem:[#allocation3 + $0x60] sm:$0xff]
        %v6280 = vld [vmem:[#allocation3 + $0x68] sm:$0xff]
        %v6281 = vld [vmem:[#allocation3 + $0x70] sm:$0xff]
        %v6282 = vld [vmem:[#allocation3 + $0x78] sm:$0xff]
        %v6283 = vld [vmem:[#allocation3 + $0x80] sm:$0xff]
        %v6284 = vld [vmem:[#allocation3 + $0x88] sm:$0xff]
        %v6285 = vld [vmem:[#allocation3 + $0x90] sm:$0xff]
        %v6286 = vld [vmem:[#allocation3 + $0x98] sm:$0xff]
        %v6287 = vld [vmem:[#allocation3 + $0xa0] sm:$0xff]
        %v6288 = vld [vmem:[#allocation3 + $0xa8] sm:$0xff]
        %v6289 = vld [vmem:[#allocation3 + $0xb0] sm:$0xff]
        %v6290 = vld [vmem:[#allocation3 + $0xb8] sm:$0xff]
        %v6291 = vld [vmem:[#allocation3 + $0xc0] sm:$0xff]
        %v6292 = vld [vmem:[#allocation3 + $0xc8] sm:$0xff]
        %v6293 = vld [vmem:[#allocation3 + $0xd0] sm:$0xff]
        %v6294 = vld [vmem:[#allocation3 + $0xd8] sm:$0xff]
        %v6295 = vld [vmem:[#allocation3 + $0xe0] sm:$0xff]
        %v6296 = vld [vmem:[#allocation3 + $0xe8] sm:$0xff]
        %v6297 = vld [vmem:[#allocation3 + $0xf0] sm:$0xff]
        %v6298 = vld [vmem:[#allocation3 + $0xf8] sm:$0xff]
        %v6299 = vadd.f32 %v6267, %v6141
        %v6300 = vadd.f32 %v6268, %v6144
        %v6301 = vadd.f32 %v6269, %v6149
        %v6302 = vadd.f32 %v6270, %v6152
        %v6303 = vadd.f32 %v6271, %v6157
        %v6304 = vadd.f32 %v6272, %v6160
        %v6305 = vadd.f32 %v6273, %v6165
        %v6306 = vadd.f32 %v6274, %v6168
        %v6307 = vadd.f32 %v6275, %v6173
        %v6308 = vadd.f32 %v6276, %v6176
        %v6309 = vadd.f32 %v6277, %v6181
        %v6310 = vadd.f32 %v6278, %v6184
        %v6311 = vadd.f32 %v6279, %v6189
        %v6312 = vadd.f32 %v6280, %v6192
        %v6313 = vadd.f32 %v6281, %v6197
        %v6314 = vadd.f32 %v6282, %v6200
        %v6315 = vadd.f32 %v6283, %v6205
        %v6316 = vadd.f32 %v6284, %v6208
        %v6317 = vadd.f32 %v6285, %v6213
        %v6318 = vadd.f32 %v6286, %v6216
        %v6319 = vadd.f32 %v6287, %v6221
        %v6320 = vadd.f32 %v6288, %v6224
        %v6321 = vadd.f32 %v6289, %v6229
        %v6322 = vadd.f32 %v6290, %v6232
        %v6323 = vadd.f32 %v6291, %v6237
        %v6324 = vadd.f32 %v6292, %v6240
        %v6325 = vadd.f32 %v6293, %v6245
        %v6326 = vadd.f32 %v6294, %v6248
        %v6327 = vadd.f32 %v6295, %v6253
        %v6328 = vadd.f32 %v6296, %v6256
        %v6329 = vadd.f32 %v6297, %v6261
        %v6330 = vadd.f32 %v6298, %v6264
        %6331 = vst.msk [vmem:[#allocation3] sm:$0xff] %vm1411, %v6299
        %6332 = vst.msk [vmem:[#allocation3 + $0x8] sm:$0xff] %vm1411, %v6300
        %6333 = vst.msk [vmem:[#allocation3 + $0x10] sm:$0xff] %vm1411, %v6301
        %6334 = vst.msk [vmem:[#allocation3 + $0x18] sm:$0xff] %vm1411, %v6302
        %6335 = vst.msk [vmem:[#allocation3 + $0x20] sm:$0xff] %vm1411, %v6303
        %6336 = vst.msk [vmem:[#allocation3 + $0x28] sm:$0xff] %vm1411, %v6304
        %6337 = vst.msk [vmem:[#allocation3 + $0x30] sm:$0xff] %vm1411, %v6305
        %6338 = vst.msk [vmem:[#allocation3 + $0x38] sm:$0xff] %vm1411, %v6306
        %6339 = vst.msk [vmem:[#allocation3 + $0x40] sm:$0xff] %vm1411, %v6307
        %6340 = vst.msk [vmem:[#allocation3 + $0x48] sm:$0xff] %vm1411, %v6308
        %6341 = vst.msk [vmem:[#allocation3 + $0x50] sm:$0xff] %vm1411, %v6309
        %6342 = vst.msk [vmem:[#allocation3 + $0x58] sm:$0xff] %vm1411, %v6310
        %6343 = vst.msk [vmem:[#allocation3 + $0x60] sm:$0xff] %vm1411, %v6311
        %6344 = vst.msk [vmem:[#allocation3 + $0x68] sm:$0xff] %vm1411, %v6312
        %6345 = vst.msk [vmem:[#allocation3 + $0x70] sm:$0xff] %vm1411, %v6313
        %6346 = vst.msk [vmem:[#allocation3 + $0x78] sm:$0xff] %vm1411, %v6314
        %6347 = vst.msk [vmem:[#allocation3 + $0x80] sm:$0xff] %vm1411, %v6315
        %6348 = vst.msk [vmem:[#allocation3 + $0x88] sm:$0xff] %vm1411, %v6316
        %6349 = vst.msk [vmem:[#allocation3 + $0x90] sm:$0xff] %vm1411, %v6317
        %6350 = vst.msk [vmem:[#allocation3 + $0x98] sm:$0xff] %vm1411, %v6318
        %6351 = vst.msk [vmem:[#allocation3 + $0xa0] sm:$0xff] %vm1411, %v6319
        %6352 = vst.msk [vmem:[#allocation3 + $0xa8] sm:$0xff] %vm1411, %v6320
        %6353 = vst.msk [vmem:[#allocation3 + $0xb0] sm:$0xff] %vm1411, %v6321
        %6354 = vst.msk [vmem:[#allocation3 + $0xb8] sm:$0xff] %vm1411, %v6322
        %6355 = vst.msk [vmem:[#allocation3 + $0xc0] sm:$0xff] %vm1411, %v6323
        %6356 = vst.msk [vmem:[#allocation3 + $0xc8] sm:$0xff] %vm1411, %v6324
        %6357 = vst.msk [vmem:[#allocation3 + $0xd0] sm:$0xff] %vm1411, %v6325
        %6358 = vst.msk [vmem:[#allocation3 + $0xd8] sm:$0xff] %vm1411, %v6326
        %6359 = vst.msk [vmem:[#allocation3 + $0xe0] sm:$0xff] %vm1411, %v6327
        %6360 = vst.msk [vmem:[#allocation3 + $0xe8] sm:$0xff] %vm1411, %v6328
        %6361 = vst.msk [vmem:[#allocation3 + $0xf0] sm:$0xff] %vm1411, %v6329
        %6362 = vst.msk [vmem:[#allocation3 + $0xf8] sm:$0xff] %vm1411, %v6330
        %v6363 = vld [vmem:[#allocation3] sm:$0xff]
        %v6364 = vld [vmem:[#allocation3 + $0x8] sm:$0xff]
        %v6365 = vld [vmem:[#allocation3 + $0x10] sm:$0xff]
        %v6366 = vld [vmem:[#allocation3 + $0x18] sm:$0xff]
        %v6367 = vld [vmem:[#allocation3 + $0x20] sm:$0xff]
        %v6368 = vld [vmem:[#allocation3 + $0x28] sm:$0xff]
        %v6369 = vld [vmem:[#allocation3 + $0x30] sm:$0xff]
        %v6370 = vld [vmem:[#allocation3 + $0x38] sm:$0xff]
        %v6371 = vld [vmem:[#allocation3 + $0x40] sm:$0xff]
        %v6372 = vld [vmem:[#allocation3 + $0x48] sm:$0xff]
        %v6373 = vld [vmem:[#allocation3 + $0x50] sm:$0xff]
        %v6374 = vld [vmem:[#allocation3 + $0x58] sm:$0xff]
        %v6375 = vld [vmem:[#allocation3 + $0x60] sm:$0xff]
        %v6376 = vld [vmem:[#allocation3 + $0x68] sm:$0xff]
        %v6377 = vld [vmem:[#allocation3 + $0x70] sm:$0xff]
        %v6378 = vld [vmem:[#allocation3 + $0x78] sm:$0xff]
        %v6379 = vld [vmem:[#allocation3 + $0x80] sm:$0xff]
        %v6380 = vld [vmem:[#allocation3 + $0x88] sm:$0xff]
        %v6381 = vld [vmem:[#allocation3 + $0x90] sm:$0xff]
        %v6382 = vld [vmem:[#allocation3 + $0x98] sm:$0xff]
        %v6383 = vld [vmem:[#allocation3 + $0xa0] sm:$0xff]
        %v6384 = vld [vmem:[#allocation3 + $0xa8] sm:$0xff]
        %v6385 = vld [vmem:[#allocation3 + $0xb0] sm:$0xff]
        %v6386 = vld [vmem:[#allocation3 + $0xb8] sm:$0xff]
        %v6387 = vld [vmem:[#allocation3 + $0xc0] sm:$0xff]
        %v6388 = vld [vmem:[#allocation3 + $0xc8] sm:$0xff]
        %v6389 = vld [vmem:[#allocation3 + $0xd0] sm:$0xff]
        %v6390 = vld [vmem:[#allocation3 + $0xd8] sm:$0xff]
        %v6391 = vld [vmem:[#allocation3 + $0xe0] sm:$0xff]
        %v6392 = vld [vmem:[#allocation3 + $0xe8] sm:$0xff]
        %v6393 = vld [vmem:[#allocation3 + $0xf0] sm:$0xff]
        %v6394 = vld [vmem:[#allocation3 + $0xf8] sm:$0xff]
        %v6395 = vld [vmem:[%s4] sm:$0x1]
        %v6397 = vlaneseq
        %v6398 = vshrl.u32 %v6397, 7
        %v6399 = vsub.s32 0, %v6398
        %v6400 = vrot.slane %v6395, %v6399
        %v6402 = vmul.f32 %v6363, %v6400
        %v6403 = vmul.f32 %v6364, %v6400
        %v6404 = vmul.f32 %v6365, %v6400
        %v6405 = vmul.f32 %v6366, %v6400
        %v6406 = vmul.f32 %v6367, %v6400
        %v6407 = vmul.f32 %v6368, %v6400
        %v6408 = vmul.f32 %v6369, %v6400
        %v6409 = vmul.f32 %v6370, %v6400
        %v6410 = vmul.f32 %v6371, %v6400
        %v6411 = vmul.f32 %v6372, %v6400
        %v6412 = vmul.f32 %v6373, %v6400
        %v6413 = vmul.f32 %v6374, %v6400
        %v6414 = vmul.f32 %v6375, %v6400
        %v6415 = vmul.f32 %v6376, %v6400
        %v6416 = vmul.f32 %v6377, %v6400
        %v6417 = vmul.f32 %v6378, %v6400
        %v6418 = vmul.f32 %v6379, %v6400
        %v6419 = vmul.f32 %v6380, %v6400
        %v6420 = vmul.f32 %v6381, %v6400
        %v6421 = vmul.f32 %v6382, %v6400
        %v6422 = vmul.f32 %v6383, %v6400
        %v6423 = vmul.f32 %v6384, %v6400
        %v6424 = vmul.f32 %v6385, %v6400
        %v6425 = vmul.f32 %v6386, %v6400
        %v6426 = vmul.f32 %v6387, %v6400
        %v6427 = vmul.f32 %v6388, %v6400
        %v6428 = vmul.f32 %v6389, %v6400
        %v6429 = vmul.f32 %v6390, %v6400
        %v6430 = vmul.f32 %v6391, %v6400
        %v6431 = vmul.f32 %v6392, %v6400
        %v6432 = vmul.f32 %v6393, %v6400
        %v6433 = vmul.f32 %v6394, %v6400
        %v6434 = vld [vmem:[%s5] sm:$0x1]
        %v6436 = vlaneseq
        %v6437 = vshrl.u32 %v6436, 7
        %v6438 = vsub.s32 0, %v6437
        %v6439 = vrot.slane %v6434, %v6438
        %v6441 = vadd.f32 %v6402, %v6439
        %v6442 = vadd.f32 %v6403, %v6439
        %v6443 = vadd.f32 %v6404, %v6439
        %v6444 = vadd.f32 %v6405, %v6439
        %v6445 = vadd.f32 %v6406, %v6439
        %v6446 = vadd.f32 %v6407, %v6439
        %v6447 = vadd.f32 %v6408, %v6439
        %v6448 = vadd.f32 %v6409, %v6439
        %v6449 = vadd.f32 %v6410, %v6439
        %v6450 = vadd.f32 %v6411, %v6439
        %v6451 = vadd.f32 %v6412, %v6439
        %v6452 = vadd.f32 %v6413, %v6439
        %v6453 = vadd.f32 %v6414, %v6439
        %v6454 = vadd.f32 %v6415, %v6439
        %v6455 = vadd.f32 %v6416, %v6439
        %v6456 = vadd.f32 %v6417, %v6439
        %v6457 = vadd.f32 %v6418, %v6439
        %v6458 = vadd.f32 %v6419, %v6439
        %v6459 = vadd.f32 %v6420, %v6439
        %v6460 = vadd.f32 %v6421, %v6439
        %v6461 = vadd.f32 %v6422, %v6439
        %v6462 = vadd.f32 %v6423, %v6439
        %v6463 = vadd.f32 %v6424, %v6439
        %v6464 = vadd.f32 %v6425, %v6439
        %v6465 = vadd.f32 %v6426, %v6439
        %v6466 = vadd.f32 %v6427, %v6439
        %v6467 = vadd.f32 %v6428, %v6439
        %v6468 = vadd.f32 %v6429, %v6439
        %v6469 = vadd.f32 %v6430, %v6439
        %v6470 = vadd.f32 %v6431, %v6439
        %v6471 = vadd.f32 %v6432, %v6439
        %v6472 = vadd.f32 %v6433, %v6439
        %v6473 = vmax.f32 %v6441, 0.0
        %v6474 = vmax.f32 %v6442, 0.0
        %v6475 = vmax.f32 %v6443, 0.0
        %v6476 = vmax.f32 %v6444, 0.0
        %v6477 = vmax.f32 %v6445, 0.0
        %v6478 = vmax.f32 %v6446, 0.0
        %v6479 = vmax.f32 %v6447, 0.0
        %v6480 = vmax.f32 %v6448, 0.0
        %v6481 = vmax.f32 %v6449, 0.0
        %v6482 = vmax.f32 %v6450, 0.0
        %v6483 = vmax.f32 %v6451, 0.0
        %v6484 = vmax.f32 %v6452, 0.0
        %v6485 = vmax.f32 %v6453, 0.0
        %v6486 = vmax.f32 %v6454, 0.0
        %v6487 = vmax.f32 %v6455, 0.0
        %v6488 = vmax.f32 %v6456, 0.0
        %v6489 = vmax.f32 %v6457, 0.0
        %v6490 = vmax.f32 %v6458, 0.0
        %v6491 = vmax.f32 %v6459, 0.0
        %v6492 = vmax.f32 %v6460, 0.0
        %v6493 = vmax.f32 %v6461, 0.0
        %v6494 = vmax.f32 %v6462, 0.0
        %v6495 = vmax.f32 %v6463, 0.0
        %v6496 = vmax.f32 %v6464, 0.0
        %v6497 = vmax.f32 %v6465, 0.0
        %v6498 = vmax.f32 %v6466, 0.0
        %v6499 = vmax.f32 %v6467, 0.0
        %v6500 = vmax.f32 %v6468, 0.0
        %v6501 = vmax.f32 %v6469, 0.0
        %v6502 = vmax.f32 %v6470, 0.0
        %v6503 = vmax.f32 %v6471, 0.0
        %v6504 = vmax.f32 %v6472, 0.0
        %v6505 = vpack.c.bf16 %v6474, %v6473
        %v6506 = vpack.c.bf16 %v6476, %v6475
        %v6507 = vpack.c.bf16 %v6478, %v6477
        %v6508 = vpack.c.bf16 %v6480, %v6479
        %v6509 = vpack.c.bf16 %v6482, %v6481
        %v6510 = vpack.c.bf16 %v6484, %v6483
        %v6511 = vpack.c.bf16 %v6486, %v6485
        %v6512 = vpack.c.bf16 %v6488, %v6487
        %v6513 = vpack.c.bf16 %v6490, %v6489
        %v6514 = vpack.c.bf16 %v6492, %v6491
        %v6515 = vpack.c.bf16 %v6494, %v6493
        %v6516 = vpack.c.bf16 %v6496, %v6495
        %v6517 = vpack.c.bf16 %v6498, %v6497
        %v6518 = vpack.c.bf16 %v6500, %v6499
        %v6519 = vpack.c.bf16 %v6502, %v6501
        %v6520 = vpack.c.bf16 %v6504, %v6503
        %v6537 = vunpack.c.l.b16 %v6505
        %v6538 = vunpack.c.h.b16 %v6505
        %v6539 = vunpack.c.l.b16 %v6506
        %v6540 = vunpack.c.h.b16 %v6506
        %v6541 = vunpack.c.l.b16 %v6507
        %v6542 = vunpack.c.h.b16 %v6507
        %v6543 = vunpack.c.l.b16 %v6508
        %v6544 = vunpack.c.h.b16 %v6508
        %v6545 = vunpack.c.l.b16 %v6509
        %v6546 = vunpack.c.h.b16 %v6509
        %v6547 = vunpack.c.l.b16 %v6510
        %v6548 = vunpack.c.h.b16 %v6510
        %v6549 = vunpack.c.l.b16 %v6511
        %v6550 = vunpack.c.h.b16 %v6511
        %v6551 = vunpack.c.l.b16 %v6512
        %v6552 = vunpack.c.h.b16 %v6512
        %v6553 = vunpack.c.l.b16 %v6513
        %v6554 = vunpack.c.h.b16 %v6513
        %v6555 = vunpack.c.l.b16 %v6514
        %v6556 = vunpack.c.h.b16 %v6514
        %v6557 = vunpack.c.l.b16 %v6515
        %v6558 = vunpack.c.h.b16 %v6515
        %v6559 = vunpack.c.l.b16 %v6516
        %v6560 = vunpack.c.h.b16 %v6516
        %v6561 = vunpack.c.l.b16 %v6517
        %v6562 = vunpack.c.h.b16 %v6517
        %v6563 = vunpack.c.l.b16 %v6518
        %v6564 = vunpack.c.h.b16 %v6518
        %v6565 = vunpack.c.l.b16 %v6519
        %v6566 = vunpack.c.h.b16 %v6519
        %v6567 = vunpack.c.l.b16 %v6520
        %v6568 = vunpack.c.h.b16 %v6520
        %v6569 = vpack.c.b16 %v6537, %v6537
        %v6570 = vpack.c.b16 %v6538, %v6538
        %v6571 = vpack.c.b16 %v6539, %v6539
        %v6572 = vpack.c.b16 %v6540, %v6540
        %v6573 = vpack.c.b16 %v6541, %v6541
        %v6574 = vpack.c.b16 %v6542, %v6542
        %v6575 = vpack.c.b16 %v6543, %v6543
        %v6576 = vpack.c.b16 %v6544, %v6544
        %v6577 = vpack.c.b16 %v6545, %v6545
        %v6578 = vpack.c.b16 %v6546, %v6546
        %v6579 = vpack.c.b16 %v6547, %v6547
        %v6580 = vpack.c.b16 %v6548, %v6548
        %v6581 = vpack.c.b16 %v6549, %v6549
        %v6582 = vpack.c.b16 %v6550, %v6550
        %v6583 = vpack.c.b16 %v6551, %v6551
        %v6584 = vpack.c.b16 %v6552, %v6552
        %v6585 = vpack.c.b16 %v6553, %v6553
        %v6586 = vpack.c.b16 %v6554, %v6554
        %v6587 = vpack.c.b16 %v6555, %v6555
        %v6588 = vpack.c.b16 %v6556, %v6556
        %v6589 = vpack.c.b16 %v6557, %v6557
        %v6590 = vpack.c.b16 %v6558, %v6558
        %v6591 = vpack.c.b16 %v6559, %v6559
        %v6592 = vpack.c.b16 %v6560, %v6560
        %v6593 = vpack.c.b16 %v6561, %v6561
        %v6594 = vpack.c.b16 %v6562, %v6562
        %v6595 = vpack.c.b16 %v6563, %v6563
        %v6596 = vpack.c.b16 %v6564, %v6564
        %v6597 = vpack.c.b16 %v6565, %v6565
        %v6598 = vpack.c.b16 %v6566, %v6566
        %v6599 = vpack.c.b16 %v6567, %v6567
        %v6600 = vpack.c.b16 %v6568, %v6568
        %vm6633 = vcmask 519168
        %6634 = vst.msk [vmem:[%s361] sm:$0xf] %vm6633, %v6569
        %6635 = vst.msk [vmem:[%s361 + $0x4] sm:$0xf] %vm6633, %v6570
        %6636 = vst.msk [vmem:[%s361 + $0x8] sm:$0xf] %vm6633, %v6571
        %6637 = vst.msk [vmem:[%s361 + $0xc] sm:$0xf] %vm6633, %v6572
        %6638 = vst.msk [vmem:[%s361 + $0x10] sm:$0xf] %vm6633, %v6573
        %6639 = vst.msk [vmem:[%s361 + $0x14] sm:$0xf] %vm6633, %v6574
        %6640 = vst.msk [vmem:[%s361 + $0x18] sm:$0xf] %vm6633, %v6575
        %6641 = vst.msk [vmem:[%s361 + $0x1c] sm:$0xf] %vm6633, %v6576
        %6642 = vst.msk [vmem:[%s361 + $0x20] sm:$0xf] %vm6633, %v6577
        %6643 = vst.msk [vmem:[%s361 + $0x24] sm:$0xf] %vm6633, %v6578
        %6644 = vst.msk [vmem:[%s361 + $0x28] sm:$0xf] %vm6633, %v6579
        %6645 = vst.msk [vmem:[%s361 + $0x2c] sm:$0xf] %vm6633, %v6580
        %6646 = vst.msk [vmem:[%s361 + $0x30] sm:$0xf] %vm6633, %v6581
        %6647 = vst.msk [vmem:[%s361 + $0x34] sm:$0xf] %vm6633, %v6582
        %6648 = vst.msk [vmem:[%s361 + $0x38] sm:$0xf] %vm6633, %v6583
        %6649 = vst.msk [vmem:[%s361 + $0x3c] sm:$0xf] %vm6633, %v6584
        %6650 = vst.msk [vmem:[%s361 + $0x40] sm:$0xf] %vm6633, %v6585
        %6651 = vst.msk [vmem:[%s361 + $0x44] sm:$0xf] %vm6633, %v6586
        %6652 = vst.msk [vmem:[%s361 + $0x48] sm:$0xf] %vm6633, %v6587
        %6653 = vst.msk [vmem:[%s361 + $0x4c] sm:$0xf] %vm6633, %v6588
        %6654 = vst.msk [vmem:[%s361 + $0x50] sm:$0xf] %vm6633, %v6589
        %6655 = vst.msk [vmem:[%s361 + $0x54] sm:$0xf] %vm6633, %v6590
        %6656 = vst.msk [vmem:[%s361 + $0x58] sm:$0xf] %vm6633, %v6591
        %6657 = vst.msk [vmem:[%s361 + $0x5c] sm:$0xf] %vm6633, %v6592
        %6658 = vst.msk [vmem:[%s361 + $0x60] sm:$0xf] %vm6633, %v6593
        %6659 = vst.msk [vmem:[%s361 + $0x64] sm:$0xf] %vm6633, %v6594
        %6660 = vst.msk [vmem:[%s361 + $0x68] sm:$0xf] %vm6633, %v6595
        %6661 = vst.msk [vmem:[%s361 + $0x6c] sm:$0xf] %vm6633, %v6596
        %6662 = vst.msk [vmem:[%s361 + $0x70] sm:$0xf] %vm6633, %v6597
        %6663 = vst.msk [vmem:[%s361 + $0x74] sm:$0xf] %vm6633, %v6598
        %6664 = vst.msk [vmem:[%s361 + $0x78] sm:$0xf] %vm6633, %v6599
        %6665 = vst.msk [vmem:[%s361 + $0x7c] sm:$0xf] %vm6633, %v6600
        %s6666 = sand.u32 %s205, 1
        %s6667 = scalar_lea.sflag [#allocation5], %s6666
        %s6668 = sand.u32 %s205, 1
        %s6669 = smul.addr %s6668, 128
        %s6670 = scalar_lea.vmem [#allocation4], %s6669
        // Predicated region
        $region61: #{tpu_custom_call.1} parent=43 // pred_check
          %p6671 = pneg %p215
        $region62: #{tpu_custom_call.1} parent=43 // pred_check_branch
          %6673 = sbr.rel (%p6671) target = $region64
        $region63: #{tpu_custom_call.1} parent=43 // pred_region
          %s6674 = smul.u32 16, %s25
          %s6676 = ssub.s32 2048, 2048
          %6677 = vsyncadd %s6667, %s6676
          %s6678 = smul.addr %s6674, 2
          %s6679 = smul.addr %s24, 32
          %s6680 = sadd.s32 %s6678, %s6679
          %s6681 = smul.addr %s6680, 64
          %s6682 = scalar_lea.hbm %s6, %s6681
          %s6683 = sshll.u32 %s6670, 4
          %s6684 = int_to_ptr.vmem [resolvable:$true] %s6683
          %6689 = dma.vmem_to_hbm [thread:$0]  %s6684, 2048, %s6682, %s6667, 64, 64, 4
        $region64: #{tpu_custom_call.1} parent=43 // pred_fallthru
          _
      $region44: #{tpu_custom_call.1} parent=5 // pred_fallthru
        _
      %p6690 = scmp.le.s32.totalorder 2, %s15
      // Predicated region
      $region65: #{tpu_custom_call.1} parent=5 // pred_check
        %p6691 = pneg %p6690
      $region66: #{tpu_custom_call.1} parent=5 // pred_check_branch
        %6693 = sbr.rel (%p6691) target = $region68
      $region67: #{tpu_custom_call.1} parent=5 // pred_region
        %s6694 = ssub.s32 %s15, 2
        // Predicated region
        $region69: #{tpu_custom_call.1} parent=67 // pred_check
          %p6695 = pneg %p221
        $region70: #{tpu_custom_call.1} parent=67 // pred_check_branch
          %6697 = sbr.rel (%p6695) target = $region72
        $region71: #{tpu_custom_call.1} parent=67 // pred_region
          %s6698 = sand.u32 %s206, 1
          %s6699 = scalar_lea.sflag [#allocation5], %s6698
          %s6700 = sand.u32 %s206, 1
          %s6701 = smul.addr %s6700, 128
          %s6702 = scalar_lea.vmem [#allocation4], %s6701
          %6703 = dma.done %s6699, 2048
        $region72: #{tpu_custom_call.1} parent=67 // pred_fallthru
          _
      $region68: #{tpu_custom_call.1} parent=5 // pred_fallthru
        _
    $region6: #{tpu_custom_call.1} parent=1 // loop_footer
      %s19 = sadd.s32 1, %s15
    $region7: #{tpu_custom_call.1} parent=1 // loop_footer_branch
      %14 = sbr.rel target = $region3
    $region8: #{tpu_custom_call.1} parent=1 // loop_exit
      _
    %6704 = vsyncpa [#allocation5], 1
    %s6705 = scalar_lea.sflag [#allocation5], 1
    %6706 = vsyncpa %s6705, 1

</llo_original>
